<compile_context>
chip_gen: v6e
topology: v6e:2x2x1
jax: 0.10.0
libtpu: 0.0.40
codegen_flags: <defaults>
</compile_context>

<pallas_src>
import jax
import jax.numpy as jnp
from jax.experimental import pallas as pl
from jax.experimental.pallas import tpu as pltpu


# ---------------------------------------------------------------------------
# AttnBlock: flash-style attention kernel
# ---------------------------------------------------------------------------
def _attn_flash_kernel(
    xq_ref,    # (1, tq, C)  input tokens for this query tile (also the residual)
    xkv_ref,   # (1, tk, C)  input tokens for this kv tile
    ns_ref,    # (1, 1, C)   per-(batch, channel) GroupNorm scale  (rstd * gamma)
    nb_ref,    # (1, 1, C)   per-(batch, channel) GroupNorm shift  (beta - mean*rstd*gamma)
    wq_ref,    # (C, C)   bf16, 1/sqrt(C) pre-folded
    bq_ref,    # (1, C)   f32,  1/sqrt(C) pre-folded
    wkv_ref,   # (C, 2C)  bf16, fused [Wk | Wv]
    bkv_ref,   # (1, 2C)  f32
    wp_ref,    # (C, C)   bf16, output projection
    bp_ref,    # (1, C)   f32
    o_ref,     # (1, tq, C)
    q_scr,     # VMEM (tq, C)  bf16   query tile (computed once per q tile)
    m_scr,     # VMEM (tq, 1)  f32    running max
    l_scr,     # VMEM (tq, 1)  f32    running sum
    acc_scr,   # VMEM (tq, C)  f32    running output accumulator
):
    ki = pl.program_id(2)
    c = xq_ref.shape[-1]

    @pl.when(ki == 0)
    def _init():
        # GroupNorm(num_groups=C): stats precomputed outside the flash loop and folded
        # with the affine params -> a single FMA per element here.
        xq = xq_ref[0].astype(jnp.float32)                      # (tq, C)
        hq = xq * ns_ref[0] + nb_ref[0]
        # q projection; the 1/sqrt(C) attention scale is already folded into wq/bq.
        q = jnp.dot(hq.astype(jnp.bfloat16), wq_ref[...],
                    preferred_element_type=jnp.float32) + bq_ref[...]
        q_scr[...] = q.astype(jnp.bfloat16)
        m_scr[...] = jnp.full(m_scr.shape, -jnp.inf, jnp.float32)
        l_scr[...] = jnp.zeros(l_scr.shape, jnp.float32)
        acc_scr[...] = jnp.zeros(acc_scr.shape, jnp.float32)

    # --- kv tile: normalize + fused K/V projection (one MXU matmul) ---
    xkv = xkv_ref[0].astype(jnp.float32)                        # (tk, C)
    hkv = (xkv * ns_ref[0] + nb_ref[0]).astype(jnp.bfloat16)
    kv = jnp.dot(hkv, wkv_ref[...],
                 preferred_element_type=jnp.float32) + bkv_ref[...]   # (tk, 2C)
    k = kv[:, :c].astype(jnp.bfloat16)
    v = kv[:, c:].astype(jnp.bfloat16)

    # scores = q @ k^T via contraction of the channel axis of both (no explicit k.T).
    s = jax.lax.dot_general(
        q_scr[...], k,
        dimension_numbers=(((1,), (1,)), ((), ())),
        preferred_element_type=jnp.float32)                     # (tq, tk)

    # online softmax update (f32 statistics)
    m_prev = m_scr[...]
    m_new = jnp.maximum(m_prev, jnp.max(s, axis=-1, keepdims=True))
    alpha = jnp.exp(m_prev - m_new)
    p = jnp.exp(s - m_new)
    l_scr[...] = alpha * l_scr[...] + jnp.sum(p, axis=-1, keepdims=True)
    acc_scr[...] = alpha * acc_scr[...] + jnp.dot(
        p.astype(jnp.bfloat16), v, preferred_element_type=jnp.float32)
    m_scr[...] = m_new

    @pl.when(ki == pl.num_programs(2) - 1)
    def _finalize():
        ctx = acc_scr[...] * pl.reciprocal(l_scr[...], approx=True)   # (tq, C)
        out = jnp.dot(ctx.astype(jnp.bfloat16), wp_ref[...],
                      preferred_element_type=jnp.float32) + bp_ref[...]
        o_ref[0] = (xq_ref[0].astype(jnp.float32) + out).astype(o_ref.dtype)


def _pick_tile(hw, target):
    """Largest multiple of 8 that divides hw and is <= target (else full hw)."""
    if hw <= target:
        return hw
    for t in range(target - target % 8, 7, -8):
        if hw % t == 0:
            return t
    return hw


def attn_block_pallas(x_nchw, p, *, q_tile=256, kv_tile=512):
    """AttnBlock forward. x_nchw: (B, C, H, W) f32 -> (B, C, H, W) f32."""
    B, C, H, W = x_nchw.shape
    HW = H * W
    x_tok = jnp.transpose(x_nchw, (0, 2, 3, 1)).reshape(B, HW, C).astype(jnp.float32)

    # GroupNorm(num_groups=C) statistics: cheap per-(b, c) reduce done once outside the
    # flash loop, folded with gamma/beta into a single per-channel scale/shift.
    eps = 1e-5
    mean = jnp.mean(x_tok, axis=1)                                   # (B, C)
    var = jnp.mean(jnp.square(x_tok - mean[:, None, :]), axis=1)     # (B, C)
    rstd = jax.lax.rsqrt(var + eps)
    gamma = p["gn_gamma"].reshape(1, C).astype(jnp.float32)
    beta = p["gn_beta"].reshape(1, C).astype(jnp.float32)
    n_scale = (rstd * gamma).reshape(B, 1, C)
    n_shift = (beta - mean * rstd * gamma).reshape(B, 1, C)

    # Fold the 1/sqrt(C) attention scale into the q projection; fuse K and V
    # projections into one (C, 2C) matmul; bf16 weights feed the MXU directly.
    scale = float(C) ** -0.5
    wq = (p["wq"].astype(jnp.float32) * scale).astype(jnp.bfloat16)
    bq = (p["bq"].astype(jnp.float32) * scale).reshape(1, C)
    wkv = jnp.concatenate([p["wk"], p["wv"]], axis=1).astype(jnp.bfloat16)
    bkv = jnp.concatenate([p["bk"], p["bv"]], axis=0).reshape(1, 2 * C).astype(jnp.float32)
    wp = p["wp"].astype(jnp.bfloat16)
    bp = p["bp"].reshape(1, C).astype(jnp.float32)

    tq = _pick_tile(HW, q_tile)
    tk = _pick_tile(HW, kv_tile)
    n_q = HW // tq
    n_kv = HW // tk

    out_tok = pl.pallas_call(
        _attn_flash_kernel,
        out_shape=jax.ShapeDtypeStruct((B, HW, C), jnp.float32),
        grid_spec=pltpu.PrefetchScalarGridSpec(
            num_scalar_prefetch=0,
            grid=(B, n_q, n_kv),
            in_specs=[
                pl.BlockSpec((1, tq, C), lambda b, qi, ki: (b, qi, 0)),   # x (q tile / residual)
                pl.BlockSpec((1, tk, C), lambda b, qi, ki: (b, ki, 0)),   # x (kv tile)
                pl.BlockSpec((1, 1, C), lambda b, qi, ki: (b, 0, 0)),     # norm scale
                pl.BlockSpec((1, 1, C), lambda b, qi, ki: (b, 0, 0)),     # norm shift
                pl.BlockSpec((C, C), lambda b, qi, ki: (0, 0)),           # wq
                pl.BlockSpec((1, C), lambda b, qi, ki: (0, 0)),           # bq
                pl.BlockSpec((C, 2 * C), lambda b, qi, ki: (0, 0)),       # wkv
                pl.BlockSpec((1, 2 * C), lambda b, qi, ki: (0, 0)),       # bkv
                pl.BlockSpec((C, C), lambda b, qi, ki: (0, 0)),           # wp
                pl.BlockSpec((1, C), lambda b, qi, ki: (0, 0)),           # bp
            ],
            out_specs=pl.BlockSpec((1, tq, C), lambda b, qi, ki: (b, qi, 0)),
            scratch_shapes=[
                pltpu.VMEM((tq, C), jnp.bfloat16),   # q tile
                pltpu.VMEM((tq, 1), jnp.float32),    # running max
                pltpu.VMEM((tq, 1), jnp.float32),    # running sum
                pltpu.VMEM((tq, C), jnp.float32),    # output accumulator
            ],
        ),
        compiler_params=pltpu.CompilerParams(
            dimension_semantics=("parallel", "parallel", "arbitrary"),
            vmem_limit_bytes=48 * 1024 * 1024,
        ),
    )(x_tok, x_tok, n_scale, n_shift, wq, bq, wkv, bkv, wp, bp)

    return jnp.transpose(out_tok.reshape(B, H, W, C), (0, 3, 1, 2))


# ---------------------------------------------------------------------------
# Fused MLP head (linear2 -> relu -> linear3 -> relu -> linear4)
# ---------------------------------------------------------------------------
def _mlp_head_kernel(x_ref, w2_ref, b2_ref, w3_ref, b3_ref, w4_ref, b4_ref, o_ref):
    h = jnp.dot(x_ref[...], w2_ref[...], preferred_element_type=jnp.float32) + b2_ref[...]
    h = jnp.maximum(h, 0.0)
    h = jnp.dot(h, w3_ref[...], preferred_element_type=jnp.float32) + b3_ref[...]
    h = jnp.maximum(h, 0.0)
    o_ref[...] = jnp.dot(h, w4_ref[...], preferred_element_type=jnp.float32) + b4_ref[...]


def _mlp_head_pallas(x_flat, p):
    B = x_flat.shape[0]
    return pl.pallas_call(
        _mlp_head_kernel,
        out_shape=jax.ShapeDtypeStruct((B, 1), jnp.float32),
    )(x_flat.astype(jnp.float32),
      p["w2"], p["b2"].reshape(1, -1),
      p["w3"], p["b3"].reshape(1, -1),
      p["w4"], p["b4"].reshape(1, -1))


# ---------------------------------------------------------------------------
# Full ATTENTION forward
# ---------------------------------------------------------------------------
def _conv2d_3x3(x, w, b):
    # TODO(synk): 3x3 convs (ch / ch2) use XLA's conv_general_dilated; an im2col+matmul
    # Pallas kernel is possible but not a clean win at these shapes.
    out = jax.lax.conv_general_dilated(
        x, w, window_strides=(1, 1), padding=((1, 1), (1, 1)),
        dimension_numbers=("NCHW", "OIHW", "NCHW"))
    return out + b.reshape(1, -1, 1, 1)


@jax.jit
def attention_forward_pallas(x, params):
    """Forward of the PyTorch ATTENTION module. x: (B, S) or (B, S, 1)."""
    if x.ndim == 2:
        x = x[..., None]                                     # unsqueeze(-1)
    h = jnp.dot(x, params["w1"]) + params["b1"]              # linear1 -> (B, S, 64)
    h = h[:, None, :, :]                                     # (B, 1, S, 64)
    h = _conv2d_3x3(h, params["ch_w"], params["ch_b"])       # (B, 64, S, 64)
    h = attn_block_pallas(h, params["attn"])                 # Pallas flash-attention kernel
    h = _conv2d_3x3(h, params["ch2_w"], params["ch2_b"])     # (B, 8, S, 64)
    h = h.reshape(h.shape[0], -1)                            # (B, 8*S*64)
    out = _mlp_head_pallas(h, params)                        # Pallas fused MLP head, (B, 1)
    return out.reshape(-1)                                   # .squeeze()


# ---------------------------------------------------------------------------
# Reference (pure JAX, f32) mirroring the PyTorch forward exactly
# ---------------------------------------------------------------------------
def _attn_block_reference(x, p):
    B, C, H, W = x.shape
    eps = 1e-5
    mean = jnp.mean(x, axis=(2, 3), keepdims=True)
    var = jnp.mean(jnp.square(x - mean), axis=(2, 3), keepdims=True)
    h = (x - mean) * jax.lax.rsqrt(var + eps)
    h = h * p["gn_gamma"].reshape(1, C, 1, 1) + p["gn_beta"].reshape(1, C, 1, 1)
    ht = jnp.transpose(h, (0, 2, 3, 1)).reshape(B, H * W, C)
    q = ht @ p["wq"] + p["bq"]
    k = ht @ p["wk"] + p["bk"]
    v = ht @ p["wv"] + p["bv"]
    w = jnp.einsum("bnc,bmc->bnm", q, k) * (int(C) ** (-0.5))
    w = jax.nn.softmax(w, axis=-1)
    o = jnp.einsum("bnm,bmc->bnc", w, v)
    o = o @ p["wp"] + p["bp"]
    o = jnp.transpose(o.reshape(B, H, W, C), (0, 3, 1, 2))
    return x + o


def attention_forward_reference(x, params):
    if x.ndim == 2:
        x = x[..., None]
    h = jnp.dot(x, params["w1"]) + params["b1"]
    h = h[:, None, :, :]
    h = _conv2d_3x3(h, params["ch_w"], params["ch_b"])
    h = _attn_block_reference(h, params["attn"])
    h = _conv2d_3x3(h, params["ch2_w"], params["ch2_b"])
    h = h.reshape(h.shape[0], -1)
    h = jax.nn.relu(h @ params["w2"] + params["b2"])
    h = jax.nn.relu(h @ params["w3"] + params["b3"])
    out = h @ params["w4"] + params["b4"]
    return out.reshape(-1)


# ---------------------------------------------------------------------------
# Parameter init (PyTorch-style uniform(-1/sqrt(fan_in), 1/sqrt(fan_in)))
# ---------------------------------------------------------------------------
def init_params(key):
    C = 64
    ks = jax.random.split(key, 10)

    def linear(k, fan_in, fan_out):
        kw, kb = jax.random.split(k)
        bound = fan_in ** -0.5
        w = jax.random.uniform(kw, (fan_in, fan_out), jnp.float32, -bound, bound)
        b = jax.random.uniform(kb, (fan_out,), jnp.float32, -bound, bound)
        return w, b

    def conv(k, cin, cout, ksz):
        kw, kb = jax.random.split(k)
        bound = (cin * ksz * ksz) ** -0.5
        w = jax.random.uniform(kw, (cout, cin, ksz, ksz), jnp.float32, -bound, bound)
        b = jax.random.uniform(kb, (cout,), jnp.float32, -bound, bound)
        return w, b

    w1, b1 = linear(ks[0], 1, 64)
    ch_w, ch_b = conv(ks[1], 1, 64, 3)
    # AttnBlock 1x1 convs stored matmul-ready as (C_in, C_out)
    wq, bq = linear(ks[2], C, C)
    wk, bk = linear(ks[3], C, C)
    wv, bv = linear(ks[4], C, C)
    wpj, bpj = linear(ks[5], C, C)
    ch2_w, ch2_b = conv(ks[6], 64, 8, 3)
    w2, b2 = linear(ks[7], 8 * 3 * 64, 4 * 3 * 64)
    w3, b3 = linear(ks[8], 4 * 3 * 64, 64)
    w4, b4 = linear(ks[9], 64, 1)

    return {
        "w1": w1, "b1": b1,
        "ch_w": ch_w, "ch_b": ch_b,
        "attn": {
            "gn_gamma": jnp.ones((C,), jnp.float32),
            "gn_beta": jnp.zeros((C,), jnp.float32),
            "wq": wq, "bq": bq, "wk": wk, "bk": bk,
            "wv": wv, "bv": bv, "wp": wpj, "bp": bpj,
        },
        "ch2_w": ch2_w, "ch2_b": ch2_b,
        "w2": w2, "b2": b2, "w3": w3, "b3": b3, "w4": w4, "b4": b4,
    }


if __name__ == "__main__":
    key = jax.random.PRNGKey(0)
    kx, kp = jax.random.split(key)

    B, S = 2, 3   # linear2's input dim (8*3*64) implies sequence length 3
    x = jax.random.normal(kx, (B, S), jnp.float32)
    params = init_params(kp)

    out = jax.block_until_ready(attention_forward_pallas(x, params))
    ref = attention_forward_reference(x, params)
    assert out.shape == (B,), out.shape
    err = float(jnp.max(jnp.abs(out - ref)))
    # bf16 MXU operands (f32 accumulation) in the attention kernel -> loosened tolerance.
    assert err < 5e-2, err

    # Also check the attention-block kernel in isolation against the f32 reference.
    h0 = jnp.dot(x[..., None], params["w1"]) + params["b1"]
    h0 = _conv2d_3x3(h0[:, None, :, :], params["ch_w"], params["ch_b"])
    attn_out = jax.block_until_ready(attn_block_pallas(h0, params["attn"]))
    attn_ref = _attn_block_reference(h0, params["attn"])
    attn_err = float(jnp.max(jnp.abs(attn_out - attn_ref)))
    assert attn_err < 5e-2, attn_err

    print("KERNEL_OK")
</pallas_src>

<mosaic_0001>
module attributes {stable_mosaic.version = 11 : i64} {
  func.func @_attn_flash_kernel(%arg0: i32, %arg1: i32, %arg2: i32, %arg3: memref<1x192x64xf32, #tpu.memory_space<vmem>>, %arg4: memref<1x192x64xf32, #tpu.memory_space<vmem>>, %arg5: memref<1x1x64xf32, #tpu.memory_space<vmem>>, %arg6: memref<1x1x64xf32, #tpu.memory_space<vmem>>, %arg7: memref<64x64xbf16, #tpu.memory_space<vmem>>, %arg8: memref<1x64xf32, #tpu.memory_space<vmem>>, %arg9: memref<64x128xbf16, #tpu.memory_space<vmem>>, %arg10: memref<1x128xf32, #tpu.memory_space<vmem>>, %arg11: memref<64x64xbf16, #tpu.memory_space<vmem>>, %arg12: memref<1x64xf32, #tpu.memory_space<vmem>>, %arg13: memref<1x192x64xf32, #tpu.memory_space<vmem>>, %arg14: memref<192x64xbf16, #tpu.memory_space<vmem>>, %arg15: memref<192x1xf32, #tpu.memory_space<vmem>>, %arg16: memref<192x1xf32, #tpu.memory_space<vmem>>, %arg17: memref<192x64xf32, #tpu.memory_space<vmem>>) attributes {dimension_semantics = [#tpu.dimension_semantics<parallel>, #tpu.dimension_semantics<parallel>, #tpu.dimension_semantics<arbitrary>], iteration_bounds = array<i64: 2, 1, 1>, scalar_prefetch = 0 : i64, scratch_operands = 4 : i64, tpu.core_type = #tpu.core_type<tc>, window_params = [{transform_indices = @transform_0, window_bounds = array<i64: 1, 192, 64>}, {transform_indices = @transform_1, window_bounds = array<i64: 1, 192, 64>}, {transform_indices = @transform_2, window_bounds = array<i64: 1, 1, 64>}, {transform_indices = @transform_3, window_bounds = array<i64: 1, 1, 64>}, {pipeline_mode = #tpu.pipeline_mode<synchronous>, transform_indices = @transform_4, window_bounds = array<i64: 64, 64>}, {pipeline_mode = #tpu.pipeline_mode<synchronous>, transform_indices = @transform_5, window_bounds = array<i64: 1, 64>}, {pipeline_mode = #tpu.pipeline_mode<synchronous>, transform_indices = @transform_6, window_bounds = array<i64: 64, 128>}, {pipeline_mode = #tpu.pipeline_mode<synchronous>, transform_indices = @transform_7, window_bounds = array<i64: 1, 128>}, {pipeline_mode = #tpu.pipeline_mode<synchronous>, transform_indices = @transform_8, window_bounds = array<i64: 64, 64>}, {pipeline_mode = #tpu.pipeline_mode<synchronous>, transform_indices = @transform_9, window_bounds = array<i64: 1, 64>}, {transform_indices = @transform_10, window_bounds = array<i64: 1, 192, 64>}]} {
    %c0_i32 = arith.constant 0 : i32
    %0 = arith.cmpi eq, %arg2, %c0_i32 : i32
    %1 = arith.extui %0 : i1 to i32
    %c0_i32_0 = arith.constant 0 : i32
    %2 = arith.cmpi ne, %1, %c0_i32_0 : i32
    scf.if %2 {
      %c0_33 = arith.constant 0 : index
      %c0_34 = arith.constant 0 : index
      %c0_35 = arith.constant 0 : index
      %51 = vector.load %arg3[%c0_33, %c0_34, %c0_35] : memref<1x192x64xf32, #tpu.memory_space<vmem>>, vector<1x192x64xf32>
      %52 = vector.shape_cast %51 : vector<1x192x64xf32> to vector<192x64xf32>
      %c0_36 = arith.constant 0 : index
      %c0_37 = arith.constant 0 : index
      %c0_38 = arith.constant 0 : index
      %53 = vector.load %arg5[%c0_36, %c0_37, %c0_38] : memref<1x1x64xf32, #tpu.memory_space<vmem>>, vector<1x1x64xf32>
      %54 = vector.shape_cast %53 : vector<1x1x64xf32> to vector<1x64xf32>
      %55 = vector.broadcast %54 : vector<1x64xf32> to vector<192x64xf32>
      %56 = arith.mulf %52, %55 : vector<192x64xf32>
      %c0_39 = arith.constant 0 : index
      %c0_40 = arith.constant 0 : index
      %c0_41 = arith.constant 0 : index
      %57 = vector.load %arg6[%c0_39, %c0_40, %c0_41] : memref<1x1x64xf32, #tpu.memory_space<vmem>>, vector<1x1x64xf32>
      %58 = vector.shape_cast %57 : vector<1x1x64xf32> to vector<1x64xf32>
      %59 = vector.broadcast %58 : vector<1x64xf32> to vector<192x64xf32>
      %60 = arith.addf %56, %59 : vector<192x64xf32>
      %61 = arith.truncf %60 : vector<192x64xf32> to vector<192x64xbf16>
      %c0_42 = arith.constant 0 : index
      %c0_43 = arith.constant 0 : index
      %62 = vector.load %arg7[%c0_42, %c0_43] : memref<64x64xbf16, #tpu.memory_space<vmem>>, vector<64x64xbf16>
      %cst_44 = arith.constant dense<0.000000e+00> : vector<192x64xf32>
      %63 = tpu.matmul %61, %62, %cst_44 {dimension_numbers = #tpu.dot_dimension_numbers<[1], [0], [0], [1], [0, 0, 1, 1], [], []>} : vector<192x64xbf16>, vector<64x64xbf16>, vector<192x64xf32> -> vector<192x64xf32>
      %c0_45 = arith.constant 0 : index
      %c0_46 = arith.constant 0 : index
      %64 = vector.load %arg8[%c0_45, %c0_46] : memref<1x64xf32, #tpu.memory_space<vmem>>, vector<1x64xf32>
      %65 = vector.broadcast %64 : vector<1x64xf32> to vector<192x64xf32>
      %66 = arith.addf %63, %65 : vector<192x64xf32>
      %67 = arith.truncf %66 : vector<192x64xf32> to vector<192x64xbf16>
      %c0_47 = arith.constant 0 : index
      %c0_48 = arith.constant 0 : index
      %68 = vector.load %arg14[%c0_47, %c0_48] : memref<192x64xbf16, #tpu.memory_space<vmem>>, vector<192x64xbf16>
      tpu.vector_store %arg14[%c0_47, %c0_48], %67 {strides = array<i32>} : memref<192x64xbf16, #tpu.memory_space<vmem>>, vector<192x64xbf16>,
      %cst_49 = arith.constant 0xFF800000 : f32
      %69 = vector.broadcast %cst_49 : f32 to vector<192x1xf32>
      %c0_50 = arith.constant 0 : index
      %c0_51 = arith.constant 0 : index
      %70 = vector.load %arg15[%c0_50, %c0_51] : memref<192x1xf32, #tpu.memory_space<vmem>>, vector<192x1xf32>
      tpu.vector_store %arg15[%c0_50, %c0_51], %69 {strides = array<i32>} : memref<192x1xf32, #tpu.memory_space<vmem>>, vector<192x1xf32>,
      %cst_52 = arith.constant 0.000000e+00 : f32
      %71 = vector.broadcast %cst_52 : f32 to vector<192x1xf32>
      %c0_53 = arith.constant 0 : index
      %c0_54 = arith.constant 0 : index
      %72 = vector.load %arg16[%c0_53, %c0_54] : memref<192x1xf32, #tpu.memory_space<vmem>>, vector<192x1xf32>
      tpu.vector_store %arg16[%c0_53, %c0_54], %71 {strides = array<i32>} : memref<192x1xf32, #tpu.memory_space<vmem>>, vector<192x1xf32>,
      %cst_55 = arith.constant 0.000000e+00 : f32
      %73 = vector.broadcast %cst_55 : f32 to vector<192x64xf32>
      %c0_56 = arith.constant 0 : index
      %c0_57 = arith.constant 0 : index
      %74 = vector.load %arg17[%c0_56, %c0_57] : memref<192x64xf32, #tpu.memory_space<vmem>>, vector<192x64xf32>
      tpu.vector_store %arg17[%c0_56, %c0_57], %73 {strides = array<i32>} : memref<192x64xf32, #tpu.memory_space<vmem>>, vector<192x64xf32>,
    } else {
    }
    %c0 = arith.constant 0 : index
    %c0_1 = arith.constant 0 : index
    %c0_2 = arith.constant 0 : index
    %3 = vector.load %arg4[%c0, %c0_1, %c0_2] : memref<1x192x64xf32, #tpu.memory_space<vmem>>, vector<1x192x64xf32>
    %4 = vector.shape_cast %3 : vector<1x192x64xf32> to vector<192x64xf32>
    %c0_3 = arith.constant 0 : index
    %c0_4 = arith.constant 0 : index
    %c0_5 = arith.constant 0 : index
    %5 = vector.load %arg5[%c0_3, %c0_4, %c0_5] : memref<1x1x64xf32, #tpu.memory_space<vmem>>, vector<1x1x64xf32>
    %6 = vector.shape_cast %5 : vector<1x1x64xf32> to vector<1x64xf32>
    %7 = vector.broadcast %6 : vector<1x64xf32> to vector<192x64xf32>
    %8 = arith.mulf %4, %7 : vector<192x64xf32>
    %c0_6 = arith.constant 0 : index
    %c0_7 = arith.constant 0 : index
    %c0_8 = arith.constant 0 : index
    %9 = vector.load %arg6[%c0_6, %c0_7, %c0_8] : memref<1x1x64xf32, #tpu.memory_space<vmem>>, vector<1x1x64xf32>
    %10 = vector.shape_cast %9 : vector<1x1x64xf32> to vector<1x64xf32>
    %11 = vector.broadcast %10 : vector<1x64xf32> to vector<192x64xf32>
    %12 = arith.addf %8, %11 : vector<192x64xf32>
    %13 = arith.truncf %12 : vector<192x64xf32> to vector<192x64xbf16>
    %c0_9 = arith.constant 0 : index
    %c0_10 = arith.constant 0 : index
    %14 = vector.load %arg9[%c0_9, %c0_10] : memref<64x128xbf16, #tpu.memory_space<vmem>>, vector<64x128xbf16>
    %cst = arith.constant dense<0.000000e+00> : vector<192x128xf32>
    %15 = tpu.matmul %13, %14, %cst {dimension_numbers = #tpu.dot_dimension_numbers<[1], [0], [0], [1], [0, 0, 1, 1], [], []>} : vector<192x64xbf16>, vector<64x128xbf16>, vector<192x128xf32> -> vector<192x128xf32>
    %c0_11 = arith.constant 0 : index
    %c0_12 = arith.constant 0 : index
    %16 = vector.load %arg10[%c0_11, %c0_12] : memref<1x128xf32, #tpu.memory_space<vmem>>, vector<1x128xf32>
    %17 = vector.broadcast %16 : vector<1x128xf32> to vector<192x128xf32>
    %18 = arith.addf %15, %17 : vector<192x128xf32>
    %19 = vector.extract_strided_slice %18 {offsets = [0, 0], sizes = [192, 64], strides = [1, 1]} : vector<192x128xf32> to vector<192x64xf32>
    %20 = arith.truncf %19 : vector<192x64xf32> to vector<192x64xbf16>
    %21 = vector.extract_strided_slice %18 {offsets = [0, 64], sizes = [192, 64], strides = [1, 1]} : vector<192x128xf32> to vector<192x64xf32>
    %22 = arith.truncf %21 : vector<192x64xf32> to vector<192x64xbf16>
    %c0_13 = arith.constant 0 : index
    %c0_14 = arith.constant 0 : index
    %23 = vector.load %arg14[%c0_13, %c0_14] : memref<192x64xbf16, #tpu.memory_space<vmem>>, vector<192x64xbf16>
    %cst_15 = arith.constant dense<0.000000e+00> : vector<192x192xf32>
    %24 = tpu.matmul %23, %20, %cst_15 {dimension_numbers = #tpu.dot_dimension_numbers<[1], [1], [0], [0], [0, 0, 1, 0], [], []>} : vector<192x64xbf16>, vector<192x64xbf16>, vector<192x192xf32> -> vector<192x192xf32>
    %c0_16 = arith.constant 0 : index
    %c0_17 = arith.constant 0 : index
    %25 = vector.load %arg15[%c0_16, %c0_17] : memref<192x1xf32, #tpu.memory_space<vmem>>, vector<192x1xf32>
    %cst_18 = arith.constant dense<0xFF800000> : vector<192xf32>
    %26 = vector.multi_reduction <maximumf>, %24, %cst_18 [1] : vector<192x192xf32> to vector<192xf32>
    %27 = vector.shape_cast %26 : vector<192xf32> to vector<192x1xf32>
    %28 = arith.maximumf %25, %27 : vector<192x1xf32>
    %29 = arith.subf %25, %28 : vector<192x1xf32>
    %30 = math.exp %29 : vector<192x1xf32>
    %31 = vector.broadcast %28 : vector<192x1xf32> to vector<192x192xf32>
    %32 = arith.subf %24, %31 : vector<192x192xf32>
    %33 = math.exp %32 : vector<192x192xf32>
    %c0_19 = arith.constant 0 : index
    %c0_20 = arith.constant 0 : index
    %34 = vector.load %arg16[%c0_19, %c0_20] : memref<192x1xf32, #tpu.memory_space<vmem>>, vector<192x1xf32>
    %35 = arith.mulf %30, %34 : vector<192x1xf32>
    %cst_21 = arith.constant dense<0.000000e+00> : vector<192xf32>
    %36 = vector.multi_reduction <add>, %33, %cst_21 [1] : vector<192x192xf32> to vector<192xf32>
    %37 = vector.shape_cast %36 : vector<192xf32> to vector<192x1xf32>
    %38 = arith.addf %35, %37 : vector<192x1xf32>
    %c0_22 = arith.constant 0 : index
    %c0_23 = arith.constant 0 : index
    %39 = vector.load %arg16[%c0_22, %c0_23] : memref<192x1xf32, #tpu.memory_space<vmem>>, vector<192x1xf32>
    tpu.vector_store %arg16[%c0_22, %c0_23], %38 {strides = array<i32>} : memref<192x1xf32, #tpu.memory_space<vmem>>, vector<192x1xf32>,
    %c0_24 = arith.constant 0 : index
    %c0_25 = arith.constant 0 : index
    %40 = vector.load %arg17[%c0_24, %c0_25] : memref<192x64xf32, #tpu.memory_space<vmem>>, vector<192x64xf32>
    %41 = vector.broadcast %30 : vector<192x1xf32> to vector<192x64xf32>
    %42 = arith.mulf %41, %40 : vector<192x64xf32>
    %43 = arith.truncf %33 : vector<192x192xf32> to vector<192x192xbf16>
    %cst_26 = arith.constant dense<0.000000e+00> : vector<192x64xf32>
    %44 = tpu.matmul %43, %22, %cst_26 {dimension_numbers = #tpu.dot_dimension_numbers<[1], [0], [0], [1], [0, 0, 1, 1], [], []>} : vector<192x192xbf16>, vector<192x64xbf16>, vector<192x64xf32> -> vector<192x64xf32>
    %45 = arith.addf %42, %44 : vector<192x64xf32>
    %c0_27 = arith.constant 0 : index
    %c0_28 = arith.constant 0 : index
    %46 = vector.load %arg17[%c0_27, %c0_28] : memref<192x64xf32, #tpu.memory_space<vmem>>, vector<192x64xf32>
    tpu.vector_store %arg17[%c0_27, %c0_28], %45 {strides = array<i32>} : memref<192x64xf32, #tpu.memory_space<vmem>>, vector<192x64xf32>,
    %c0_29 = arith.constant 0 : index
    %c0_30 = arith.constant 0 : index
    %47 = vector.load %arg15[%c0_29, %c0_30] : memref<192x1xf32, #tpu.memory_space<vmem>>, vector<192x1xf32>
    tpu.vector_store %arg15[%c0_29, %c0_30], %28 {strides = array<i32>} : memref<192x1xf32, #tpu.memory_space<vmem>>, vector<192x1xf32>,
    %c0_i32_31 = arith.constant 0 : i32
    %48 = arith.cmpi eq, %arg2, %c0_i32_31 : i32
    %49 = arith.extui %48 : i1 to i32
    %c0_i32_32 = arith.constant 0 : i32
    %50 = arith.cmpi ne, %49, %c0_i32_32 : i32
    scf.if %50 {
      %c0_33 = arith.constant 0 : index
      %c0_34 = arith.constant 0 : index
      %51 = vector.load %arg17[%c0_33, %c0_34] : memref<192x64xf32, #tpu.memory_space<vmem>>, vector<192x64xf32>
      %c0_35 = arith.constant 0 : index
      %c0_36 = arith.constant 0 : index
      %52 = vector.load %arg16[%c0_35, %c0_36] : memref<192x1xf32, #tpu.memory_space<vmem>>, vector<192x1xf32>
      %53 = tpu.reciprocal %52 {approx = true} : vector<192x1xf32> -> vector<192x1xf32>
      %54 = vector.broadcast %53 : vector<192x1xf32> to vector<192x64xf32>
      %55 = arith.mulf %51, %54 : vector<192x64xf32>
      %56 = arith.truncf %55 : vector<192x64xf32> to vector<192x64xbf16>
      %c0_37 = arith.constant 0 : index
      %c0_38 = arith.constant 0 : index
      %57 = vector.load %arg11[%c0_37, %c0_38] : memref<64x64xbf16, #tpu.memory_space<vmem>>, vector<64x64xbf16>
      %cst_39 = arith.constant dense<0.000000e+00> : vector<192x64xf32>
      %58 = tpu.matmul %56, %57, %cst_39 {dimension_numbers = #tpu.dot_dimension_numbers<[1], [0], [0], [1], [0, 0, 1, 1], [], []>} : vector<192x64xbf16>, vector<64x64xbf16>, vector<192x64xf32> -> vector<192x64xf32>
      %c0_40 = arith.constant 0 : index
      %c0_41 = arith.constant 0 : index
      %59 = vector.load %arg12[%c0_40, %c0_41] : memref<1x64xf32, #tpu.memory_space<vmem>>, vector<1x64xf32>
      %60 = vector.broadcast %59 : vector<1x64xf32> to vector<192x64xf32>
      %61 = arith.addf %58, %60 : vector<192x64xf32>
      %c0_42 = arith.constant 0 : index
      %c0_43 = arith.constant 0 : index
      %c0_44 = arith.constant 0 : index
      %62 = vector.load %arg3[%c0_42, %c0_43, %c0_44] : memref<1x192x64xf32, #tpu.memory_space<vmem>>, vector<1x192x64xf32>
      %63 = vector.shape_cast %62 : vector<1x192x64xf32> to vector<192x64xf32>
      %64 = arith.addf %63, %61 : vector<192x64xf32>
      %c0_45 = arith.constant 0 : index
      %c0_46 = arith.constant 0 : index
      %c0_47 = arith.constant 0 : index
      %65 = vector.load %arg13[%c0_45, %c0_46, %c0_47] : memref<1x192x64xf32, #tpu.memory_space<vmem>>, vector<1x192x64xf32>
      %66 = vector.shape_cast %65 : vector<1x192x64xf32> to vector<192x64xf32>
      %67 = vector.shape_cast %64 : vector<192x64xf32> to vector<1x192x64xf32>
      tpu.vector_store %arg13[%c0_45, %c0_46, %c0_47], %67 {strides = array<i32>} : memref<1x192x64xf32, #tpu.memory_space<vmem>>, vector<1x192x64xf32>,
    } else {
    }
    return
  }
  func.func @transform_0(%arg0: i32, %arg1: i32, %arg2: i32) -> (i32, i32, i32) {
    %c0_i32 = arith.constant 0 : i32
    %c0_i32_0 = arith.constant 0 : i32
    return %arg0, %arg1, %c0_i32 : i32, i32, i32
  }
  func.func @transform_1(%arg0: i32, %arg1: i32, %arg2: i32) -> (i32, i32, i32) {
    %c0_i32 = arith.constant 0 : i32
    %c0_i32_0 = arith.constant 0 : i32
    return %arg0, %arg2, %c0_i32 : i32, i32, i32
  }
  func.func @transform_2(%arg0: i32, %arg1: i32, %arg2: i32) -> (i32, i32, i32) {
    %c0_i32 = arith.constant 0 : i32
    %c0_i32_0 = arith.constant 0 : i32
    %c0_i32_1 = arith.constant 0 : i32
    return %arg0, %c0_i32, %c0_i32_0 : i32, i32, i32
  }
  func.func @transform_3(%arg0: i32, %arg1: i32, %arg2: i32) -> (i32, i32, i32) {
    %c0_i32 = arith.constant 0 : i32
    %c0_i32_0 = arith.constant 0 : i32
    %c0_i32_1 = arith.constant 0 : i32
    return %arg0, %c0_i32, %c0_i32_0 : i32, i32, i32
  }
  func.func @transform_4(%arg0: i32, %arg1: i32, %arg2: i32) -> (i32, i32) {
    %c0_i32 = arith.constant 0 : i32
    %c0_i32_0 = arith.constant 0 : i32
    %c0_i32_1 = arith.constant 0 : i32
    return %c0_i32, %c0_i32_0 : i32, i32
  }
  func.func @transform_5(%arg0: i32, %arg1: i32, %arg2: i32) -> (i32, i32) {
    %c0_i32 = arith.constant 0 : i32
    %c0_i32_0 = arith.constant 0 : i32
    %c0_i32_1 = arith.constant 0 : i32
    return %c0_i32, %c0_i32_0 : i32, i32
  }
  func.func @transform_6(%arg0: i32, %arg1: i32, %arg2: i32) -> (i32, i32) {
    %c0_i32 = arith.constant 0 : i32
    %c0_i32_0 = arith.constant 0 : i32
    %c0_i32_1 = arith.constant 0 : i32
    return %c0_i32, %c0_i32_0 : i32, i32
  }
  func.func @transform_7(%arg0: i32, %arg1: i32, %arg2: i32) -> (i32, i32) {
    %c0_i32 = arith.constant 0 : i32
    %c0_i32_0 = arith.constant 0 : i32
    %c0_i32_1 = arith.constant 0 : i32
    return %c0_i32, %c0_i32_0 : i32, i32
  }
  func.func @transform_8(%arg0: i32, %arg1: i32, %arg2: i32) -> (i32, i32) {
    %c0_i32 = arith.constant 0 : i32
    %c0_i32_0 = arith.constant 0 : i32
    %c0_i32_1 = arith.constant 0 : i32
    return %c0_i32, %c0_i32_0 : i32, i32
  }
  func.func @transform_9(%arg0: i32, %arg1: i32, %arg2: i32) -> (i32, i32) {
    %c0_i32 = arith.constant 0 : i32
    %c0_i32_0 = arith.constant 0 : i32
    %c0_i32_1 = arith.constant 0 : i32
    return %c0_i32, %c0_i32_0 : i32, i32
  }
  func.func @transform_10(%arg0: i32, %arg1: i32, %arg2: i32) -> (i32, i32, i32) {
    %c0_i32 = arith.constant 0 : i32
    %c0_i32_0 = arith.constant 0 : i32
    return %arg0, %arg1, %c0_i32 : i32, i32, i32
  }
}

module attributes {stable_mosaic.version = 11 : i64} {
  func.func @_mlp_head_kernel(%arg0: memref<2x1536xf32, #tpu.memory_space<vmem>>, %arg1: memref<1536x768xf32, #tpu.memory_space<vmem>>, %arg2: memref<1x768xf32, #tpu.memory_space<vmem>>, %arg3: memref<768x64xf32, #tpu.memory_space<vmem>>, %arg4: memref<1x64xf32, #tpu.memory_space<vmem>>, %arg5: memref<64x1xf32, #tpu.memory_space<vmem>>, %arg6: memref<1x1xf32, #tpu.memory_space<vmem>>, %arg7: memref<2x1xf32, #tpu.memory_space<vmem>>) attributes {dimension_semantics = [], scalar_prefetch = 0 : i64, scratch_operands = 0 : i64, tpu.core_type = #tpu.core_type<tc>} {
    %c0 = arith.constant 0 : index
    %c0_0 = arith.constant 0 : index
    %0 = vector.load %arg0[%c0, %c0_0] : memref<2x1536xf32, #tpu.memory_space<vmem>>, vector<2x1536xf32>
    %c0_1 = arith.constant 0 : index
    %c0_2 = arith.constant 0 : index
    %1 = vector.load %arg1[%c0_1, %c0_2] : memref<1536x768xf32, #tpu.memory_space<vmem>>, vector<1536x768xf32>
    %cst = arith.constant dense<0.000000e+00> : vector<2x768xf32>
    %2 = tpu.matmul %0, %1, %cst {dimension_numbers = #tpu.dot_dimension_numbers<[1], [0], [0], [1], [0, 0, 1, 1], [], []>} : vector<2x1536xf32>, vector<1536x768xf32>, vector<2x768xf32> -> vector<2x768xf32>
    %c0_3 = arith.constant 0 : index
    %c0_4 = arith.constant 0 : index
    %3 = vector.load %arg2[%c0_3, %c0_4] : memref<1x768xf32, #tpu.memory_space<vmem>>, vector<1x768xf32>
    %4 = vector.broadcast %3 : vector<1x768xf32> to vector<2x768xf32>
    %5 = arith.addf %2, %4 : vector<2x768xf32>
    %cst_5 = arith.constant 0.000000e+00 : f32
    %6 = vector.broadcast %cst_5 : f32 to vector<2x768xf32>
    %7 = arith.maximumf %5, %6 : vector<2x768xf32>
    %c0_6 = arith.constant 0 : index
    %c0_7 = arith.constant 0 : index
    %8 = vector.load %arg3[%c0_6, %c0_7] : memref<768x64xf32, #tpu.memory_space<vmem>>, vector<768x64xf32>
    %cst_8 = arith.constant dense<0.000000e+00> : vector<2x64xf32>
    %9 = tpu.matmul %7, %8, %cst_8 {dimension_numbers = #tpu.dot_dimension_numbers<[1], [0], [0], [1], [0, 0, 1, 1], [], []>} : vector<2x768xf32>, vector<768x64xf32>, vector<2x64xf32> -> vector<2x64xf32>
    %c0_9 = arith.constant 0 : index
    %c0_10 = arith.constant 0 : index
    %10 = vector.load %arg4[%c0_9, %c0_10] : memref<1x64xf32, #tpu.memory_space<vmem>>, vector<1x64xf32>
    %11 = vector.broadcast %10 : vector<1x64xf32> to vector<2x64xf32>
    %12 = arith.addf %9, %11 : vector<2x64xf32>
    %cst_11 = arith.constant 0.000000e+00 : f32
    %13 = vector.broadcast %cst_11 : f32 to vector<2x64xf32>
    %14 = arith.maximumf %12, %13 : vector<2x64xf32>
    %c0_12 = arith.constant 0 : index
    %c0_13 = arith.constant 0 : index
    %15 = vector.load %arg5[%c0_12, %c0_13] : memref<64x1xf32, #tpu.memory_space<vmem>>, vector<64x1xf32>
    %cst_14 = arith.constant dense<0.000000e+00> : vector<2x1xf32>
    %16 = tpu.matmul %14, %15, %cst_14 {dimension_numbers = #tpu.dot_dimension_numbers<[1], [0], [0], [1], [0, 0, 1, 1], [], []>} : vector<2x64xf32>, vector<64x1xf32>, vector<2x1xf32> -> vector<2x1xf32>
    %c0_15 = arith.constant 0 : index
    %c0_16 = arith.constant 0 : index
    %17 = vector.load %arg6[%c0_15, %c0_16] : memref<1x1xf32, #tpu.memory_space<vmem>>, vector<1x1xf32>
    %18 = vector.broadcast %17 : vector<1x1xf32> to vector<2x1xf32>
    %19 = arith.addf %16, %18 : vector<2x1xf32>
    %c0_17 = arith.constant 0 : index
    %c0_18 = arith.constant 0 : index
    %20 = vector.load %arg7[%c0_17, %c0_18] : memref<2x1xf32, #tpu.memory_space<vmem>>, vector<2x1xf32>
    tpu.vector_store %arg7[%c0_17, %c0_18], %19 {strides = array<i32>} : memref<2x1xf32, #tpu.memory_space<vmem>>, vector<2x1xf32>,
    return
  }
}

</mosaic_0001>

<llo_original>
// kernel: attention_forward_pallas.2
$region0: #{attention_forward_pallas.2}
  #allocation0 [shape = 'u32[]', space=smem, size = 0x4, offset = 0x4, fixed_abs, tag = 'smem constant byte address 0x4 - core index']
  #allocation1 [shape = 'u32[144,128]{1,0:T(1,128)}', space=vmem, size = 0x12000, scoped, tag = 'internal scratch']
  #allocation2 [shape = 'bf16[192,64]{1,0:T(8,128)(2,1)}', space=vmem, size = 0xc000, scoped, tag = 'scratch operand']
  #allocation3 [shape = 'f32[192,1]{1,0:T(8,128)}', space=vmem, size = 0x18000, scoped, tag = 'scratch operand']
  #allocation4 [shape = 'f32[192,1]{1,0:T(8,128)}', space=vmem, size = 0x18000, scoped, tag = 'scratch operand']
  #allocation5 [shape = 'f32[192,64]{1,0:T(8,128)}', space=vmem, size = 0x18000, scoped, tag = 'scratch operand']
  %s0 = inlined_call_operand.vmem [shape: f32[2,192,64], index: 0, kind: input, shape index: {}, may-alias: {0,1}]
  %s1 = inlined_call_operand.vmem [shape: f32[2,192,64], index: 1, kind: input, shape index: {}, may-alias: {0,1}]
  %s2 = inlined_call_operand.vmem [shape: f32[2,1,64], index: 2, kind: input, shape index: {}]
  %s3 = inlined_call_operand.vmem [shape: f32[2,1,64], index: 3, kind: input, shape index: {}]
  %s4 = inlined_call_operand.vmem [shape: bf16[64,64], index: 4, kind: input, shape index: {}]
  %s5 = inlined_call_operand.vmem [shape: f32[1,64], index: 5, kind: input, shape index: {}]
  %s6 = inlined_call_operand.vmem [shape: bf16[64,128], index: 6, kind: input, shape index: {}]
  %s7 = inlined_call_operand.vmem [shape: f32[1,128], index: 7, kind: input, shape index: {}]
  %s8 = inlined_call_operand.vmem [shape: bf16[64,64], index: 8, kind: input, shape index: {}]
  %s9 = inlined_call_operand.hbm [shape: f32[1,64], index: 9, kind: input, shape index: {}]
  %s10 = inlined_call_operand.vmem [shape: f32[2,192,64], index: 10, kind: output, shape index: {}]
  %s11 = sld [smem:[#allocation0]]
  $region85: #{attention_forward_pallas.2} parent=0
    _
  %s13 = ssub.s32 1, %s11
  %s14 = scalar_select 0, %s13, %s11
  $region1: #{attention_forward_pallas.2} parent=0
    #allocation6 [shape = 'u8[512]{0}', space=vmem, size = 0x400, scoped, tag = 'input window, operand 9, single buffered']
    #allocation7 [shape = 's32[2]{0}', space=sflag, size = 0x8, scoped, tag = 'scoped memory for attention_forward_pallas.2']
    %15 = vsyncpa [#allocation7], 0
    loop: start=0, step=1, limit=4
    $region2: #{attention_forward_pallas.2} parent=1 // loop_pre_header
      _
    $region3: #{attention_forward_pallas.2} parent=1 // loop_header
      %s17 = sphi 0, %s21
      %p18 = scmp.ge.s32.totalorder %s17, 4
      %s24 = sphi 0, %s43
      %s25 = sphi 0, %s39
      %s26 = sphi 0, %s35
      %s27 = sphi 0, %s24
      %s28 = sphi 0, %s25
      %s29 = sphi 0, %s26
      %s30 = sphi 0, %s27
      %s31 = sphi 0, %s28
      %s32 = sphi 0, %s29
      %s48 = sphi 0, %s50
      %s51 = sphi 0, %s48
      %s52 = sphi 0, %s51
      %s68 = sphi 0, %s52
      %s76 = sphi 0, %s78
      %s79 = sphi 0, %s76
      %s80 = sphi 0, %s79
      %s96 = sphi 0, %s80
      %s102 = sphi 0, %s104
      %s105 = sphi 0, %s102
      %s106 = sphi 0, %s105
      %s122 = sphi 0, %s106
      %s128 = sphi 0, %s130
      %s131 = sphi 0, %s128
      %s132 = sphi 0, %s131
      %s148 = sphi 0, %s132
      %s152 = sphi 0, %s152
      %s154 = sphi 0, %s152
      %s155 = sphi 0, %s154
      %s169 = sphi 0, %s155
      %s173 = sphi 0, %s173
      %s175 = sphi 0, %s173
      %s176 = sphi 0, %s175
      %s190 = sphi 0, %s176
      %s194 = sphi 0, %s194
      %s196 = sphi 0, %s194
      %s197 = sphi 0, %s196
      %s211 = sphi 0, %s197
      %s215 = sphi 0, %s215
      %s217 = sphi 0, %s215
      %s218 = sphi 0, %s217
      %s232 = sphi 0, %s218
      %s236 = sphi 0, %s236
      %s238 = sphi 0, %s236
      %s239 = sphi 0, %s238
      %s253 = sphi 0, %s239
      %s257 = sphi 0, %s257
      %s259 = sphi 0, %s257
      %s260 = sphi 0, %s259
      %s274 = sphi 0, %s260
      %s282 = sphi 0, %s284
      %s285 = sphi 0, %s282
      %s286 = sphi 0, %s285
      %s302 = sphi 0, %s286
    $region4: #{attention_forward_pallas.2} parent=1 // loop_header_branch
      %20 = sbr.rel (%p18) target = $region8
    $region5: #{attention_forward_pallas.2} parent=1 // loop_body
      %s22 = ssub.s32 %s17, 1
      %s23 = ssub.s32 %s17, 2
      %s33 = sadd.s32 1, %s26
      %p34 = scmp.ge.s32.totalorder %s33, 1
      %s35 = scalar_select %p34, 0, %s33
      %s36 = sadd.s32 1, %s25
      %s37 = scalar_select %p34, %s36, %s25
      %p38 = scmp.ge.s32.totalorder %s37, 1
      %s39 = scalar_select %p38, 0, %s37
      %s40 = sadd.s32 1, %s24
      %s41 = scalar_select %p38, %s40, %s24
      %p42 = scmp.ge.s32.totalorder %s41, 2
      %s43 = scalar_select %p42, 0, %s41
      %s44 = ssub.s32 %s24, %s43
      %s45 = ssub.s32 %s25, %s39
      %s46 = sor.u32 %s44, %s45
      %p47 = scmp.eq.s32.totalorder %s46, 0
      %s49 = sadd.s32 %s48, 1
      %s50 = scalar_select %p47, %s48, %s49
      %p53 = pneg %p47
      %p54 = scmp.eq.s32.totalorder %s17, 1
      %p55 = por %p53, %p54
      %p56 = scmp.ne.s32.totalorder %s48, %s51
      %p57 = scmp.eq.s32.totalorder %s17, 0
      %p58 = por %p56, %p57
      %p59 = scmp.ne.s32.totalorder %s48, %s51
      %p60 = scmp.eq.s32.totalorder %s22, 1
      %p61 = por %p59, %p60
      %p62 = scmp.ne.s32.totalorder %s51, %s52
      %p63 = scmp.eq.s32.totalorder %s22, 0
      %p64 = por %p62, %p63
      %p65 = scmp.ne.s32.totalorder %s51, %s52
      %p66 = scmp.eq.s32.totalorder %s23, 1
      %p67 = por %p65, %p66
      %p69 = scmp.ne.s32.totalorder %s52, %s68
      %p70 = scmp.eq.s32.totalorder %s23, 0
      %p71 = por %p69, %p70
      %s72 = ssub.s32 %s24, %s43
      %s73 = ssub.s32 %s26, %s35
      %s74 = sor.u32 %s72, %s73
      %p75 = scmp.eq.s32.totalorder %s74, 0
      %s77 = sadd.s32 %s76, 1
      %s78 = scalar_select %p75, %s76, %s77
      %p81 = pneg %p75
      %p82 = scmp.eq.s32.totalorder %s17, 1
      %p83 = por %p81, %p82
      %p84 = scmp.ne.s32.totalorder %s76, %s79
      %p85 = scmp.eq.s32.totalorder %s17, 0
      %p86 = por %p84, %p85
      %p87 = scmp.ne.s32.totalorder %s76, %s79
      %p88 = scmp.eq.s32.totalorder %s22, 1
      %p89 = por %p87, %p88
      %p90 = scmp.ne.s32.totalorder %s79, %s80
      %p91 = scmp.eq.s32.totalorder %s22, 0
      %p92 = por %p90, %p91
      %p93 = scmp.ne.s32.totalorder %s79, %s80
      %p94 = scmp.eq.s32.totalorder %s23, 1
      %p95 = por %p93, %p94
      %p97 = scmp.ne.s32.totalorder %s80, %s96
      %p98 = scmp.eq.s32.totalorder %s23, 0
      %p99 = por %p97, %p98
      %s100 = ssub.s32 %s24, %s43
      %p101 = scmp.eq.s32.totalorder %s100, 0
      %s103 = sadd.s32 %s102, 1
      %s104 = scalar_select %p101, %s102, %s103
      %p107 = pneg %p101
      %p108 = scmp.eq.s32.totalorder %s17, 1
      %p109 = por %p107, %p108
      %p110 = scmp.ne.s32.totalorder %s102, %s105
      %p111 = scmp.eq.s32.totalorder %s17, 0
      %p112 = por %p110, %p111
      %p113 = scmp.ne.s32.totalorder %s102, %s105
      %p114 = scmp.eq.s32.totalorder %s22, 1
      %p115 = por %p113, %p114
      %p116 = scmp.ne.s32.totalorder %s105, %s106
      %p117 = scmp.eq.s32.totalorder %s22, 0
      %p118 = por %p116, %p117
      %p119 = scmp.ne.s32.totalorder %s105, %s106
      %p120 = scmp.eq.s32.totalorder %s23, 1
      %p121 = por %p119, %p120
      %p123 = scmp.ne.s32.totalorder %s106, %s122
      %p124 = scmp.eq.s32.totalorder %s23, 0
      %p125 = por %p123, %p124
      %s126 = ssub.s32 %s24, %s43
      %p127 = scmp.eq.s32.totalorder %s126, 0
      %s129 = sadd.s32 %s128, 1
      %s130 = scalar_select %p127, %s128, %s129
      %p133 = pneg %p127
      %p134 = scmp.eq.s32.totalorder %s17, 1
      %p135 = por %p133, %p134
      %p136 = scmp.ne.s32.totalorder %s128, %s131
      %p137 = scmp.eq.s32.totalorder %s17, 0
      %p138 = por %p136, %p137
      %p139 = scmp.ne.s32.totalorder %s128, %s131
      %p140 = scmp.eq.s32.totalorder %s22, 1
      %p141 = por %p139, %p140
      %p142 = scmp.ne.s32.totalorder %s131, %s132
      %p143 = scmp.eq.s32.totalorder %s22, 0
      %p144 = por %p142, %p143
      %p145 = scmp.ne.s32.totalorder %s131, %s132
      %p146 = scmp.eq.s32.totalorder %s23, 1
      %p147 = por %p145, %p146
      %p149 = scmp.ne.s32.totalorder %s132, %s148
      %p150 = scmp.eq.s32.totalorder %s23, 0
      %p151 = por %p149, %p150
      %s153 = sadd.s32 %s152, 1
      %p156 = scmp.eq.s32.totalorder %s17, 1
      %p157 = scmp.ne.s32.totalorder %s152, %s154
      %p158 = scmp.eq.s32.totalorder %s17, 0
      %p159 = por %p157, %p158
      %p160 = scmp.ne.s32.totalorder %s152, %s154
      %p161 = scmp.eq.s32.totalorder %s22, 1
      %p162 = por %p160, %p161
      %p163 = scmp.ne.s32.totalorder %s154, %s155
      %p164 = scmp.eq.s32.totalorder %s22, 0
      %p165 = por %p163, %p164
      %p166 = scmp.ne.s32.totalorder %s154, %s155
      %p167 = scmp.eq.s32.totalorder %s23, 1
      %p168 = por %p166, %p167
      %p170 = scmp.ne.s32.totalorder %s155, %s169
      %p171 = scmp.eq.s32.totalorder %s23, 0
      %p172 = por %p170, %p171
      %s174 = sadd.s32 %s173, 1
      %p177 = scmp.eq.s32.totalorder %s17, 1
      %p178 = scmp.ne.s32.totalorder %s173, %s175
      %p179 = scmp.eq.s32.totalorder %s17, 0
      %p180 = por %p178, %p179
      %p181 = scmp.ne.s32.totalorder %s173, %s175
      %p182 = scmp.eq.s32.totalorder %s22, 1
      %p183 = por %p181, %p182
      %p184 = scmp.ne.s32.totalorder %s175, %s176
      %p185 = scmp.eq.s32.totalorder %s22, 0
      %p186 = por %p184, %p185
      %p187 = scmp.ne.s32.totalorder %s175, %s176
      %p188 = scmp.eq.s32.totalorder %s23, 1
      %p189 = por %p187, %p188
      %p191 = scmp.ne.s32.totalorder %s176, %s190
      %p192 = scmp.eq.s32.totalorder %s23, 0
      %p193 = por %p191, %p192
      %s195 = sadd.s32 %s194, 1
      %p198 = scmp.eq.s32.totalorder %s17, 1
      %p199 = scmp.ne.s32.totalorder %s194, %s196
      %p200 = scmp.eq.s32.totalorder %s17, 0
      %p201 = por %p199, %p200
      %p202 = scmp.ne.s32.totalorder %s194, %s196
      %p203 = scmp.eq.s32.totalorder %s22, 1
      %p204 = por %p202, %p203
      %p205 = scmp.ne.s32.totalorder %s196, %s197
      %p206 = scmp.eq.s32.totalorder %s22, 0
      %p207 = por %p205, %p206
      %p208 = scmp.ne.s32.totalorder %s196, %s197
      %p209 = scmp.eq.s32.totalorder %s23, 1
      %p210 = por %p208, %p209
      %p212 = scmp.ne.s32.totalorder %s197, %s211
      %p213 = scmp.eq.s32.totalorder %s23, 0
      %p214 = por %p212, %p213
      %s216 = sadd.s32 %s215, 1
      %p219 = scmp.eq.s32.totalorder %s17, 1
      %p220 = scmp.ne.s32.totalorder %s215, %s217
      %p221 = scmp.eq.s32.totalorder %s17, 0
      %p222 = por %p220, %p221
      %p223 = scmp.ne.s32.totalorder %s215, %s217
      %p224 = scmp.eq.s32.totalorder %s22, 1
      %p225 = por %p223, %p224
      %p226 = scmp.ne.s32.totalorder %s217, %s218
      %p227 = scmp.eq.s32.totalorder %s22, 0
      %p228 = por %p226, %p227
      %p229 = scmp.ne.s32.totalorder %s217, %s218
      %p230 = scmp.eq.s32.totalorder %s23, 1
      %p231 = por %p229, %p230
      %p233 = scmp.ne.s32.totalorder %s218, %s232
      %p234 = scmp.eq.s32.totalorder %s23, 0
      %p235 = por %p233, %p234
      %s237 = sadd.s32 %s236, 1
      %p240 = scmp.eq.s32.totalorder %s17, 1
      %p241 = scmp.ne.s32.totalorder %s236, %s238
      %p242 = scmp.eq.s32.totalorder %s17, 0
      %p243 = por %p241, %p242
      %p244 = scmp.ne.s32.totalorder %s236, %s238
      %p245 = scmp.eq.s32.totalorder %s22, 1
      %p246 = por %p244, %p245
      %p247 = scmp.ne.s32.totalorder %s238, %s239
      %p248 = scmp.eq.s32.totalorder %s22, 0
      %p249 = por %p247, %p248
      %p250 = scmp.ne.s32.totalorder %s238, %s239
      %p251 = scmp.eq.s32.totalorder %s23, 1
      %p252 = por %p250, %p251
      %p254 = scmp.ne.s32.totalorder %s239, %s253
      %p255 = scmp.eq.s32.totalorder %s23, 0
      %p256 = por %p254, %p255
      %s258 = sadd.s32 %s257, 1
      %p261 = scmp.eq.s32.totalorder %s17, 1
      %p262 = scmp.ne.s32.totalorder %s257, %s259
      %p263 = scmp.eq.s32.totalorder %s17, 0
      %p264 = por %p262, %p263
      %p265 = scmp.ne.s32.totalorder %s257, %s259
      %p266 = scmp.eq.s32.totalorder %s22, 1
      %p267 = por %p265, %p266
      %p268 = scmp.ne.s32.totalorder %s259, %s260
      %p269 = scmp.eq.s32.totalorder %s22, 0
      %p270 = por %p268, %p269
      %p271 = scmp.ne.s32.totalorder %s259, %s260
      %p272 = scmp.eq.s32.totalorder %s23, 1
      %p273 = por %p271, %p272
      %p275 = scmp.ne.s32.totalorder %s260, %s274
      %p276 = scmp.eq.s32.totalorder %s23, 0
      %p277 = por %p275, %p276
      %s278 = ssub.s32 %s24, %s43
      %s279 = ssub.s32 %s25, %s39
      %s280 = sor.u32 %s278, %s279
      %p281 = scmp.eq.s32.totalorder %s280, 0
      %s283 = sadd.s32 %s282, 1
      %s284 = scalar_select %p281, %s282, %s283
      %p287 = pneg %p281
      %p288 = scmp.eq.s32.totalorder %s17, 1
      %p289 = por %p287, %p288
      %p290 = scmp.ne.s32.totalorder %s282, %s285
      %p291 = scmp.eq.s32.totalorder %s17, 0
      %p292 = por %p290, %p291
      %p293 = scmp.ne.s32.totalorder %s282, %s285
      %p294 = scmp.eq.s32.totalorder %s22, 1
      %p295 = por %p293, %p294
      %p296 = scmp.ne.s32.totalorder %s285, %s286
      %p297 = scmp.eq.s32.totalorder %s22, 0
      %p298 = por %p296, %p297
      %p299 = scmp.ne.s32.totalorder %s285, %s286
      %p300 = scmp.eq.s32.totalorder %s23, 1
      %p301 = por %p299, %p300
      %p303 = scmp.ne.s32.totalorder %s286, %s302
      %p304 = scmp.eq.s32.totalorder %s23, 0
      %p305 = por %p303, %p304
      %p306 = scmp.le.s32.totalorder 1, %s17
      %p307 = scmp.lt.s32.totalorder %s17, 3
      %p308 = pnand %p306, %p307
      %p309 = pneg %p308
      // Predicated region
      $region9: #{attention_forward_pallas.2} parent=5 // pred_check
        _
      $region10: #{attention_forward_pallas.2} parent=5 // pred_check_branch
        %311 = sbr.rel (%p308) target = $region12
      $region11: #{attention_forward_pallas.2} parent=5 // pred_region
        %s312 = ssub.s32 %s17, 1
        // Predicated region
        $region13: #{attention_forward_pallas.2} parent=11 // pred_check
          %p313 = pneg %p165
        $region14: #{attention_forward_pallas.2} parent=11 // pred_check_branch
          %315 = sbr.rel (%p313) target = $region16
        $region15: #{attention_forward_pallas.2} parent=11 // pred_region
          _
        $region16: #{attention_forward_pallas.2} parent=11 // pred_fallthru
          _
        // Predicated region
        $region17: #{attention_forward_pallas.2} parent=11 // pred_check
          %p316 = pneg %p186
        $region18: #{attention_forward_pallas.2} parent=11 // pred_check_branch
          %318 = sbr.rel (%p316) target = $region20
        $region19: #{attention_forward_pallas.2} parent=11 // pred_region
          _
        $region20: #{attention_forward_pallas.2} parent=11 // pred_fallthru
          _
        // Predicated region
        $region21: #{attention_forward_pallas.2} parent=11 // pred_check
          %p319 = pneg %p207
        $region22: #{attention_forward_pallas.2} parent=11 // pred_check_branch
          %321 = sbr.rel (%p319) target = $region24
        $region23: #{attention_forward_pallas.2} parent=11 // pred_region
          _
        $region24: #{attention_forward_pallas.2} parent=11 // pred_fallthru
          _
        // Predicated region
        $region25: #{attention_forward_pallas.2} parent=11 // pred_check
          %p322 = pneg %p228
        $region26: #{attention_forward_pallas.2} parent=11 // pred_check_branch
          %324 = sbr.rel (%p322) target = $region28
        $region27: #{attention_forward_pallas.2} parent=11 // pred_region
          _
        $region28: #{attention_forward_pallas.2} parent=11 // pred_fallthru
          _
        // Predicated region
        $region29: #{attention_forward_pallas.2} parent=11 // pred_check
          %p325 = pneg %p249
        $region30: #{attention_forward_pallas.2} parent=11 // pred_check_branch
          %327 = sbr.rel (%p325) target = $region32
        $region31: #{attention_forward_pallas.2} parent=11 // pred_region
          _
        $region32: #{attention_forward_pallas.2} parent=11 // pred_fallthru
          _
        // Predicated region
        $region33: #{attention_forward_pallas.2} parent=11 // pred_check
          %p328 = pneg %p270
        $region34: #{attention_forward_pallas.2} parent=11 // pred_check_branch
          %330 = sbr.rel (%p328) target = $region36
        $region35: #{attention_forward_pallas.2} parent=11 // pred_region
          %s332 = ssub.s32 16, 16
          %333 = vsyncadd [#allocation7], %s332
          %s335 = sshll.u32 [#allocation6], 4
          %s336 = int_to_ptr.vmem [resolvable:$true] %s335
          %338 = dma.hbm_to_vmem [thread:$0]  %s9, 16, %s336, [#allocation7]
        $region36: #{attention_forward_pallas.2} parent=11 // pred_fallthru
          _
      $region12: #{attention_forward_pallas.2} parent=5 // pred_fallthru
        _
      %p339 = scmp.lt.s32.totalorder %s17, 2
      // Predicated region
      $region37: #{attention_forward_pallas.2} parent=5 // pred_check
        %p340 = pneg %p339
      $region38: #{attention_forward_pallas.2} parent=5 // pred_check_branch
        %342 = sbr.rel (%p340) target = $region40
      $region39: #{attention_forward_pallas.2} parent=5 // pred_region
        // Predicated region
        $region41: #{attention_forward_pallas.2} parent=39 // pred_check
          %p343 = pneg %p58
        $region42: #{attention_forward_pallas.2} parent=39 // pred_check_branch
          %345 = sbr.rel (%p343) target = $region44
        $region43: #{attention_forward_pallas.2} parent=39 // pred_region
          %s346 = smul.u32 24, %s25
          %p347 = scmp.lt.s32.totalorder %s24, 1
          %s348 = scalar_select %p347, %s24, 1
          %p349 = scmp.lt.s32.totalorder %s346, 23
          %s350 = scalar_select %p349, %s346, 23
          %s351 = smul.addr %s348, 24
          %s352 = sadd.s32 %s350, %s351
          %s353 = smul.addr %s352, 8
          %s354 = scalar_lea.vmem %s0, %s353
          %s355 = smul.u32 24, %s25
        $region44: #{attention_forward_pallas.2} parent=39 // pred_fallthru
          _
        // Predicated region
        $region45: #{attention_forward_pallas.2} parent=39 // pred_check
          %p356 = pneg %p86
        $region46: #{attention_forward_pallas.2} parent=39 // pred_check_branch
          %358 = sbr.rel (%p356) target = $region48
        $region47: #{attention_forward_pallas.2} parent=39 // pred_region
          %s359 = smul.u32 24, %s26
          %p360 = scmp.lt.s32.totalorder %s24, 1
          %s361 = scalar_select %p360, %s24, 1
          %p362 = scmp.lt.s32.totalorder %s359, 23
          %s363 = scalar_select %p362, %s359, 23
          %s364 = smul.addr %s361, 24
          %s365 = sadd.s32 %s363, %s364
          %s366 = smul.addr %s365, 8
          %s367 = scalar_lea.vmem %s1, %s366
          %s368 = smul.u32 24, %s26
        $region48: #{attention_forward_pallas.2} parent=39 // pred_fallthru
          _
        // Predicated region
        $region49: #{attention_forward_pallas.2} parent=39 // pred_check
          %p369 = pneg %p112
        $region50: #{attention_forward_pallas.2} parent=39 // pred_check_branch
          %371 = sbr.rel (%p369) target = $region52
        $region51: #{attention_forward_pallas.2} parent=39 // pred_region
          %p372 = scmp.lt.s32.totalorder %s24, 1
          %s373 = scalar_select %p372, %s24, 1
          %s374 = scalar_lea.vmem %s2, %s373
        $region52: #{attention_forward_pallas.2} parent=39 // pred_fallthru
          _
        // Predicated region
        $region53: #{attention_forward_pallas.2} parent=39 // pred_check
          %p375 = pneg %p138
        $region54: #{attention_forward_pallas.2} parent=39 // pred_check_branch
          %377 = sbr.rel (%p375) target = $region56
        $region55: #{attention_forward_pallas.2} parent=39 // pred_region
          %p378 = scmp.lt.s32.totalorder %s24, 1
          %s379 = scalar_select %p378, %s24, 1
          %s380 = scalar_lea.vmem %s3, %s379
        $region56: #{attention_forward_pallas.2} parent=39 // pred_fallthru
          _
      $region40: #{attention_forward_pallas.2} parent=5 // pred_fallthru
        _
      %p381 = scmp.le.s32.totalorder 1, %s17
      %p382 = scmp.lt.s32.totalorder %s17, 3
      %p383 = pnand %p381, %p382
      %p384 = pneg %p383
      // Predicated region
      $region57: #{attention_forward_pallas.2} parent=5 // pred_check
        _
      $region58: #{attention_forward_pallas.2} parent=5 // pred_check_branch
        %386 = sbr.rel (%p383) target = $region60
      $region59: #{attention_forward_pallas.2} parent=5 // pred_region
        %s387 = ssub.s32 %s17, 1
        // Predicated region
        $region61: #{attention_forward_pallas.2} parent=59 // pred_check
          %p388 = pneg %p270
        $region62: #{attention_forward_pallas.2} parent=59 // pred_check_branch
          %390 = sbr.rel (%p388) target = $region64
        $region63: #{attention_forward_pallas.2} parent=59 // pred_region
          %391 = dma.done [#allocation7], 16
        $region64: #{attention_forward_pallas.2} parent=59 // pred_fallthru
          _
        %s392 = smul.u32 24, %s28
        %p393 = scmp.lt.s32.totalorder %s27, 1
        %s394 = scalar_select %p393, %s27, 1
        %p395 = scmp.lt.s32.totalorder %s392, 23
        %s396 = scalar_select %p395, %s392, 23
        %s397 = smul.addr %s394, 24
        %s398 = sadd.s32 %s396, %s397
        %s399 = smul.addr %s398, 8
        %s400 = scalar_lea.vmem %s0, %s399
        %p401 = pneg %p64
        %p402 = pneg %p61
        %s403 = smul.u32 24, %s29
        %p404 = scmp.lt.s32.totalorder %s27, 1
        %s405 = scalar_select %p404, %s27, 1
        %p406 = scmp.lt.s32.totalorder %s403, 23
        %s407 = scalar_select %p406, %s403, 23
        %s408 = smul.addr %s405, 24
        %s409 = sadd.s32 %s407, %s408
        %s410 = smul.addr %s409, 8
        %s411 = scalar_lea.vmem %s1, %s410
        %p412 = pneg %p92
        %p413 = pneg %p89
        %p414 = scmp.lt.s32.totalorder %s27, 1
        %s415 = scalar_select %p414, %s27, 1
        %s416 = scalar_lea.vmem %s2, %s415
        %p417 = pneg %p118
        %p418 = pneg %p115
        %p419 = scmp.lt.s32.totalorder %s27, 1
        %s420 = scalar_select %p419, %s27, 1
        %s421 = scalar_lea.vmem %s3, %s420
        %p422 = pneg %p144
        %p423 = pneg %p141
        %p424 = pneg %p165
        %p425 = pneg %p162
        %p426 = pneg %p186
        %p427 = pneg %p183
        %p428 = pneg %p207
        %p429 = pneg %p204
        %p430 = pneg %p228
        %p431 = pneg %p225
        %p432 = pneg %p249
        %p433 = pneg %p246
        %p434 = pneg %p270
        %p435 = pneg %p267
        %p436 = pneg %p298
        %p437 = pneg %p295
        %s438 = smul.u32 24, %s28
        %p439 = scmp.lt.s32.totalorder %s27, 1
        %s440 = scalar_select %p439, %s27, 1
        %p441 = scmp.lt.s32.totalorder %s438, 23
        %s442 = scalar_select %p441, %s438, 23
        %s443 = smul.addr %s440, 24
        %s444 = sadd.s32 %s442, %s443
        %s445 = smul.addr %s444, 8
        %s446 = scalar_lea.vmem %s10, %s445
        %s447 = smul.u32 24, %s28
        %p448 = scmp.lt.s32.totalorder %s27, 1
        %s449 = scalar_select %p448, %s27, 1
        %p450 = scmp.lt.s32.totalorder %s447, 23
        %s451 = scalar_select %p450, %s447, 23
        %s452 = smul.addr %s449, 24
        %s453 = sadd.s32 %s451, %s452
        %s454 = smul.addr %s453, 8
        %s455 = scalar_lea.vmem %s0, %s454
        %s456 = smul.u32 24, %s28
        %s457 = smul.u32 24, %s29
        %p458 = scmp.lt.s32.totalorder %s27, 1
        %s459 = scalar_select %p458, %s27, 1
        %p460 = scmp.lt.s32.totalorder %s457, 23
        %s461 = scalar_select %p460, %s457, 23
        %s462 = smul.addr %s459, 24
        %s463 = sadd.s32 %s461, %s462
        %s464 = smul.addr %s463, 8
        %s465 = scalar_lea.vmem %s1, %s464
        %s466 = smul.u32 24, %s29
        %p467 = scmp.lt.s32.totalorder %s27, 1
        %s468 = scalar_select %p467, %s27, 1
        %s469 = scalar_lea.vmem %s2, %s468
        %p470 = scmp.lt.s32.totalorder %s27, 1
        %s471 = scalar_select %p470, %s27, 1
        %s472 = scalar_lea.vmem %s3, %s471
        %s473 = smul.u32 24, %s28
        %p474 = scmp.lt.s32.totalorder %s27, 1
        %s475 = scalar_select %p474, %s27, 1
        %p476 = scmp.lt.s32.totalorder %s473, 23
        %s477 = scalar_select %p476, %s473, 23
        %s478 = smul.addr %s475, 24
        %s479 = sadd.s32 %s477, %s478
        %s480 = smul.addr %s479, 8
        %s481 = scalar_lea.vmem %s10, %s480
        %s482 = smul.u32 24, %s28
        %p484 = scmp.eq.s32.totalorder %s29, 0
        // Predicated region
        $region65: #{attention_forward_pallas.2} parent=59 // pred_check
          %p485 = pneg %p484
        $region66: #{attention_forward_pallas.2} parent=59 // pred_check_branch
          %487 = sbr.rel (%p485) target = $region68
        $region67: #{attention_forward_pallas.2} parent=59 // pred_region
          %v488 = vld [vmem:[%s455] sm:$0xff]
          %v489 = vld [vmem:[%s455 + $0x8] sm:$0xff]
          %v490 = vld [vmem:[%s455 + $0x10] sm:$0xff]
          %v491 = vld [vmem:[%s455 + $0x18] sm:$0xff]
          %v492 = vld [vmem:[%s455 + $0x20] sm:$0xff]
          %v493 = vld [vmem:[%s455 + $0x28] sm:$0xff]
          %v494 = vld [vmem:[%s455 + $0x30] sm:$0xff]
          %v495 = vld [vmem:[%s455 + $0x38] sm:$0xff]
          %v496 = vld [vmem:[%s455 + $0x40] sm:$0xff]
          %v497 = vld [vmem:[%s455 + $0x48] sm:$0xff]
          %v498 = vld [vmem:[%s455 + $0x50] sm:$0xff]
          %v499 = vld [vmem:[%s455 + $0x58] sm:$0xff]
          %v500 = vld [vmem:[%s455 + $0x60] sm:$0xff]
          %v501 = vld [vmem:[%s455 + $0x68] sm:$0xff]
          %v502 = vld [vmem:[%s455 + $0x70] sm:$0xff]
          %v503 = vld [vmem:[%s455 + $0x78] sm:$0xff]
          %v504 = vld [vmem:[%s455 + $0x80] sm:$0xff]
          %v505 = vld [vmem:[%s455 + $0x88] sm:$0xff]
          %v506 = vld [vmem:[%s455 + $0x90] sm:$0xff]
          %v507 = vld [vmem:[%s455 + $0x98] sm:$0xff]
          %v508 = vld [vmem:[%s455 + $0xa0] sm:$0xff]
          %v509 = vld [vmem:[%s455 + $0xa8] sm:$0xff]
          %v510 = vld [vmem:[%s455 + $0xb0] sm:$0xff]
          %v511 = vld [vmem:[%s455 + $0xb8] sm:$0xff]
          %v512 = vld [vmem:[%s469] sm:$0x1]
          %v514 = vlaneseq
          %v515 = vshrl.u32 %v514, 7
          %v516 = vsub.s32 0, %v515
          %v517 = vrot.slane %v512, %v516
          %v519 = vmul.f32 %v488, %v517
          %v520 = vmul.f32 %v489, %v517
          %v521 = vmul.f32 %v490, %v517
          %v522 = vmul.f32 %v491, %v517
          %v523 = vmul.f32 %v492, %v517
          %v524 = vmul.f32 %v493, %v517
          %v525 = vmul.f32 %v494, %v517
          %v526 = vmul.f32 %v495, %v517
          %v527 = vmul.f32 %v496, %v517
          %v528 = vmul.f32 %v497, %v517
          %v529 = vmul.f32 %v498, %v517
          %v530 = vmul.f32 %v499, %v517
          %v531 = vmul.f32 %v500, %v517
          %v532 = vmul.f32 %v501, %v517
          %v533 = vmul.f32 %v502, %v517
          %v534 = vmul.f32 %v503, %v517
          %v535 = vmul.f32 %v504, %v517
          %v536 = vmul.f32 %v505, %v517
          %v537 = vmul.f32 %v506, %v517
          %v538 = vmul.f32 %v507, %v517
          %v539 = vmul.f32 %v508, %v517
          %v540 = vmul.f32 %v509, %v517
          %v541 = vmul.f32 %v510, %v517
          %v542 = vmul.f32 %v511, %v517
          %v543 = vld [vmem:[%s472] sm:$0x1]
          %v545 = vlaneseq
          %v546 = vshrl.u32 %v545, 7
          %v547 = vsub.s32 0, %v546
          %v548 = vrot.slane %v543, %v547
          %v550 = vadd.f32 %v519, %v548
          %v551 = vadd.f32 %v520, %v548
          %v552 = vadd.f32 %v521, %v548
          %v553 = vadd.f32 %v522, %v548
          %v554 = vadd.f32 %v523, %v548
          %v555 = vadd.f32 %v524, %v548
          %v556 = vadd.f32 %v525, %v548
          %v557 = vadd.f32 %v526, %v548
          %v558 = vadd.f32 %v527, %v548
          %v559 = vadd.f32 %v528, %v548
          %v560 = vadd.f32 %v529, %v548
          %v561 = vadd.f32 %v530, %v548
          %v562 = vadd.f32 %v531, %v548
          %v563 = vadd.f32 %v532, %v548
          %v564 = vadd.f32 %v533, %v548
          %v565 = vadd.f32 %v534, %v548
          %v566 = vadd.f32 %v535, %v548
          %v567 = vadd.f32 %v536, %v548
          %v568 = vadd.f32 %v537, %v548
          %v569 = vadd.f32 %v538, %v548
          %v570 = vadd.f32 %v539, %v548
          %v571 = vadd.f32 %v540, %v548
          %v572 = vadd.f32 %v541, %v548
          %v573 = vadd.f32 %v542, %v548
          %v574 = vpack.c.bf16 %v551, %v550
          %v575 = vpack.c.bf16 %v553, %v552
          %v576 = vpack.c.bf16 %v555, %v554
          %v577 = vpack.c.bf16 %v557, %v556
          %v578 = vpack.c.bf16 %v559, %v558
          %v579 = vpack.c.bf16 %v561, %v560
          %v580 = vpack.c.bf16 %v563, %v562
          %v581 = vpack.c.bf16 %v565, %v564
          %v582 = vpack.c.bf16 %v567, %v566
          %v583 = vpack.c.bf16 %v569, %v568
          %v584 = vpack.c.bf16 %v571, %v570
          %v585 = vpack.c.bf16 %v573, %v572
          %v586 = vld [vmem:[%s4] sm:$0xf]
          %v587 = vld [vmem:[%s4 + $0x4] sm:$0xf]
          %v588 = vld [vmem:[%s4 + $0x8] sm:$0xf]
          %v589 = vld [vmem:[%s4 + $0xc] sm:$0xf]
          %v590 = vld [vmem:[%s4 + $0x10] sm:$0xf]
          %v591 = vld [vmem:[%s4 + $0x14] sm:$0xf]
          %v592 = vld [vmem:[%s4 + $0x18] sm:$0xf]
          %v593 = vld [vmem:[%s4 + $0x1c] sm:$0xf]
          %v594 = vld [vmem:[%s5] sm:$0x1]
          %v596 = vlaneseq
          %v597 = vshrl.u32 %v596, 7
          %v598 = vsub.s32 0, %v597
          %v599 = vrot.slane %v594, %v598
          %v609 = vunpack.c.l.b16 %v586
          %v610 = vunpack.c.l.b16 %v587
          %v611 = vunpack.c.l.b16 %v588
          %v612 = vunpack.c.l.b16 %v589
          %v613 = vunpack.c.l.b16 %v590
          %v614 = vunpack.c.l.b16 %v591
          %v615 = vunpack.c.l.b16 %v592
          %v616 = vunpack.c.l.b16 %v593
          %v617 = vpack.c.b16 %v610, %v609
          %v618 = vpack.c.b16 %v612, %v611
          %v619 = vpack.c.b16 %v614, %v613
          %v620 = vpack.c.b16 %v616, %v615
          %vm625 = vcmask 523264
          %v627 = vsel %vm625, %v574, 0
          %v630 = vsel %vm625, %v575, 0
          %v633 = vsel %vm625, %v576, 0
          %v636 = vsel %vm625, %v577, 0
          %v639 = vsel %vm625, %v578, 0
          %v642 = vsel %vm625, %v579, 0
          %v645 = vsel %vm625, %v580, 0
          %v648 = vsel %vm625, %v581, 0
          %v651 = vsel %vm625, %v582, 0
          %v654 = vsel %vm625, %v583, 0
          %v657 = vsel %vm625, %v584, 0
          %v660 = vsel %vm625, %v585, 0
          %662 = vmatprep.subr.bf16.mxu0 0
          %663 = vmatpush1.bf16.msra.mxu0 0
          %664 = vmatprep.subr.bf16.mxu0 0
          %665 = vmatpush1.bf16.msra.mxu0 0
          %666 = vmatprep.subr.bf16.mxu0 0
          %667 = vmatpush1.bf16.msra.mxu0 0
          %668 = vmatprep.subr.bf16.mxu0 0
          %669 = vmatpush1.bf16.msra.mxu0 0
          %670 = vmatprep.subr.bf16.mxu0 0
          %671 = vmatpush1.bf16.msra.mxu0 %v620
          %672 = vmatprep.subr.bf16.mxu0 0
          %673 = vmatpush1.bf16.msra.mxu0 %v619
          %674 = vmatprep.subr.bf16.mxu0 0
          %675 = vmatpush1.bf16.msra.mxu0 %v618
          %676 = vmatprep.subr.bf16.mxu0 0
          %677 = vmatpush1.bf16.msra.mxu0 %v617
          %678 = vmatprep.subr.bf16.mxu0 0
          %679 = vmatpush2.bf16.msra.mxu0 0
          %680 = vmatprep.subr.bf16.mxu0 0
          %681 = vmatpush2.bf16.msra.mxu0 0
          %682 = vmatprep.subr.bf16.mxu0 0
          %683 = vmatpush2.bf16.msra.mxu0 0
          %684 = vmatprep.subr.bf16.mxu0 0
          %685 = vmatpush2.bf16.msra.mxu0 0
          %686 = vmatprep.subr.bf16.mxu0 0
          %687 = vmatpush2.bf16.msra.mxu0 0
          %688 = vmatprep.subr.bf16.mxu0 0
          %689 = vmatpush2.bf16.msra.mxu0 0
          %690 = vmatprep.subr.bf16.mxu0 0
          %691 = vmatpush2.bf16.msra.mxu0 0
          %692 = vmatprep.subr.bf16.mxu0 0
          %693 = vmatpush2.bf16.msra.mxu0 0
          %694 = vmatprep.mubr.bf16.mxu0 0
          %695 = vmatmul.mubr.bf16.gmra.mxu0 %v627
          %v696 = vpop.f32.mrf.mxu0
          %v697 = vadd.f32 %v599, %v696
          %v698 = vpop.f32.mrf.mxu0
          %v699 = vpop.f32.mrf.mxu0
          %v700 = vadd.f32 %v599, %v699
          %v701 = vpop.f32.mrf.mxu0
          %702 = vmatprep.mubr.bf16.mxu0 0
          %703 = vmatmul.mubr.bf16.gmra.mxu0 %v630
          %v704 = vpop.f32.mrf.mxu0
          %v705 = vadd.f32 %v599, %v704
          %v706 = vpop.f32.mrf.mxu0
          %v707 = vpop.f32.mrf.mxu0
          %v708 = vadd.f32 %v599, %v707
          %v709 = vpop.f32.mrf.mxu0
          %710 = vmatprep.mubr.bf16.mxu0 0
          %711 = vmatmul.mubr.bf16.gmra.mxu0 %v633
          %v712 = vpop.f32.mrf.mxu0
          %v713 = vadd.f32 %v599, %v712
          %v714 = vpop.f32.mrf.mxu0
          %v715 = vpop.f32.mrf.mxu0
          %v716 = vadd.f32 %v599, %v715
          %v717 = vpop.f32.mrf.mxu0
          %718 = vmatprep.mubr.bf16.mxu0 0
          %719 = vmatmul.mubr.bf16.gmra.mxu0 %v636
          %v720 = vpop.f32.mrf.mxu0
          %v721 = vadd.f32 %v599, %v720
          %v722 = vpop.f32.mrf.mxu0
          %v723 = vpop.f32.mrf.mxu0
          %v724 = vadd.f32 %v599, %v723
          %v725 = vpop.f32.mrf.mxu0
          %726 = vmatprep.mubr.bf16.mxu0 0
          %727 = vmatmul.mubr.bf16.gmra.mxu0 %v639
          %v728 = vpop.f32.mrf.mxu0
          %v729 = vadd.f32 %v599, %v728
          %v730 = vpop.f32.mrf.mxu0
          %v731 = vpop.f32.mrf.mxu0
          %v732 = vadd.f32 %v599, %v731
          %v733 = vpop.f32.mrf.mxu0
          %734 = vmatprep.mubr.bf16.mxu0 0
          %735 = vmatmul.mubr.bf16.gmra.mxu0 %v642
          %v736 = vpop.f32.mrf.mxu0
          %v737 = vadd.f32 %v599, %v736
          %v738 = vpop.f32.mrf.mxu0
          %v739 = vpop.f32.mrf.mxu0
          %v740 = vadd.f32 %v599, %v739
          %v741 = vpop.f32.mrf.mxu0
          %742 = vmatprep.mubr.bf16.mxu0 0
          %743 = vmatmul.mubr.bf16.gmra.mxu0 %v645
          %v744 = vpop.f32.mrf.mxu0
          %v745 = vadd.f32 %v599, %v744
          %v746 = vpop.f32.mrf.mxu0
          %v747 = vpop.f32.mrf.mxu0
          %v748 = vadd.f32 %v599, %v747
          %v749 = vpop.f32.mrf.mxu0
          %750 = vmatprep.mubr.bf16.mxu0 0
          %751 = vmatmul.mubr.bf16.gmra.mxu0 %v648
          %v752 = vpop.f32.mrf.mxu0
          %v753 = vadd.f32 %v599, %v752
          %v754 = vpop.f32.mrf.mxu0
          %v755 = vpop.f32.mrf.mxu0
          %v756 = vadd.f32 %v599, %v755
          %v757 = vpop.f32.mrf.mxu0
          %758 = vmatprep.mubr.bf16.mxu0 0
          %759 = vmatmul.mubr.bf16.gmra.mxu0 %v651
          %v760 = vpop.f32.mrf.mxu0
          %v761 = vadd.f32 %v599, %v760
          %v762 = vpop.f32.mrf.mxu0
          %v763 = vpop.f32.mrf.mxu0
          %v764 = vadd.f32 %v599, %v763
          %v765 = vpop.f32.mrf.mxu0
          %766 = vmatprep.mubr.bf16.mxu0 0
          %767 = vmatmul.mubr.bf16.gmra.mxu0 %v654
          %v768 = vpop.f32.mrf.mxu0
          %v769 = vadd.f32 %v599, %v768
          %v770 = vpop.f32.mrf.mxu0
          %v771 = vpop.f32.mrf.mxu0
          %v772 = vadd.f32 %v599, %v771
          %v773 = vpop.f32.mrf.mxu0
          %774 = vmatprep.mubr.bf16.mxu0 0
          %775 = vmatmul.mubr.bf16.gmra.mxu0 %v657
          %v776 = vpop.f32.mrf.mxu0
          %v777 = vadd.f32 %v599, %v776
          %v778 = vpop.f32.mrf.mxu0
          %v779 = vpop.f32.mrf.mxu0
          %v780 = vadd.f32 %v599, %v779
          %v781 = vpop.f32.mrf.mxu0
          %782 = vmatprep.mubr.bf16.mxu0 0
          %783 = vmatmul.mubr.bf16.gmra.mxu0 %v660
          %v784 = vpop.f32.mrf.mxu0
          %v785 = vadd.f32 %v599, %v784
          %v786 = vpop.f32.mrf.mxu0
          %v787 = vpop.f32.mrf.mxu0
          %v788 = vadd.f32 %v599, %v787
          %v789 = vpop.f32.mrf.mxu0
          %790 = vdwg.mxu0
          %v791 = vpack.c.bf16 %v700, %v697
          %v792 = vpack.c.bf16 %v708, %v705
          %v793 = vpack.c.bf16 %v716, %v713
          %v794 = vpack.c.bf16 %v724, %v721
          %v795 = vpack.c.bf16 %v732, %v729
          %v796 = vpack.c.bf16 %v740, %v737
          %v797 = vpack.c.bf16 %v748, %v745
          %v798 = vpack.c.bf16 %v756, %v753
          %v799 = vpack.c.bf16 %v764, %v761
          %v800 = vpack.c.bf16 %v772, %v769
          %v801 = vpack.c.bf16 %v780, %v777
          %v802 = vpack.c.bf16 %v788, %v785
          %v815 = vunpack.c.l.b16 %v791
          %v816 = vunpack.c.h.b16 %v791
          %v817 = vunpack.c.l.b16 %v792
          %v818 = vunpack.c.h.b16 %v792
          %v819 = vunpack.c.l.b16 %v793
          %v820 = vunpack.c.h.b16 %v793
          %v821 = vunpack.c.l.b16 %v794
          %v822 = vunpack.c.h.b16 %v794
          %v823 = vunpack.c.l.b16 %v795
          %v824 = vunpack.c.h.b16 %v795
          %v825 = vunpack.c.l.b16 %v796
          %v826 = vunpack.c.h.b16 %v796
          %v827 = vunpack.c.l.b16 %v797
          %v828 = vunpack.c.h.b16 %v797
          %v829 = vunpack.c.l.b16 %v798
          %v830 = vunpack.c.h.b16 %v798
          %v831 = vunpack.c.l.b16 %v799
          %v832 = vunpack.c.h.b16 %v799
          %v833 = vunpack.c.l.b16 %v800
          %v834 = vunpack.c.h.b16 %v800
          %v835 = vunpack.c.l.b16 %v801
          %v836 = vunpack.c.h.b16 %v801
          %v837 = vunpack.c.l.b16 %v802
          %v838 = vunpack.c.h.b16 %v802
          %v839 = vpack.c.b16 %v815, %v815
          %v840 = vpack.c.b16 %v816, %v816
          %v841 = vpack.c.b16 %v817, %v817
          %v842 = vpack.c.b16 %v818, %v818
          %v843 = vpack.c.b16 %v819, %v819
          %v844 = vpack.c.b16 %v820, %v820
          %v845 = vpack.c.b16 %v821, %v821
          %v846 = vpack.c.b16 %v822, %v822
          %v847 = vpack.c.b16 %v823, %v823
          %v848 = vpack.c.b16 %v824, %v824
          %v849 = vpack.c.b16 %v825, %v825
          %v850 = vpack.c.b16 %v826, %v826
          %v851 = vpack.c.b16 %v827, %v827
          %v852 = vpack.c.b16 %v828, %v828
          %v853 = vpack.c.b16 %v829, %v829
          %v854 = vpack.c.b16 %v830, %v830
          %v855 = vpack.c.b16 %v831, %v831
          %v856 = vpack.c.b16 %v832, %v832
          %v857 = vpack.c.b16 %v833, %v833
          %v858 = vpack.c.b16 %v834, %v834
          %v859 = vpack.c.b16 %v835, %v835
          %v860 = vpack.c.b16 %v836, %v836
          %v861 = vpack.c.b16 %v837, %v837
          %v862 = vpack.c.b16 %v838, %v838
          %vm887 = vcmask 519168
          %888 = vst.msk [vmem:[#allocation2] sm:$0xf] %vm887, %v839
          %889 = vst.msk [vmem:[#allocation2 + $0x4] sm:$0xf] %vm887, %v840
          %890 = vst.msk [vmem:[#allocation2 + $0x8] sm:$0xf] %vm887, %v841
          %891 = vst.msk [vmem:[#allocation2 + $0xc] sm:$0xf] %vm887, %v842
          %892 = vst.msk [vmem:[#allocation2 + $0x10] sm:$0xf] %vm887, %v843
          %893 = vst.msk [vmem:[#allocation2 + $0x14] sm:$0xf] %vm887, %v844
          %894 = vst.msk [vmem:[#allocation2 + $0x18] sm:$0xf] %vm887, %v845
          %895 = vst.msk [vmem:[#allocation2 + $0x1c] sm:$0xf] %vm887, %v846
          %896 = vst.msk [vmem:[#allocation2 + $0x20] sm:$0xf] %vm887, %v847
          %897 = vst.msk [vmem:[#allocation2 + $0x24] sm:$0xf] %vm887, %v848
          %898 = vst.msk [vmem:[#allocation2 + $0x28] sm:$0xf] %vm887, %v849
          %899 = vst.msk [vmem:[#allocation2 + $0x2c] sm:$0xf] %vm887, %v850
          %900 = vst.msk [vmem:[#allocation2 + $0x30] sm:$0xf] %vm887, %v851
          %901 = vst.msk [vmem:[#allocation2 + $0x34] sm:$0xf] %vm887, %v852
          %902 = vst.msk [vmem:[#allocation2 + $0x38] sm:$0xf] %vm887, %v853
          %903 = vst.msk [vmem:[#allocation2 + $0x3c] sm:$0xf] %vm887, %v854
          %904 = vst.msk [vmem:[#allocation2 + $0x40] sm:$0xf] %vm887, %v855
          %905 = vst.msk [vmem:[#allocation2 + $0x44] sm:$0xf] %vm887, %v856
          %906 = vst.msk [vmem:[#allocation2 + $0x48] sm:$0xf] %vm887, %v857
          %907 = vst.msk [vmem:[#allocation2 + $0x4c] sm:$0xf] %vm887, %v858
          %908 = vst.msk [vmem:[#allocation2 + $0x50] sm:$0xf] %vm887, %v859
          %909 = vst.msk [vmem:[#allocation2 + $0x54] sm:$0xf] %vm887, %v860
          %910 = vst.msk [vmem:[#allocation2 + $0x58] sm:$0xf] %vm887, %v861
          %911 = vst.msk [vmem:[#allocation2 + $0x5c] sm:$0xf] %vm887, %v862
          %vm912 = vcmask 7168
          %913 = vst.msk [vmem:[#allocation3] sm:$0xff] %vm912, -inf
          %914 = vst.msk [vmem:[#allocation3 + $0x8] sm:$0xff] %vm912, -inf
          %915 = vst.msk [vmem:[#allocation3 + $0x10] sm:$0xff] %vm912, -inf
          %916 = vst.msk [vmem:[#allocation3 + $0x18] sm:$0xff] %vm912, -inf
          %917 = vst.msk [vmem:[#allocation3 + $0x20] sm:$0xff] %vm912, -inf
          %918 = vst.msk [vmem:[#allocation3 + $0x28] sm:$0xff] %vm912, -inf
          %919 = vst.msk [vmem:[#allocation3 + $0x30] sm:$0xff] %vm912, -inf
          %920 = vst.msk [vmem:[#allocation3 + $0x38] sm:$0xff] %vm912, -inf
          %921 = vst.msk [vmem:[#allocation3 + $0x40] sm:$0xff] %vm912, -inf
          %922 = vst.msk [vmem:[#allocation3 + $0x48] sm:$0xff] %vm912, -inf
          %923 = vst.msk [vmem:[#allocation3 + $0x50] sm:$0xff] %vm912, -inf
          %924 = vst.msk [vmem:[#allocation3 + $0x58] sm:$0xff] %vm912, -inf
          %925 = vst.msk [vmem:[#allocation3 + $0x60] sm:$0xff] %vm912, -inf
          %926 = vst.msk [vmem:[#allocation3 + $0x68] sm:$0xff] %vm912, -inf
          %927 = vst.msk [vmem:[#allocation3 + $0x70] sm:$0xff] %vm912, -inf
          %928 = vst.msk [vmem:[#allocation3 + $0x78] sm:$0xff] %vm912, -inf
          %929 = vst.msk [vmem:[#allocation3 + $0x80] sm:$0xff] %vm912, -inf
          %930 = vst.msk [vmem:[#allocation3 + $0x88] sm:$0xff] %vm912, -inf
          %931 = vst.msk [vmem:[#allocation3 + $0x90] sm:$0xff] %vm912, -inf
          %932 = vst.msk [vmem:[#allocation3 + $0x98] sm:$0xff] %vm912, -inf
          %933 = vst.msk [vmem:[#allocation3 + $0xa0] sm:$0xff] %vm912, -inf
          %934 = vst.msk [vmem:[#allocation3 + $0xa8] sm:$0xff] %vm912, -inf
          %935 = vst.msk [vmem:[#allocation3 + $0xb0] sm:$0xff] %vm912, -inf
          %936 = vst.msk [vmem:[#allocation3 + $0xb8] sm:$0xff] %vm912, -inf
          %937 = vst.msk [vmem:[#allocation4] sm:$0xff] %vm912, 0.0
          %938 = vst.msk [vmem:[#allocation4 + $0x8] sm:$0xff] %vm912, 0.0
          %939 = vst.msk [vmem:[#allocation4 + $0x10] sm:$0xff] %vm912, 0.0
          %940 = vst.msk [vmem:[#allocation4 + $0x18] sm:$0xff] %vm912, 0.0
          %941 = vst.msk [vmem:[#allocation4 + $0x20] sm:$0xff] %vm912, 0.0
          %942 = vst.msk [vmem:[#allocation4 + $0x28] sm:$0xff] %vm912, 0.0
          %943 = vst.msk [vmem:[#allocation4 + $0x30] sm:$0xff] %vm912, 0.0
          %944 = vst.msk [vmem:[#allocation4 + $0x38] sm:$0xff] %vm912, 0.0
          %945 = vst.msk [vmem:[#allocation4 + $0x40] sm:$0xff] %vm912, 0.0
          %946 = vst.msk [vmem:[#allocation4 + $0x48] sm:$0xff] %vm912, 0.0
          %947 = vst.msk [vmem:[#allocation4 + $0x50] sm:$0xff] %vm912, 0.0
          %948 = vst.msk [vmem:[#allocation4 + $0x58] sm:$0xff] %vm912, 0.0
          %949 = vst.msk [vmem:[#allocation4 + $0x60] sm:$0xff] %vm912, 0.0
          %950 = vst.msk [vmem:[#allocation4 + $0x68] sm:$0xff] %vm912, 0.0
          %951 = vst.msk [vmem:[#allocation4 + $0x70] sm:$0xff] %vm912, 0.0
          %952 = vst.msk [vmem:[#allocation4 + $0x78] sm:$0xff] %vm912, 0.0
          %953 = vst.msk [vmem:[#allocation4 + $0x80] sm:$0xff] %vm912, 0.0
          %954 = vst.msk [vmem:[#allocation4 + $0x88] sm:$0xff] %vm912, 0.0
          %955 = vst.msk [vmem:[#allocation4 + $0x90] sm:$0xff] %vm912, 0.0
          %956 = vst.msk [vmem:[#allocation4 + $0x98] sm:$0xff] %vm912, 0.0
          %957 = vst.msk [vmem:[#allocation4 + $0xa0] sm:$0xff] %vm912, 0.0
          %958 = vst.msk [vmem:[#allocation4 + $0xa8] sm:$0xff] %vm912, 0.0
          %959 = vst.msk [vmem:[#allocation4 + $0xb0] sm:$0xff] %vm912, 0.0
          %960 = vst.msk [vmem:[#allocation4 + $0xb8] sm:$0xff] %vm912, 0.0
          %961 = vst.msk [vmem:[#allocation5] sm:$0xff] %vm625, 0.0
          %962 = vst.msk [vmem:[#allocation5 + $0x8] sm:$0xff] %vm625, 0.0
          %963 = vst.msk [vmem:[#allocation5 + $0x10] sm:$0xff] %vm625, 0.0
          %964 = vst.msk [vmem:[#allocation5 + $0x18] sm:$0xff] %vm625, 0.0
          %965 = vst.msk [vmem:[#allocation5 + $0x20] sm:$0xff] %vm625, 0.0
          %966 = vst.msk [vmem:[#allocation5 + $0x28] sm:$0xff] %vm625, 0.0
          %967 = vst.msk [vmem:[#allocation5 + $0x30] sm:$0xff] %vm625, 0.0
          %968 = vst.msk [vmem:[#allocation5 + $0x38] sm:$0xff] %vm625, 0.0
          %969 = vst.msk [vmem:[#allocation5 + $0x40] sm:$0xff] %vm625, 0.0
          %970 = vst.msk [vmem:[#allocation5 + $0x48] sm:$0xff] %vm625, 0.0
          %971 = vst.msk [vmem:[#allocation5 + $0x50] sm:$0xff] %vm625, 0.0
          %972 = vst.msk [vmem:[#allocation5 + $0x58] sm:$0xff] %vm625, 0.0
          %973 = vst.msk [vmem:[#allocation5 + $0x60] sm:$0xff] %vm625, 0.0
          %974 = vst.msk [vmem:[#allocation5 + $0x68] sm:$0xff] %vm625, 0.0
          %975 = vst.msk [vmem:[#allocation5 + $0x70] sm:$0xff] %vm625, 0.0
          %976 = vst.msk [vmem:[#allocation5 + $0x78] sm:$0xff] %vm625, 0.0
          %977 = vst.msk [vmem:[#allocation5 + $0x80] sm:$0xff] %vm625, 0.0
          %978 = vst.msk [vmem:[#allocation5 + $0x88] sm:$0xff] %vm625, 0.0
          %979 = vst.msk [vmem:[#allocation5 + $0x90] sm:$0xff] %vm625, 0.0
          %980 = vst.msk [vmem:[#allocation5 + $0x98] sm:$0xff] %vm625, 0.0
          %981 = vst.msk [vmem:[#allocation5 + $0xa0] sm:$0xff] %vm625, 0.0
          %982 = vst.msk [vmem:[#allocation5 + $0xa8] sm:$0xff] %vm625, 0.0
          %983 = vst.msk [vmem:[#allocation5 + $0xb0] sm:$0xff] %vm625, 0.0
          %984 = vst.msk [vmem:[#allocation5 + $0xb8] sm:$0xff] %vm625, 0.0
        $region68: #{attention_forward_pallas.2} parent=59 // pred_fallthru
          _
        %v985 = vld [vmem:[%s465] sm:$0xff]
        %v986 = vld [vmem:[%s465 + $0x8] sm:$0xff]
        %v987 = vld [vmem:[%s465 + $0x10] sm:$0xff]
        %v988 = vld [vmem:[%s465 + $0x18] sm:$0xff]
        %v989 = vld [vmem:[%s465 + $0x20] sm:$0xff]
        %v990 = vld [vmem:[%s465 + $0x28] sm:$0xff]
        %v991 = vld [vmem:[%s465 + $0x30] sm:$0xff]
        %v992 = vld [vmem:[%s465 + $0x38] sm:$0xff]
        %v993 = vld [vmem:[%s465 + $0x40] sm:$0xff]
        %v994 = vld [vmem:[%s465 + $0x48] sm:$0xff]
        %v995 = vld [vmem:[%s465 + $0x50] sm:$0xff]
        %v996 = vld [vmem:[%s465 + $0x58] sm:$0xff]
        %v997 = vld [vmem:[%s465 + $0x60] sm:$0xff]
        %v998 = vld [vmem:[%s465 + $0x68] sm:$0xff]
        %v999 = vld [vmem:[%s465 + $0x70] sm:$0xff]
        %v1000 = vld [vmem:[%s465 + $0x78] sm:$0xff]
        %v1001 = vld [vmem:[%s465 + $0x80] sm:$0xff]
        %v1002 = vld [vmem:[%s465 + $0x88] sm:$0xff]
        %v1003 = vld [vmem:[%s465 + $0x90] sm:$0xff]
        %v1004 = vld [vmem:[%s465 + $0x98] sm:$0xff]
        %v1005 = vld [vmem:[%s465 + $0xa0] sm:$0xff]
        %v1006 = vld [vmem:[%s465 + $0xa8] sm:$0xff]
        %v1007 = vld [vmem:[%s465 + $0xb0] sm:$0xff]
        %v1008 = vld [vmem:[%s465 + $0xb8] sm:$0xff]
        %v1009 = vld [vmem:[%s469] sm:$0x1]
        %v1011 = vlaneseq
        %v1012 = vshrl.u32 %v1011, 7
        %v1013 = vsub.s32 0, %v1012
        %v1014 = vrot.slane %v1009, %v1013
        %v1016 = vmul.f32 %v985, %v1014
        %v1017 = vmul.f32 %v986, %v1014
        %v1018 = vmul.f32 %v987, %v1014
        %v1019 = vmul.f32 %v988, %v1014
        %v1020 = vmul.f32 %v989, %v1014
        %v1021 = vmul.f32 %v990, %v1014
        %v1022 = vmul.f32 %v991, %v1014
        %v1023 = vmul.f32 %v992, %v1014
        %v1024 = vmul.f32 %v993, %v1014
        %v1025 = vmul.f32 %v994, %v1014
        %v1026 = vmul.f32 %v995, %v1014
        %v1027 = vmul.f32 %v996, %v1014
        %v1028 = vmul.f32 %v997, %v1014
        %v1029 = vmul.f32 %v998, %v1014
        %v1030 = vmul.f32 %v999, %v1014
        %v1031 = vmul.f32 %v1000, %v1014
        %v1032 = vmul.f32 %v1001, %v1014
        %v1033 = vmul.f32 %v1002, %v1014
        %v1034 = vmul.f32 %v1003, %v1014
        %v1035 = vmul.f32 %v1004, %v1014
        %v1036 = vmul.f32 %v1005, %v1014
        %v1037 = vmul.f32 %v1006, %v1014
        %v1038 = vmul.f32 %v1007, %v1014
        %v1039 = vmul.f32 %v1008, %v1014
        %v1040 = vld [vmem:[%s472] sm:$0x1]
        %v1042 = vlaneseq
        %v1043 = vshrl.u32 %v1042, 7
        %v1044 = vsub.s32 0, %v1043
        %v1045 = vrot.slane %v1040, %v1044
        %v1047 = vadd.f32 %v1016, %v1045
        %v1048 = vadd.f32 %v1017, %v1045
        %v1049 = vadd.f32 %v1018, %v1045
        %v1050 = vadd.f32 %v1019, %v1045
        %v1051 = vadd.f32 %v1020, %v1045
        %v1052 = vadd.f32 %v1021, %v1045
        %v1053 = vadd.f32 %v1022, %v1045
        %v1054 = vadd.f32 %v1023, %v1045
        %v1055 = vadd.f32 %v1024, %v1045
        %v1056 = vadd.f32 %v1025, %v1045
        %v1057 = vadd.f32 %v1026, %v1045
        %v1058 = vadd.f32 %v1027, %v1045
        %v1059 = vadd.f32 %v1028, %v1045
        %v1060 = vadd.f32 %v1029, %v1045
        %v1061 = vadd.f32 %v1030, %v1045
        %v1062 = vadd.f32 %v1031, %v1045
        %v1063 = vadd.f32 %v1032, %v1045
        %v1064 = vadd.f32 %v1033, %v1045
        %v1065 = vadd.f32 %v1034, %v1045
        %v1066 = vadd.f32 %v1035, %v1045
        %v1067 = vadd.f32 %v1036, %v1045
        %v1068 = vadd.f32 %v1037, %v1045
        %v1069 = vadd.f32 %v1038, %v1045
        %v1070 = vadd.f32 %v1039, %v1045
        %v1071 = vpack.c.bf16 %v1048, %v1047
        %v1072 = vpack.c.bf16 %v1050, %v1049
        %v1073 = vpack.c.bf16 %v1052, %v1051
        %v1074 = vpack.c.bf16 %v1054, %v1053
        %v1075 = vpack.c.bf16 %v1056, %v1055
        %v1076 = vpack.c.bf16 %v1058, %v1057
        %v1077 = vpack.c.bf16 %v1060, %v1059
        %v1078 = vpack.c.bf16 %v1062, %v1061
        %v1079 = vpack.c.bf16 %v1064, %v1063
        %v1080 = vpack.c.bf16 %v1066, %v1065
        %v1081 = vpack.c.bf16 %v1068, %v1067
        %v1082 = vpack.c.bf16 %v1070, %v1069
        %v1083 = vld [vmem:[%s6] sm:$0xf]
        %v1084 = vld [vmem:[%s6 + $0x4] sm:$0xf]
        %v1085 = vld [vmem:[%s6 + $0x8] sm:$0xf]
        %v1086 = vld [vmem:[%s6 + $0xc] sm:$0xf]
        %v1087 = vld [vmem:[%s6 + $0x10] sm:$0xf]
        %v1088 = vld [vmem:[%s6 + $0x14] sm:$0xf]
        %v1089 = vld [vmem:[%s6 + $0x18] sm:$0xf]
        %v1090 = vld [vmem:[%s6 + $0x1c] sm:$0xf]
        %v1091 = vld [vmem:[%s7] sm:$0x1]
        %v1093 = vlaneseq
        %v1094 = vshrl.u32 %v1093, 7
        %v1095 = vsub.s32 0, %v1094
        %v1096 = vrot.slane %v1091, %v1095
        %v1106 = vunpack.c.l.b16 %v1083
        %v1107 = vunpack.c.l.b16 %v1084
        %v1108 = vunpack.c.l.b16 %v1085
        %v1109 = vunpack.c.l.b16 %v1086
        %v1110 = vunpack.c.l.b16 %v1087
        %v1111 = vunpack.c.l.b16 %v1088
        %v1112 = vunpack.c.l.b16 %v1089
        %v1113 = vunpack.c.l.b16 %v1090
        %v1114 = vpack.c.b16 %v1107, %v1106
        %v1115 = vpack.c.b16 %v1109, %v1108
        %v1116 = vpack.c.b16 %v1111, %v1110
        %v1117 = vpack.c.b16 %v1113, %v1112
        %vm1122 = vcmask 523264
        %v1124 = vsel %vm1122, %v1071, 0
        %v1127 = vsel %vm1122, %v1072, 0
        %v1130 = vsel %vm1122, %v1073, 0
        %v1133 = vsel %vm1122, %v1074, 0
        %v1136 = vsel %vm1122, %v1075, 0
        %v1139 = vsel %vm1122, %v1076, 0
        %v1142 = vsel %vm1122, %v1077, 0
        %v1145 = vsel %vm1122, %v1078, 0
        %v1148 = vsel %vm1122, %v1079, 0
        %v1151 = vsel %vm1122, %v1080, 0
        %v1154 = vsel %vm1122, %v1081, 0
        %v1157 = vsel %vm1122, %v1082, 0
        %1159 = vmatprep.subr.bf16.mxu0 0
        %1160 = vmatpush1.bf16.msra.mxu0 0
        %1161 = vmatprep.subr.bf16.mxu0 0
        %1162 = vmatpush1.bf16.msra.mxu0 0
        %1163 = vmatprep.subr.bf16.mxu0 0
        %1164 = vmatpush1.bf16.msra.mxu0 0
        %1165 = vmatprep.subr.bf16.mxu0 0
        %1166 = vmatpush1.bf16.msra.mxu0 0
        %1167 = vmatprep.subr.bf16.mxu0 0
        %1168 = vmatpush1.bf16.msra.mxu0 %v1117
        %1169 = vmatprep.subr.bf16.mxu0 0
        %1170 = vmatpush1.bf16.msra.mxu0 %v1116
        %1171 = vmatprep.subr.bf16.mxu0 0
        %1172 = vmatpush1.bf16.msra.mxu0 %v1115
        %1173 = vmatprep.subr.bf16.mxu0 0
        %1174 = vmatpush1.bf16.msra.mxu0 %v1114
        %1175 = vmatprep.subr.bf16.mxu0 0
        %1176 = vmatpush2.bf16.msra.mxu0 0
        %1177 = vmatprep.subr.bf16.mxu0 0
        %1178 = vmatpush2.bf16.msra.mxu0 0
        %1179 = vmatprep.subr.bf16.mxu0 0
        %1180 = vmatpush2.bf16.msra.mxu0 0
        %1181 = vmatprep.subr.bf16.mxu0 0
        %1182 = vmatpush2.bf16.msra.mxu0 0
        %1183 = vmatprep.subr.bf16.mxu0 0
        %1184 = vmatpush2.bf16.msra.mxu0 0
        %1185 = vmatprep.subr.bf16.mxu0 0
        %1186 = vmatpush2.bf16.msra.mxu0 0
        %1187 = vmatprep.subr.bf16.mxu0 0
        %1188 = vmatpush2.bf16.msra.mxu0 0
        %1189 = vmatprep.subr.bf16.mxu0 0
        %1190 = vmatpush2.bf16.msra.mxu0 0
        %1191 = vmatprep.mubr.bf16.mxu0 0
        %1192 = vmatmul.mubr.bf16.gmra.mxu0 %v1124
        %v1193 = vpop.f32.mrf.mxu0
        %v1194 = vadd.f32 %v1096, %v1193
        %v1195 = vpop.f32.mrf.mxu0
        %v1196 = vpop.f32.mrf.mxu0
        %v1197 = vadd.f32 %v1096, %v1196
        %v1198 = vpop.f32.mrf.mxu0
        %1199 = vmatprep.mubr.bf16.mxu0 0
        %1200 = vmatmul.mubr.bf16.gmra.mxu0 %v1127
        %v1201 = vpop.f32.mrf.mxu0
        %v1202 = vadd.f32 %v1096, %v1201
        %v1203 = vpop.f32.mrf.mxu0
        %v1204 = vpop.f32.mrf.mxu0
        %v1205 = vadd.f32 %v1096, %v1204
        %v1206 = vpop.f32.mrf.mxu0
        %1207 = vmatprep.mubr.bf16.mxu0 0
        %1208 = vmatmul.mubr.bf16.gmra.mxu0 %v1130
        %v1209 = vpop.f32.mrf.mxu0
        %v1210 = vadd.f32 %v1096, %v1209
        %v1211 = vpop.f32.mrf.mxu0
        %v1212 = vpop.f32.mrf.mxu0
        %v1213 = vadd.f32 %v1096, %v1212
        %v1214 = vpop.f32.mrf.mxu0
        %1215 = vmatprep.mubr.bf16.mxu0 0
        %1216 = vmatmul.mubr.bf16.gmra.mxu0 %v1133
        %v1217 = vpop.f32.mrf.mxu0
        %v1218 = vadd.f32 %v1096, %v1217
        %v1219 = vpop.f32.mrf.mxu0
        %v1220 = vpop.f32.mrf.mxu0
        %v1221 = vadd.f32 %v1096, %v1220
        %v1222 = vpop.f32.mrf.mxu0
        %1223 = vmatprep.mubr.bf16.mxu0 0
        %1224 = vmatmul.mubr.bf16.gmra.mxu0 %v1136
        %v1225 = vpop.f32.mrf.mxu0
        %v1226 = vadd.f32 %v1096, %v1225
        %v1227 = vpop.f32.mrf.mxu0
        %v1228 = vpop.f32.mrf.mxu0
        %v1229 = vadd.f32 %v1096, %v1228
        %v1230 = vpop.f32.mrf.mxu0
        %1231 = vmatprep.mubr.bf16.mxu0 0
        %1232 = vmatmul.mubr.bf16.gmra.mxu0 %v1139
        %v1233 = vpop.f32.mrf.mxu0
        %v1234 = vadd.f32 %v1096, %v1233
        %v1235 = vpop.f32.mrf.mxu0
        %v1236 = vpop.f32.mrf.mxu0
        %v1237 = vadd.f32 %v1096, %v1236
        %v1238 = vpop.f32.mrf.mxu0
        %1239 = vmatprep.mubr.bf16.mxu0 0
        %1240 = vmatmul.mubr.bf16.gmra.mxu0 %v1142
        %v1241 = vpop.f32.mrf.mxu0
        %v1242 = vadd.f32 %v1096, %v1241
        %v1243 = vpop.f32.mrf.mxu0
        %v1244 = vpop.f32.mrf.mxu0
        %v1245 = vadd.f32 %v1096, %v1244
        %v1246 = vpop.f32.mrf.mxu0
        %1247 = vmatprep.mubr.bf16.mxu0 0
        %1248 = vmatmul.mubr.bf16.gmra.mxu0 %v1145
        %v1249 = vpop.f32.mrf.mxu0
        %v1250 = vadd.f32 %v1096, %v1249
        %v1251 = vpop.f32.mrf.mxu0
        %v1252 = vpop.f32.mrf.mxu0
        %v1253 = vadd.f32 %v1096, %v1252
        %v1254 = vpop.f32.mrf.mxu0
        %1255 = vmatprep.mubr.bf16.mxu0 0
        %1256 = vmatmul.mubr.bf16.gmra.mxu0 %v1148
        %v1257 = vpop.f32.mrf.mxu0
        %v1258 = vadd.f32 %v1096, %v1257
        %v1259 = vpop.f32.mrf.mxu0
        %v1260 = vpop.f32.mrf.mxu0
        %v1261 = vadd.f32 %v1096, %v1260
        %v1262 = vpop.f32.mrf.mxu0
        %1263 = vmatprep.mubr.bf16.mxu0 0
        %1264 = vmatmul.mubr.bf16.gmra.mxu0 %v1151
        %v1265 = vpop.f32.mrf.mxu0
        %v1266 = vadd.f32 %v1096, %v1265
        %v1267 = vpop.f32.mrf.mxu0
        %v1268 = vpop.f32.mrf.mxu0
        %v1269 = vadd.f32 %v1096, %v1268
        %v1270 = vpop.f32.mrf.mxu0
        %1271 = vmatprep.mubr.bf16.mxu0 0
        %1272 = vmatmul.mubr.bf16.gmra.mxu0 %v1154
        %v1273 = vpop.f32.mrf.mxu0
        %v1274 = vadd.f32 %v1096, %v1273
        %v1275 = vpop.f32.mrf.mxu0
        %v1276 = vpop.f32.mrf.mxu0
        %v1277 = vadd.f32 %v1096, %v1276
        %v1278 = vpop.f32.mrf.mxu0
        %1279 = vmatprep.mubr.bf16.mxu0 0
        %1280 = vmatmul.mubr.bf16.gmra.mxu0 %v1157
        %v1281 = vpop.f32.mrf.mxu0
        %v1282 = vadd.f32 %v1096, %v1281
        %v1283 = vpop.f32.mrf.mxu0
        %v1284 = vpop.f32.mrf.mxu0
        %v1285 = vadd.f32 %v1096, %v1284
        %v1286 = vpop.f32.mrf.mxu0
        %1287 = vdwg.mxu0
        %v1288 = vpack.c.bf16 %v1197, %v1194
        %v1289 = vpack.c.bf16 %v1205, %v1202
        %v1290 = vpack.c.bf16 %v1213, %v1210
        %v1291 = vpack.c.bf16 %v1221, %v1218
        %v1292 = vpack.c.bf16 %v1229, %v1226
        %v1293 = vpack.c.bf16 %v1237, %v1234
        %v1294 = vpack.c.bf16 %v1245, %v1242
        %v1295 = vpack.c.bf16 %v1253, %v1250
        %v1296 = vpack.c.bf16 %v1261, %v1258
        %v1297 = vpack.c.bf16 %v1269, %v1266
        %v1298 = vpack.c.bf16 %v1277, %v1274
        %v1299 = vpack.c.bf16 %v1285, %v1282
        %v1300 = vld [vmem:[#allocation2] sm:$0xf]
        %v1301 = vld [vmem:[#allocation2 + $0x4] sm:$0xf]
        %v1302 = vld [vmem:[#allocation2 + $0x8] sm:$0xf]
        %v1303 = vld [vmem:[#allocation2 + $0xc] sm:$0xf]
        %v1304 = vld [vmem:[#allocation2 + $0x10] sm:$0xf]
        %v1305 = vld [vmem:[#allocation2 + $0x14] sm:$0xf]
        %v1306 = vld [vmem:[#allocation2 + $0x18] sm:$0xf]
        %v1307 = vld [vmem:[#allocation2 + $0x1c] sm:$0xf]
        %v1308 = vld [vmem:[#allocation2 + $0x20] sm:$0xf]
        %v1309 = vld [vmem:[#allocation2 + $0x24] sm:$0xf]
        %v1310 = vld [vmem:[#allocation2 + $0x28] sm:$0xf]
        %v1311 = vld [vmem:[#allocation2 + $0x2c] sm:$0xf]
        %v1312 = vld [vmem:[#allocation2 + $0x30] sm:$0xf]
        %v1313 = vld [vmem:[#allocation2 + $0x34] sm:$0xf]
        %v1314 = vld [vmem:[#allocation2 + $0x38] sm:$0xf]
        %v1315 = vld [vmem:[#allocation2 + $0x3c] sm:$0xf]
        %v1316 = vld [vmem:[#allocation2 + $0x40] sm:$0xf]
        %v1317 = vld [vmem:[#allocation2 + $0x44] sm:$0xf]
        %v1318 = vld [vmem:[#allocation2 + $0x48] sm:$0xf]
        %v1319 = vld [vmem:[#allocation2 + $0x4c] sm:$0xf]
        %v1320 = vld [vmem:[#allocation2 + $0x50] sm:$0xf]
        %v1321 = vld [vmem:[#allocation2 + $0x54] sm:$0xf]
        %v1322 = vld [vmem:[#allocation2 + $0x58] sm:$0xf]
        %v1323 = vld [vmem:[#allocation2 + $0x5c] sm:$0xf]
        %v1348 = vunpack.c.l.b16 %v1300
        %v1349 = vunpack.c.l.b16 %v1301
        %v1350 = vunpack.c.l.b16 %v1302
        %v1351 = vunpack.c.l.b16 %v1303
        %v1352 = vunpack.c.l.b16 %v1304
        %v1353 = vunpack.c.l.b16 %v1305
        %v1354 = vunpack.c.l.b16 %v1306
        %v1355 = vunpack.c.l.b16 %v1307
        %v1356 = vunpack.c.l.b16 %v1308
        %v1357 = vunpack.c.l.b16 %v1309
        %v1358 = vunpack.c.l.b16 %v1310
        %v1359 = vunpack.c.l.b16 %v1311
        %v1360 = vunpack.c.l.b16 %v1312
        %v1361 = vunpack.c.l.b16 %v1313
        %v1362 = vunpack.c.l.b16 %v1314
        %v1363 = vunpack.c.l.b16 %v1315
        %v1364 = vunpack.c.l.b16 %v1316
        %v1365 = vunpack.c.l.b16 %v1317
        %v1366 = vunpack.c.l.b16 %v1318
        %v1367 = vunpack.c.l.b16 %v1319
        %v1368 = vunpack.c.l.b16 %v1320
        %v1369 = vunpack.c.l.b16 %v1321
        %v1370 = vunpack.c.l.b16 %v1322
        %v1371 = vunpack.c.l.b16 %v1323
        %v1372 = vpack.c.b16 %v1349, %v1348
        %v1373 = vpack.c.b16 %v1351, %v1350
        %v1374 = vpack.c.b16 %v1353, %v1352
        %v1375 = vpack.c.b16 %v1355, %v1354
        %v1376 = vpack.c.b16 %v1357, %v1356
        %v1377 = vpack.c.b16 %v1359, %v1358
        %v1378 = vpack.c.b16 %v1361, %v1360
        %v1379 = vpack.c.b16 %v1363, %v1362
        %v1380 = vpack.c.b16 %v1365, %v1364
        %v1381 = vpack.c.b16 %v1367, %v1366
        %v1382 = vpack.c.b16 %v1369, %v1368
        %v1383 = vpack.c.b16 %v1371, %v1370
        %v1385 = vsel %vm1122, %v1372, 0
        %v1388 = vsel %vm1122, %v1373, 0
        %v1391 = vsel %vm1122, %v1374, 0
        %v1394 = vsel %vm1122, %v1375, 0
        %v1397 = vsel %vm1122, %v1376, 0
        %v1400 = vsel %vm1122, %v1377, 0
        %v1403 = vsel %vm1122, %v1378, 0
        %v1406 = vsel %vm1122, %v1379, 0
        %v1409 = vsel %vm1122, %v1380, 0
        %v1412 = vsel %vm1122, %v1381, 0
        %v1415 = vsel %vm1122, %v1382, 0
        %v1418 = vsel %vm1122, %v1383, 0
        %v1421 = vsel %vm1122, %v1288, 0
        %v1424 = vsel %vm1122, %v1289, 0
        %v1427 = vsel %vm1122, %v1290, 0
        %v1430 = vsel %vm1122, %v1291, 0
        %v1433 = vsel %vm1122, %v1292, 0
        %v1436 = vsel %vm1122, %v1293, 0
        %v1439 = vsel %vm1122, %v1294, 0
        %v1442 = vsel %vm1122, %v1295, 0
        %v1445 = vsel %vm1122, %v1296, 0
        %v1448 = vsel %vm1122, %v1297, 0
        %v1451 = vsel %vm1122, %v1298, 0
        %v1454 = vsel %vm1122, %v1299, 0
        %1456 = vmatprep.subr.bf16.mxu0 0
        %1457 = vmatpush1.bf16.xpose.msra.mxu0 %v1442
        %1458 = vmatprep.subr.bf16.mxu0 0
        %1459 = vmatpush1.bf16.xpose.msra.mxu0 %v1439
        %1460 = vmatprep.subr.bf16.mxu0 0
        %1461 = vmatpush1.bf16.xpose.msra.mxu0 %v1436
        %1462 = vmatprep.subr.bf16.mxu0 0
        %1463 = vmatpush1.bf16.xpose.msra.mxu0 %v1433
        %1464 = vmatprep.subr.bf16.mxu0 0
        %1465 = vmatpush1.bf16.xpose.msra.mxu0 %v1430
        %1466 = vmatprep.subr.bf16.mxu0 0
        %1467 = vmatpush1.bf16.xpose.msra.mxu0 %v1427
        %1468 = vmatprep.subr.bf16.mxu0 0
        %1469 = vmatpush1.bf16.xpose.msra.mxu0 %v1424
        %1470 = vmatprep.subr.bf16.mxu0 0
        %1471 = vmatpush1.bf16.xpose.msra.mxu0 %v1421
        %1472 = vmatprep.subr.bf16.mxu0 0
        %1473 = vmatpush2.bf16.xpose.msra.mxu0 0
        %1474 = vmatprep.subr.bf16.mxu0 0
        %1475 = vmatpush2.bf16.xpose.msra.mxu0 0
        %1476 = vmatprep.subr.bf16.mxu0 0
        %1477 = vmatpush2.bf16.xpose.msra.mxu0 0
        %1478 = vmatprep.subr.bf16.mxu0 0
        %1479 = vmatpush2.bf16.xpose.msra.mxu0 0
        %1480 = vmatprep.subr.bf16.mxu0 0
        %1481 = vmatpush2.bf16.xpose.msra.mxu0 %v1454
        %1482 = vmatprep.subr.bf16.mxu0 0
        %1483 = vmatpush2.bf16.xpose.msra.mxu0 %v1451
        %1484 = vmatprep.subr.bf16.mxu0 0
        %1485 = vmatpush2.bf16.xpose.msra.mxu0 %v1448
        %1486 = vmatprep.subr.bf16.mxu0 0
        %1487 = vmatpush2.bf16.xpose.msra.mxu0 %v1445
        %1488 = vmatprep.mubr.bf16.mxu0 0
        %1489 = vmatmul.mubr.bf16.gmra.mxu0 %v1385
        %v1490 = vpop.f32.mrf.mxu0
        %v1491 = vadd.f32 0.0, %v1490
        %v1492 = vpop.f32.mrf.mxu0
        %v1493 = vadd.f32 0.0, %v1492
        %v1494 = vpop.f32.mrf.mxu0
        %v1495 = vadd.f32 0.0, %v1494
        %v1496 = vpop.f32.mrf.mxu0
        %v1497 = vadd.f32 0.0, %v1496
        %1498 = vmatprep.mubr.bf16.mxu0 0
        %1499 = vmatmul.mubr.bf16.gmra.mxu0 %v1388
        %v1500 = vpop.f32.mrf.mxu0
        %v1501 = vadd.f32 0.0, %v1500
        %v1502 = vpop.f32.mrf.mxu0
        %v1503 = vadd.f32 0.0, %v1502
        %v1504 = vpop.f32.mrf.mxu0
        %v1505 = vadd.f32 0.0, %v1504
        %v1506 = vpop.f32.mrf.mxu0
        %v1507 = vadd.f32 0.0, %v1506
        %1508 = vmatprep.mubr.bf16.mxu0 0
        %1509 = vmatmul.mubr.bf16.gmra.mxu0 %v1391
        %v1510 = vpop.f32.mrf.mxu0
        %v1511 = vadd.f32 0.0, %v1510
        %v1512 = vpop.f32.mrf.mxu0
        %v1513 = vadd.f32 0.0, %v1512
        %v1514 = vpop.f32.mrf.mxu0
        %v1515 = vadd.f32 0.0, %v1514
        %v1516 = vpop.f32.mrf.mxu0
        %v1517 = vadd.f32 0.0, %v1516
        %1518 = vmatprep.mubr.bf16.mxu0 0
        %1519 = vmatmul.mubr.bf16.gmra.mxu0 %v1394
        %v1520 = vpop.f32.mrf.mxu0
        %v1521 = vadd.f32 0.0, %v1520
        %v1522 = vpop.f32.mrf.mxu0
        %v1523 = vadd.f32 0.0, %v1522
        %v1524 = vpop.f32.mrf.mxu0
        %v1525 = vadd.f32 0.0, %v1524
        %v1526 = vpop.f32.mrf.mxu0
        %v1527 = vadd.f32 0.0, %v1526
        %1528 = vmatprep.mubr.bf16.mxu0 0
        %1529 = vmatmul.mubr.bf16.gmra.mxu0 %v1397
        %v1530 = vpop.f32.mrf.mxu0
        %v1531 = vadd.f32 0.0, %v1530
        %v1532 = vpop.f32.mrf.mxu0
        %v1533 = vadd.f32 0.0, %v1532
        %v1534 = vpop.f32.mrf.mxu0
        %v1535 = vadd.f32 0.0, %v1534
        %v1536 = vpop.f32.mrf.mxu0
        %v1537 = vadd.f32 0.0, %v1536
        %1538 = vmatprep.mubr.bf16.mxu0 0
        %1539 = vmatmul.mubr.bf16.gmra.mxu0 %v1400
        %v1540 = vpop.f32.mrf.mxu0
        %v1541 = vadd.f32 0.0, %v1540
        %v1542 = vpop.f32.mrf.mxu0
        %v1543 = vadd.f32 0.0, %v1542
        %v1544 = vpop.f32.mrf.mxu0
        %v1545 = vadd.f32 0.0, %v1544
        %v1546 = vpop.f32.mrf.mxu0
        %v1547 = vadd.f32 0.0, %v1546
        %1548 = vmatprep.mubr.bf16.mxu0 0
        %1549 = vmatmul.mubr.bf16.gmra.mxu0 %v1403
        %v1550 = vpop.f32.mrf.mxu0
        %v1551 = vadd.f32 0.0, %v1550
        %v1552 = vpop.f32.mrf.mxu0
        %v1553 = vadd.f32 0.0, %v1552
        %v1554 = vpop.f32.mrf.mxu0
        %v1555 = vadd.f32 0.0, %v1554
        %v1556 = vpop.f32.mrf.mxu0
        %v1557 = vadd.f32 0.0, %v1556
        %1558 = vmatprep.mubr.bf16.mxu0 0
        %1559 = vmatmul.mubr.bf16.gmra.mxu0 %v1406
        %v1560 = vpop.f32.mrf.mxu0
        %v1561 = vadd.f32 0.0, %v1560
        %v1562 = vpop.f32.mrf.mxu0
        %v1563 = vadd.f32 0.0, %v1562
        %v1564 = vpop.f32.mrf.mxu0
        %v1565 = vadd.f32 0.0, %v1564
        %v1566 = vpop.f32.mrf.mxu0
        %v1567 = vadd.f32 0.0, %v1566
        %1568 = vmatprep.mubr.bf16.mxu0 0
        %1569 = vmatmul.mubr.bf16.gmra.mxu0 %v1409
        %v1570 = vpop.f32.mrf.mxu0
        %v1571 = vadd.f32 0.0, %v1570
        %v1572 = vpop.f32.mrf.mxu0
        %v1573 = vadd.f32 0.0, %v1572
        %v1574 = vpop.f32.mrf.mxu0
        %v1575 = vadd.f32 0.0, %v1574
        %v1576 = vpop.f32.mrf.mxu0
        %v1577 = vadd.f32 0.0, %v1576
        %1578 = vmatprep.mubr.bf16.mxu0 0
        %1579 = vmatmul.mubr.bf16.gmra.mxu0 %v1412
        %v1580 = vpop.f32.mrf.mxu0
        %v1581 = vadd.f32 0.0, %v1580
        %v1582 = vpop.f32.mrf.mxu0
        %v1583 = vadd.f32 0.0, %v1582
        %v1584 = vpop.f32.mrf.mxu0
        %v1585 = vadd.f32 0.0, %v1584
        %v1586 = vpop.f32.mrf.mxu0
        %v1587 = vadd.f32 0.0, %v1586
        %1588 = vmatprep.mubr.bf16.mxu0 0
        %1589 = vmatmul.mubr.bf16.gmra.mxu0 %v1415
        %v1590 = vpop.f32.mrf.mxu0
        %v1591 = vadd.f32 0.0, %v1590
        %v1592 = vpop.f32.mrf.mxu0
        %v1593 = vadd.f32 0.0, %v1592
        %v1594 = vpop.f32.mrf.mxu0
        %v1595 = vadd.f32 0.0, %v1594
        %v1596 = vpop.f32.mrf.mxu0
        %v1597 = vadd.f32 0.0, %v1596
        %1598 = vmatprep.mubr.bf16.mxu0 0
        %1599 = vmatmul.mubr.bf16.gmra.mxu0 %v1418
        %v1600 = vpop.f32.mrf.mxu0
        %v1601 = vadd.f32 0.0, %v1600
        %v1602 = vpop.f32.mrf.mxu0
        %v1603 = vadd.f32 0.0, %v1602
        %v1604 = vpop.f32.mrf.mxu0
        %v1605 = vadd.f32 0.0, %v1604
        %v1606 = vpop.f32.mrf.mxu0
        %v1607 = vadd.f32 0.0, %v1606
        %1608 = vdwg.mxu0
        %v1609 = vld [vmem:[#allocation3] sm:$0xff]
        %v1610 = vld [vmem:[#allocation3 + $0x8] sm:$0xff]
        %v1611 = vld [vmem:[#allocation3 + $0x10] sm:$0xff]
        %v1612 = vld [vmem:[#allocation3 + $0x18] sm:$0xff]
        %v1613 = vld [vmem:[#allocation3 + $0x20] sm:$0xff]
        %v1614 = vld [vmem:[#allocation3 + $0x28] sm:$0xff]
        %v1615 = vld [vmem:[#allocation3 + $0x30] sm:$0xff]
        %v1616 = vld [vmem:[#allocation3 + $0x38] sm:$0xff]
        %v1617 = vld [vmem:[#allocation3 + $0x40] sm:$0xff]
        %v1618 = vld [vmem:[#allocation3 + $0x48] sm:$0xff]
        %v1619 = vld [vmem:[#allocation3 + $0x50] sm:$0xff]
        %v1620 = vld [vmem:[#allocation3 + $0x58] sm:$0xff]
        %v1621 = vld [vmem:[#allocation3 + $0x60] sm:$0xff]
        %v1622 = vld [vmem:[#allocation3 + $0x68] sm:$0xff]
        %v1623 = vld [vmem:[#allocation3 + $0x70] sm:$0xff]
        %v1624 = vld [vmem:[#allocation3 + $0x78] sm:$0xff]
        %v1625 = vld [vmem:[#allocation3 + $0x80] sm:$0xff]
        %v1626 = vld [vmem:[#allocation3 + $0x88] sm:$0xff]
        %v1627 = vld [vmem:[#allocation3 + $0x90] sm:$0xff]
        %v1628 = vld [vmem:[#allocation3 + $0x98] sm:$0xff]
        %v1629 = vld [vmem:[#allocation3 + $0xa0] sm:$0xff]
        %v1630 = vld [vmem:[#allocation3 + $0xa8] sm:$0xff]
        %v1631 = vld [vmem:[#allocation3 + $0xb0] sm:$0xff]
        %v1632 = vld [vmem:[#allocation3 + $0xb8] sm:$0xff]
        %v1633 = vsel %vm1122, %v1493, -inf
        %v1634 = vmax.f32 %v1491, %v1633
        %1635 = vmax.xlane.f32.xlu0 %v1634
        %v1636 = vpop.xlane.xlu0 %1635
        %v1637 = vsel %vm1122, %v1497, -inf
        %v1638 = vmax.f32 %v1495, %v1637
        %1639 = vmax.xlane.f32.xlu0 %v1638
        %v1640 = vpop.xlane.xlu0 %1639
        %v1641 = vsel %vm1122, %v1503, -inf
        %v1642 = vmax.f32 %v1501, %v1641
        %1643 = vmax.xlane.f32.xlu0 %v1642
        %v1644 = vpop.xlane.xlu0 %1643
        %v1645 = vsel %vm1122, %v1507, -inf
        %v1646 = vmax.f32 %v1505, %v1645
        %1647 = vmax.xlane.f32.xlu0 %v1646
        %v1648 = vpop.xlane.xlu0 %1647
        %v1649 = vsel %vm1122, %v1513, -inf
        %v1650 = vmax.f32 %v1511, %v1649
        %1651 = vmax.xlane.f32.xlu0 %v1650
        %v1652 = vpop.xlane.xlu0 %1651
        %v1653 = vsel %vm1122, %v1517, -inf
        %v1654 = vmax.f32 %v1515, %v1653
        %1655 = vmax.xlane.f32.xlu0 %v1654
        %v1656 = vpop.xlane.xlu0 %1655
        %v1657 = vsel %vm1122, %v1523, -inf
        %v1658 = vmax.f32 %v1521, %v1657
        %1659 = vmax.xlane.f32.xlu0 %v1658
        %v1660 = vpop.xlane.xlu0 %1659
        %v1661 = vsel %vm1122, %v1527, -inf
        %v1662 = vmax.f32 %v1525, %v1661
        %1663 = vmax.xlane.f32.xlu0 %v1662
        %v1664 = vpop.xlane.xlu0 %1663
        %v1665 = vsel %vm1122, %v1533, -inf
        %v1666 = vmax.f32 %v1531, %v1665
        %1667 = vmax.xlane.f32.xlu0 %v1666
        %v1668 = vpop.xlane.xlu0 %1667
        %v1669 = vsel %vm1122, %v1537, -inf
        %v1670 = vmax.f32 %v1535, %v1669
        %1671 = vmax.xlane.f32.xlu0 %v1670
        %v1672 = vpop.xlane.xlu0 %1671
        %v1673 = vsel %vm1122, %v1543, -inf
        %v1674 = vmax.f32 %v1541, %v1673
        %1675 = vmax.xlane.f32.xlu0 %v1674
        %v1676 = vpop.xlane.xlu0 %1675
        %v1677 = vsel %vm1122, %v1547, -inf
        %v1678 = vmax.f32 %v1545, %v1677
        %1679 = vmax.xlane.f32.xlu0 %v1678
        %v1680 = vpop.xlane.xlu0 %1679
        %v1681 = vsel %vm1122, %v1553, -inf
        %v1682 = vmax.f32 %v1551, %v1681
        %1683 = vmax.xlane.f32.xlu0 %v1682
        %v1684 = vpop.xlane.xlu0 %1683
        %v1685 = vsel %vm1122, %v1557, -inf
        %v1686 = vmax.f32 %v1555, %v1685
        %1687 = vmax.xlane.f32.xlu0 %v1686
        %v1688 = vpop.xlane.xlu0 %1687
        %v1689 = vsel %vm1122, %v1563, -inf
        %v1690 = vmax.f32 %v1561, %v1689
        %1691 = vmax.xlane.f32.xlu0 %v1690
        %v1692 = vpop.xlane.xlu0 %1691
        %v1693 = vsel %vm1122, %v1567, -inf
        %v1694 = vmax.f32 %v1565, %v1693
        %1695 = vmax.xlane.f32.xlu0 %v1694
        %v1696 = vpop.xlane.xlu0 %1695
        %v1697 = vsel %vm1122, %v1573, -inf
        %v1698 = vmax.f32 %v1571, %v1697
        %1699 = vmax.xlane.f32.xlu0 %v1698
        %v1700 = vpop.xlane.xlu0 %1699
        %v1701 = vsel %vm1122, %v1577, -inf
        %v1702 = vmax.f32 %v1575, %v1701
        %1703 = vmax.xlane.f32.xlu0 %v1702
        %v1704 = vpop.xlane.xlu0 %1703
        %v1705 = vsel %vm1122, %v1583, -inf
        %v1706 = vmax.f32 %v1581, %v1705
        %1707 = vmax.xlane.f32.xlu0 %v1706
        %v1708 = vpop.xlane.xlu0 %1707
        %v1709 = vsel %vm1122, %v1587, -inf
        %v1710 = vmax.f32 %v1585, %v1709
        %1711 = vmax.xlane.f32.xlu0 %v1710
        %v1712 = vpop.xlane.xlu0 %1711
        %v1713 = vsel %vm1122, %v1593, -inf
        %v1714 = vmax.f32 %v1591, %v1713
        %1715 = vmax.xlane.f32.xlu0 %v1714
        %v1716 = vpop.xlane.xlu0 %1715
        %v1717 = vsel %vm1122, %v1597, -inf
        %v1718 = vmax.f32 %v1595, %v1717
        %1719 = vmax.xlane.f32.xlu0 %v1718
        %v1720 = vpop.xlane.xlu0 %1719
        %v1721 = vsel %vm1122, %v1603, -inf
        %v1722 = vmax.f32 %v1601, %v1721
        %1723 = vmax.xlane.f32.xlu0 %v1722
        %v1724 = vpop.xlane.xlu0 %1723
        %v1725 = vsel %vm1122, %v1607, -inf
        %v1726 = vmax.f32 %v1605, %v1725
        %1727 = vmax.xlane.f32.xlu0 %v1726
        %v1728 = vpop.xlane.xlu0 %1727
        %v1729 = vmax.f32 %v1609, %v1636
        %v1730 = vmax.f32 %v1610, %v1640
        %v1731 = vmax.f32 %v1611, %v1644
        %v1732 = vmax.f32 %v1612, %v1648
        %v1733 = vmax.f32 %v1613, %v1652
        %v1734 = vmax.f32 %v1614, %v1656
        %v1735 = vmax.f32 %v1615, %v1660
        %v1736 = vmax.f32 %v1616, %v1664
        %v1737 = vmax.f32 %v1617, %v1668
        %v1738 = vmax.f32 %v1618, %v1672
        %v1739 = vmax.f32 %v1619, %v1676
        %v1740 = vmax.f32 %v1620, %v1680
        %v1741 = vmax.f32 %v1621, %v1684
        %v1742 = vmax.f32 %v1622, %v1688
        %v1743 = vmax.f32 %v1623, %v1692
        %v1744 = vmax.f32 %v1624, %v1696
        %v1745 = vmax.f32 %v1625, %v1700
        %v1746 = vmax.f32 %v1626, %v1704
        %v1747 = vmax.f32 %v1627, %v1708
        %v1748 = vmax.f32 %v1628, %v1712
        %v1749 = vmax.f32 %v1629, %v1716
        %v1750 = vmax.f32 %v1630, %v1720
        %v1751 = vmax.f32 %v1631, %v1724
        %v1752 = vmax.f32 %v1632, %v1728
        %v1753 = vsub.f32 %v1609, %v1729
        %v1754 = vsub.f32 %v1610, %v1730
        %v1755 = vsub.f32 %v1611, %v1731
        %v1756 = vsub.f32 %v1612, %v1732
        %v1757 = vsub.f32 %v1613, %v1733
        %v1758 = vsub.f32 %v1614, %v1734
        %v1759 = vsub.f32 %v1615, %v1735
        %v1760 = vsub.f32 %v1616, %v1736
        %v1761 = vsub.f32 %v1617, %v1737
        %v1762 = vsub.f32 %v1618, %v1738
        %v1763 = vsub.f32 %v1619, %v1739
        %v1764 = vsub.f32 %v1620, %v1740
        %v1765 = vsub.f32 %v1621, %v1741
        %v1766 = vsub.f32 %v1622, %v1742
        %v1767 = vsub.f32 %v1623, %v1743
        %v1768 = vsub.f32 %v1624, %v1744
        %v1769 = vsub.f32 %v1625, %v1745
        %v1770 = vsub.f32 %v1626, %v1746
        %v1771 = vsub.f32 %v1627, %v1747
        %v1772 = vsub.f32 %v1628, %v1748
        %v1773 = vsub.f32 %v1629, %v1749
        %v1774 = vsub.f32 %v1630, %v1750
        %v1775 = vsub.f32 %v1631, %v1751
        %v1776 = vsub.f32 %v1632, %v1752
        %v1777 = vmul.f32 %v1753, 1.442695
        %v1778 = vpow.pop %v1777
        %v1779 = vmul.f32 %v1754, 1.442695
        %v1780 = vpow.pop %v1779
        %v1781 = vmul.f32 %v1755, 1.442695
        %v1782 = vpow.pop %v1781
        %v1783 = vmul.f32 %v1756, 1.442695
        %v1784 = vpow.pop %v1783
        %v1785 = vmul.f32 %v1757, 1.442695
        %v1786 = vpow.pop %v1785
        %v1787 = vmul.f32 %v1758, 1.442695
        %v1788 = vpow.pop %v1787
        %v1789 = vmul.f32 %v1759, 1.442695
        %v1790 = vpow.pop %v1789
        %v1791 = vmul.f32 %v1760, 1.442695
        %v1792 = vpow.pop %v1791
        %v1793 = vmul.f32 %v1761, 1.442695
        %v1794 = vpow.pop %v1793
        %v1795 = vmul.f32 %v1762, 1.442695
        %v1796 = vpow.pop %v1795
        %v1797 = vmul.f32 %v1763, 1.442695
        %v1798 = vpow.pop %v1797
        %v1799 = vmul.f32 %v1764, 1.442695
        %v1800 = vpow.pop %v1799
        %v1801 = vmul.f32 %v1765, 1.442695
        %v1802 = vpow.pop %v1801
        %v1803 = vmul.f32 %v1766, 1.442695
        %v1804 = vpow.pop %v1803
        %v1805 = vmul.f32 %v1767, 1.442695
        %v1806 = vpow.pop %v1805
        %v1807 = vmul.f32 %v1768, 1.442695
        %v1808 = vpow.pop %v1807
        %v1809 = vmul.f32 %v1769, 1.442695
        %v1810 = vpow.pop %v1809
        %v1811 = vmul.f32 %v1770, 1.442695
        %v1812 = vpow.pop %v1811
        %v1813 = vmul.f32 %v1771, 1.442695
        %v1814 = vpow.pop %v1813
        %v1815 = vmul.f32 %v1772, 1.442695
        %v1816 = vpow.pop %v1815
        %v1817 = vmul.f32 %v1773, 1.442695
        %v1818 = vpow.pop %v1817
        %v1819 = vmul.f32 %v1774, 1.442695
        %v1820 = vpow.pop %v1819
        %v1821 = vmul.f32 %v1775, 1.442695
        %v1822 = vpow.pop %v1821
        %v1823 = vmul.f32 %v1776, 1.442695
        %v1824 = vpow.pop %v1823
        %1826 = vset.pattern.permute.xlu0 0
        %1827 = vperm.xlu0 %1826, %v1729
        %v1828 = vpop.permute.xlu0 %1827
        %1831 = vset.pattern.permute.xlu0 0
        %1832 = vperm.xlu0 %1831, %v1730
        %v1833 = vpop.permute.xlu0 %1832
        %1836 = vset.pattern.permute.xlu0 0
        %1837 = vperm.xlu0 %1836, %v1731
        %v1838 = vpop.permute.xlu0 %1837
        %1841 = vset.pattern.permute.xlu0 0
        %1842 = vperm.xlu0 %1841, %v1732
        %v1843 = vpop.permute.xlu0 %1842
        %1846 = vset.pattern.permute.xlu0 0
        %1847 = vperm.xlu0 %1846, %v1733
        %v1848 = vpop.permute.xlu0 %1847
        %1851 = vset.pattern.permute.xlu0 0
        %1852 = vperm.xlu0 %1851, %v1734
        %v1853 = vpop.permute.xlu0 %1852
        %1856 = vset.pattern.permute.xlu0 0
        %1857 = vperm.xlu0 %1856, %v1735
        %v1858 = vpop.permute.xlu0 %1857
        %1861 = vset.pattern.permute.xlu0 0
        %1862 = vperm.xlu0 %1861, %v1736
        %v1863 = vpop.permute.xlu0 %1862
        %1866 = vset.pattern.permute.xlu0 0
        %1867 = vperm.xlu0 %1866, %v1737
        %v1868 = vpop.permute.xlu0 %1867
        %1871 = vset.pattern.permute.xlu0 0
        %1872 = vperm.xlu0 %1871, %v1738
        %v1873 = vpop.permute.xlu0 %1872
        %1876 = vset.pattern.permute.xlu0 0
        %1877 = vperm.xlu0 %1876, %v1739
        %v1878 = vpop.permute.xlu0 %1877
        %1881 = vset.pattern.permute.xlu0 0
        %1882 = vperm.xlu0 %1881, %v1740
        %v1883 = vpop.permute.xlu0 %1882
        %1886 = vset.pattern.permute.xlu0 0
        %1887 = vperm.xlu0 %1886, %v1741
        %v1888 = vpop.permute.xlu0 %1887
        %1891 = vset.pattern.permute.xlu0 0
        %1892 = vperm.xlu0 %1891, %v1742
        %v1893 = vpop.permute.xlu0 %1892
        %1896 = vset.pattern.permute.xlu0 0
        %1897 = vperm.xlu0 %1896, %v1743
        %v1898 = vpop.permute.xlu0 %1897
        %1901 = vset.pattern.permute.xlu0 0
        %1902 = vperm.xlu0 %1901, %v1744
        %v1903 = vpop.permute.xlu0 %1902
        %1906 = vset.pattern.permute.xlu0 0
        %1907 = vperm.xlu0 %1906, %v1745
        %v1908 = vpop.permute.xlu0 %1907
        %1911 = vset.pattern.permute.xlu0 0
        %1912 = vperm.xlu0 %1911, %v1746
        %v1913 = vpop.permute.xlu0 %1912
        %1916 = vset.pattern.permute.xlu0 0
        %1917 = vperm.xlu0 %1916, %v1747
        %v1918 = vpop.permute.xlu0 %1917
        %1921 = vset.pattern.permute.xlu0 0
        %1922 = vperm.xlu0 %1921, %v1748
        %v1923 = vpop.permute.xlu0 %1922
        %1926 = vset.pattern.permute.xlu0 0
        %1927 = vperm.xlu0 %1926, %v1749
        %v1928 = vpop.permute.xlu0 %1927
        %1931 = vset.pattern.permute.xlu0 0
        %1932 = vperm.xlu0 %1931, %v1750
        %v1933 = vpop.permute.xlu0 %1932
        %1936 = vset.pattern.permute.xlu0 0
        %1937 = vperm.xlu0 %1936, %v1751
        %v1938 = vpop.permute.xlu0 %1937
        %1941 = vset.pattern.permute.xlu0 0
        %1942 = vperm.xlu0 %1941, %v1752
        %v1943 = vpop.permute.xlu0 %1942
        %v1945 = vsub.f32 %v1491, %v1828
        %v1946 = vsub.f32 %v1493, %v1828
        %v1947 = vsub.f32 %v1495, %v1833
        %v1948 = vsub.f32 %v1497, %v1833
        %v1949 = vsub.f32 %v1501, %v1838
        %v1950 = vsub.f32 %v1503, %v1838
        %v1951 = vsub.f32 %v1505, %v1843
        %v1952 = vsub.f32 %v1507, %v1843
        %v1953 = vsub.f32 %v1511, %v1848
        %v1954 = vsub.f32 %v1513, %v1848
        %v1955 = vsub.f32 %v1515, %v1853
        %v1956 = vsub.f32 %v1517, %v1853
        %v1957 = vsub.f32 %v1521, %v1858
        %v1958 = vsub.f32 %v1523, %v1858
        %v1959 = vsub.f32 %v1525, %v1863
        %v1960 = vsub.f32 %v1527, %v1863
        %v1961 = vsub.f32 %v1531, %v1868
        %v1962 = vsub.f32 %v1533, %v1868
        %v1963 = vsub.f32 %v1535, %v1873
        %v1964 = vsub.f32 %v1537, %v1873
        %v1965 = vsub.f32 %v1541, %v1878
        %v1966 = vsub.f32 %v1543, %v1878
        %v1967 = vsub.f32 %v1545, %v1883
        %v1968 = vsub.f32 %v1547, %v1883
        %v1969 = vsub.f32 %v1551, %v1888
        %v1970 = vsub.f32 %v1553, %v1888
        %v1971 = vsub.f32 %v1555, %v1893
        %v1972 = vsub.f32 %v1557, %v1893
        %v1973 = vsub.f32 %v1561, %v1898
        %v1974 = vsub.f32 %v1563, %v1898
        %v1975 = vsub.f32 %v1565, %v1903
        %v1976 = vsub.f32 %v1567, %v1903
        %v1977 = vsub.f32 %v1571, %v1908
        %v1978 = vsub.f32 %v1573, %v1908
        %v1979 = vsub.f32 %v1575, %v1913
        %v1980 = vsub.f32 %v1577, %v1913
        %v1981 = vsub.f32 %v1581, %v1918
        %v1982 = vsub.f32 %v1583, %v1918
        %v1983 = vsub.f32 %v1585, %v1923
        %v1984 = vsub.f32 %v1587, %v1923
        %v1985 = vsub.f32 %v1591, %v1928
        %v1986 = vsub.f32 %v1593, %v1928
        %v1987 = vsub.f32 %v1595, %v1933
        %v1988 = vsub.f32 %v1597, %v1933
        %v1989 = vsub.f32 %v1601, %v1938
        %v1990 = vsub.f32 %v1603, %v1938
        %v1991 = vsub.f32 %v1605, %v1943
        %v1992 = vsub.f32 %v1607, %v1943
        %v1993 = vmul.f32 %v1945, 1.442695
        %v1994 = vpow.pop %v1993
        %v1995 = vmul.f32 %v1946, 1.442695
        %v1996 = vpow.pop %v1995
        %v1997 = vmul.f32 %v1947, 1.442695
        %v1998 = vpow.pop %v1997
        %v1999 = vmul.f32 %v1948, 1.442695
        %v2000 = vpow.pop %v1999
        %v2001 = vmul.f32 %v1949, 1.442695
        %v2002 = vpow.pop %v2001
        %v2003 = vmul.f32 %v1950, 1.442695
        %v2004 = vpow.pop %v2003
        %v2005 = vmul.f32 %v1951, 1.442695
        %v2006 = vpow.pop %v2005
        %v2007 = vmul.f32 %v1952, 1.442695
        %v2008 = vpow.pop %v2007
        %v2009 = vmul.f32 %v1953, 1.442695
        %v2010 = vpow.pop %v2009
        %v2011 = vmul.f32 %v1954, 1.442695
        %v2012 = vpow.pop %v2011
        %v2013 = vmul.f32 %v1955, 1.442695
        %v2014 = vpow.pop %v2013
        %v2015 = vmul.f32 %v1956, 1.442695
        %v2016 = vpow.pop %v2015
        %v2017 = vmul.f32 %v1957, 1.442695
        %v2018 = vpow.pop %v2017
        %v2019 = vmul.f32 %v1958, 1.442695
        %v2020 = vpow.pop %v2019
        %v2021 = vmul.f32 %v1959, 1.442695
        %v2022 = vpow.pop %v2021
        %v2023 = vmul.f32 %v1960, 1.442695
        %v2024 = vpow.pop %v2023
        %v2025 = vmul.f32 %v1961, 1.442695
        %v2026 = vpow.pop %v2025
        %v2027 = vmul.f32 %v1962, 1.442695
        %v2028 = vpow.pop %v2027
        %v2029 = vmul.f32 %v1963, 1.442695
        %v2030 = vpow.pop %v2029
        %v2031 = vmul.f32 %v1964, 1.442695
        %v2032 = vpow.pop %v2031
        %v2033 = vmul.f32 %v1965, 1.442695
        %v2034 = vpow.pop %v2033
        %v2035 = vmul.f32 %v1966, 1.442695
        %v2036 = vpow.pop %v2035
        %v2037 = vmul.f32 %v1967, 1.442695
        %v2038 = vpow.pop %v2037
        %v2039 = vmul.f32 %v1968, 1.442695
        %v2040 = vpow.pop %v2039
        %v2041 = vmul.f32 %v1969, 1.442695
        %v2042 = vpow.pop %v2041
        %v2043 = vmul.f32 %v1970, 1.442695
        %v2044 = vpow.pop %v2043
        %v2045 = vmul.f32 %v1971, 1.442695
        %v2046 = vpow.pop %v2045
        %v2047 = vmul.f32 %v1972, 1.442695
        %v2048 = vpow.pop %v2047
        %v2049 = vmul.f32 %v1973, 1.442695
        %v2050 = vpow.pop %v2049
        %v2051 = vmul.f32 %v1974, 1.442695
        %v2052 = vpow.pop %v2051
        %v2053 = vmul.f32 %v1975, 1.442695
        %v2054 = vpow.pop %v2053
        %v2055 = vmul.f32 %v1976, 1.442695
        %v2056 = vpow.pop %v2055
        %v2057 = vmul.f32 %v1977, 1.442695
        %v2058 = vpow.pop %v2057
        %v2059 = vmul.f32 %v1978, 1.442695
        %v2060 = vpow.pop %v2059
        %v2061 = vmul.f32 %v1979, 1.442695
        %v2062 = vpow.pop %v2061
        %v2063 = vmul.f32 %v1980, 1.442695
        %v2064 = vpow.pop %v2063
        %v2065 = vmul.f32 %v1981, 1.442695
        %v2066 = vpow.pop %v2065
        %v2067 = vmul.f32 %v1982, 1.442695
        %v2068 = vpow.pop %v2067
        %v2069 = vmul.f32 %v1983, 1.442695
        %v2070 = vpow.pop %v2069
        %v2071 = vmul.f32 %v1984, 1.442695
        %v2072 = vpow.pop %v2071
        %v2073 = vmul.f32 %v1985, 1.442695
        %v2074 = vpow.pop %v2073
        %v2075 = vmul.f32 %v1986, 1.442695
        %v2076 = vpow.pop %v2075
        %v2077 = vmul.f32 %v1987, 1.442695
        %v2078 = vpow.pop %v2077
        %v2079 = vmul.f32 %v1988, 1.442695
        %v2080 = vpow.pop %v2079
        %v2081 = vmul.f32 %v1989, 1.442695
        %v2082 = vpow.pop %v2081
        %v2083 = vmul.f32 %v1990, 1.442695
        %v2084 = vpow.pop %v2083
        %v2085 = vmul.f32 %v1991, 1.442695
        %v2086 = vpow.pop %v2085
        %v2087 = vmul.f32 %v1992, 1.442695
        %v2088 = vpow.pop %v2087
        %v2089 = vld [vmem:[#allocation4] sm:$0xff]
        %v2090 = vld [vmem:[#allocation4 + $0x8] sm:$0xff]
        %v2091 = vld [vmem:[#allocation4 + $0x10] sm:$0xff]
        %v2092 = vld [vmem:[#allocation4 + $0x18] sm:$0xff]
        %v2093 = vld [vmem:[#allocation4 + $0x20] sm:$0xff]
        %v2094 = vld [vmem:[#allocation4 + $0x28] sm:$0xff]
        %v2095 = vld [vmem:[#allocation4 + $0x30] sm:$0xff]
        %v2096 = vld [vmem:[#allocation4 + $0x38] sm:$0xff]
        %v2097 = vld [vmem:[#allocation4 + $0x40] sm:$0xff]
        %v2098 = vld [vmem:[#allocation4 + $0x48] sm:$0xff]
        %v2099 = vld [vmem:[#allocation4 + $0x50] sm:$0xff]
        %v2100 = vld [vmem:[#allocation4 + $0x58] sm:$0xff]
        %v2101 = vld [vmem:[#allocation4 + $0x60] sm:$0xff]
        %v2102 = vld [vmem:[#allocation4 + $0x68] sm:$0xff]
        %v2103 = vld [vmem:[#allocation4 + $0x70] sm:$0xff]
        %v2104 = vld [vmem:[#allocation4 + $0x78] sm:$0xff]
        %v2105 = vld [vmem:[#allocation4 + $0x80] sm:$0xff]
        %v2106 = vld [vmem:[#allocation4 + $0x88] sm:$0xff]
        %v2107 = vld [vmem:[#allocation4 + $0x90] sm:$0xff]
        %v2108 = vld [vmem:[#allocation4 + $0x98] sm:$0xff]
        %v2109 = vld [vmem:[#allocation4 + $0xa0] sm:$0xff]
        %v2110 = vld [vmem:[#allocation4 + $0xa8] sm:$0xff]
        %v2111 = vld [vmem:[#allocation4 + $0xb0] sm:$0xff]
        %v2112 = vld [vmem:[#allocation4 + $0xb8] sm:$0xff]
        %v2113 = vmul.f32 %v1778, %v2089
        %v2114 = vmul.f32 %v1780, %v2090
        %v2115 = vmul.f32 %v1782, %v2091
        %v2116 = vmul.f32 %v1784, %v2092
        %v2117 = vmul.f32 %v1786, %v2093
        %v2118 = vmul.f32 %v1788, %v2094
        %v2119 = vmul.f32 %v1790, %v2095
        %v2120 = vmul.f32 %v1792, %v2096
        %v2121 = vmul.f32 %v1794, %v2097
        %v2122 = vmul.f32 %v1796, %v2098
        %v2123 = vmul.f32 %v1798, %v2099
        %v2124 = vmul.f32 %v1800, %v2100
        %v2125 = vmul.f32 %v1802, %v2101
        %v2126 = vmul.f32 %v1804, %v2102
        %v2127 = vmul.f32 %v1806, %v2103
        %v2128 = vmul.f32 %v1808, %v2104
        %v2129 = vmul.f32 %v1810, %v2105
        %v2130 = vmul.f32 %v1812, %v2106
        %v2131 = vmul.f32 %v1814, %v2107
        %v2132 = vmul.f32 %v1816, %v2108
        %v2133 = vmul.f32 %v1818, %v2109
        %v2134 = vmul.f32 %v1820, %v2110
        %v2135 = vmul.f32 %v1822, %v2111
        %v2136 = vmul.f32 %v1824, %v2112
        %v2137 = vsel %vm1122, %v1996, 0.0
        %v2138 = vadd.f32 %v1994, %v2137
        %2139 = vadd.xlane.f32.xlu0 %v2138
        %v2140 = vpop.xlane.xlu0 %2139
        %v2141 = vsel %vm1122, %v2000, 0.0
        %v2142 = vadd.f32 %v1998, %v2141
        %2143 = vadd.xlane.f32.xlu0 %v2142
        %v2144 = vpop.xlane.xlu0 %2143
        %v2145 = vsel %vm1122, %v2004, 0.0
        %v2146 = vadd.f32 %v2002, %v2145
        %2147 = vadd.xlane.f32.xlu0 %v2146
        %v2148 = vpop.xlane.xlu0 %2147
        %v2149 = vsel %vm1122, %v2008, 0.0
        %v2150 = vadd.f32 %v2006, %v2149
        %2151 = vadd.xlane.f32.xlu0 %v2150
        %v2152 = vpop.xlane.xlu0 %2151
        %v2153 = vsel %vm1122, %v2012, 0.0
        %v2154 = vadd.f32 %v2010, %v2153
        %2155 = vadd.xlane.f32.xlu0 %v2154
        %v2156 = vpop.xlane.xlu0 %2155
        %v2157 = vsel %vm1122, %v2016, 0.0
        %v2158 = vadd.f32 %v2014, %v2157
        %2159 = vadd.xlane.f32.xlu0 %v2158
        %v2160 = vpop.xlane.xlu0 %2159
        %v2161 = vsel %vm1122, %v2020, 0.0
        %v2162 = vadd.f32 %v2018, %v2161
        %2163 = vadd.xlane.f32.xlu0 %v2162
        %v2164 = vpop.xlane.xlu0 %2163
        %v2165 = vsel %vm1122, %v2024, 0.0
        %v2166 = vadd.f32 %v2022, %v2165
        %2167 = vadd.xlane.f32.xlu0 %v2166
        %v2168 = vpop.xlane.xlu0 %2167
        %v2169 = vsel %vm1122, %v2028, 0.0
        %v2170 = vadd.f32 %v2026, %v2169
        %2171 = vadd.xlane.f32.xlu0 %v2170
        %v2172 = vpop.xlane.xlu0 %2171
        %v2173 = vsel %vm1122, %v2032, 0.0
        %v2174 = vadd.f32 %v2030, %v2173
        %2175 = vadd.xlane.f32.xlu0 %v2174
        %v2176 = vpop.xlane.xlu0 %2175
        %v2177 = vsel %vm1122, %v2036, 0.0
        %v2178 = vadd.f32 %v2034, %v2177
        %2179 = vadd.xlane.f32.xlu0 %v2178
        %v2180 = vpop.xlane.xlu0 %2179
        %v2181 = vsel %vm1122, %v2040, 0.0
        %v2182 = vadd.f32 %v2038, %v2181
        %2183 = vadd.xlane.f32.xlu0 %v2182
        %v2184 = vpop.xlane.xlu0 %2183
        %v2185 = vsel %vm1122, %v2044, 0.0
        %v2186 = vadd.f32 %v2042, %v2185
        %2187 = vadd.xlane.f32.xlu0 %v2186
        %v2188 = vpop.xlane.xlu0 %2187
        %v2189 = vsel %vm1122, %v2048, 0.0
        %v2190 = vadd.f32 %v2046, %v2189
        %2191 = vadd.xlane.f32.xlu0 %v2190
        %v2192 = vpop.xlane.xlu0 %2191
        %v2193 = vsel %vm1122, %v2052, 0.0
        %v2194 = vadd.f32 %v2050, %v2193
        %2195 = vadd.xlane.f32.xlu0 %v2194
        %v2196 = vpop.xlane.xlu0 %2195
        %v2197 = vsel %vm1122, %v2056, 0.0
        %v2198 = vadd.f32 %v2054, %v2197
        %2199 = vadd.xlane.f32.xlu0 %v2198
        %v2200 = vpop.xlane.xlu0 %2199
        %v2201 = vsel %vm1122, %v2060, 0.0
        %v2202 = vadd.f32 %v2058, %v2201
        %2203 = vadd.xlane.f32.xlu0 %v2202
        %v2204 = vpop.xlane.xlu0 %2203
        %v2205 = vsel %vm1122, %v2064, 0.0
        %v2206 = vadd.f32 %v2062, %v2205
        %2207 = vadd.xlane.f32.xlu0 %v2206
        %v2208 = vpop.xlane.xlu0 %2207
        %v2209 = vsel %vm1122, %v2068, 0.0
        %v2210 = vadd.f32 %v2066, %v2209
        %2211 = vadd.xlane.f32.xlu0 %v2210
        %v2212 = vpop.xlane.xlu0 %2211
        %v2213 = vsel %vm1122, %v2072, 0.0
        %v2214 = vadd.f32 %v2070, %v2213
        %2215 = vadd.xlane.f32.xlu0 %v2214
        %v2216 = vpop.xlane.xlu0 %2215
        %v2217 = vsel %vm1122, %v2076, 0.0
        %v2218 = vadd.f32 %v2074, %v2217
        %2219 = vadd.xlane.f32.xlu0 %v2218
        %v2220 = vpop.xlane.xlu0 %2219
        %v2221 = vsel %vm1122, %v2080, 0.0
        %v2222 = vadd.f32 %v2078, %v2221
        %2223 = vadd.xlane.f32.xlu0 %v2222
        %v2224 = vpop.xlane.xlu0 %2223
        %v2225 = vsel %vm1122, %v2084, 0.0
        %v2226 = vadd.f32 %v2082, %v2225
        %2227 = vadd.xlane.f32.xlu0 %v2226
        %v2228 = vpop.xlane.xlu0 %2227
        %v2229 = vsel %vm1122, %v2088, 0.0
        %v2230 = vadd.f32 %v2086, %v2229
        %2231 = vadd.xlane.f32.xlu0 %v2230
        %v2232 = vpop.xlane.xlu0 %2231
        %v2233 = vadd.f32 %v2113, %v2140
        %v2234 = vadd.f32 %v2114, %v2144
        %v2235 = vadd.f32 %v2115, %v2148
        %v2236 = vadd.f32 %v2116, %v2152
        %v2237 = vadd.f32 %v2117, %v2156
        %v2238 = vadd.f32 %v2118, %v2160
        %v2239 = vadd.f32 %v2119, %v2164
        %v2240 = vadd.f32 %v2120, %v2168
        %v2241 = vadd.f32 %v2121, %v2172
        %v2242 = vadd.f32 %v2122, %v2176
        %v2243 = vadd.f32 %v2123, %v2180
        %v2244 = vadd.f32 %v2124, %v2184
        %v2245 = vadd.f32 %v2125, %v2188
        %v2246 = vadd.f32 %v2126, %v2192
        %v2247 = vadd.f32 %v2127, %v2196
        %v2248 = vadd.f32 %v2128, %v2200
        %v2249 = vadd.f32 %v2129, %v2204
        %v2250 = vadd.f32 %v2130, %v2208
        %v2251 = vadd.f32 %v2131, %v2212
        %v2252 = vadd.f32 %v2132, %v2216
        %v2253 = vadd.f32 %v2133, %v2220
        %v2254 = vadd.f32 %v2134, %v2224
        %v2255 = vadd.f32 %v2135, %v2228
        %v2256 = vadd.f32 %v2136, %v2232
        %vm2257 = vcmask 7168
        %2258 = vst.msk [vmem:[#allocation4] sm:$0xff] %vm2257, %v2233
        %2259 = vst.msk [vmem:[#allocation4 + $0x8] sm:$0xff] %vm2257, %v2234
        %2260 = vst.msk [vmem:[#allocation4 + $0x10] sm:$0xff] %vm2257, %v2235
        %2261 = vst.msk [vmem:[#allocation4 + $0x18] sm:$0xff] %vm2257, %v2236
        %2262 = vst.msk [vmem:[#allocation4 + $0x20] sm:$0xff] %vm2257, %v2237
        %2263 = vst.msk [vmem:[#allocation4 + $0x28] sm:$0xff] %vm2257, %v2238
        %2264 = vst.msk [vmem:[#allocation4 + $0x30] sm:$0xff] %vm2257, %v2239
        %2265 = vst.msk [vmem:[#allocation4 + $0x38] sm:$0xff] %vm2257, %v2240
        %2266 = vst.msk [vmem:[#allocation4 + $0x40] sm:$0xff] %vm2257, %v2241
        %2267 = vst.msk [vmem:[#allocation4 + $0x48] sm:$0xff] %vm2257, %v2242
        %2268 = vst.msk [vmem:[#allocation4 + $0x50] sm:$0xff] %vm2257, %v2243
        %2269 = vst.msk [vmem:[#allocation4 + $0x58] sm:$0xff] %vm2257, %v2244
        %2270 = vst.msk [vmem:[#allocation4 + $0x60] sm:$0xff] %vm2257, %v2245
        %2271 = vst.msk [vmem:[#allocation4 + $0x68] sm:$0xff] %vm2257, %v2246
        %2272 = vst.msk [vmem:[#allocation4 + $0x70] sm:$0xff] %vm2257, %v2247
        %2273 = vst.msk [vmem:[#allocation4 + $0x78] sm:$0xff] %vm2257, %v2248
        %2274 = vst.msk [vmem:[#allocation4 + $0x80] sm:$0xff] %vm2257, %v2249
        %2275 = vst.msk [vmem:[#allocation4 + $0x88] sm:$0xff] %vm2257, %v2250
        %2276 = vst.msk [vmem:[#allocation4 + $0x90] sm:$0xff] %vm2257, %v2251
        %2277 = vst.msk [vmem:[#allocation4 + $0x98] sm:$0xff] %vm2257, %v2252
        %2278 = vst.msk [vmem:[#allocation4 + $0xa0] sm:$0xff] %vm2257, %v2253
        %2279 = vst.msk [vmem:[#allocation4 + $0xa8] sm:$0xff] %vm2257, %v2254
        %2280 = vst.msk [vmem:[#allocation4 + $0xb0] sm:$0xff] %vm2257, %v2255
        %2281 = vst.msk [vmem:[#allocation4 + $0xb8] sm:$0xff] %vm2257, %v2256
        %v2282 = vld [vmem:[#allocation5] sm:$0xff]
        %v2283 = vld [vmem:[#allocation5 + $0x8] sm:$0xff]
        %v2284 = vld [vmem:[#allocation5 + $0x10] sm:$0xff]
        %v2285 = vld [vmem:[#allocation5 + $0x18] sm:$0xff]
        %v2286 = vld [vmem:[#allocation5 + $0x20] sm:$0xff]
        %v2287 = vld [vmem:[#allocation5 + $0x28] sm:$0xff]
        %v2288 = vld [vmem:[#allocation5 + $0x30] sm:$0xff]
        %v2289 = vld [vmem:[#allocation5 + $0x38] sm:$0xff]
        %v2290 = vld [vmem:[#allocation5 + $0x40] sm:$0xff]
        %v2291 = vld [vmem:[#allocation5 + $0x48] sm:$0xff]
        %v2292 = vld [vmem:[#allocation5 + $0x50] sm:$0xff]
        %v2293 = vld [vmem:[#allocation5 + $0x58] sm:$0xff]
        %v2294 = vld [vmem:[#allocation5 + $0x60] sm:$0xff]
        %v2295 = vld [vmem:[#allocation5 + $0x68] sm:$0xff]
        %v2296 = vld [vmem:[#allocation5 + $0x70] sm:$0xff]
        %v2297 = vld [vmem:[#allocation5 + $0x78] sm:$0xff]
        %v2298 = vld [vmem:[#allocation5 + $0x80] sm:$0xff]
        %v2299 = vld [vmem:[#allocation5 + $0x88] sm:$0xff]
        %v2300 = vld [vmem:[#allocation5 + $0x90] sm:$0xff]
        %v2301 = vld [vmem:[#allocation5 + $0x98] sm:$0xff]
        %v2302 = vld [vmem:[#allocation5 + $0xa0] sm:$0xff]
        %v2303 = vld [vmem:[#allocation5 + $0xa8] sm:$0xff]
        %v2304 = vld [vmem:[#allocation5 + $0xb0] sm:$0xff]
        %v2305 = vld [vmem:[#allocation5 + $0xb8] sm:$0xff]
        %2307 = vset.pattern.permute.xlu0 0
        %2308 = vperm.xlu0 %2307, %v1778
        %v2309 = vpop.permute.xlu0 %2308
        %2312 = vset.pattern.permute.xlu0 0
        %2313 = vperm.xlu0 %2312, %v1780
        %v2314 = vpop.permute.xlu0 %2313
        %2317 = vset.pattern.permute.xlu0 0
        %2318 = vperm.xlu0 %2317, %v1782
        %v2319 = vpop.permute.xlu0 %2318
        %2322 = vset.pattern.permute.xlu0 0
        %2323 = vperm.xlu0 %2322, %v1784
        %v2324 = vpop.permute.xlu0 %2323
        %2327 = vset.pattern.permute.xlu0 0
        %2328 = vperm.xlu0 %2327, %v1786
        %v2329 = vpop.permute.xlu0 %2328
        %2332 = vset.pattern.permute.xlu0 0
        %2333 = vperm.xlu0 %2332, %v1788
        %v2334 = vpop.permute.xlu0 %2333
        %2337 = vset.pattern.permute.xlu0 0
        %2338 = vperm.xlu0 %2337, %v1790
        %v2339 = vpop.permute.xlu0 %2338
        %2342 = vset.pattern.permute.xlu0 0
        %2343 = vperm.xlu0 %2342, %v1792
        %v2344 = vpop.permute.xlu0 %2343
        %2347 = vset.pattern.permute.xlu0 0
        %2348 = vperm.xlu0 %2347, %v1794
        %v2349 = vpop.permute.xlu0 %2348
        %2352 = vset.pattern.permute.xlu0 0
        %2353 = vperm.xlu0 %2352, %v1796
        %v2354 = vpop.permute.xlu0 %2353
        %2357 = vset.pattern.permute.xlu0 0
        %2358 = vperm.xlu0 %2357, %v1798
        %v2359 = vpop.permute.xlu0 %2358
        %2362 = vset.pattern.permute.xlu0 0
        %2363 = vperm.xlu0 %2362, %v1800
        %v2364 = vpop.permute.xlu0 %2363
        %2367 = vset.pattern.permute.xlu0 0
        %2368 = vperm.xlu0 %2367, %v1802
        %v2369 = vpop.permute.xlu0 %2368
        %2372 = vset.pattern.permute.xlu0 0
        %2373 = vperm.xlu0 %2372, %v1804
        %v2374 = vpop.permute.xlu0 %2373
        %2377 = vset.pattern.permute.xlu0 0
        %2378 = vperm.xlu0 %2377, %v1806
        %v2379 = vpop.permute.xlu0 %2378
        %2382 = vset.pattern.permute.xlu0 0
        %2383 = vperm.xlu0 %2382, %v1808
        %v2384 = vpop.permute.xlu0 %2383
        %2387 = vset.pattern.permute.xlu0 0
        %2388 = vperm.xlu0 %2387, %v1810
        %v2389 = vpop.permute.xlu0 %2388
        %2392 = vset.pattern.permute.xlu0 0
        %2393 = vperm.xlu0 %2392, %v1812
        %v2394 = vpop.permute.xlu0 %2393
        %2397 = vset.pattern.permute.xlu0 0
        %2398 = vperm.xlu0 %2397, %v1814
        %v2399 = vpop.permute.xlu0 %2398
        %2402 = vset.pattern.permute.xlu0 0
        %2403 = vperm.xlu0 %2402, %v1816
        %v2404 = vpop.permute.xlu0 %2403
        %2407 = vset.pattern.permute.xlu0 0
        %2408 = vperm.xlu0 %2407, %v1818
        %v2409 = vpop.permute.xlu0 %2408
        %2412 = vset.pattern.permute.xlu0 0
        %2413 = vperm.xlu0 %2412, %v1820
        %v2414 = vpop.permute.xlu0 %2413
        %2417 = vset.pattern.permute.xlu0 0
        %2418 = vperm.xlu0 %2417, %v1822
        %v2419 = vpop.permute.xlu0 %2418
        %2422 = vset.pattern.permute.xlu0 0
        %2423 = vperm.xlu0 %2422, %v1824
        %v2424 = vpop.permute.xlu0 %2423
        %v2426 = vmul.f32 %v2309, %v2282
        %v2427 = vmul.f32 %v2314, %v2283
        %v2428 = vmul.f32 %v2319, %v2284
        %v2429 = vmul.f32 %v2324, %v2285
        %v2430 = vmul.f32 %v2329, %v2286
        %v2431 = vmul.f32 %v2334, %v2287
        %v2432 = vmul.f32 %v2339, %v2288
        %v2433 = vmul.f32 %v2344, %v2289
        %v2434 = vmul.f32 %v2349, %v2290
        %v2435 = vmul.f32 %v2354, %v2291
        %v2436 = vmul.f32 %v2359, %v2292
        %v2437 = vmul.f32 %v2364, %v2293
        %v2438 = vmul.f32 %v2369, %v2294
        %v2439 = vmul.f32 %v2374, %v2295
        %v2440 = vmul.f32 %v2379, %v2296
        %v2441 = vmul.f32 %v2384, %v2297
        %v2442 = vmul.f32 %v2389, %v2298
        %v2443 = vmul.f32 %v2394, %v2299
        %v2444 = vmul.f32 %v2399, %v2300
        %v2445 = vmul.f32 %v2404, %v2301
        %v2446 = vmul.f32 %v2409, %v2302
        %v2447 = vmul.f32 %v2414, %v2303
        %v2448 = vmul.f32 %v2419, %v2304
        %v2449 = vmul.f32 %v2424, %v2305
        %v2450 = vpack.c.bf16 %v1998, %v1994
        %v2451 = vpack.c.bf16 %v2000, %v1996
        %v2452 = vpack.c.bf16 %v2006, %v2002
        %v2453 = vpack.c.bf16 %v2008, %v2004
        %v2454 = vpack.c.bf16 %v2014, %v2010
        %v2455 = vpack.c.bf16 %v2016, %v2012
        %v2456 = vpack.c.bf16 %v2022, %v2018
        %v2457 = vpack.c.bf16 %v2024, %v2020
        %v2458 = vpack.c.bf16 %v2030, %v2026
        %v2459 = vpack.c.bf16 %v2032, %v2028
        %v2460 = vpack.c.bf16 %v2038, %v2034
        %v2461 = vpack.c.bf16 %v2040, %v2036
        %v2462 = vpack.c.bf16 %v2046, %v2042
        %v2463 = vpack.c.bf16 %v2048, %v2044
        %v2464 = vpack.c.bf16 %v2054, %v2050
        %v2465 = vpack.c.bf16 %v2056, %v2052
        %v2466 = vpack.c.bf16 %v2062, %v2058
        %v2467 = vpack.c.bf16 %v2064, %v2060
        %v2468 = vpack.c.bf16 %v2070, %v2066
        %v2469 = vpack.c.bf16 %v2072, %v2068
        %v2470 = vpack.c.bf16 %v2078, %v2074
        %v2471 = vpack.c.bf16 %v2080, %v2076
        %v2472 = vpack.c.bf16 %v2086, %v2082
        %v2473 = vpack.c.bf16 %v2088, %v2084
        %2486 = vrot.lane.b32.xlu0 %v1288, 64
        %v2487 = vpop.permute.xlu0 %2486
        %2488 = vrot.lane.b32.xlu0 %v1289, 64
        %v2489 = vpop.permute.xlu0 %2488
        %2490 = vrot.lane.b32.xlu0 %v1290, 64
        %v2491 = vpop.permute.xlu0 %2490
        %2492 = vrot.lane.b32.xlu0 %v1291, 64
        %v2493 = vpop.permute.xlu0 %2492
        %2494 = vrot.lane.b32.xlu0 %v1292, 64
        %v2495 = vpop.permute.xlu0 %2494
        %2496 = vrot.lane.b32.xlu0 %v1293, 64
        %v2497 = vpop.permute.xlu0 %2496
        %2498 = vrot.lane.b32.xlu0 %v1294, 64
        %v2499 = vpop.permute.xlu0 %2498
        %2500 = vrot.lane.b32.xlu0 %v1295, 64
        %v2501 = vpop.permute.xlu0 %2500
        %2502 = vrot.lane.b32.xlu0 %v1296, 64
        %v2503 = vpop.permute.xlu0 %2502
        %2504 = vrot.lane.b32.xlu0 %v1297, 64
        %v2505 = vpop.permute.xlu0 %2504
        %2506 = vrot.lane.b32.xlu0 %v1298, 64
        %v2507 = vpop.permute.xlu0 %2506
        %2508 = vrot.lane.b32.xlu0 %v1299, 64
        %v2509 = vpop.permute.xlu0 %2508
        %v2523 = vsel %vm1122, %v2451, 0
        %v2526 = vsel %vm1122, %v2453, 0
        %v2529 = vsel %vm1122, %v2455, 0
        %v2532 = vsel %vm1122, %v2457, 0
        %v2535 = vsel %vm1122, %v2459, 0
        %v2538 = vsel %vm1122, %v2461, 0
        %v2541 = vsel %vm1122, %v2463, 0
        %v2544 = vsel %vm1122, %v2465, 0
        %v2547 = vsel %vm1122, %v2467, 0
        %v2550 = vsel %vm1122, %v2469, 0
        %v2553 = vsel %vm1122, %v2471, 0
        %v2556 = vsel %vm1122, %v2473, 0
        %2558 = vmatprep.subr.bf16.mxu0 0
        %2559 = vmatpush1.bf16.msra.mxu0 %v2501
        %2560 = vmatprep.subr.bf16.mxu0 0
        %2561 = vmatpush1.bf16.msra.mxu0 %v2499
        %2562 = vmatprep.subr.bf16.mxu0 0
        %2563 = vmatpush1.bf16.msra.mxu0 %v2497
        %2564 = vmatprep.subr.bf16.mxu0 0
        %2565 = vmatpush1.bf16.msra.mxu0 %v2495
        %2566 = vmatprep.subr.bf16.mxu0 0
        %2567 = vmatpush1.bf16.msra.mxu0 %v2493
        %2568 = vmatprep.subr.bf16.mxu0 0
        %2569 = vmatpush1.bf16.msra.mxu0 %v2491
        %2570 = vmatprep.subr.bf16.mxu0 0
        %2571 = vmatpush1.bf16.msra.mxu0 %v2489
        %2572 = vmatprep.subr.bf16.mxu0 0
        %2573 = vmatpush1.bf16.msra.mxu0 %v2487
        %2574 = vmatprep.subr.bf16.mxu0 0
        %2575 = vmatpush2.bf16.msra.mxu0 0
        %2576 = vmatprep.subr.bf16.mxu0 0
        %2577 = vmatpush2.bf16.msra.mxu0 0
        %2578 = vmatprep.subr.bf16.mxu0 0
        %2579 = vmatpush2.bf16.msra.mxu0 0
        %2580 = vmatprep.subr.bf16.mxu0 0
        %2581 = vmatpush2.bf16.msra.mxu0 0
        %2582 = vmatprep.subr.bf16.mxu0 0
        %2583 = vmatpush2.bf16.msra.mxu0 %v2509
        %2584 = vmatprep.subr.bf16.mxu0 0
        %2585 = vmatpush2.bf16.msra.mxu0 %v2507
        %2586 = vmatprep.subr.bf16.mxu0 0
        %2587 = vmatpush2.bf16.msra.mxu0 %v2505
        %2588 = vmatprep.subr.bf16.mxu0 0
        %2589 = vmatpush2.bf16.msra.mxu0 %v2503
        %2590 = vmatprep.mubr.bf16.mxu0 %v2523
        %2591 = vmatmul.mubr.bf16.gmra.mxu0 %v2450
        %v2592 = vpop.f32.mrf.mxu0
        %v2593 = vadd.f32 0.0, %v2592
        %v2594 = vpop.f32.mrf.mxu0
        %v2595 = vpop.f32.mrf.mxu0
        %v2596 = vadd.f32 0.0, %v2595
        %v2597 = vpop.f32.mrf.mxu0
        %2598 = vmatprep.mubr.bf16.mxu0 %v2526
        %2599 = vmatmul.mubr.bf16.gmra.mxu0 %v2452
        %v2600 = vpop.f32.mrf.mxu0
        %v2601 = vadd.f32 0.0, %v2600
        %v2602 = vpop.f32.mrf.mxu0
        %v2603 = vpop.f32.mrf.mxu0
        %v2604 = vadd.f32 0.0, %v2603
        %v2605 = vpop.f32.mrf.mxu0
        %2606 = vmatprep.mubr.bf16.mxu0 %v2529
        %2607 = vmatmul.mubr.bf16.gmra.mxu0 %v2454
        %v2608 = vpop.f32.mrf.mxu0
        %v2609 = vadd.f32 0.0, %v2608
        %v2610 = vpop.f32.mrf.mxu0
        %v2611 = vpop.f32.mrf.mxu0
        %v2612 = vadd.f32 0.0, %v2611
        %v2613 = vpop.f32.mrf.mxu0
        %2614 = vmatprep.mubr.bf16.mxu0 %v2532
        %2615 = vmatmul.mubr.bf16.gmra.mxu0 %v2456
        %v2616 = vpop.f32.mrf.mxu0
        %v2617 = vadd.f32 0.0, %v2616
        %v2618 = vpop.f32.mrf.mxu0
        %v2619 = vpop.f32.mrf.mxu0
        %v2620 = vadd.f32 0.0, %v2619
        %v2621 = vpop.f32.mrf.mxu0
        %2622 = vmatprep.mubr.bf16.mxu0 %v2535
        %2623 = vmatmul.mubr.bf16.gmra.mxu0 %v2458
        %v2624 = vpop.f32.mrf.mxu0
        %v2625 = vadd.f32 0.0, %v2624
        %v2626 = vpop.f32.mrf.mxu0
        %v2627 = vpop.f32.mrf.mxu0
        %v2628 = vadd.f32 0.0, %v2627
        %v2629 = vpop.f32.mrf.mxu0
        %2630 = vmatprep.mubr.bf16.mxu0 %v2538
        %2631 = vmatmul.mubr.bf16.gmra.mxu0 %v2460
        %v2632 = vpop.f32.mrf.mxu0
        %v2633 = vadd.f32 0.0, %v2632
        %v2634 = vpop.f32.mrf.mxu0
        %v2635 = vpop.f32.mrf.mxu0
        %v2636 = vadd.f32 0.0, %v2635
        %v2637 = vpop.f32.mrf.mxu0
        %2638 = vmatprep.mubr.bf16.mxu0 %v2541
        %2639 = vmatmul.mubr.bf16.gmra.mxu0 %v2462
        %v2640 = vpop.f32.mrf.mxu0
        %v2641 = vadd.f32 0.0, %v2640
        %v2642 = vpop.f32.mrf.mxu0
        %v2643 = vpop.f32.mrf.mxu0
        %v2644 = vadd.f32 0.0, %v2643
        %v2645 = vpop.f32.mrf.mxu0
        %2646 = vmatprep.mubr.bf16.mxu0 %v2544
        %2647 = vmatmul.mubr.bf16.gmra.mxu0 %v2464
        %v2648 = vpop.f32.mrf.mxu0
        %v2649 = vadd.f32 0.0, %v2648
        %v2650 = vpop.f32.mrf.mxu0
        %v2651 = vpop.f32.mrf.mxu0
        %v2652 = vadd.f32 0.0, %v2651
        %v2653 = vpop.f32.mrf.mxu0
        %2654 = vmatprep.mubr.bf16.mxu0 %v2547
        %2655 = vmatmul.mubr.bf16.gmra.mxu0 %v2466
        %v2656 = vpop.f32.mrf.mxu0
        %v2657 = vadd.f32 0.0, %v2656
        %v2658 = vpop.f32.mrf.mxu0
        %v2659 = vpop.f32.mrf.mxu0
        %v2660 = vadd.f32 0.0, %v2659
        %v2661 = vpop.f32.mrf.mxu0
        %2662 = vmatprep.mubr.bf16.mxu0 %v2550
        %2663 = vmatmul.mubr.bf16.gmra.mxu0 %v2468
        %v2664 = vpop.f32.mrf.mxu0
        %v2665 = vadd.f32 0.0, %v2664
        %v2666 = vpop.f32.mrf.mxu0
        %v2667 = vpop.f32.mrf.mxu0
        %v2668 = vadd.f32 0.0, %v2667
        %v2669 = vpop.f32.mrf.mxu0
        %2670 = vmatprep.mubr.bf16.mxu0 %v2553
        %2671 = vmatmul.mubr.bf16.gmra.mxu0 %v2470
        %v2672 = vpop.f32.mrf.mxu0
        %v2673 = vadd.f32 0.0, %v2672
        %v2674 = vpop.f32.mrf.mxu0
        %v2675 = vpop.f32.mrf.mxu0
        %v2676 = vadd.f32 0.0, %v2675
        %v2677 = vpop.f32.mrf.mxu0
        %2678 = vmatprep.mubr.bf16.mxu0 %v2556
        %2679 = vmatmul.mubr.bf16.gmra.mxu0 %v2472
        %v2680 = vpop.f32.mrf.mxu0
        %v2681 = vadd.f32 0.0, %v2680
        %v2682 = vpop.f32.mrf.mxu0
        %v2683 = vpop.f32.mrf.mxu0
        %v2684 = vadd.f32 0.0, %v2683
        %v2685 = vpop.f32.mrf.mxu0
        %2686 = vdwg.mxu0
        %v2687 = vadd.f32 %v2426, %v2593
        %v2688 = vadd.f32 %v2427, %v2596
        %v2689 = vadd.f32 %v2428, %v2601
        %v2690 = vadd.f32 %v2429, %v2604
        %v2691 = vadd.f32 %v2430, %v2609
        %v2692 = vadd.f32 %v2431, %v2612
        %v2693 = vadd.f32 %v2432, %v2617
        %v2694 = vadd.f32 %v2433, %v2620
        %v2695 = vadd.f32 %v2434, %v2625
        %v2696 = vadd.f32 %v2435, %v2628
        %v2697 = vadd.f32 %v2436, %v2633
        %v2698 = vadd.f32 %v2437, %v2636
        %v2699 = vadd.f32 %v2438, %v2641
        %v2700 = vadd.f32 %v2439, %v2644
        %v2701 = vadd.f32 %v2440, %v2649
        %v2702 = vadd.f32 %v2441, %v2652
        %v2703 = vadd.f32 %v2442, %v2657
        %v2704 = vadd.f32 %v2443, %v2660
        %v2705 = vadd.f32 %v2444, %v2665
        %v2706 = vadd.f32 %v2445, %v2668
        %v2707 = vadd.f32 %v2446, %v2673
        %v2708 = vadd.f32 %v2447, %v2676
        %v2709 = vadd.f32 %v2448, %v2681
        %v2710 = vadd.f32 %v2449, %v2684
        %2711 = vst.msk [vmem:[#allocation5] sm:$0xff] %vm1122, %v2687
        %2712 = vst.msk [vmem:[#allocation5 + $0x8] sm:$0xff] %vm1122, %v2688
        %2713 = vst.msk [vmem:[#allocation5 + $0x10] sm:$0xff] %vm1122, %v2689
        %2714 = vst.msk [vmem:[#allocation5 + $0x18] sm:$0xff] %vm1122, %v2690
        %2715 = vst.msk [vmem:[#allocation5 + $0x20] sm:$0xff] %vm1122, %v2691
        %2716 = vst.msk [vmem:[#allocation5 + $0x28] sm:$0xff] %vm1122, %v2692
        %2717 = vst.msk [vmem:[#allocation5 + $0x30] sm:$0xff] %vm1122, %v2693
        %2718 = vst.msk [vmem:[#allocation5 + $0x38] sm:$0xff] %vm1122, %v2694
        %2719 = vst.msk [vmem:[#allocation5 + $0x40] sm:$0xff] %vm1122, %v2695
        %2720 = vst.msk [vmem:[#allocation5 + $0x48] sm:$0xff] %vm1122, %v2696
        %2721 = vst.msk [vmem:[#allocation5 + $0x50] sm:$0xff] %vm1122, %v2697
        %2722 = vst.msk [vmem:[#allocation5 + $0x58] sm:$0xff] %vm1122, %v2698
        %2723 = vst.msk [vmem:[#allocation5 + $0x60] sm:$0xff] %vm1122, %v2699
        %2724 = vst.msk [vmem:[#allocation5 + $0x68] sm:$0xff] %vm1122, %v2700
        %2725 = vst.msk [vmem:[#allocation5 + $0x70] sm:$0xff] %vm1122, %v2701
        %2726 = vst.msk [vmem:[#allocation5 + $0x78] sm:$0xff] %vm1122, %v2702
        %2727 = vst.msk [vmem:[#allocation5 + $0x80] sm:$0xff] %vm1122, %v2703
        %2728 = vst.msk [vmem:[#allocation5 + $0x88] sm:$0xff] %vm1122, %v2704
        %2729 = vst.msk [vmem:[#allocation5 + $0x90] sm:$0xff] %vm1122, %v2705
        %2730 = vst.msk [vmem:[#allocation5 + $0x98] sm:$0xff] %vm1122, %v2706
        %2731 = vst.msk [vmem:[#allocation5 + $0xa0] sm:$0xff] %vm1122, %v2707
        %2732 = vst.msk [vmem:[#allocation5 + $0xa8] sm:$0xff] %vm1122, %v2708
        %2733 = vst.msk [vmem:[#allocation5 + $0xb0] sm:$0xff] %vm1122, %v2709
        %2734 = vst.msk [vmem:[#allocation5 + $0xb8] sm:$0xff] %vm1122, %v2710
        %2735 = vst.msk [vmem:[#allocation3] sm:$0xff] %vm2257, %v1729
        %2736 = vst.msk [vmem:[#allocation3 + $0x8] sm:$0xff] %vm2257, %v1730
        %2737 = vst.msk [vmem:[#allocation3 + $0x10] sm:$0xff] %vm2257, %v1731
        %2738 = vst.msk [vmem:[#allocation3 + $0x18] sm:$0xff] %vm2257, %v1732
        %2739 = vst.msk [vmem:[#allocation3 + $0x20] sm:$0xff] %vm2257, %v1733
        %2740 = vst.msk [vmem:[#allocation3 + $0x28] sm:$0xff] %vm2257, %v1734
        %2741 = vst.msk [vmem:[#allocation3 + $0x30] sm:$0xff] %vm2257, %v1735
        %2742 = vst.msk [vmem:[#allocation3 + $0x38] sm:$0xff] %vm2257, %v1736
        %2743 = vst.msk [vmem:[#allocation3 + $0x40] sm:$0xff] %vm2257, %v1737
        %2744 = vst.msk [vmem:[#allocation3 + $0x48] sm:$0xff] %vm2257, %v1738
        %2745 = vst.msk [vmem:[#allocation3 + $0x50] sm:$0xff] %vm2257, %v1739
        %2746 = vst.msk [vmem:[#allocation3 + $0x58] sm:$0xff] %vm2257, %v1740
        %2747 = vst.msk [vmem:[#allocation3 + $0x60] sm:$0xff] %vm2257, %v1741
        %2748 = vst.msk [vmem:[#allocation3 + $0x68] sm:$0xff] %vm2257, %v1742
        %2749 = vst.msk [vmem:[#allocation3 + $0x70] sm:$0xff] %vm2257, %v1743
        %2750 = vst.msk [vmem:[#allocation3 + $0x78] sm:$0xff] %vm2257, %v1744
        %2751 = vst.msk [vmem:[#allocation3 + $0x80] sm:$0xff] %vm2257, %v1745
        %2752 = vst.msk [vmem:[#allocation3 + $0x88] sm:$0xff] %vm2257, %v1746
        %2753 = vst.msk [vmem:[#allocation3 + $0x90] sm:$0xff] %vm2257, %v1747
        %2754 = vst.msk [vmem:[#allocation3 + $0x98] sm:$0xff] %vm2257, %v1748
        %2755 = vst.msk [vmem:[#allocation3 + $0xa0] sm:$0xff] %vm2257, %v1749
        %2756 = vst.msk [vmem:[#allocation3 + $0xa8] sm:$0xff] %vm2257, %v1750
        %2757 = vst.msk [vmem:[#allocation3 + $0xb0] sm:$0xff] %vm2257, %v1751
        %2758 = vst.msk [vmem:[#allocation3 + $0xb8] sm:$0xff] %vm2257, %v1752
        // Predicated region
        $region69: #{attention_forward_pallas.2} parent=59 // pred_check
          %p2759 = pneg %p484
        $region70: #{attention_forward_pallas.2} parent=59 // pred_check_branch
          %2761 = sbr.rel (%p2759) target = $region72
        $region71: #{attention_forward_pallas.2} parent=59 // pred_region
          %v2762 = vld [vmem:[#allocation5] sm:$0xff]
          %v2763 = vld [vmem:[#allocation5 + $0x8] sm:$0xff]
          %v2764 = vld [vmem:[#allocation5 + $0x10] sm:$0xff]
          %v2765 = vld [vmem:[#allocation5 + $0x18] sm:$0xff]
          %v2766 = vld [vmem:[#allocation5 + $0x20] sm:$0xff]
          %v2767 = vld [vmem:[#allocation5 + $0x28] sm:$0xff]
          %v2768 = vld [vmem:[#allocation5 + $0x30] sm:$0xff]
          %v2769 = vld [vmem:[#allocation5 + $0x38] sm:$0xff]
          %v2770 = vld [vmem:[#allocation5 + $0x40] sm:$0xff]
          %v2771 = vld [vmem:[#allocation5 + $0x48] sm:$0xff]
          %v2772 = vld [vmem:[#allocation5 + $0x50] sm:$0xff]
          %v2773 = vld [vmem:[#allocation5 + $0x58] sm:$0xff]
          %v2774 = vld [vmem:[#allocation5 + $0x60] sm:$0xff]
          %v2775 = vld [vmem:[#allocation5 + $0x68] sm:$0xff]
          %v2776 = vld [vmem:[#allocation5 + $0x70] sm:$0xff]
          %v2777 = vld [vmem:[#allocation5 + $0x78] sm:$0xff]
          %v2778 = vld [vmem:[#allocation5 + $0x80] sm:$0xff]
          %v2779 = vld [vmem:[#allocation5 + $0x88] sm:$0xff]
          %v2780 = vld [vmem:[#allocation5 + $0x90] sm:$0xff]
          %v2781 = vld [vmem:[#allocation5 + $0x98] sm:$0xff]
          %v2782 = vld [vmem:[#allocation5 + $0xa0] sm:$0xff]
          %v2783 = vld [vmem:[#allocation5 + $0xa8] sm:$0xff]
          %v2784 = vld [vmem:[#allocation5 + $0xb0] sm:$0xff]
          %v2785 = vld [vmem:[#allocation5 + $0xb8] sm:$0xff]
          %v2786 = vld [vmem:[#allocation4] sm:$0xff]
          %v2787 = vld [vmem:[#allocation4 + $0x8] sm:$0xff]
          %v2788 = vld [vmem:[#allocation4 + $0x10] sm:$0xff]
          %v2789 = vld [vmem:[#allocation4 + $0x18] sm:$0xff]
          %v2790 = vld [vmem:[#allocation4 + $0x20] sm:$0xff]
          %v2791 = vld [vmem:[#allocation4 + $0x28] sm:$0xff]
          %v2792 = vld [vmem:[#allocation4 + $0x30] sm:$0xff]
          %v2793 = vld [vmem:[#allocation4 + $0x38] sm:$0xff]
          %v2794 = vld [vmem:[#allocation4 + $0x40] sm:$0xff]
          %v2795 = vld [vmem:[#allocation4 + $0x48] sm:$0xff]
          %v2796 = vld [vmem:[#allocation4 + $0x50] sm:$0xff]
          %v2797 = vld [vmem:[#allocation4 + $0x58] sm:$0xff]
          %v2798 = vld [vmem:[#allocation4 + $0x60] sm:$0xff]
          %v2799 = vld [vmem:[#allocation4 + $0x68] sm:$0xff]
          %v2800 = vld [vmem:[#allocation4 + $0x70] sm:$0xff]
          %v2801 = vld [vmem:[#allocation4 + $0x78] sm:$0xff]
          %v2802 = vld [vmem:[#allocation4 + $0x80] sm:$0xff]
          %v2803 = vld [vmem:[#allocation4 + $0x88] sm:$0xff]
          %v2804 = vld [vmem:[#allocation4 + $0x90] sm:$0xff]
          %v2805 = vld [vmem:[#allocation4 + $0x98] sm:$0xff]
          %v2806 = vld [vmem:[#allocation4 + $0xa0] sm:$0xff]
          %v2807 = vld [vmem:[#allocation4 + $0xa8] sm:$0xff]
          %v2808 = vld [vmem:[#allocation4 + $0xb0] sm:$0xff]
          %v2809 = vld [vmem:[#allocation4 + $0xb8] sm:$0xff]
          %v2810 = vrcp.pop %v2786
          %v2811 = vrcp.pop %v2787
          %v2812 = vrcp.pop %v2788
          %v2813 = vrcp.pop %v2789
          %v2814 = vrcp.pop %v2790
          %v2815 = vrcp.pop %v2791
          %v2816 = vrcp.pop %v2792
          %v2817 = vrcp.pop %v2793
          %v2818 = vrcp.pop %v2794
          %v2819 = vrcp.pop %v2795
          %v2820 = vrcp.pop %v2796
          %v2821 = vrcp.pop %v2797
          %v2822 = vrcp.pop %v2798
          %v2823 = vrcp.pop %v2799
          %v2824 = vrcp.pop %v2800
          %v2825 = vrcp.pop %v2801
          %v2826 = vrcp.pop %v2802
          %v2827 = vrcp.pop %v2803
          %v2828 = vrcp.pop %v2804
          %v2829 = vrcp.pop %v2805
          %v2830 = vrcp.pop %v2806
          %v2831 = vrcp.pop %v2807
          %v2832 = vrcp.pop %v2808
          %v2833 = vrcp.pop %v2809
          %2835 = vset.pattern.permute.xlu0 0
          %2836 = vperm.xlu0 %2835, %v2810
          %v2837 = vpop.permute.xlu0 %2836
          %2840 = vset.pattern.permute.xlu0 0
          %2841 = vperm.xlu0 %2840, %v2811
          %v2842 = vpop.permute.xlu0 %2841
          %2845 = vset.pattern.permute.xlu0 0
          %2846 = vperm.xlu0 %2845, %v2812
          %v2847 = vpop.permute.xlu0 %2846
          %2850 = vset.pattern.permute.xlu0 0
          %2851 = vperm.xlu0 %2850, %v2813
          %v2852 = vpop.permute.xlu0 %2851
          %2855 = vset.pattern.permute.xlu0 0
          %2856 = vperm.xlu0 %2855, %v2814
          %v2857 = vpop.permute.xlu0 %2856
          %2860 = vset.pattern.permute.xlu0 0
          %2861 = vperm.xlu0 %2860, %v2815
          %v2862 = vpop.permute.xlu0 %2861
          %2865 = vset.pattern.permute.xlu0 0
          %2866 = vperm.xlu0 %2865, %v2816
          %v2867 = vpop.permute.xlu0 %2866
          %2870 = vset.pattern.permute.xlu0 0
          %2871 = vperm.xlu0 %2870, %v2817
          %v2872 = vpop.permute.xlu0 %2871
          %2875 = vset.pattern.permute.xlu0 0
          %2876 = vperm.xlu0 %2875, %v2818
          %v2877 = vpop.permute.xlu0 %2876
          %2880 = vset.pattern.permute.xlu0 0
          %2881 = vperm.xlu0 %2880, %v2819
          %v2882 = vpop.permute.xlu0 %2881
          %2885 = vset.pattern.permute.xlu0 0
          %2886 = vperm.xlu0 %2885, %v2820
          %v2887 = vpop.permute.xlu0 %2886
          %2890 = vset.pattern.permute.xlu0 0
          %2891 = vperm.xlu0 %2890, %v2821
          %v2892 = vpop.permute.xlu0 %2891
          %2895 = vset.pattern.permute.xlu0 0
          %2896 = vperm.xlu0 %2895, %v2822
          %v2897 = vpop.permute.xlu0 %2896
          %2900 = vset.pattern.permute.xlu0 0
          %2901 = vperm.xlu0 %2900, %v2823
          %v2902 = vpop.permute.xlu0 %2901
          %2905 = vset.pattern.permute.xlu0 0
          %2906 = vperm.xlu0 %2905, %v2824
          %v2907 = vpop.permute.xlu0 %2906
          %2910 = vset.pattern.permute.xlu0 0
          %2911 = vperm.xlu0 %2910, %v2825
          %v2912 = vpop.permute.xlu0 %2911
          %2915 = vset.pattern.permute.xlu0 0
          %2916 = vperm.xlu0 %2915, %v2826
          %v2917 = vpop.permute.xlu0 %2916
          %2920 = vset.pattern.permute.xlu0 0
          %2921 = vperm.xlu0 %2920, %v2827
          %v2922 = vpop.permute.xlu0 %2921
          %2925 = vset.pattern.permute.xlu0 0
          %2926 = vperm.xlu0 %2925, %v2828
          %v2927 = vpop.permute.xlu0 %2926
          %2930 = vset.pattern.permute.xlu0 0
          %2931 = vperm.xlu0 %2930, %v2829
          %v2932 = vpop.permute.xlu0 %2931
          %2935 = vset.pattern.permute.xlu0 0
          %2936 = vperm.xlu0 %2935, %v2830
          %v2937 = vpop.permute.xlu0 %2936
          %2940 = vset.pattern.permute.xlu0 0
          %2941 = vperm.xlu0 %2940, %v2831
          %v2942 = vpop.permute.xlu0 %2941
          %2945 = vset.pattern.permute.xlu0 0
          %2946 = vperm.xlu0 %2945, %v2832
          %v2947 = vpop.permute.xlu0 %2946
          %2950 = vset.pattern.permute.xlu0 0
          %2951 = vperm.xlu0 %2950, %v2833
          %v2952 = vpop.permute.xlu0 %2951
          %v2954 = vmul.f32 %v2762, %v2837
          %v2955 = vmul.f32 %v2763, %v2842
          %v2956 = vmul.f32 %v2764, %v2847
          %v2957 = vmul.f32 %v2765, %v2852
          %v2958 = vmul.f32 %v2766, %v2857
          %v2959 = vmul.f32 %v2767, %v2862
          %v2960 = vmul.f32 %v2768, %v2867
          %v2961 = vmul.f32 %v2769, %v2872
          %v2962 = vmul.f32 %v2770, %v2877
          %v2963 = vmul.f32 %v2771, %v2882
          %v2964 = vmul.f32 %v2772, %v2887
          %v2965 = vmul.f32 %v2773, %v2892
          %v2966 = vmul.f32 %v2774, %v2897
          %v2967 = vmul.f32 %v2775, %v2902
          %v2968 = vmul.f32 %v2776, %v2907
          %v2969 = vmul.f32 %v2777, %v2912
          %v2970 = vmul.f32 %v2778, %v2917
          %v2971 = vmul.f32 %v2779, %v2922
          %v2972 = vmul.f32 %v2780, %v2927
          %v2973 = vmul.f32 %v2781, %v2932
          %v2974 = vmul.f32 %v2782, %v2937
          %v2975 = vmul.f32 %v2783, %v2942
          %v2976 = vmul.f32 %v2784, %v2947
          %v2977 = vmul.f32 %v2785, %v2952
          %v2978 = vpack.c.bf16 %v2955, %v2954
          %v2979 = vpack.c.bf16 %v2957, %v2956
          %v2980 = vpack.c.bf16 %v2959, %v2958
          %v2981 = vpack.c.bf16 %v2961, %v2960
          %v2982 = vpack.c.bf16 %v2963, %v2962
          %v2983 = vpack.c.bf16 %v2965, %v2964
          %v2984 = vpack.c.bf16 %v2967, %v2966
          %v2985 = vpack.c.bf16 %v2969, %v2968
          %v2986 = vpack.c.bf16 %v2971, %v2970
          %v2987 = vpack.c.bf16 %v2973, %v2972
          %v2988 = vpack.c.bf16 %v2975, %v2974
          %v2989 = vpack.c.bf16 %v2977, %v2976
          %v2990 = vld [vmem:[%s8] sm:$0xf]
          %v2991 = vld [vmem:[%s8 + $0x4] sm:$0xf]
          %v2992 = vld [vmem:[%s8 + $0x8] sm:$0xf]
          %v2993 = vld [vmem:[%s8 + $0xc] sm:$0xf]
          %v2994 = vld [vmem:[%s8 + $0x10] sm:$0xf]
          %v2995 = vld [vmem:[%s8 + $0x14] sm:$0xf]
          %v2996 = vld [vmem:[%s8 + $0x18] sm:$0xf]
          %v2997 = vld [vmem:[%s8 + $0x1c] sm:$0xf]
          %v2998 = vld [vmem:[#allocation6] sm:$0x1]
          %v3000 = vlaneseq
          %v3001 = vshrl.u32 %v3000, 7
          %v3002 = vsub.s32 0, %v3001
          %v3003 = vrot.slane %v2998, %v3002
          %v3013 = vunpack.c.l.b16 %v2990
          %v3014 = vunpack.c.l.b16 %v2991
          %v3015 = vunpack.c.l.b16 %v2992
          %v3016 = vunpack.c.l.b16 %v2993
          %v3017 = vunpack.c.l.b16 %v2994
          %v3018 = vunpack.c.l.b16 %v2995
          %v3019 = vunpack.c.l.b16 %v2996
          %v3020 = vunpack.c.l.b16 %v2997
          %v3021 = vpack.c.b16 %v3014, %v3013
          %v3022 = vpack.c.b16 %v3016, %v3015
          %v3023 = vpack.c.b16 %v3018, %v3017
          %v3024 = vpack.c.b16 %v3020, %v3019
          %v3030 = vsel %vm1122, %v2978, 0
          %v3033 = vsel %vm1122, %v2979, 0
          %v3036 = vsel %vm1122, %v2980, 0
          %v3039 = vsel %vm1122, %v2981, 0
          %v3042 = vsel %vm1122, %v2982, 0
          %v3045 = vsel %vm1122, %v2983, 0
          %v3048 = vsel %vm1122, %v2984, 0
          %v3051 = vsel %vm1122, %v2985, 0
          %v3054 = vsel %vm1122, %v2986, 0
          %v3057 = vsel %vm1122, %v2987, 0
          %v3060 = vsel %vm1122, %v2988, 0
          %v3063 = vsel %vm1122, %v2989, 0
          %3065 = vmatprep.subr.bf16.mxu0 0
          %3066 = vmatpush1.bf16.msra.mxu0 0
          %3067 = vmatprep.subr.bf16.mxu0 0
          %3068 = vmatpush1.bf16.msra.mxu0 0
          %3069 = vmatprep.subr.bf16.mxu0 0
          %3070 = vmatpush1.bf16.msra.mxu0 0
          %3071 = vmatprep.subr.bf16.mxu0 0
          %3072 = vmatpush1.bf16.msra.mxu0 0
          %3073 = vmatprep.subr.bf16.mxu0 0
          %3074 = vmatpush1.bf16.msra.mxu0 %v3024
          %3075 = vmatprep.subr.bf16.mxu0 0
          %3076 = vmatpush1.bf16.msra.mxu0 %v3023
          %3077 = vmatprep.subr.bf16.mxu0 0
          %3078 = vmatpush1.bf16.msra.mxu0 %v3022
          %3079 = vmatprep.subr.bf16.mxu0 0
          %3080 = vmatpush1.bf16.msra.mxu0 %v3021
          %3081 = vmatprep.subr.bf16.mxu0 0
          %3082 = vmatpush2.bf16.msra.mxu0 0
          %3083 = vmatprep.subr.bf16.mxu0 0
          %3084 = vmatpush2.bf16.msra.mxu0 0
          %3085 = vmatprep.subr.bf16.mxu0 0
          %3086 = vmatpush2.bf16.msra.mxu0 0
          %3087 = vmatprep.subr.bf16.mxu0 0
          %3088 = vmatpush2.bf16.msra.mxu0 0
          %3089 = vmatprep.subr.bf16.mxu0 0
          %3090 = vmatpush2.bf16.msra.mxu0 0
          %3091 = vmatprep.subr.bf16.mxu0 0
          %3092 = vmatpush2.bf16.msra.mxu0 0
          %3093 = vmatprep.subr.bf16.mxu0 0
          %3094 = vmatpush2.bf16.msra.mxu0 0
          %3095 = vmatprep.subr.bf16.mxu0 0
          %3096 = vmatpush2.bf16.msra.mxu0 0
          %3097 = vmatprep.mubr.bf16.mxu0 0
          %3098 = vmatmul.mubr.bf16.gmra.mxu0 %v3030
          %v3099 = vpop.f32.mrf.mxu0
          %v3100 = vadd.f32 %v3003, %v3099
          %v3101 = vpop.f32.mrf.mxu0
          %v3102 = vpop.f32.mrf.mxu0
          %v3103 = vadd.f32 %v3003, %v3102
          %v3104 = vpop.f32.mrf.mxu0
          %3105 = vmatprep.mubr.bf16.mxu0 0
          %3106 = vmatmul.mubr.bf16.gmra.mxu0 %v3033
          %v3107 = vpop.f32.mrf.mxu0
          %v3108 = vadd.f32 %v3003, %v3107
          %v3109 = vpop.f32.mrf.mxu0
          %v3110 = vpop.f32.mrf.mxu0
          %v3111 = vadd.f32 %v3003, %v3110
          %v3112 = vpop.f32.mrf.mxu0
          %3113 = vmatprep.mubr.bf16.mxu0 0
          %3114 = vmatmul.mubr.bf16.gmra.mxu0 %v3036
          %v3115 = vpop.f32.mrf.mxu0
          %v3116 = vadd.f32 %v3003, %v3115
          %v3117 = vpop.f32.mrf.mxu0
          %v3118 = vpop.f32.mrf.mxu0
          %v3119 = vadd.f32 %v3003, %v3118
          %v3120 = vpop.f32.mrf.mxu0
          %3121 = vmatprep.mubr.bf16.mxu0 0
          %3122 = vmatmul.mubr.bf16.gmra.mxu0 %v3039
          %v3123 = vpop.f32.mrf.mxu0
          %v3124 = vadd.f32 %v3003, %v3123
          %v3125 = vpop.f32.mrf.mxu0
          %v3126 = vpop.f32.mrf.mxu0
          %v3127 = vadd.f32 %v3003, %v3126
          %v3128 = vpop.f32.mrf.mxu0
          %3129 = vmatprep.mubr.bf16.mxu0 0
          %3130 = vmatmul.mubr.bf16.gmra.mxu0 %v3042
          %v3131 = vpop.f32.mrf.mxu0
          %v3132 = vadd.f32 %v3003, %v3131
          %v3133 = vpop.f32.mrf.mxu0
          %v3134 = vpop.f32.mrf.mxu0
          %v3135 = vadd.f32 %v3003, %v3134
          %v3136 = vpop.f32.mrf.mxu0
          %3137 = vmatprep.mubr.bf16.mxu0 0
          %3138 = vmatmul.mubr.bf16.gmra.mxu0 %v3045
          %v3139 = vpop.f32.mrf.mxu0
          %v3140 = vadd.f32 %v3003, %v3139
          %v3141 = vpop.f32.mrf.mxu0
          %v3142 = vpop.f32.mrf.mxu0
          %v3143 = vadd.f32 %v3003, %v3142
          %v3144 = vpop.f32.mrf.mxu0
          %3145 = vmatprep.mubr.bf16.mxu0 0
          %3146 = vmatmul.mubr.bf16.gmra.mxu0 %v3048
          %v3147 = vpop.f32.mrf.mxu0
          %v3148 = vadd.f32 %v3003, %v3147
          %v3149 = vpop.f32.mrf.mxu0
          %v3150 = vpop.f32.mrf.mxu0
          %v3151 = vadd.f32 %v3003, %v3150
          %v3152 = vpop.f32.mrf.mxu0
          %3153 = vmatprep.mubr.bf16.mxu0 0
          %3154 = vmatmul.mubr.bf16.gmra.mxu0 %v3051
          %v3155 = vpop.f32.mrf.mxu0
          %v3156 = vadd.f32 %v3003, %v3155
          %v3157 = vpop.f32.mrf.mxu0
          %v3158 = vpop.f32.mrf.mxu0
          %v3159 = vadd.f32 %v3003, %v3158
          %v3160 = vpop.f32.mrf.mxu0
          %3161 = vmatprep.mubr.bf16.mxu0 0
          %3162 = vmatmul.mubr.bf16.gmra.mxu0 %v3054
          %v3163 = vpop.f32.mrf.mxu0
          %v3164 = vadd.f32 %v3003, %v3163
          %v3165 = vpop.f32.mrf.mxu0
          %v3166 = vpop.f32.mrf.mxu0
          %v3167 = vadd.f32 %v3003, %v3166
          %v3168 = vpop.f32.mrf.mxu0
          %3169 = vmatprep.mubr.bf16.mxu0 0
          %3170 = vmatmul.mubr.bf16.gmra.mxu0 %v3057
          %v3171 = vpop.f32.mrf.mxu0
          %v3172 = vadd.f32 %v3003, %v3171
          %v3173 = vpop.f32.mrf.mxu0
          %v3174 = vpop.f32.mrf.mxu0
          %v3175 = vadd.f32 %v3003, %v3174
          %v3176 = vpop.f32.mrf.mxu0
          %3177 = vmatprep.mubr.bf16.mxu0 0
          %3178 = vmatmul.mubr.bf16.gmra.mxu0 %v3060
          %v3179 = vpop.f32.mrf.mxu0
          %v3180 = vadd.f32 %v3003, %v3179
          %v3181 = vpop.f32.mrf.mxu0
          %v3182 = vpop.f32.mrf.mxu0
          %v3183 = vadd.f32 %v3003, %v3182
          %v3184 = vpop.f32.mrf.mxu0
          %3185 = vmatprep.mubr.bf16.mxu0 0
          %3186 = vmatmul.mubr.bf16.gmra.mxu0 %v3063
          %v3187 = vpop.f32.mrf.mxu0
          %v3188 = vadd.f32 %v3003, %v3187
          %v3189 = vpop.f32.mrf.mxu0
          %v3190 = vpop.f32.mrf.mxu0
          %v3191 = vadd.f32 %v3003, %v3190
          %v3192 = vpop.f32.mrf.mxu0
          %3193 = vdwg.mxu0
          %v3194 = vld [vmem:[%s455] sm:$0xff]
          %v3195 = vld [vmem:[%s455 + $0x8] sm:$0xff]
          %v3196 = vld [vmem:[%s455 + $0x10] sm:$0xff]
          %v3197 = vld [vmem:[%s455 + $0x18] sm:$0xff]
          %v3198 = vld [vmem:[%s455 + $0x20] sm:$0xff]
          %v3199 = vld [vmem:[%s455 + $0x28] sm:$0xff]
          %v3200 = vld [vmem:[%s455 + $0x30] sm:$0xff]
          %v3201 = vld [vmem:[%s455 + $0x38] sm:$0xff]
          %v3202 = vld [vmem:[%s455 + $0x40] sm:$0xff]
          %v3203 = vld [vmem:[%s455 + $0x48] sm:$0xff]
          %v3204 = vld [vmem:[%s455 + $0x50] sm:$0xff]
          %v3205 = vld [vmem:[%s455 + $0x58] sm:$0xff]
          %v3206 = vld [vmem:[%s455 + $0x60] sm:$0xff]
          %v3207 = vld [vmem:[%s455 + $0x68] sm:$0xff]
          %v3208 = vld [vmem:[%s455 + $0x70] sm:$0xff]
          %v3209 = vld [vmem:[%s455 + $0x78] sm:$0xff]
          %v3210 = vld [vmem:[%s455 + $0x80] sm:$0xff]
          %v3211 = vld [vmem:[%s455 + $0x88] sm:$0xff]
          %v3212 = vld [vmem:[%s455 + $0x90] sm:$0xff]
          %v3213 = vld [vmem:[%s455 + $0x98] sm:$0xff]
          %v3214 = vld [vmem:[%s455 + $0xa0] sm:$0xff]
          %v3215 = vld [vmem:[%s455 + $0xa8] sm:$0xff]
          %v3216 = vld [vmem:[%s455 + $0xb0] sm:$0xff]
          %v3217 = vld [vmem:[%s455 + $0xb8] sm:$0xff]
          %v3218 = vadd.f32 %v3194, %v3100
          %v3219 = vadd.f32 %v3195, %v3103
          %v3220 = vadd.f32 %v3196, %v3108
          %v3221 = vadd.f32 %v3197, %v3111
          %v3222 = vadd.f32 %v3198, %v3116
          %v3223 = vadd.f32 %v3199, %v3119
          %v3224 = vadd.f32 %v3200, %v3124
          %v3225 = vadd.f32 %v3201, %v3127
          %v3226 = vadd.f32 %v3202, %v3132
          %v3227 = vadd.f32 %v3203, %v3135
          %v3228 = vadd.f32 %v3204, %v3140
          %v3229 = vadd.f32 %v3205, %v3143
          %v3230 = vadd.f32 %v3206, %v3148
          %v3231 = vadd.f32 %v3207, %v3151
          %v3232 = vadd.f32 %v3208, %v3156
          %v3233 = vadd.f32 %v3209, %v3159
          %v3234 = vadd.f32 %v3210, %v3164
          %v3235 = vadd.f32 %v3211, %v3167
          %v3236 = vadd.f32 %v3212, %v3172
          %v3237 = vadd.f32 %v3213, %v3175
          %v3238 = vadd.f32 %v3214, %v3180
          %v3239 = vadd.f32 %v3215, %v3183
          %v3240 = vadd.f32 %v3216, %v3188
          %v3241 = vadd.f32 %v3217, %v3191
          %3242 = vst.msk [vmem:[%s481] sm:$0xff] %vm1122, %v3218
          %3243 = vst.msk [vmem:[%s481 + $0x8] sm:$0xff] %vm1122, %v3219
          %3244 = vst.msk [vmem:[%s481 + $0x10] sm:$0xff] %vm1122, %v3220
          %3245 = vst.msk [vmem:[%s481 + $0x18] sm:$0xff] %vm1122, %v3221
          %3246 = vst.msk [vmem:[%s481 + $0x20] sm:$0xff] %vm1122, %v3222
          %3247 = vst.msk [vmem:[%s481 + $0x28] sm:$0xff] %vm1122, %v3223
          %3248 = vst.msk [vmem:[%s481 + $0x30] sm:$0xff] %vm1122, %v3224
          %3249 = vst.msk [vmem:[%s481 + $0x38] sm:$0xff] %vm1122, %v3225
          %3250 = vst.msk [vmem:[%s481 + $0x40] sm:$0xff] %vm1122, %v3226
          %3251 = vst.msk [vmem:[%s481 + $0x48] sm:$0xff] %vm1122, %v3227
          %3252 = vst.msk [vmem:[%s481 + $0x50] sm:$0xff] %vm1122, %v3228
          %3253 = vst.msk [vmem:[%s481 + $0x58] sm:$0xff] %vm1122, %v3229
          %3254 = vst.msk [vmem:[%s481 + $0x60] sm:$0xff] %vm1122, %v3230
          %3255 = vst.msk [vmem:[%s481 + $0x68] sm:$0xff] %vm1122, %v3231
          %3256 = vst.msk [vmem:[%s481 + $0x70] sm:$0xff] %vm1122, %v3232
          %3257 = vst.msk [vmem:[%s481 + $0x78] sm:$0xff] %vm1122, %v3233
          %3258 = vst.msk [vmem:[%s481 + $0x80] sm:$0xff] %vm1122, %v3234
          %3259 = vst.msk [vmem:[%s481 + $0x88] sm:$0xff] %vm1122, %v3235
          %3260 = vst.msk [vmem:[%s481 + $0x90] sm:$0xff] %vm1122, %v3236
          %3261 = vst.msk [vmem:[%s481 + $0x98] sm:$0xff] %vm1122, %v3237
          %3262 = vst.msk [vmem:[%s481 + $0xa0] sm:$0xff] %vm1122, %v3238
          %3263 = vst.msk [vmem:[%s481 + $0xa8] sm:$0xff] %vm1122, %v3239
          %3264 = vst.msk [vmem:[%s481 + $0xb0] sm:$0xff] %vm1122, %v3240
          %3265 = vst.msk [vmem:[%s481 + $0xb8] sm:$0xff] %vm1122, %v3241
        $region72: #{attention_forward_pallas.2} parent=59 // pred_fallthru
          _
        %s3266 = smul.u32 24, %s28
        %p3267 = scmp.lt.s32.totalorder %s27, 1
        %s3268 = scalar_select %p3267, %s27, 1
        %p3269 = scmp.lt.s32.totalorder %s3266, 23
        %s3270 = scalar_select %p3269, %s3266, 23
        %s3271 = smul.addr %s3268, 24
        %s3272 = sadd.s32 %s3270, %s3271
        %s3273 = smul.addr %s3272, 8
        %s3274 = scalar_lea.vmem %s10, %s3273
        // Predicated region
        $region73: #{attention_forward_pallas.2} parent=59 // pred_check
          %p3275 = pneg %p295
        $region74: #{attention_forward_pallas.2} parent=59 // pred_check_branch
          %3277 = sbr.rel (%p3275) target = $region76
        $region75: #{attention_forward_pallas.2} parent=59 // pred_region
          %s3278 = smul.u32 24, %s28
        $region76: #{attention_forward_pallas.2} parent=59 // pred_fallthru
          _
      $region60: #{attention_forward_pallas.2} parent=5 // pred_fallthru
        _
      %p3279 = scmp.le.s32.totalorder 2, %s17
      // Predicated region
      $region77: #{attention_forward_pallas.2} parent=5 // pred_check
        %p3280 = pneg %p3279
      $region78: #{attention_forward_pallas.2} parent=5 // pred_check_branch
        %3282 = sbr.rel (%p3280) target = $region80
      $region79: #{attention_forward_pallas.2} parent=5 // pred_region
        %s3283 = ssub.s32 %s17, 2
        // Predicated region
        $region81: #{attention_forward_pallas.2} parent=79 // pred_check
          %p3284 = pneg %p301
        $region82: #{attention_forward_pallas.2} parent=79 // pred_check_branch
          %3286 = sbr.rel (%p3284) target = $region84
        $region83: #{attention_forward_pallas.2} parent=79 // pred_region
          %s3287 = smul.u32 24, %s31
          %p3288 = scmp.lt.s32.totalorder %s30, 1
          %s3289 = scalar_select %p3288, %s30, 1
          %p3290 = scmp.lt.s32.totalorder %s3287, 23
          %s3291 = scalar_select %p3290, %s3287, 23
          %s3292 = smul.addr %s3289, 24
          %s3293 = sadd.s32 %s3291, %s3292
          %s3294 = smul.addr %s3293, 8
          %s3295 = scalar_lea.vmem %s10, %s3294
        $region84: #{attention_forward_pallas.2} parent=79 // pred_fallthru
          _
      $region80: #{attention_forward_pallas.2} parent=5 // pred_fallthru
        _
    $region6: #{attention_forward_pallas.2} parent=1 // loop_footer
      %s21 = sadd.s32 1, %s17
    $region7: #{attention_forward_pallas.2} parent=1 // loop_footer_branch
      %16 = sbr.rel target = $region3
    $region8: #{attention_forward_pallas.2} parent=1 // loop_exit
      _
    %3296 = vsyncpa [#allocation7], 1
    %s3297 = scalar_lea.sflag [#allocation7], 1
    %3298 = vsyncpa %s3297, 1

// kernel: attention_forward_pallas.3
$region0: #{attention_forward_pallas.3}
  #allocation0 [shape = 'u32[]', space=smem, size = 0x4, offset = 0x4, fixed_abs, tag = 'smem constant byte address 0x4 - core index']
  #allocation1 [shape = 'u32[144,128]{1,0:T(1,128)}', space=vmem, size = 0x12000, scoped, tag = 'internal scratch']
  #allocation2 [shape = 'f32[1,1]{1,0:T(1,128)S(1)}', space=vmem, size = 0x200, scoped, tag = 'scoped memory for attention_forward_pallas.3']
  %s0 = inlined_call_operand.vmem [shape: f32[2,1536], index: 0, kind: input, shape index: {}]
  %s1 = inlined_call_operand.hbm [shape: f32[1536,768], index: 1, kind: input, shape index: {}]
  %s2 = inlined_call_operand.vmem [shape: f32[1,768], index: 2, kind: input, shape index: {}]
  %s3 = inlined_call_operand.vmem [shape: f32[768,64], index: 3, kind: input, shape index: {}]
  %s4 = inlined_call_operand.hbm [shape: f32[1,64], index: 4, kind: input, shape index: {}]
  %s5 = inlined_call_operand.vmem [shape: f32[64,1], index: 5, kind: input, shape index: {}]
  %s6 = inlined_call_operand.<no memory space> [shape: f32[1,1], index: 6, kind: input, shape index: {}]
  %s7 = inlined_call_operand.vmem [shape: f32[2,1], index: 7, kind: output, shape index: {}]
  %s8 = sld [smem:[#allocation0]]
  $region46: #{attention_forward_pallas.3} parent=0
    _
  %s10 = ssub.s32 1, %s8
  %s11 = scalar_select 0, %s10, %s8
  %v12 = vstv %s6
  %13 = vst [vmem:[#allocation2] sm:$0x1] %v12
  $region1: #{attention_forward_pallas.3} parent=0
    #allocation3 [shape = 'u8[4718592]{0}', space=vmem, size = 0x480000, scoped, tag = 'input window, operand 1, single buffered']
    #allocation4 [shape = 's32[1]{0}', space=sflag, size = 0x4, scoped, tag = 'scoped memory for attention_forward_pallas.3']
    #allocation5 [shape = 'u8[512]{0}', space=vmem, size = 0x400, scoped, tag = 'input window, operand 4, single buffered']
    #allocation6 [shape = 's32[1]{0}', space=sflag, size = 0x4, scoped, tag = 'scoped memory for attention_forward_pallas.3']
    %14 = vsyncpa [#allocation4], 0
    %15 = vsyncpa [#allocation6], 0
    // Predicated region
    $region2: #{attention_forward_pallas.3} parent=1 // pred_check
      _
    $region3: #{attention_forward_pallas.3} parent=1 // pred_check_branch
      %17 = sbr.rel (0) target = $region5
    $region4: #{attention_forward_pallas.3} parent=1 // pred_region
      _
    $region5: #{attention_forward_pallas.3} parent=1 // pred_fallthru
      _
    // Predicated region
    $region6: #{attention_forward_pallas.3} parent=1 // pred_check
      _
    $region7: #{attention_forward_pallas.3} parent=1 // pred_check_branch
      %19 = sbr.rel (0) target = $region9
    $region8: #{attention_forward_pallas.3} parent=1 // pred_region
      %s21 = ssub.s32 147456, 147456
      %22 = vsyncadd [#allocation4], %s21
      %s23 = sshll.u32 [#allocation3], 4
      %s24 = int_to_ptr.vmem [resolvable:$true] %s23
      %29 = dma.hbm_to_vmem [thread:$0]  %s1, 147456, %s24, [#allocation4], 768, 768, 48
    $region9: #{attention_forward_pallas.3} parent=1 // pred_fallthru
      _
    // Predicated region
    $region10: #{attention_forward_pallas.3} parent=1 // pred_check
      _
    $region11: #{attention_forward_pallas.3} parent=1 // pred_check_branch
      %31 = sbr.rel (0) target = $region13
    $region12: #{attention_forward_pallas.3} parent=1 // pred_region
      _
    $region13: #{attention_forward_pallas.3} parent=1 // pred_fallthru
      _
    // Predicated region
    $region14: #{attention_forward_pallas.3} parent=1 // pred_check
      _
    $region15: #{attention_forward_pallas.3} parent=1 // pred_check_branch
      %33 = sbr.rel (0) target = $region17
    $region16: #{attention_forward_pallas.3} parent=1 // pred_region
      _
    $region17: #{attention_forward_pallas.3} parent=1 // pred_fallthru
      _
    // Predicated region
    $region18: #{attention_forward_pallas.3} parent=1 // pred_check
      _
    $region19: #{attention_forward_pallas.3} parent=1 // pred_check_branch
      %35 = sbr.rel (0) target = $region21
    $region20: #{attention_forward_pallas.3} parent=1 // pred_region
      %s37 = ssub.s32 16, 16
      %38 = vsyncadd [#allocation6], %s37
      %s40 = sshll.u32 [#allocation5], 4
      %s41 = int_to_ptr.vmem [resolvable:$true] %s40
      %43 = dma.hbm_to_vmem [thread:$0]  %s4, 16, %s41, [#allocation6]
    $region21: #{attention_forward_pallas.3} parent=1 // pred_fallthru
      _
    // Predicated region
    $region22: #{attention_forward_pallas.3} parent=1 // pred_check
      _
    $region23: #{attention_forward_pallas.3} parent=1 // pred_check_branch
      %45 = sbr.rel (0) target = $region25
    $region24: #{attention_forward_pallas.3} parent=1 // pred_region
      _
    $region25: #{attention_forward_pallas.3} parent=1 // pred_fallthru
      _
    // Predicated region
    $region26: #{attention_forward_pallas.3} parent=1 // pred_check
      _
    $region27: #{attention_forward_pallas.3} parent=1 // pred_check_branch
      %47 = sbr.rel (0) target = $region29
    $region28: #{attention_forward_pallas.3} parent=1 // pred_region
      _
    $region29: #{attention_forward_pallas.3} parent=1 // pred_fallthru
      _
    // Predicated region
    $region30: #{attention_forward_pallas.3} parent=1 // pred_check
      _
    $region31: #{attention_forward_pallas.3} parent=1 // pred_check_branch
      %49 = sbr.rel (0) target = $region33
    $region32: #{attention_forward_pallas.3} parent=1 // pred_region
      %50 = dma.done [#allocation4], 147456
    $region33: #{attention_forward_pallas.3} parent=1 // pred_fallthru
      _
    // Predicated region
    $region34: #{attention_forward_pallas.3} parent=1 // pred_check
      _
    $region35: #{attention_forward_pallas.3} parent=1 // pred_check_branch
      %52 = sbr.rel (0) target = $region37
    $region36: #{attention_forward_pallas.3} parent=1 // pred_region
      %53 = dma.done [#allocation6], 16
    $region37: #{attention_forward_pallas.3} parent=1 // pred_fallthru
      _
    %v54 = vld [vmem:[%s0] sm:$0xff]
    %v55 = vld [vmem:[%s0 + $0x8] sm:$0xff]
    %v56 = vld [vmem:[%s0 + $0x10] sm:$0xff]
    %v57 = vld [vmem:[#allocation3] sm:$0xff]
    %v58 = vld [vmem:[#allocation3 + $0x8] sm:$0xff]
    %v59 = vld [vmem:[#allocation3 + $0x10] sm:$0xff]
    %v60 = vld [vmem:[#allocation3 + $0x18] sm:$0xff]
    %v61 = vld [vmem:[#allocation3 + $0x20] sm:$0xff]
    %v62 = vld [vmem:[#allocation3 + $0x28] sm:$0xff]
    %v63 = vld [vmem:[#allocation3 + $0x30] sm:$0xff]
    %v64 = vld [vmem:[#allocation3 + $0x38] sm:$0xff]
    %v65 = vld [vmem:[#allocation3 + $0x40] sm:$0xff]
    %v66 = vld [vmem:[#allocation3 + $0x48] sm:$0xff]
    %v67 = vld [vmem:[#allocation3 + $0x50] sm:$0xff]
    %v68 = vld [vmem:[#allocation3 + $0x58] sm:$0xff]
    %v69 = vld [vmem:[#allocation3 + $0x60] sm:$0xff]
    %v70 = vld [vmem:[#allocation3 + $0x68] sm:$0xff]
    %v71 = vld [vmem:[#allocation3 + $0x70] sm:$0xff]
    %v72 = vld [vmem:[#allocation3 + $0x78] sm:$0xff]
    %v73 = vld [vmem:[#allocation3 + $0x80] sm:$0xff]
    %v74 = vld [vmem:[#allocation3 + $0x88] sm:$0xff]
    %v75 = vld [vmem:[#allocation3 + $0x90] sm:$0xff]
    %v76 = vld [vmem:[#allocation3 + $0x98] sm:$0xff]
    %v77 = vld [vmem:[#allocation3 + $0xa0] sm:$0xff]
    %v78 = vld [vmem:[#allocation3 + $0xa8] sm:$0xff]
    %v79 = vld [vmem:[#allocation3 + $0xb0] sm:$0xff]
    %v80 = vld [vmem:[#allocation3 + $0xb8] sm:$0xff]
    %v81 = vld [vmem:[#allocation3 + $0xc0] sm:$0xff]
    %v82 = vld [vmem:[#allocation3 + $0xc8] sm:$0xff]
    %v83 = vld [vmem:[#allocation3 + $0xd0] sm:$0xff]
    %v84 = vld [vmem:[#allocation3 + $0xd8] sm:$0xff]
    %v85 = vld [vmem:[#allocation3 + $0xe0] sm:$0xff]
    %v86 = vld [vmem:[#allocation3 + $0xe8] sm:$0xff]
    %v87 = vld [vmem:[#allocation3 + $0xf0] sm:$0xff]
    %v88 = vld [vmem:[#allocation3 + $0xf8] sm:$0xff]
    %v89 = vld [vmem:[#allocation3 + $0x100] sm:$0xff]
    %v90 = vld [vmem:[#allocation3 + $0x108] sm:$0xff]
    %v91 = vld [vmem:[#allocation3 + $0x110] sm:$0xff]
    %v92 = vld [vmem:[#allocation3 + $0x118] sm:$0xff]
    %v93 = vld [vmem:[#allocation3 + $0x120] sm:$0xff]
    %v94 = vld [vmem:[#allocation3 + $0x128] sm:$0xff]
    %v95 = vld [vmem:[#allocation3 + $0x130] sm:$0xff]
    %v96 = vld [vmem:[#allocation3 + $0x138] sm:$0xff]
    %v97 = vld [vmem:[#allocation3 + $0x140] sm:$0xff]
    %v98 = vld [vmem:[#allocation3 + $0x148] sm:$0xff]
    %v99 = vld [vmem:[#allocation3 + $0x150] sm:$0xff]
    %v100 = vld [vmem:[#allocation3 + $0x158] sm:$0xff]
    %v101 = vld [vmem:[#allocation3 + $0x160] sm:$0xff]
    %v102 = vld [vmem:[#allocation3 + $0x168] sm:$0xff]
    %v103 = vld [vmem:[#allocation3 + $0x170] sm:$0xff]
    %v104 = vld [vmem:[#allocation3 + $0x178] sm:$0xff]
    %v105 = vld [vmem:[#allocation3 + $0x180] sm:$0xff]
    %v106 = vld [vmem:[#allocation3 + $0x188] sm:$0xff]
    %v107 = vld [vmem:[#allocation3 + $0x190] sm:$0xff]
    %v108 = vld [vmem:[#allocation3 + $0x198] sm:$0xff]
    %v109 = vld [vmem:[#allocation3 + $0x1a0] sm:$0xff]
    %v110 = vld [vmem:[#allocation3 + $0x1a8] sm:$0xff]
    %v111 = vld [vmem:[#allocation3 + $0x1b0] sm:$0xff]
    %v112 = vld [vmem:[#allocation3 + $0x1b8] sm:$0xff]
    %v113 = vld [vmem:[#allocation3 + $0x1c0] sm:$0xff]
    %v114 = vld [vmem:[#allocation3 + $0x1c8] sm:$0xff]
    %v115 = vld [vmem:[#allocation3 + $0x1d0] sm:$0xff]
    %v116 = vld [vmem:[#allocation3 + $0x1d8] sm:$0xff]
    %v117 = vld [vmem:[#allocation3 + $0x1e0] sm:$0xff]
    %v118 = vld [vmem:[#allocation3 + $0x1e8] sm:$0xff]
    %v119 = vld [vmem:[#allocation3 + $0x1f0] sm:$0xff]
    %v120 = vld [vmem:[#allocation3 + $0x1f8] sm:$0xff]
    %v121 = vld [vmem:[#allocation3 + $0x200] sm:$0xff]
    %v122 = vld [vmem:[#allocation3 + $0x208] sm:$0xff]
    %v123 = vld [vmem:[#allocation3 + $0x210] sm:$0xff]
    %v124 = vld [vmem:[#allocation3 + $0x218] sm:$0xff]
    %v125 = vld [vmem:[#allocation3 + $0x220] sm:$0xff]
    %v126 = vld [vmem:[#allocation3 + $0x228] sm:$0xff]
    %v127 = vld [vmem:[#allocation3 + $0x230] sm:$0xff]
    %v128 = vld [vmem:[#allocation3 + $0x238] sm:$0xff]
    %v129 = vld [vmem:[#allocation3 + $0x240] sm:$0xff]
    %v130 = vld [vmem:[#allocation3 + $0x248] sm:$0xff]
    %v131 = vld [vmem:[#allocation3 + $0x250] sm:$0xff]
    %v132 = vld [vmem:[#allocation3 + $0x258] sm:$0xff]
    %v133 = vld [vmem:[#allocation3 + $0x260] sm:$0xff]
    %v134 = vld [vmem:[#allocation3 + $0x268] sm:$0xff]
    %v135 = vld [vmem:[#allocation3 + $0x270] sm:$0xff]
    %v136 = vld [vmem:[#allocation3 + $0x278] sm:$0xff]
    %v137 = vld [vmem:[#allocation3 + $0x280] sm:$0xff]
    %v138 = vld [vmem:[#allocation3 + $0x288] sm:$0xff]
    %v139 = vld [vmem:[#allocation3 + $0x290] sm:$0xff]
    %v140 = vld [vmem:[#allocation3 + $0x298] sm:$0xff]
    %v141 = vld [vmem:[#allocation3 + $0x2a0] sm:$0xff]
    %v142 = vld [vmem:[#allocation3 + $0x2a8] sm:$0xff]
    %v143 = vld [vmem:[#allocation3 + $0x2b0] sm:$0xff]
    %v144 = vld [vmem:[#allocation3 + $0x2b8] sm:$0xff]
    %v145 = vld [vmem:[#allocation3 + $0x2c0] sm:$0xff]
    %v146 = vld [vmem:[#allocation3 + $0x2c8] sm:$0xff]
    %v147 = vld [vmem:[#allocation3 + $0x2d0] sm:$0xff]
    %v148 = vld [vmem:[#allocation3 + $0x2d8] sm:$0xff]
    %v149 = vld [vmem:[#allocation3 + $0x2e0] sm:$0xff]
    %v150 = vld [vmem:[#allocation3 + $0x2e8] sm:$0xff]
    %v151 = vld [vmem:[#allocation3 + $0x2f0] sm:$0xff]
    %v152 = vld [vmem:[#allocation3 + $0x2f8] sm:$0xff]
    %v153 = vld [vmem:[#allocation3 + $0x300] sm:$0xff]
    %v154 = vld [vmem:[#allocation3 + $0x308] sm:$0xff]
    %v155 = vld [vmem:[#allocation3 + $0x310] sm:$0xff]
    %v156 = vld [vmem:[#allocation3 + $0x318] sm:$0xff]
    %v157 = vld [vmem:[#allocation3 + $0x320] sm:$0xff]
    %v158 = vld [vmem:[#allocation3 + $0x328] sm:$0xff]
    %v159 = vld [vmem:[#allocation3 + $0x330] sm:$0xff]
    %v160 = vld [vmem:[#allocation3 + $0x338] sm:$0xff]
    %v161 = vld [vmem:[#allocation3 + $0x340] sm:$0xff]
    %v162 = vld [vmem:[#allocation3 + $0x348] sm:$0xff]
    %v163 = vld [vmem:[#allocation3 + $0x350] sm:$0xff]
    %v164 = vld [vmem:[#allocation3 + $0x358] sm:$0xff]
    %v165 = vld [vmem:[#allocation3 + $0x360] sm:$0xff]
    %v166 = vld [vmem:[#allocation3 + $0x368] sm:$0xff]
    %v167 = vld [vmem:[#allocation3 + $0x370] sm:$0xff]
    %v168 = vld [vmem:[#allocation3 + $0x378] sm:$0xff]
    %v169 = vld [vmem:[#allocation3 + $0x380] sm:$0xff]
    %v170 = vld [vmem:[#allocation3 + $0x388] sm:$0xff]
    %v171 = vld [vmem:[#allocation3 + $0x390] sm:$0xff]
    %v172 = vld [vmem:[#allocation3 + $0x398] sm:$0xff]
    %v173 = vld [vmem:[#allocation3 + $0x3a0] sm:$0xff]
    %v174 = vld [vmem:[#allocation3 + $0x3a8] sm:$0xff]
    %v175 = vld [vmem:[#allocation3 + $0x3b0] sm:$0xff]
    %v176 = vld [vmem:[#allocation3 + $0x3b8] sm:$0xff]
    %v177 = vld [vmem:[#allocation3 + $0x3c0] sm:$0xff]
    %v178 = vld [vmem:[#allocation3 + $0x3c8] sm:$0xff]
    %v179 = vld [vmem:[#allocation3 + $0x3d0] sm:$0xff]
    %v180 = vld [vmem:[#allocation3 + $0x3d8] sm:$0xff]
    %v181 = vld [vmem:[#allocation3 + $0x3e0] sm:$0xff]
    %v182 = vld [vmem:[#allocation3 + $0x3e8] sm:$0xff]
    %v183 = vld [vmem:[#allocation3 + $0x3f0] sm:$0xff]
    %v184 = vld [vmem:[#allocation3 + $0x3f8] sm:$0xff]
    %v185 = vld [vmem:[#allocation3 + $0x400] sm:$0xff]
    %v186 = vld [vmem:[#allocation3 + $0x408] sm:$0xff]
    %v187 = vld [vmem:[#allocation3 + $0x410] sm:$0xff]
    %v188 = vld [vmem:[#allocation3 + $0x418] sm:$0xff]
    %v189 = vld [vmem:[#allocation3 + $0x420] sm:$0xff]
    %v190 = vld [vmem:[#allocation3 + $0x428] sm:$0xff]
    %v191 = vld [vmem:[#allocation3 + $0x430] sm:$0xff]
    %v192 = vld [vmem:[#allocation3 + $0x438] sm:$0xff]
    %v193 = vld [vmem:[#allocation3 + $0x440] sm:$0xff]
    %v194 = vld [vmem:[#allocation3 + $0x448] sm:$0xff]
    %v195 = vld [vmem:[#allocation3 + $0x450] sm:$0xff]
    %v196 = vld [vmem:[#allocation3 + $0x458] sm:$0xff]
    %v197 = vld [vmem:[#allocation3 + $0x460] sm:$0xff]
    %v198 = vld [vmem:[#allocation3 + $0x468] sm:$0xff]
    %v199 = vld [vmem:[#allocation3 + $0x470] sm:$0xff]
    %v200 = vld [vmem:[#allocation3 + $0x478] sm:$0xff]
    %v201 = vld [vmem:[#allocation3 + $0x480] sm:$0xff]
    %v202 = vld [vmem:[#allocation3 + $0x488] sm:$0xff]
    %v203 = vld [vmem:[#allocation3 + $0x490] sm:$0xff]
    %v204 = vld [vmem:[#allocation3 + $0x498] sm:$0xff]
    %v205 = vld [vmem:[#allocation3 + $0x4a0] sm:$0xff]
    %v206 = vld [vmem:[#allocation3 + $0x4a8] sm:$0xff]
    %v207 = vld [vmem:[#allocation3 + $0x4b0] sm:$0xff]
    %v208 = vld [vmem:[#allocation3 + $0x4b8] sm:$0xff]
    %v209 = vld [vmem:[#allocation3 + $0x4c0] sm:$0xff]
    %v210 = vld [vmem:[#allocation3 + $0x4c8] sm:$0xff]
    %v211 = vld [vmem:[#allocation3 + $0x4d0] sm:$0xff]
    %v212 = vld [vmem:[#allocation3 + $0x4d8] sm:$0xff]
    %v213 = vld [vmem:[#allocation3 + $0x4e0] sm:$0xff]
    %v214 = vld [vmem:[#allocation3 + $0x4e8] sm:$0xff]
    %v215 = vld [vmem:[#allocation3 + $0x4f0] sm:$0xff]
    %v216 = vld [vmem:[#allocation3 + $0x4f8] sm:$0xff]
    %v217 = vld [vmem:[#allocation3 + $0x500] sm:$0xff]
    %v218 = vld [vmem:[#allocation3 + $0x508] sm:$0xff]
    %v219 = vld [vmem:[#allocation3 + $0x510] sm:$0xff]
    %v220 = vld [vmem:[#allocation3 + $0x518] sm:$0xff]
    %v221 = vld [vmem:[#allocation3 + $0x520] sm:$0xff]
    %v222 = vld [vmem:[#allocation3 + $0x528] sm:$0xff]
    %v223 = vld [vmem:[#allocation3 + $0x530] sm:$0xff]
    %v224 = vld [vmem:[#allocation3 + $0x538] sm:$0xff]
    %v225 = vld [vmem:[#allocation3 + $0x540] sm:$0xff]
    %v226 = vld [vmem:[#allocation3 + $0x548] sm:$0xff]
    %v227 = vld [vmem:[#allocation3 + $0x550] sm:$0xff]
    %v228 = vld [vmem:[#allocation3 + $0x558] sm:$0xff]
    %v229 = vld [vmem:[#allocation3 + $0x560] sm:$0xff]
    %v230 = vld [vmem:[#allocation3 + $0x568] sm:$0xff]
    %v231 = vld [vmem:[#allocation3 + $0x570] sm:$0xff]
    %v232 = vld [vmem:[#allocation3 + $0x578] sm:$0xff]
    %v233 = vld [vmem:[#allocation3 + $0x580] sm:$0xff]
    %v234 = vld [vmem:[#allocation3 + $0x588] sm:$0xff]
    %v235 = vld [vmem:[#allocation3 + $0x590] sm:$0xff]
    %v236 = vld [vmem:[#allocation3 + $0x598] sm:$0xff]
    %v237 = vld [vmem:[#allocation3 + $0x5a0] sm:$0xff]
    %v238 = vld [vmem:[#allocation3 + $0x5a8] sm:$0xff]
    %v239 = vld [vmem:[#allocation3 + $0x5b0] sm:$0xff]
    %v240 = vld [vmem:[#allocation3 + $0x5b8] sm:$0xff]
    %v241 = vld [vmem:[#allocation3 + $0x5c0] sm:$0xff]
    %v242 = vld [vmem:[#allocation3 + $0x5c8] sm:$0xff]
    %v243 = vld [vmem:[#allocation3 + $0x5d0] sm:$0xff]
    %v244 = vld [vmem:[#allocation3 + $0x5d8] sm:$0xff]
    %v245 = vld [vmem:[#allocation3 + $0x5e0] sm:$0xff]
    %v246 = vld [vmem:[#allocation3 + $0x5e8] sm:$0xff]
    %v247 = vld [vmem:[#allocation3 + $0x5f0] sm:$0xff]
    %v248 = vld [vmem:[#allocation3 + $0x5f8] sm:$0xff]
    %v249 = vld [vmem:[#allocation3 + $0x600] sm:$0xff]
    %v250 = vld [vmem:[#allocation3 + $0x608] sm:$0xff]
    %v251 = vld [vmem:[#allocation3 + $0x610] sm:$0xff]
    %v252 = vld [vmem:[#allocation3 + $0x618] sm:$0xff]
    %v253 = vld [vmem:[#allocation3 + $0x620] sm:$0xff]
    %v254 = vld [vmem:[#allocation3 + $0x628] sm:$0xff]
    %v255 = vld [vmem:[#allocation3 + $0x630] sm:$0xff]
    %v256 = vld [vmem:[#allocation3 + $0x638] sm:$0xff]
    %v257 = vld [vmem:[#allocation3 + $0x640] sm:$0xff]
    %v258 = vld [vmem:[#allocation3 + $0x648] sm:$0xff]
    %v259 = vld [vmem:[#allocation3 + $0x650] sm:$0xff]
    %v260 = vld [vmem:[#allocation3 + $0x658] sm:$0xff]
    %v261 = vld [vmem:[#allocation3 + $0x660] sm:$0xff]
    %v262 = vld [vmem:[#allocation3 + $0x668] sm:$0xff]
    %v263 = vld [vmem:[#allocation3 + $0x670] sm:$0xff]
    %v264 = vld [vmem:[#allocation3 + $0x678] sm:$0xff]
    %v265 = vld [vmem:[#allocation3 + $0x680] sm:$0xff]
    %v266 = vld [vmem:[#allocation3 + $0x688] sm:$0xff]
    %v267 = vld [vmem:[#allocation3 + $0x690] sm:$0xff]
    %v268 = vld [vmem:[#allocation3 + $0x698] sm:$0xff]
    %v269 = vld [vmem:[#allocation3 + $0x6a0] sm:$0xff]
    %v270 = vld [vmem:[#allocation3 + $0x6a8] sm:$0xff]
    %v271 = vld [vmem:[#allocation3 + $0x6b0] sm:$0xff]
    %v272 = vld [vmem:[#allocation3 + $0x6b8] sm:$0xff]
    %v273 = vld [vmem:[#allocation3 + $0x6c0] sm:$0xff]
    %v274 = vld [vmem:[#allocation3 + $0x6c8] sm:$0xff]
    %v275 = vld [vmem:[#allocation3 + $0x6d0] sm:$0xff]
    %v276 = vld [vmem:[#allocation3 + $0x6d8] sm:$0xff]
    %v277 = vld [vmem:[#allocation3 + $0x6e0] sm:$0xff]
    %v278 = vld [vmem:[#allocation3 + $0x6e8] sm:$0xff]
    %v279 = vld [vmem:[#allocation3 + $0x6f0] sm:$0xff]
    %v280 = vld [vmem:[#allocation3 + $0x6f8] sm:$0xff]
    %v281 = vld [vmem:[#allocation3 + $0x700] sm:$0xff]
    %v282 = vld [vmem:[#allocation3 + $0x708] sm:$0xff]
    %v283 = vld [vmem:[#allocation3 + $0x710] sm:$0xff]
    %v284 = vld [vmem:[#allocation3 + $0x718] sm:$0xff]
    %v285 = vld [vmem:[#allocation3 + $0x720] sm:$0xff]
    %v286 = vld [vmem:[#allocation3 + $0x728] sm:$0xff]
    %v287 = vld [vmem:[#allocation3 + $0x730] sm:$0xff]
    %v288 = vld [vmem:[#allocation3 + $0x738] sm:$0xff]
    %v289 = vld [vmem:[#allocation3 + $0x740] sm:$0xff]
    %v290 = vld [vmem:[#allocation3 + $0x748] sm:$0xff]
    %v291 = vld [vmem:[#allocation3 + $0x750] sm:$0xff]
    %v292 = vld [vmem:[#allocation3 + $0x758] sm:$0xff]
    %v293 = vld [vmem:[#allocation3 + $0x760] sm:$0xff]
    %v294 = vld [vmem:[#allocation3 + $0x768] sm:$0xff]
    %v295 = vld [vmem:[#allocation3 + $0x770] sm:$0xff]
    %v296 = vld [vmem:[#allocation3 + $0x778] sm:$0xff]
    %v297 = vld [vmem:[#allocation3 + $0x780] sm:$0xff]
    %v298 = vld [vmem:[#allocation3 + $0x788] sm:$0xff]
    %v299 = vld [vmem:[#allocation3 + $0x790] sm:$0xff]
    %v300 = vld [vmem:[#allocation3 + $0x798] sm:$0xff]
    %v301 = vld [vmem:[#allocation3 + $0x7a0] sm:$0xff]
    %v302 = vld [vmem:[#allocation3 + $0x7a8] sm:$0xff]
    %v303 = vld [vmem:[#allocation3 + $0x7b0] sm:$0xff]
    %v304 = vld [vmem:[#allocation3 + $0x7b8] sm:$0xff]
    %v305 = vld [vmem:[#allocation3 + $0x7c0] sm:$0xff]
    %v306 = vld [vmem:[#allocation3 + $0x7c8] sm:$0xff]
    %v307 = vld [vmem:[#allocation3 + $0x7d0] sm:$0xff]
    %v308 = vld [vmem:[#allocation3 + $0x7d8] sm:$0xff]
    %v309 = vld [vmem:[#allocation3 + $0x7e0] sm:$0xff]
    %v310 = vld [vmem:[#allocation3 + $0x7e8] sm:$0xff]
    %v311 = vld [vmem:[#allocation3 + $0x7f0] sm:$0xff]
    %v312 = vld [vmem:[#allocation3 + $0x7f8] sm:$0xff]
    %v313 = vld [vmem:[#allocation3 + $0x800] sm:$0xff]
    %v314 = vld [vmem:[#allocation3 + $0x808] sm:$0xff]
    %v315 = vld [vmem:[#allocation3 + $0x810] sm:$0xff]
    %v316 = vld [vmem:[#allocation3 + $0x818] sm:$0xff]
    %v317 = vld [vmem:[#allocation3 + $0x820] sm:$0xff]
    %v318 = vld [vmem:[#allocation3 + $0x828] sm:$0xff]
    %v319 = vld [vmem:[#allocation3 + $0x830] sm:$0xff]
    %v320 = vld [vmem:[#allocation3 + $0x838] sm:$0xff]
    %v321 = vld [vmem:[#allocation3 + $0x840] sm:$0xff]
    %v322 = vld [vmem:[#allocation3 + $0x848] sm:$0xff]
    %v323 = vld [vmem:[#allocation3 + $0x850] sm:$0xff]
    %v324 = vld [vmem:[#allocation3 + $0x858] sm:$0xff]
    %v325 = vld [vmem:[#allocation3 + $0x860] sm:$0xff]
    %v326 = vld [vmem:[#allocation3 + $0x868] sm:$0xff]
    %v327 = vld [vmem:[#allocation3 + $0x870] sm:$0xff]
    %v328 = vld [vmem:[#allocation3 + $0x878] sm:$0xff]
    %v329 = vld [vmem:[#allocation3 + $0x880] sm:$0xff]
    %v330 = vld [vmem:[#allocation3 + $0x888] sm:$0xff]
    %v331 = vld [vmem:[#allocation3 + $0x890] sm:$0xff]
    %v332 = vld [vmem:[#allocation3 + $0x898] sm:$0xff]
    %v333 = vld [vmem:[#allocation3 + $0x8a0] sm:$0xff]
    %v334 = vld [vmem:[#allocation3 + $0x8a8] sm:$0xff]
    %v335 = vld [vmem:[#allocation3 + $0x8b0] sm:$0xff]
    %v336 = vld [vmem:[#allocation3 + $0x8b8] sm:$0xff]
    %v337 = vld [vmem:[#allocation3 + $0x8c0] sm:$0xff]
    %v338 = vld [vmem:[#allocation3 + $0x8c8] sm:$0xff]
    %v339 = vld [vmem:[#allocation3 + $0x8d0] sm:$0xff]
    %v340 = vld [vmem:[#allocation3 + $0x8d8] sm:$0xff]
    %v341 = vld [vmem:[#allocation3 + $0x8e0] sm:$0xff]
    %v342 = vld [vmem:[#allocation3 + $0x8e8] sm:$0xff]
    %v343 = vld [vmem:[#allocation3 + $0x8f0] sm:$0xff]
    %v344 = vld [vmem:[#allocation3 + $0x8f8] sm:$0xff]
    %v345 = vld [vmem:[#allocation3 + $0x900] sm:$0xff]
    %v346 = vld [vmem:[#allocation3 + $0x908] sm:$0xff]
    %v347 = vld [vmem:[#allocation3 + $0x910] sm:$0xff]
    %v348 = vld [vmem:[#allocation3 + $0x918] sm:$0xff]
    %v349 = vld [vmem:[#allocation3 + $0x920] sm:$0xff]
    %v350 = vld [vmem:[#allocation3 + $0x928] sm:$0xff]
    %v351 = vld [vmem:[#allocation3 + $0x930] sm:$0xff]
    %v352 = vld [vmem:[#allocation3 + $0x938] sm:$0xff]
    %v353 = vld [vmem:[#allocation3 + $0x940] sm:$0xff]
    %v354 = vld [vmem:[#allocation3 + $0x948] sm:$0xff]
    %v355 = vld [vmem:[#allocation3 + $0x950] sm:$0xff]
    %v356 = vld [vmem:[#allocation3 + $0x958] sm:$0xff]
    %v357 = vld [vmem:[#allocation3 + $0x960] sm:$0xff]
    %v358 = vld [vmem:[#allocation3 + $0x968] sm:$0xff]
    %v359 = vld [vmem:[#allocation3 + $0x970] sm:$0xff]
    %v360 = vld [vmem:[#allocation3 + $0x978] sm:$0xff]
    %v361 = vld [vmem:[#allocation3 + $0x980] sm:$0xff]
    %v362 = vld [vmem:[#allocation3 + $0x988] sm:$0xff]
    %v363 = vld [vmem:[#allocation3 + $0x990] sm:$0xff]
    %v364 = vld [vmem:[#allocation3 + $0x998] sm:$0xff]
    %v365 = vld [vmem:[#allocation3 + $0x9a0] sm:$0xff]
    %v366 = vld [vmem:[#allocation3 + $0x9a8] sm:$0xff]
    %v367 = vld [vmem:[#allocation3 + $0x9b0] sm:$0xff]
    %v368 = vld [vmem:[#allocation3 + $0x9b8] sm:$0xff]
    %v369 = vld [vmem:[#allocation3 + $0x9c0] sm:$0xff]
    %v370 = vld [vmem:[#allocation3 + $0x9c8] sm:$0xff]
    %v371 = vld [vmem:[#allocation3 + $0x9d0] sm:$0xff]
    %v372 = vld [vmem:[#allocation3 + $0x9d8] sm:$0xff]
    %v373 = vld [vmem:[#allocation3 + $0x9e0] sm:$0xff]
    %v374 = vld [vmem:[#allocation3 + $0x9e8] sm:$0xff]
    %v375 = vld [vmem:[#allocation3 + $0x9f0] sm:$0xff]
    %v376 = vld [vmem:[#allocation3 + $0x9f8] sm:$0xff]
    %v377 = vld [vmem:[#allocation3 + $0xa00] sm:$0xff]
    %v378 = vld [vmem:[#allocation3 + $0xa08] sm:$0xff]
    %v379 = vld [vmem:[#allocation3 + $0xa10] sm:$0xff]
    %v380 = vld [vmem:[#allocation3 + $0xa18] sm:$0xff]
    %v381 = vld [vmem:[#allocation3 + $0xa20] sm:$0xff]
    %v382 = vld [vmem:[#allocation3 + $0xa28] sm:$0xff]
    %v383 = vld [vmem:[#allocation3 + $0xa30] sm:$0xff]
    %v384 = vld [vmem:[#allocation3 + $0xa38] sm:$0xff]
    %v385 = vld [vmem:[#allocation3 + $0xa40] sm:$0xff]
    %v386 = vld [vmem:[#allocation3 + $0xa48] sm:$0xff]
    %v387 = vld [vmem:[#allocation3 + $0xa50] sm:$0xff]
    %v388 = vld [vmem:[#allocation3 + $0xa58] sm:$0xff]
    %v389 = vld [vmem:[#allocation3 + $0xa60] sm:$0xff]
    %v390 = vld [vmem:[#allocation3 + $0xa68] sm:$0xff]
    %v391 = vld [vmem:[#allocation3 + $0xa70] sm:$0xff]
    %v392 = vld [vmem:[#allocation3 + $0xa78] sm:$0xff]
    %v393 = vld [vmem:[#allocation3 + $0xa80] sm:$0xff]
    %v394 = vld [vmem:[#allocation3 + $0xa88] sm:$0xff]
    %v395 = vld [vmem:[#allocation3 + $0xa90] sm:$0xff]
    %v396 = vld [vmem:[#allocation3 + $0xa98] sm:$0xff]
    %v397 = vld [vmem:[#allocation3 + $0xaa0] sm:$0xff]
    %v398 = vld [vmem:[#allocation3 + $0xaa8] sm:$0xff]
    %v399 = vld [vmem:[#allocation3 + $0xab0] sm:$0xff]
    %v400 = vld [vmem:[#allocation3 + $0xab8] sm:$0xff]
    %v401 = vld [vmem:[#allocation3 + $0xac0] sm:$0xff]
    %v402 = vld [vmem:[#allocation3 + $0xac8] sm:$0xff]
    %v403 = vld [vmem:[#allocation3 + $0xad0] sm:$0xff]
    %v404 = vld [vmem:[#allocation3 + $0xad8] sm:$0xff]
    %v405 = vld [vmem:[#allocation3 + $0xae0] sm:$0xff]
    %v406 = vld [vmem:[#allocation3 + $0xae8] sm:$0xff]
    %v407 = vld [vmem:[#allocation3 + $0xaf0] sm:$0xff]
    %v408 = vld [vmem:[#allocation3 + $0xaf8] sm:$0xff]
    %v409 = vld [vmem:[#allocation3 + $0xb00] sm:$0xff]
    %v410 = vld [vmem:[#allocation3 + $0xb08] sm:$0xff]
    %v411 = vld [vmem:[#allocation3 + $0xb10] sm:$0xff]
    %v412 = vld [vmem:[#allocation3 + $0xb18] sm:$0xff]
    %v413 = vld [vmem:[#allocation3 + $0xb20] sm:$0xff]
    %v414 = vld [vmem:[#allocation3 + $0xb28] sm:$0xff]
    %v415 = vld [vmem:[#allocation3 + $0xb30] sm:$0xff]
    %v416 = vld [vmem:[#allocation3 + $0xb38] sm:$0xff]
    %v417 = vld [vmem:[#allocation3 + $0xb40] sm:$0xff]
    %v418 = vld [vmem:[#allocation3 + $0xb48] sm:$0xff]
    %v419 = vld [vmem:[#allocation3 + $0xb50] sm:$0xff]
    %v420 = vld [vmem:[#allocation3 + $0xb58] sm:$0xff]
    %v421 = vld [vmem:[#allocation3 + $0xb60] sm:$0xff]
    %v422 = vld [vmem:[#allocation3 + $0xb68] sm:$0xff]
    %v423 = vld [vmem:[#allocation3 + $0xb70] sm:$0xff]
    %v424 = vld [vmem:[#allocation3 + $0xb78] sm:$0xff]
    %v425 = vld [vmem:[#allocation3 + $0xb80] sm:$0xff]
    %v426 = vld [vmem:[#allocation3 + $0xb88] sm:$0xff]
    %v427 = vld [vmem:[#allocation3 + $0xb90] sm:$0xff]
    %v428 = vld [vmem:[#allocation3 + $0xb98] sm:$0xff]
    %v429 = vld [vmem:[#allocation3 + $0xba0] sm:$0xff]
    %v430 = vld [vmem:[#allocation3 + $0xba8] sm:$0xff]
    %v431 = vld [vmem:[#allocation3 + $0xbb0] sm:$0xff]
    %v432 = vld [vmem:[#allocation3 + $0xbb8] sm:$0xff]
    %v433 = vld [vmem:[#allocation3 + $0xbc0] sm:$0xff]
    %v434 = vld [vmem:[#allocation3 + $0xbc8] sm:$0xff]
    %v435 = vld [vmem:[#allocation3 + $0xbd0] sm:$0xff]
    %v436 = vld [vmem:[#allocation3 + $0xbd8] sm:$0xff]
    %v437 = vld [vmem:[#allocation3 + $0xbe0] sm:$0xff]
    %v438 = vld [vmem:[#allocation3 + $0xbe8] sm:$0xff]
    %v439 = vld [vmem:[#allocation3 + $0xbf0] sm:$0xff]
    %v440 = vld [vmem:[#allocation3 + $0xbf8] sm:$0xff]
    %v441 = vld [vmem:[#allocation3 + $0xc00] sm:$0xff]
    %v442 = vld [vmem:[#allocation3 + $0xc08] sm:$0xff]
    %v443 = vld [vmem:[#allocation3 + $0xc10] sm:$0xff]
    %v444 = vld [vmem:[#allocation3 + $0xc18] sm:$0xff]
    %v445 = vld [vmem:[#allocation3 + $0xc20] sm:$0xff]
    %v446 = vld [vmem:[#allocation3 + $0xc28] sm:$0xff]
    %v447 = vld [vmem:[#allocation3 + $0xc30] sm:$0xff]
    %v448 = vld [vmem:[#allocation3 + $0xc38] sm:$0xff]
    %v449 = vld [vmem:[#allocation3 + $0xc40] sm:$0xff]
    %v450 = vld [vmem:[#allocation3 + $0xc48] sm:$0xff]
    %v451 = vld [vmem:[#allocation3 + $0xc50] sm:$0xff]
    %v452 = vld [vmem:[#allocation3 + $0xc58] sm:$0xff]
    %v453 = vld [vmem:[#allocation3 + $0xc60] sm:$0xff]
    %v454 = vld [vmem:[#allocation3 + $0xc68] sm:$0xff]
    %v455 = vld [vmem:[#allocation3 + $0xc70] sm:$0xff]
    %v456 = vld [vmem:[#allocation3 + $0xc78] sm:$0xff]
    %v457 = vld [vmem:[#allocation3 + $0xc80] sm:$0xff]
    %v458 = vld [vmem:[#allocation3 + $0xc88] sm:$0xff]
    %v459 = vld [vmem:[#allocation3 + $0xc90] sm:$0xff]
    %v460 = vld [vmem:[#allocation3 + $0xc98] sm:$0xff]
    %v461 = vld [vmem:[#allocation3 + $0xca0] sm:$0xff]
    %v462 = vld [vmem:[#allocation3 + $0xca8] sm:$0xff]
    %v463 = vld [vmem:[#allocation3 + $0xcb0] sm:$0xff]
    %v464 = vld [vmem:[#allocation3 + $0xcb8] sm:$0xff]
    %v465 = vld [vmem:[#allocation3 + $0xcc0] sm:$0xff]
    %v466 = vld [vmem:[#allocation3 + $0xcc8] sm:$0xff]
    %v467 = vld [vmem:[#allocation3 + $0xcd0] sm:$0xff]
    %v468 = vld [vmem:[#allocation3 + $0xcd8] sm:$0xff]
    %v469 = vld [vmem:[#allocation3 + $0xce0] sm:$0xff]
    %v470 = vld [vmem:[#allocation3 + $0xce8] sm:$0xff]
    %v471 = vld [vmem:[#allocation3 + $0xcf0] sm:$0xff]
    %v472 = vld [vmem:[#allocation3 + $0xcf8] sm:$0xff]
    %v473 = vld [vmem:[#allocation3 + $0xd00] sm:$0xff]
    %v474 = vld [vmem:[#allocation3 + $0xd08] sm:$0xff]
    %v475 = vld [vmem:[#allocation3 + $0xd10] sm:$0xff]
    %v476 = vld [vmem:[#allocation3 + $0xd18] sm:$0xff]
    %v477 = vld [vmem:[#allocation3 + $0xd20] sm:$0xff]
    %v478 = vld [vmem:[#allocation3 + $0xd28] sm:$0xff]
    %v479 = vld [vmem:[#allocation3 + $0xd30] sm:$0xff]
    %v480 = vld [vmem:[#allocation3 + $0xd38] sm:$0xff]
    %v481 = vld [vmem:[#allocation3 + $0xd40] sm:$0xff]
    %v482 = vld [vmem:[#allocation3 + $0xd48] sm:$0xff]
    %v483 = vld [vmem:[#allocation3 + $0xd50] sm:$0xff]
    %v484 = vld [vmem:[#allocation3 + $0xd58] sm:$0xff]
    %v485 = vld [vmem:[#allocation3 + $0xd60] sm:$0xff]
    %v486 = vld [vmem:[#allocation3 + $0xd68] sm:$0xff]
    %v487 = vld [vmem:[#allocation3 + $0xd70] sm:$0xff]
    %v488 = vld [vmem:[#allocation3 + $0xd78] sm:$0xff]
    %v489 = vld [vmem:[#allocation3 + $0xd80] sm:$0xff]
    %v490 = vld [vmem:[#allocation3 + $0xd88] sm:$0xff]
    %v491 = vld [vmem:[#allocation3 + $0xd90] sm:$0xff]
    %v492 = vld [vmem:[#allocation3 + $0xd98] sm:$0xff]
    %v493 = vld [vmem:[#allocation3 + $0xda0] sm:$0xff]
    %v494 = vld [vmem:[#allocation3 + $0xda8] sm:$0xff]
    %v495 = vld [vmem:[#allocation3 + $0xdb0] sm:$0xff]
    %v496 = vld [vmem:[#allocation3 + $0xdb8] sm:$0xff]
    %v497 = vld [vmem:[#allocation3 + $0xdc0] sm:$0xff]
    %v498 = vld [vmem:[#allocation3 + $0xdc8] sm:$0xff]
    %v499 = vld [vmem:[#allocation3 + $0xdd0] sm:$0xff]
    %v500 = vld [vmem:[#allocation3 + $0xdd8] sm:$0xff]
    %v501 = vld [vmem:[#allocation3 + $0xde0] sm:$0xff]
    %v502 = vld [vmem:[#allocation3 + $0xde8] sm:$0xff]
    %v503 = vld [vmem:[#allocation3 + $0xdf0] sm:$0xff]
    %v504 = vld [vmem:[#allocation3 + $0xdf8] sm:$0xff]
    %v505 = vld [vmem:[#allocation3 + $0xe00] sm:$0xff]
    %v506 = vld [vmem:[#allocation3 + $0xe08] sm:$0xff]
    %v507 = vld [vmem:[#allocation3 + $0xe10] sm:$0xff]
    %v508 = vld [vmem:[#allocation3 + $0xe18] sm:$0xff]
    %v509 = vld [vmem:[#allocation3 + $0xe20] sm:$0xff]
    %v510 = vld [vmem:[#allocation3 + $0xe28] sm:$0xff]
    %v511 = vld [vmem:[#allocation3 + $0xe30] sm:$0xff]
    %v512 = vld [vmem:[#allocation3 + $0xe38] sm:$0xff]
    %v513 = vld [vmem:[#allocation3 + $0xe40] sm:$0xff]
    %v514 = vld [vmem:[#allocation3 + $0xe48] sm:$0xff]
    %v515 = vld [vmem:[#allocation3 + $0xe50] sm:$0xff]
    %v516 = vld [vmem:[#allocation3 + $0xe58] sm:$0xff]
    %v517 = vld [vmem:[#allocation3 + $0xe60] sm:$0xff]
    %v518 = vld [vmem:[#allocation3 + $0xe68] sm:$0xff]
    %v519 = vld [vmem:[#allocation3 + $0xe70] sm:$0xff]
    %v520 = vld [vmem:[#allocation3 + $0xe78] sm:$0xff]
    %v521 = vld [vmem:[#allocation3 + $0xe80] sm:$0xff]
    %v522 = vld [vmem:[#allocation3 + $0xe88] sm:$0xff]
    %v523 = vld [vmem:[#allocation3 + $0xe90] sm:$0xff]
    %v524 = vld [vmem:[#allocation3 + $0xe98] sm:$0xff]
    %v525 = vld [vmem:[#allocation3 + $0xea0] sm:$0xff]
    %v526 = vld [vmem:[#allocation3 + $0xea8] sm:$0xff]
    %v527 = vld [vmem:[#allocation3 + $0xeb0] sm:$0xff]
    %v528 = vld [vmem:[#allocation3 + $0xeb8] sm:$0xff]
    %v529 = vld [vmem:[#allocation3 + $0xec0] sm:$0xff]
    %v530 = vld [vmem:[#allocation3 + $0xec8] sm:$0xff]
    %v531 = vld [vmem:[#allocation3 + $0xed0] sm:$0xff]
    %v532 = vld [vmem:[#allocation3 + $0xed8] sm:$0xff]
    %v533 = vld [vmem:[#allocation3 + $0xee0] sm:$0xff]
    %v534 = vld [vmem:[#allocation3 + $0xee8] sm:$0xff]
    %v535 = vld [vmem:[#allocation3 + $0xef0] sm:$0xff]
    %v536 = vld [vmem:[#allocation3 + $0xef8] sm:$0xff]
    %v537 = vld [vmem:[#allocation3 + $0xf00] sm:$0xff]
    %v538 = vld [vmem:[#allocation3 + $0xf08] sm:$0xff]
    %v539 = vld [vmem:[#allocation3 + $0xf10] sm:$0xff]
    %v540 = vld [vmem:[#allocation3 + $0xf18] sm:$0xff]
    %v541 = vld [vmem:[#allocation3 + $0xf20] sm:$0xff]
    %v542 = vld [vmem:[#allocation3 + $0xf28] sm:$0xff]
    %v543 = vld [vmem:[#allocation3 + $0xf30] sm:$0xff]
    %v544 = vld [vmem:[#allocation3 + $0xf38] sm:$0xff]
    %v545 = vld [vmem:[#allocation3 + $0xf40] sm:$0xff]
    %v546 = vld [vmem:[#allocation3 + $0xf48] sm:$0xff]
    %v547 = vld [vmem:[#allocation3 + $0xf50] sm:$0xff]
    %v548 = vld [vmem:[#allocation3 + $0xf58] sm:$0xff]
    %v549 = vld [vmem:[#allocation3 + $0xf60] sm:$0xff]
    %v550 = vld [vmem:[#allocation3 + $0xf68] sm:$0xff]
    %v551 = vld [vmem:[#allocation3 + $0xf70] sm:$0xff]
    %v552 = vld [vmem:[#allocation3 + $0xf78] sm:$0xff]
    %v553 = vld [vmem:[#allocation3 + $0xf80] sm:$0xff]
    %v554 = vld [vmem:[#allocation3 + $0xf88] sm:$0xff]
    %v555 = vld [vmem:[#allocation3 + $0xf90] sm:$0xff]
    %v556 = vld [vmem:[#allocation3 + $0xf98] sm:$0xff]
    %v557 = vld [vmem:[#allocation3 + $0xfa0] sm:$0xff]
    %v558 = vld [vmem:[#allocation3 + $0xfa8] sm:$0xff]
    %v559 = vld [vmem:[#allocation3 + $0xfb0] sm:$0xff]
    %v560 = vld [vmem:[#allocation3 + $0xfb8] sm:$0xff]
    %v561 = vld [vmem:[#allocation3 + $0xfc0] sm:$0xff]
    %v562 = vld [vmem:[#allocation3 + $0xfc8] sm:$0xff]
    %v563 = vld [vmem:[#allocation3 + $0xfd0] sm:$0xff]
    %v564 = vld [vmem:[#allocation3 + $0xfd8] sm:$0xff]
    %v565 = vld [vmem:[#allocation3 + $0xfe0] sm:$0xff]
    %v566 = vld [vmem:[#allocation3 + $0xfe8] sm:$0xff]
    %v567 = vld [vmem:[#allocation3 + $0xff0] sm:$0xff]
    %v568 = vld [vmem:[#allocation3 + $0xff8] sm:$0xff]
    %v569 = vld [vmem:[#allocation3 + $0x1000] sm:$0xff]
    %v570 = vld [vmem:[#allocation3 + $0x1008] sm:$0xff]
    %v571 = vld [vmem:[#allocation3 + $0x1010] sm:$0xff]
    %v572 = vld [vmem:[#allocation3 + $0x1018] sm:$0xff]
    %v573 = vld [vmem:[#allocation3 + $0x1020] sm:$0xff]
    %v574 = vld [vmem:[#allocation3 + $0x1028] sm:$0xff]
    %v575 = vld [vmem:[#allocation3 + $0x1030] sm:$0xff]
    %v576 = vld [vmem:[#allocation3 + $0x1038] sm:$0xff]
    %v577 = vld [vmem:[#allocation3 + $0x1040] sm:$0xff]
    %v578 = vld [vmem:[#allocation3 + $0x1048] sm:$0xff]
    %v579 = vld [vmem:[#allocation3 + $0x1050] sm:$0xff]
    %v580 = vld [vmem:[#allocation3 + $0x1058] sm:$0xff]
    %v581 = vld [vmem:[#allocation3 + $0x1060] sm:$0xff]
    %v582 = vld [vmem:[#allocation3 + $0x1068] sm:$0xff]
    %v583 = vld [vmem:[#allocation3 + $0x1070] sm:$0xff]
    %v584 = vld [vmem:[#allocation3 + $0x1078] sm:$0xff]
    %v585 = vld [vmem:[#allocation3 + $0x1080] sm:$0xff]
    %v586 = vld [vmem:[#allocation3 + $0x1088] sm:$0xff]
    %v587 = vld [vmem:[#allocation3 + $0x1090] sm:$0xff]
    %v588 = vld [vmem:[#allocation3 + $0x1098] sm:$0xff]
    %v589 = vld [vmem:[#allocation3 + $0x10a0] sm:$0xff]
    %v590 = vld [vmem:[#allocation3 + $0x10a8] sm:$0xff]
    %v591 = vld [vmem:[#allocation3 + $0x10b0] sm:$0xff]
    %v592 = vld [vmem:[#allocation3 + $0x10b8] sm:$0xff]
    %v593 = vld [vmem:[#allocation3 + $0x10c0] sm:$0xff]
    %v594 = vld [vmem:[#allocation3 + $0x10c8] sm:$0xff]
    %v595 = vld [vmem:[#allocation3 + $0x10d0] sm:$0xff]
    %v596 = vld [vmem:[#allocation3 + $0x10d8] sm:$0xff]
    %v597 = vld [vmem:[#allocation3 + $0x10e0] sm:$0xff]
    %v598 = vld [vmem:[#allocation3 + $0x10e8] sm:$0xff]
    %v599 = vld [vmem:[#allocation3 + $0x10f0] sm:$0xff]
    %v600 = vld [vmem:[#allocation3 + $0x10f8] sm:$0xff]
    %v601 = vld [vmem:[#allocation3 + $0x1100] sm:$0xff]
    %v602 = vld [vmem:[#allocation3 + $0x1108] sm:$0xff]
    %v603 = vld [vmem:[#allocation3 + $0x1110] sm:$0xff]
    %v604 = vld [vmem:[#allocation3 + $0x1118] sm:$0xff]
    %v605 = vld [vmem:[#allocation3 + $0x1120] sm:$0xff]
    %v606 = vld [vmem:[#allocation3 + $0x1128] sm:$0xff]
    %v607 = vld [vmem:[#allocation3 + $0x1130] sm:$0xff]
    %v608 = vld [vmem:[#allocation3 + $0x1138] sm:$0xff]
    %v609 = vld [vmem:[#allocation3 + $0x1140] sm:$0xff]
    %v610 = vld [vmem:[#allocation3 + $0x1148] sm:$0xff]
    %v611 = vld [vmem:[#allocation3 + $0x1150] sm:$0xff]
    %v612 = vld [vmem:[#allocation3 + $0x1158] sm:$0xff]
    %v613 = vld [vmem:[#allocation3 + $0x1160] sm:$0xff]
    %v614 = vld [vmem:[#allocation3 + $0x1168] sm:$0xff]
    %v615 = vld [vmem:[#allocation3 + $0x1170] sm:$0xff]
    %v616 = vld [vmem:[#allocation3 + $0x1178] sm:$0xff]
    %v617 = vld [vmem:[#allocation3 + $0x1180] sm:$0xff]
    %v618 = vld [vmem:[#allocation3 + $0x1188] sm:$0xff]
    %v619 = vld [vmem:[#allocation3 + $0x1190] sm:$0xff]
    %v620 = vld [vmem:[#allocation3 + $0x1198] sm:$0xff]
    %v621 = vld [vmem:[#allocation3 + $0x11a0] sm:$0xff]
    %v622 = vld [vmem:[#allocation3 + $0x11a8] sm:$0xff]
    %v623 = vld [vmem:[#allocation3 + $0x11b0] sm:$0xff]
    %v624 = vld [vmem:[#allocation3 + $0x11b8] sm:$0xff]
    %v625 = vld [vmem:[#allocation3 + $0x11c0] sm:$0xff]
    %v626 = vld [vmem:[#allocation3 + $0x11c8] sm:$0xff]
    %v627 = vld [vmem:[#allocation3 + $0x11d0] sm:$0xff]
    %v628 = vld [vmem:[#allocation3 + $0x11d8] sm:$0xff]
    %v629 = vld [vmem:[#allocation3 + $0x11e0] sm:$0xff]
    %v630 = vld [vmem:[#allocation3 + $0x11e8] sm:$0xff]
    %v631 = vld [vmem:[#allocation3 + $0x11f0] sm:$0xff]
    %v632 = vld [vmem:[#allocation3 + $0x11f8] sm:$0xff]
    %v633 = vld [vmem:[#allocation3 + $0x1200] sm:$0xff]
    %v634 = vld [vmem:[#allocation3 + $0x1208] sm:$0xff]
    %v635 = vld [vmem:[#allocation3 + $0x1210] sm:$0xff]
    %v636 = vld [vmem:[#allocation3 + $0x1218] sm:$0xff]
    %v637 = vld [vmem:[#allocation3 + $0x1220] sm:$0xff]
    %v638 = vld [vmem:[#allocation3 + $0x1228] sm:$0xff]
    %v639 = vld [vmem:[#allocation3 + $0x1230] sm:$0xff]
    %v640 = vld [vmem:[#allocation3 + $0x1238] sm:$0xff]
    %v641 = vld [vmem:[#allocation3 + $0x1240] sm:$0xff]
    %v642 = vld [vmem:[#allocation3 + $0x1248] sm:$0xff]
    %v643 = vld [vmem:[#allocation3 + $0x1250] sm:$0xff]
    %v644 = vld [vmem:[#allocation3 + $0x1258] sm:$0xff]
    %v645 = vld [vmem:[#allocation3 + $0x1260] sm:$0xff]
    %v646 = vld [vmem:[#allocation3 + $0x1268] sm:$0xff]
    %v647 = vld [vmem:[#allocation3 + $0x1270] sm:$0xff]
    %v648 = vld [vmem:[#allocation3 + $0x1278] sm:$0xff]
    %v649 = vld [vmem:[#allocation3 + $0x1280] sm:$0xff]
    %v650 = vld [vmem:[#allocation3 + $0x1288] sm:$0xff]
    %v651 = vld [vmem:[#allocation3 + $0x1290] sm:$0xff]
    %v652 = vld [vmem:[#allocation3 + $0x1298] sm:$0xff]
    %v653 = vld [vmem:[#allocation3 + $0x12a0] sm:$0xff]
    %v654 = vld [vmem:[#allocation3 + $0x12a8] sm:$0xff]
    %v655 = vld [vmem:[#allocation3 + $0x12b0] sm:$0xff]
    %v656 = vld [vmem:[#allocation3 + $0x12b8] sm:$0xff]
    %v657 = vld [vmem:[#allocation3 + $0x12c0] sm:$0xff]
    %v658 = vld [vmem:[#allocation3 + $0x12c8] sm:$0xff]
    %v659 = vld [vmem:[#allocation3 + $0x12d0] sm:$0xff]
    %v660 = vld [vmem:[#allocation3 + $0x12d8] sm:$0xff]
    %v661 = vld [vmem:[#allocation3 + $0x12e0] sm:$0xff]
    %v662 = vld [vmem:[#allocation3 + $0x12e8] sm:$0xff]
    %v663 = vld [vmem:[#allocation3 + $0x12f0] sm:$0xff]
    %v664 = vld [vmem:[#allocation3 + $0x12f8] sm:$0xff]
    %v665 = vld [vmem:[#allocation3 + $0x1300] sm:$0xff]
    %v666 = vld [vmem:[#allocation3 + $0x1308] sm:$0xff]
    %v667 = vld [vmem:[#allocation3 + $0x1310] sm:$0xff]
    %v668 = vld [vmem:[#allocation3 + $0x1318] sm:$0xff]
    %v669 = vld [vmem:[#allocation3 + $0x1320] sm:$0xff]
    %v670 = vld [vmem:[#allocation3 + $0x1328] sm:$0xff]
    %v671 = vld [vmem:[#allocation3 + $0x1330] sm:$0xff]
    %v672 = vld [vmem:[#allocation3 + $0x1338] sm:$0xff]
    %v673 = vld [vmem:[#allocation3 + $0x1340] sm:$0xff]
    %v674 = vld [vmem:[#allocation3 + $0x1348] sm:$0xff]
    %v675 = vld [vmem:[#allocation3 + $0x1350] sm:$0xff]
    %v676 = vld [vmem:[#allocation3 + $0x1358] sm:$0xff]
    %v677 = vld [vmem:[#allocation3 + $0x1360] sm:$0xff]
    %v678 = vld [vmem:[#allocation3 + $0x1368] sm:$0xff]
    %v679 = vld [vmem:[#allocation3 + $0x1370] sm:$0xff]
    %v680 = vld [vmem:[#allocation3 + $0x1378] sm:$0xff]
    %v681 = vld [vmem:[#allocation3 + $0x1380] sm:$0xff]
    %v682 = vld [vmem:[#allocation3 + $0x1388] sm:$0xff]
    %v683 = vld [vmem:[#allocation3 + $0x1390] sm:$0xff]
    %v684 = vld [vmem:[#allocation3 + $0x1398] sm:$0xff]
    %v685 = vld [vmem:[#allocation3 + $0x13a0] sm:$0xff]
    %v686 = vld [vmem:[#allocation3 + $0x13a8] sm:$0xff]
    %v687 = vld [vmem:[#allocation3 + $0x13b0] sm:$0xff]
    %v688 = vld [vmem:[#allocation3 + $0x13b8] sm:$0xff]
    %v689 = vld [vmem:[#allocation3 + $0x13c0] sm:$0xff]
    %v690 = vld [vmem:[#allocation3 + $0x13c8] sm:$0xff]
    %v691 = vld [vmem:[#allocation3 + $0x13d0] sm:$0xff]
    %v692 = vld [vmem:[#allocation3 + $0x13d8] sm:$0xff]
    %v693 = vld [vmem:[#allocation3 + $0x13e0] sm:$0xff]
    %v694 = vld [vmem:[#allocation3 + $0x13e8] sm:$0xff]
    %v695 = vld [vmem:[#allocation3 + $0x13f0] sm:$0xff]
    %v696 = vld [vmem:[#allocation3 + $0x13f8] sm:$0xff]
    %v697 = vld [vmem:[#allocation3 + $0x1400] sm:$0xff]
    %v698 = vld [vmem:[#allocation3 + $0x1408] sm:$0xff]
    %v699 = vld [vmem:[#allocation3 + $0x1410] sm:$0xff]
    %v700 = vld [vmem:[#allocation3 + $0x1418] sm:$0xff]
    %v701 = vld [vmem:[#allocation3 + $0x1420] sm:$0xff]
    %v702 = vld [vmem:[#allocation3 + $0x1428] sm:$0xff]
    %v703 = vld [vmem:[#allocation3 + $0x1430] sm:$0xff]
    %v704 = vld [vmem:[#allocation3 + $0x1438] sm:$0xff]
    %v705 = vld [vmem:[#allocation3 + $0x1440] sm:$0xff]
    %v706 = vld [vmem:[#allocation3 + $0x1448] sm:$0xff]
    %v707 = vld [vmem:[#allocation3 + $0x1450] sm:$0xff]
    %v708 = vld [vmem:[#allocation3 + $0x1458] sm:$0xff]
    %v709 = vld [vmem:[#allocation3 + $0x1460] sm:$0xff]
    %v710 = vld [vmem:[#allocation3 + $0x1468] sm:$0xff]
    %v711 = vld [vmem:[#allocation3 + $0x1470] sm:$0xff]
    %v712 = vld [vmem:[#allocation3 + $0x1478] sm:$0xff]
    %v713 = vld [vmem:[#allocation3 + $0x1480] sm:$0xff]
    %v714 = vld [vmem:[#allocation3 + $0x1488] sm:$0xff]
    %v715 = vld [vmem:[#allocation3 + $0x1490] sm:$0xff]
    %v716 = vld [vmem:[#allocation3 + $0x1498] sm:$0xff]
    %v717 = vld [vmem:[#allocation3 + $0x14a0] sm:$0xff]
    %v718 = vld [vmem:[#allocation3 + $0x14a8] sm:$0xff]
    %v719 = vld [vmem:[#allocation3 + $0x14b0] sm:$0xff]
    %v720 = vld [vmem:[#allocation3 + $0x14b8] sm:$0xff]
    %v721 = vld [vmem:[#allocation3 + $0x14c0] sm:$0xff]
    %v722 = vld [vmem:[#allocation3 + $0x14c8] sm:$0xff]
    %v723 = vld [vmem:[#allocation3 + $0x14d0] sm:$0xff]
    %v724 = vld [vmem:[#allocation3 + $0x14d8] sm:$0xff]
    %v725 = vld [vmem:[#allocation3 + $0x14e0] sm:$0xff]
    %v726 = vld [vmem:[#allocation3 + $0x14e8] sm:$0xff]
    %v727 = vld [vmem:[#allocation3 + $0x14f0] sm:$0xff]
    %v728 = vld [vmem:[#allocation3 + $0x14f8] sm:$0xff]
    %v729 = vld [vmem:[#allocation3 + $0x1500] sm:$0xff]
    %v730 = vld [vmem:[#allocation3 + $0x1508] sm:$0xff]
    %v731 = vld [vmem:[#allocation3 + $0x1510] sm:$0xff]
    %v732 = vld [vmem:[#allocation3 + $0x1518] sm:$0xff]
    %v733 = vld [vmem:[#allocation3 + $0x1520] sm:$0xff]
    %v734 = vld [vmem:[#allocation3 + $0x1528] sm:$0xff]
    %v735 = vld [vmem:[#allocation3 + $0x1530] sm:$0xff]
    %v736 = vld [vmem:[#allocation3 + $0x1538] sm:$0xff]
    %v737 = vld [vmem:[#allocation3 + $0x1540] sm:$0xff]
    %v738 = vld [vmem:[#allocation3 + $0x1548] sm:$0xff]
    %v739 = vld [vmem:[#allocation3 + $0x1550] sm:$0xff]
    %v740 = vld [vmem:[#allocation3 + $0x1558] sm:$0xff]
    %v741 = vld [vmem:[#allocation3 + $0x1560] sm:$0xff]
    %v742 = vld [vmem:[#allocation3 + $0x1568] sm:$0xff]
    %v743 = vld [vmem:[#allocation3 + $0x1570] sm:$0xff]
    %v744 = vld [vmem:[#allocation3 + $0x1578] sm:$0xff]
    %v745 = vld [vmem:[#allocation3 + $0x1580] sm:$0xff]
    %v746 = vld [vmem:[#allocation3 + $0x1588] sm:$0xff]
    %v747 = vld [vmem:[#allocation3 + $0x1590] sm:$0xff]
    %v748 = vld [vmem:[#allocation3 + $0x1598] sm:$0xff]
    %v749 = vld [vmem:[#allocation3 + $0x15a0] sm:$0xff]
    %v750 = vld [vmem:[#allocation3 + $0x15a8] sm:$0xff]
    %v751 = vld [vmem:[#allocation3 + $0x15b0] sm:$0xff]
    %v752 = vld [vmem:[#allocation3 + $0x15b8] sm:$0xff]
    %v753 = vld [vmem:[#allocation3 + $0x15c0] sm:$0xff]
    %v754 = vld [vmem:[#allocation3 + $0x15c8] sm:$0xff]
    %v755 = vld [vmem:[#allocation3 + $0x15d0] sm:$0xff]
    %v756 = vld [vmem:[#allocation3 + $0x15d8] sm:$0xff]
    %v757 = vld [vmem:[#allocation3 + $0x15e0] sm:$0xff]
    %v758 = vld [vmem:[#allocation3 + $0x15e8] sm:$0xff]
    %v759 = vld [vmem:[#allocation3 + $0x15f0] sm:$0xff]
    %v760 = vld [vmem:[#allocation3 + $0x15f8] sm:$0xff]
    %v761 = vld [vmem:[#allocation3 + $0x1600] sm:$0xff]
    %v762 = vld [vmem:[#allocation3 + $0x1608] sm:$0xff]
    %v763 = vld [vmem:[#allocation3 + $0x1610] sm:$0xff]
    %v764 = vld [vmem:[#allocation3 + $0x1618] sm:$0xff]
    %v765 = vld [vmem:[#allocation3 + $0x1620] sm:$0xff]
    %v766 = vld [vmem:[#allocation3 + $0x1628] sm:$0xff]
    %v767 = vld [vmem:[#allocation3 + $0x1630] sm:$0xff]
    %v768 = vld [vmem:[#allocation3 + $0x1638] sm:$0xff]
    %v769 = vld [vmem:[#allocation3 + $0x1640] sm:$0xff]
    %v770 = vld [vmem:[#allocation3 + $0x1648] sm:$0xff]
    %v771 = vld [vmem:[#allocation3 + $0x1650] sm:$0xff]
    %v772 = vld [vmem:[#allocation3 + $0x1658] sm:$0xff]
    %v773 = vld [vmem:[#allocation3 + $0x1660] sm:$0xff]
    %v774 = vld [vmem:[#allocation3 + $0x1668] sm:$0xff]
    %v775 = vld [vmem:[#allocation3 + $0x1670] sm:$0xff]
    %v776 = vld [vmem:[#allocation3 + $0x1678] sm:$0xff]
    %v777 = vld [vmem:[#allocation3 + $0x1680] sm:$0xff]
    %v778 = vld [vmem:[#allocation3 + $0x1688] sm:$0xff]
    %v779 = vld [vmem:[#allocation3 + $0x1690] sm:$0xff]
    %v780 = vld [vmem:[#allocation3 + $0x1698] sm:$0xff]
    %v781 = vld [vmem:[#allocation3 + $0x16a0] sm:$0xff]
    %v782 = vld [vmem:[#allocation3 + $0x16a8] sm:$0xff]
    %v783 = vld [vmem:[#allocation3 + $0x16b0] sm:$0xff]
    %v784 = vld [vmem:[#allocation3 + $0x16b8] sm:$0xff]
    %v785 = vld [vmem:[#allocation3 + $0x16c0] sm:$0xff]
    %v786 = vld [vmem:[#allocation3 + $0x16c8] sm:$0xff]
    %v787 = vld [vmem:[#allocation3 + $0x16d0] sm:$0xff]
    %v788 = vld [vmem:[#allocation3 + $0x16d8] sm:$0xff]
    %v789 = vld [vmem:[#allocation3 + $0x16e0] sm:$0xff]
    %v790 = vld [vmem:[#allocation3 + $0x16e8] sm:$0xff]
    %v791 = vld [vmem:[#allocation3 + $0x16f0] sm:$0xff]
    %v792 = vld [vmem:[#allocation3 + $0x16f8] sm:$0xff]
    %v793 = vld [vmem:[#allocation3 + $0x1700] sm:$0xff]
    %v794 = vld [vmem:[#allocation3 + $0x1708] sm:$0xff]
    %v795 = vld [vmem:[#allocation3 + $0x1710] sm:$0xff]
    %v796 = vld [vmem:[#allocation3 + $0x1718] sm:$0xff]
    %v797 = vld [vmem:[#allocation3 + $0x1720] sm:$0xff]
    %v798 = vld [vmem:[#allocation3 + $0x1728] sm:$0xff]
    %v799 = vld [vmem:[#allocation3 + $0x1730] sm:$0xff]
    %v800 = vld [vmem:[#allocation3 + $0x1738] sm:$0xff]
    %v801 = vld [vmem:[#allocation3 + $0x1740] sm:$0xff]
    %v802 = vld [vmem:[#allocation3 + $0x1748] sm:$0xff]
    %v803 = vld [vmem:[#allocation3 + $0x1750] sm:$0xff]
    %v804 = vld [vmem:[#allocation3 + $0x1758] sm:$0xff]
    %v805 = vld [vmem:[#allocation3 + $0x1760] sm:$0xff]
    %v806 = vld [vmem:[#allocation3 + $0x1768] sm:$0xff]
    %v807 = vld [vmem:[#allocation3 + $0x1770] sm:$0xff]
    %v808 = vld [vmem:[#allocation3 + $0x1778] sm:$0xff]
    %v809 = vld [vmem:[#allocation3 + $0x1780] sm:$0xff]
    %v810 = vld [vmem:[#allocation3 + $0x1788] sm:$0xff]
    %v811 = vld [vmem:[#allocation3 + $0x1790] sm:$0xff]
    %v812 = vld [vmem:[#allocation3 + $0x1798] sm:$0xff]
    %v813 = vld [vmem:[#allocation3 + $0x17a0] sm:$0xff]
    %v814 = vld [vmem:[#allocation3 + $0x17a8] sm:$0xff]
    %v815 = vld [vmem:[#allocation3 + $0x17b0] sm:$0xff]
    %v816 = vld [vmem:[#allocation3 + $0x17b8] sm:$0xff]
    %v817 = vld [vmem:[#allocation3 + $0x17c0] sm:$0xff]
    %v818 = vld [vmem:[#allocation3 + $0x17c8] sm:$0xff]
    %v819 = vld [vmem:[#allocation3 + $0x17d0] sm:$0xff]
    %v820 = vld [vmem:[#allocation3 + $0x17d8] sm:$0xff]
    %v821 = vld [vmem:[#allocation3 + $0x17e0] sm:$0xff]
    %v822 = vld [vmem:[#allocation3 + $0x17e8] sm:$0xff]
    %v823 = vld [vmem:[#allocation3 + $0x17f0] sm:$0xff]
    %v824 = vld [vmem:[#allocation3 + $0x17f8] sm:$0xff]
    %v825 = vld [vmem:[#allocation3 + $0x1800] sm:$0xff]
    %v826 = vld [vmem:[#allocation3 + $0x1808] sm:$0xff]
    %v827 = vld [vmem:[#allocation3 + $0x1810] sm:$0xff]
    %v828 = vld [vmem:[#allocation3 + $0x1818] sm:$0xff]
    %v829 = vld [vmem:[#allocation3 + $0x1820] sm:$0xff]
    %v830 = vld [vmem:[#allocation3 + $0x1828] sm:$0xff]
    %v831 = vld [vmem:[#allocation3 + $0x1830] sm:$0xff]
    %v832 = vld [vmem:[#allocation3 + $0x1838] sm:$0xff]
    %v833 = vld [vmem:[#allocation3 + $0x1840] sm:$0xff]
    %v834 = vld [vmem:[#allocation3 + $0x1848] sm:$0xff]
    %v835 = vld [vmem:[#allocation3 + $0x1850] sm:$0xff]
    %v836 = vld [vmem:[#allocation3 + $0x1858] sm:$0xff]
    %v837 = vld [vmem:[#allocation3 + $0x1860] sm:$0xff]
    %v838 = vld [vmem:[#allocation3 + $0x1868] sm:$0xff]
    %v839 = vld [vmem:[#allocation3 + $0x1870] sm:$0xff]
    %v840 = vld [vmem:[#allocation3 + $0x1878] sm:$0xff]
    %v841 = vld [vmem:[#allocation3 + $0x1880] sm:$0xff]
    %v842 = vld [vmem:[#allocation3 + $0x1888] sm:$0xff]
    %v843 = vld [vmem:[#allocation3 + $0x1890] sm:$0xff]
    %v844 = vld [vmem:[#allocation3 + $0x1898] sm:$0xff]
    %v845 = vld [vmem:[#allocation3 + $0x18a0] sm:$0xff]
    %v846 = vld [vmem:[#allocation3 + $0x18a8] sm:$0xff]
    %v847 = vld [vmem:[#allocation3 + $0x18b0] sm:$0xff]
    %v848 = vld [vmem:[#allocation3 + $0x18b8] sm:$0xff]
    %v849 = vld [vmem:[#allocation3 + $0x18c0] sm:$0xff]
    %v850 = vld [vmem:[#allocation3 + $0x18c8] sm:$0xff]
    %v851 = vld [vmem:[#allocation3 + $0x18d0] sm:$0xff]
    %v852 = vld [vmem:[#allocation3 + $0x18d8] sm:$0xff]
    %v853 = vld [vmem:[#allocation3 + $0x18e0] sm:$0xff]
    %v854 = vld [vmem:[#allocation3 + $0x18e8] sm:$0xff]
    %v855 = vld [vmem:[#allocation3 + $0x18f0] sm:$0xff]
    %v856 = vld [vmem:[#allocation3 + $0x18f8] sm:$0xff]
    %v857 = vld [vmem:[#allocation3 + $0x1900] sm:$0xff]
    %v858 = vld [vmem:[#allocation3 + $0x1908] sm:$0xff]
    %v859 = vld [vmem:[#allocation3 + $0x1910] sm:$0xff]
    %v860 = vld [vmem:[#allocation3 + $0x1918] sm:$0xff]
    %v861 = vld [vmem:[#allocation3 + $0x1920] sm:$0xff]
    %v862 = vld [vmem:[#allocation3 + $0x1928] sm:$0xff]
    %v863 = vld [vmem:[#allocation3 + $0x1930] sm:$0xff]
    %v864 = vld [vmem:[#allocation3 + $0x1938] sm:$0xff]
    %v865 = vld [vmem:[#allocation3 + $0x1940] sm:$0xff]
    %v866 = vld [vmem:[#allocation3 + $0x1948] sm:$0xff]
    %v867 = vld [vmem:[#allocation3 + $0x1950] sm:$0xff]
    %v868 = vld [vmem:[#allocation3 + $0x1958] sm:$0xff]
    %v869 = vld [vmem:[#allocation3 + $0x1960] sm:$0xff]
    %v870 = vld [vmem:[#allocation3 + $0x1968] sm:$0xff]
    %v871 = vld [vmem:[#allocation3 + $0x1970] sm:$0xff]
    %v872 = vld [vmem:[#allocation3 + $0x1978] sm:$0xff]
    %v873 = vld [vmem:[#allocation3 + $0x1980] sm:$0xff]
    %v874 = vld [vmem:[#allocation3 + $0x1988] sm:$0xff]
    %v875 = vld [vmem:[#allocation3 + $0x1990] sm:$0xff]
    %v876 = vld [vmem:[#allocation3 + $0x1998] sm:$0xff]
    %v877 = vld [vmem:[#allocation3 + $0x19a0] sm:$0xff]
    %v878 = vld [vmem:[#allocation3 + $0x19a8] sm:$0xff]
    %v879 = vld [vmem:[#allocation3 + $0x19b0] sm:$0xff]
    %v880 = vld [vmem:[#allocation3 + $0x19b8] sm:$0xff]
    %v881 = vld [vmem:[#allocation3 + $0x19c0] sm:$0xff]
    %v882 = vld [vmem:[#allocation3 + $0x19c8] sm:$0xff]
    %v883 = vld [vmem:[#allocation3 + $0x19d0] sm:$0xff]
    %v884 = vld [vmem:[#allocation3 + $0x19d8] sm:$0xff]
    %v885 = vld [vmem:[#allocation3 + $0x19e0] sm:$0xff]
    %v886 = vld [vmem:[#allocation3 + $0x19e8] sm:$0xff]
    %v887 = vld [vmem:[#allocation3 + $0x19f0] sm:$0xff]
    %v888 = vld [vmem:[#allocation3 + $0x19f8] sm:$0xff]
    %v889 = vld [vmem:[#allocation3 + $0x1a00] sm:$0xff]
    %v890 = vld [vmem:[#allocation3 + $0x1a08] sm:$0xff]
    %v891 = vld [vmem:[#allocation3 + $0x1a10] sm:$0xff]
    %v892 = vld [vmem:[#allocation3 + $0x1a18] sm:$0xff]
    %v893 = vld [vmem:[#allocation3 + $0x1a20] sm:$0xff]
    %v894 = vld [vmem:[#allocation3 + $0x1a28] sm:$0xff]
    %v895 = vld [vmem:[#allocation3 + $0x1a30] sm:$0xff]
    %v896 = vld [vmem:[#allocation3 + $0x1a38] sm:$0xff]
    %v897 = vld [vmem:[#allocation3 + $0x1a40] sm:$0xff]
    %v898 = vld [vmem:[#allocation3 + $0x1a48] sm:$0xff]
    %v899 = vld [vmem:[#allocation3 + $0x1a50] sm:$0xff]
    %v900 = vld [vmem:[#allocation3 + $0x1a58] sm:$0xff]
    %v901 = vld [vmem:[#allocation3 + $0x1a60] sm:$0xff]
    %v902 = vld [vmem:[#allocation3 + $0x1a68] sm:$0xff]
    %v903 = vld [vmem:[#allocation3 + $0x1a70] sm:$0xff]
    %v904 = vld [vmem:[#allocation3 + $0x1a78] sm:$0xff]
    %v905 = vld [vmem:[#allocation3 + $0x1a80] sm:$0xff]
    %v906 = vld [vmem:[#allocation3 + $0x1a88] sm:$0xff]
    %v907 = vld [vmem:[#allocation3 + $0x1a90] sm:$0xff]
    %v908 = vld [vmem:[#allocation3 + $0x1a98] sm:$0xff]
    %v909 = vld [vmem:[#allocation3 + $0x1aa0] sm:$0xff]
    %v910 = vld [vmem:[#allocation3 + $0x1aa8] sm:$0xff]
    %v911 = vld [vmem:[#allocation3 + $0x1ab0] sm:$0xff]
    %v912 = vld [vmem:[#allocation3 + $0x1ab8] sm:$0xff]
    %v913 = vld [vmem:[#allocation3 + $0x1ac0] sm:$0xff]
    %v914 = vld [vmem:[#allocation3 + $0x1ac8] sm:$0xff]
    %v915 = vld [vmem:[#allocation3 + $0x1ad0] sm:$0xff]
    %v916 = vld [vmem:[#allocation3 + $0x1ad8] sm:$0xff]
    %v917 = vld [vmem:[#allocation3 + $0x1ae0] sm:$0xff]
    %v918 = vld [vmem:[#allocation3 + $0x1ae8] sm:$0xff]
    %v919 = vld [vmem:[#allocation3 + $0x1af0] sm:$0xff]
    %v920 = vld [vmem:[#allocation3 + $0x1af8] sm:$0xff]
    %v921 = vld [vmem:[#allocation3 + $0x1b00] sm:$0xff]
    %v922 = vld [vmem:[#allocation3 + $0x1b08] sm:$0xff]
    %v923 = vld [vmem:[#allocation3 + $0x1b10] sm:$0xff]
    %v924 = vld [vmem:[#allocation3 + $0x1b18] sm:$0xff]
    %v925 = vld [vmem:[#allocation3 + $0x1b20] sm:$0xff]
    %v926 = vld [vmem:[#allocation3 + $0x1b28] sm:$0xff]
    %v927 = vld [vmem:[#allocation3 + $0x1b30] sm:$0xff]
    %v928 = vld [vmem:[#allocation3 + $0x1b38] sm:$0xff]
    %v929 = vld [vmem:[#allocation3 + $0x1b40] sm:$0xff]
    %v930 = vld [vmem:[#allocation3 + $0x1b48] sm:$0xff]
    %v931 = vld [vmem:[#allocation3 + $0x1b50] sm:$0xff]
    %v932 = vld [vmem:[#allocation3 + $0x1b58] sm:$0xff]
    %v933 = vld [vmem:[#allocation3 + $0x1b60] sm:$0xff]
    %v934 = vld [vmem:[#allocation3 + $0x1b68] sm:$0xff]
    %v935 = vld [vmem:[#allocation3 + $0x1b70] sm:$0xff]
    %v936 = vld [vmem:[#allocation3 + $0x1b78] sm:$0xff]
    %v937 = vld [vmem:[#allocation3 + $0x1b80] sm:$0xff]
    %v938 = vld [vmem:[#allocation3 + $0x1b88] sm:$0xff]
    %v939 = vld [vmem:[#allocation3 + $0x1b90] sm:$0xff]
    %v940 = vld [vmem:[#allocation3 + $0x1b98] sm:$0xff]
    %v941 = vld [vmem:[#allocation3 + $0x1ba0] sm:$0xff]
    %v942 = vld [vmem:[#allocation3 + $0x1ba8] sm:$0xff]
    %v943 = vld [vmem:[#allocation3 + $0x1bb0] sm:$0xff]
    %v944 = vld [vmem:[#allocation3 + $0x1bb8] sm:$0xff]
    %v945 = vld [vmem:[#allocation3 + $0x1bc0] sm:$0xff]
    %v946 = vld [vmem:[#allocation3 + $0x1bc8] sm:$0xff]
    %v947 = vld [vmem:[#allocation3 + $0x1bd0] sm:$0xff]
    %v948 = vld [vmem:[#allocation3 + $0x1bd8] sm:$0xff]
    %v949 = vld [vmem:[#allocation3 + $0x1be0] sm:$0xff]
    %v950 = vld [vmem:[#allocation3 + $0x1be8] sm:$0xff]
    %v951 = vld [vmem:[#allocation3 + $0x1bf0] sm:$0xff]
    %v952 = vld [vmem:[#allocation3 + $0x1bf8] sm:$0xff]
    %v953 = vld [vmem:[#allocation3 + $0x1c00] sm:$0xff]
    %v954 = vld [vmem:[#allocation3 + $0x1c08] sm:$0xff]
    %v955 = vld [vmem:[#allocation3 + $0x1c10] sm:$0xff]
    %v956 = vld [vmem:[#allocation3 + $0x1c18] sm:$0xff]
    %v957 = vld [vmem:[#allocation3 + $0x1c20] sm:$0xff]
    %v958 = vld [vmem:[#allocation3 + $0x1c28] sm:$0xff]
    %v959 = vld [vmem:[#allocation3 + $0x1c30] sm:$0xff]
    %v960 = vld [vmem:[#allocation3 + $0x1c38] sm:$0xff]
    %v961 = vld [vmem:[#allocation3 + $0x1c40] sm:$0xff]
    %v962 = vld [vmem:[#allocation3 + $0x1c48] sm:$0xff]
    %v963 = vld [vmem:[#allocation3 + $0x1c50] sm:$0xff]
    %v964 = vld [vmem:[#allocation3 + $0x1c58] sm:$0xff]
    %v965 = vld [vmem:[#allocation3 + $0x1c60] sm:$0xff]
    %v966 = vld [vmem:[#allocation3 + $0x1c68] sm:$0xff]
    %v967 = vld [vmem:[#allocation3 + $0x1c70] sm:$0xff]
    %v968 = vld [vmem:[#allocation3 + $0x1c78] sm:$0xff]
    %v969 = vld [vmem:[#allocation3 + $0x1c80] sm:$0xff]
    %v970 = vld [vmem:[#allocation3 + $0x1c88] sm:$0xff]
    %v971 = vld [vmem:[#allocation3 + $0x1c90] sm:$0xff]
    %v972 = vld [vmem:[#allocation3 + $0x1c98] sm:$0xff]
    %v973 = vld [vmem:[#allocation3 + $0x1ca0] sm:$0xff]
    %v974 = vld [vmem:[#allocation3 + $0x1ca8] sm:$0xff]
    %v975 = vld [vmem:[#allocation3 + $0x1cb0] sm:$0xff]
    %v976 = vld [vmem:[#allocation3 + $0x1cb8] sm:$0xff]
    %v977 = vld [vmem:[#allocation3 + $0x1cc0] sm:$0xff]
    %v978 = vld [vmem:[#allocation3 + $0x1cc8] sm:$0xff]
    %v979 = vld [vmem:[#allocation3 + $0x1cd0] sm:$0xff]
    %v980 = vld [vmem:[#allocation3 + $0x1cd8] sm:$0xff]
    %v981 = vld [vmem:[#allocation3 + $0x1ce0] sm:$0xff]
    %v982 = vld [vmem:[#allocation3 + $0x1ce8] sm:$0xff]
    %v983 = vld [vmem:[#allocation3 + $0x1cf0] sm:$0xff]
    %v984 = vld [vmem:[#allocation3 + $0x1cf8] sm:$0xff]
    %v985 = vld [vmem:[#allocation3 + $0x1d00] sm:$0xff]
    %v986 = vld [vmem:[#allocation3 + $0x1d08] sm:$0xff]
    %v987 = vld [vmem:[#allocation3 + $0x1d10] sm:$0xff]
    %v988 = vld [vmem:[#allocation3 + $0x1d18] sm:$0xff]
    %v989 = vld [vmem:[#allocation3 + $0x1d20] sm:$0xff]
    %v990 = vld [vmem:[#allocation3 + $0x1d28] sm:$0xff]
    %v991 = vld [vmem:[#allocation3 + $0x1d30] sm:$0xff]
    %v992 = vld [vmem:[#allocation3 + $0x1d38] sm:$0xff]
    %v993 = vld [vmem:[#allocation3 + $0x1d40] sm:$0xff]
    %v994 = vld [vmem:[#allocation3 + $0x1d48] sm:$0xff]
    %v995 = vld [vmem:[#allocation3 + $0x1d50] sm:$0xff]
    %v996 = vld [vmem:[#allocation3 + $0x1d58] sm:$0xff]
    %v997 = vld [vmem:[#allocation3 + $0x1d60] sm:$0xff]
    %v998 = vld [vmem:[#allocation3 + $0x1d68] sm:$0xff]
    %v999 = vld [vmem:[#allocation3 + $0x1d70] sm:$0xff]
    %v1000 = vld [vmem:[#allocation3 + $0x1d78] sm:$0xff]
    %v1001 = vld [vmem:[#allocation3 + $0x1d80] sm:$0xff]
    %v1002 = vld [vmem:[#allocation3 + $0x1d88] sm:$0xff]
    %v1003 = vld [vmem:[#allocation3 + $0x1d90] sm:$0xff]
    %v1004 = vld [vmem:[#allocation3 + $0x1d98] sm:$0xff]
    %v1005 = vld [vmem:[#allocation3 + $0x1da0] sm:$0xff]
    %v1006 = vld [vmem:[#allocation3 + $0x1da8] sm:$0xff]
    %v1007 = vld [vmem:[#allocation3 + $0x1db0] sm:$0xff]
    %v1008 = vld [vmem:[#allocation3 + $0x1db8] sm:$0xff]
    %v1009 = vld [vmem:[#allocation3 + $0x1dc0] sm:$0xff]
    %v1010 = vld [vmem:[#allocation3 + $0x1dc8] sm:$0xff]
    %v1011 = vld [vmem:[#allocation3 + $0x1dd0] sm:$0xff]
    %v1012 = vld [vmem:[#allocation3 + $0x1dd8] sm:$0xff]
    %v1013 = vld [vmem:[#allocation3 + $0x1de0] sm:$0xff]
    %v1014 = vld [vmem:[#allocation3 + $0x1de8] sm:$0xff]
    %v1015 = vld [vmem:[#allocation3 + $0x1df0] sm:$0xff]
    %v1016 = vld [vmem:[#allocation3 + $0x1df8] sm:$0xff]
    %v1017 = vld [vmem:[#allocation3 + $0x1e00] sm:$0xff]
    %v1018 = vld [vmem:[#allocation3 + $0x1e08] sm:$0xff]
    %v1019 = vld [vmem:[#allocation3 + $0x1e10] sm:$0xff]
    %v1020 = vld [vmem:[#allocation3 + $0x1e18] sm:$0xff]
    %v1021 = vld [vmem:[#allocation3 + $0x1e20] sm:$0xff]
    %v1022 = vld [vmem:[#allocation3 + $0x1e28] sm:$0xff]
    %v1023 = vld [vmem:[#allocation3 + $0x1e30] sm:$0xff]
    %v1024 = vld [vmem:[#allocation3 + $0x1e38] sm:$0xff]
    %v1025 = vld [vmem:[#allocation3 + $0x1e40] sm:$0xff]
    %v1026 = vld [vmem:[#allocation3 + $0x1e48] sm:$0xff]
    %v1027 = vld [vmem:[#allocation3 + $0x1e50] sm:$0xff]
    %v1028 = vld [vmem:[#allocation3 + $0x1e58] sm:$0xff]
    %v1029 = vld [vmem:[#allocation3 + $0x1e60] sm:$0xff]
    %v1030 = vld [vmem:[#allocation3 + $0x1e68] sm:$0xff]
    %v1031 = vld [vmem:[#allocation3 + $0x1e70] sm:$0xff]
    %v1032 = vld [vmem:[#allocation3 + $0x1e78] sm:$0xff]
    %v1033 = vld [vmem:[#allocation3 + $0x1e80] sm:$0xff]
    %v1034 = vld [vmem:[#allocation3 + $0x1e88] sm:$0xff]
    %v1035 = vld [vmem:[#allocation3 + $0x1e90] sm:$0xff]
    %v1036 = vld [vmem:[#allocation3 + $0x1e98] sm:$0xff]
    %v1037 = vld [vmem:[#allocation3 + $0x1ea0] sm:$0xff]
    %v1038 = vld [vmem:[#allocation3 + $0x1ea8] sm:$0xff]
    %v1039 = vld [vmem:[#allocation3 + $0x1eb0] sm:$0xff]
    %v1040 = vld [vmem:[#allocation3 + $0x1eb8] sm:$0xff]
    %v1041 = vld [vmem:[#allocation3 + $0x1ec0] sm:$0xff]
    %v1042 = vld [vmem:[#allocation3 + $0x1ec8] sm:$0xff]
    %v1043 = vld [vmem:[#allocation3 + $0x1ed0] sm:$0xff]
    %v1044 = vld [vmem:[#allocation3 + $0x1ed8] sm:$0xff]
    %v1045 = vld [vmem:[#allocation3 + $0x1ee0] sm:$0xff]
    %v1046 = vld [vmem:[#allocation3 + $0x1ee8] sm:$0xff]
    %v1047 = vld [vmem:[#allocation3 + $0x1ef0] sm:$0xff]
    %v1048 = vld [vmem:[#allocation3 + $0x1ef8] sm:$0xff]
    %v1049 = vld [vmem:[#allocation3 + $0x1f00] sm:$0xff]
    %v1050 = vld [vmem:[#allocation3 + $0x1f08] sm:$0xff]
    %v1051 = vld [vmem:[#allocation3 + $0x1f10] sm:$0xff]
    %v1052 = vld [vmem:[#allocation3 + $0x1f18] sm:$0xff]
    %v1053 = vld [vmem:[#allocation3 + $0x1f20] sm:$0xff]
    %v1054 = vld [vmem:[#allocation3 + $0x1f28] sm:$0xff]
    %v1055 = vld [vmem:[#allocation3 + $0x1f30] sm:$0xff]
    %v1056 = vld [vmem:[#allocation3 + $0x1f38] sm:$0xff]
    %v1057 = vld [vmem:[#allocation3 + $0x1f40] sm:$0xff]
    %v1058 = vld [vmem:[#allocation3 + $0x1f48] sm:$0xff]
    %v1059 = vld [vmem:[#allocation3 + $0x1f50] sm:$0xff]
    %v1060 = vld [vmem:[#allocation3 + $0x1f58] sm:$0xff]
    %v1061 = vld [vmem:[#allocation3 + $0x1f60] sm:$0xff]
    %v1062 = vld [vmem:[#allocation3 + $0x1f68] sm:$0xff]
    %v1063 = vld [vmem:[#allocation3 + $0x1f70] sm:$0xff]
    %v1064 = vld [vmem:[#allocation3 + $0x1f78] sm:$0xff]
    %v1065 = vld [vmem:[#allocation3 + $0x1f80] sm:$0xff]
    %v1066 = vld [vmem:[#allocation3 + $0x1f88] sm:$0xff]
    %v1067 = vld [vmem:[#allocation3 + $0x1f90] sm:$0xff]
    %v1068 = vld [vmem:[#allocation3 + $0x1f98] sm:$0xff]
    %v1069 = vld [vmem:[#allocation3 + $0x1fa0] sm:$0xff]
    %v1070 = vld [vmem:[#allocation3 + $0x1fa8] sm:$0xff]
    %v1071 = vld [vmem:[#allocation3 + $0x1fb0] sm:$0xff]
    %v1072 = vld [vmem:[#allocation3 + $0x1fb8] sm:$0xff]
    %v1073 = vld [vmem:[#allocation3 + $0x1fc0] sm:$0xff]
    %v1074 = vld [vmem:[#allocation3 + $0x1fc8] sm:$0xff]
    %v1075 = vld [vmem:[#allocation3 + $0x1fd0] sm:$0xff]
    %v1076 = vld [vmem:[#allocation3 + $0x1fd8] sm:$0xff]
    %v1077 = vld [vmem:[#allocation3 + $0x1fe0] sm:$0xff]
    %v1078 = vld [vmem:[#allocation3 + $0x1fe8] sm:$0xff]
    %v1079 = vld [vmem:[#allocation3 + $0x1ff0] sm:$0xff]
    %v1080 = vld [vmem:[#allocation3 + $0x1ff8] sm:$0xff]
    %v1081 = vld [vmem:[#allocation3 + $0x2000] sm:$0xff]
    %v1082 = vld [vmem:[#allocation3 + $0x2008] sm:$0xff]
    %v1083 = vld [vmem:[#allocation3 + $0x2010] sm:$0xff]
    %v1084 = vld [vmem:[#allocation3 + $0x2018] sm:$0xff]
    %v1085 = vld [vmem:[#allocation3 + $0x2020] sm:$0xff]
    %v1086 = vld [vmem:[#allocation3 + $0x2028] sm:$0xff]
    %v1087 = vld [vmem:[#allocation3 + $0x2030] sm:$0xff]
    %v1088 = vld [vmem:[#allocation3 + $0x2038] sm:$0xff]
    %v1089 = vld [vmem:[#allocation3 + $0x2040] sm:$0xff]
    %v1090 = vld [vmem:[#allocation3 + $0x2048] sm:$0xff]
    %v1091 = vld [vmem:[#allocation3 + $0x2050] sm:$0xff]
    %v1092 = vld [vmem:[#allocation3 + $0x2058] sm:$0xff]
    %v1093 = vld [vmem:[#allocation3 + $0x2060] sm:$0xff]
    %v1094 = vld [vmem:[#allocation3 + $0x2068] sm:$0xff]
    %v1095 = vld [vmem:[#allocation3 + $0x2070] sm:$0xff]
    %v1096 = vld [vmem:[#allocation3 + $0x2078] sm:$0xff]
    %v1097 = vld [vmem:[#allocation3 + $0x2080] sm:$0xff]
    %v1098 = vld [vmem:[#allocation3 + $0x2088] sm:$0xff]
    %v1099 = vld [vmem:[#allocation3 + $0x2090] sm:$0xff]
    %v1100 = vld [vmem:[#allocation3 + $0x2098] sm:$0xff]
    %v1101 = vld [vmem:[#allocation3 + $0x20a0] sm:$0xff]
    %v1102 = vld [vmem:[#allocation3 + $0x20a8] sm:$0xff]
    %v1103 = vld [vmem:[#allocation3 + $0x20b0] sm:$0xff]
    %v1104 = vld [vmem:[#allocation3 + $0x20b8] sm:$0xff]
    %v1105 = vld [vmem:[#allocation3 + $0x20c0] sm:$0xff]
    %v1106 = vld [vmem:[#allocation3 + $0x20c8] sm:$0xff]
    %v1107 = vld [vmem:[#allocation3 + $0x20d0] sm:$0xff]
    %v1108 = vld [vmem:[#allocation3 + $0x20d8] sm:$0xff]
    %v1109 = vld [vmem:[#allocation3 + $0x20e0] sm:$0xff]
    %v1110 = vld [vmem:[#allocation3 + $0x20e8] sm:$0xff]
    %v1111 = vld [vmem:[#allocation3 + $0x20f0] sm:$0xff]
    %v1112 = vld [vmem:[#allocation3 + $0x20f8] sm:$0xff]
    %v1113 = vld [vmem:[#allocation3 + $0x2100] sm:$0xff]
    %v1114 = vld [vmem:[#allocation3 + $0x2108] sm:$0xff]
    %v1115 = vld [vmem:[#allocation3 + $0x2110] sm:$0xff]
    %v1116 = vld [vmem:[#allocation3 + $0x2118] sm:$0xff]
    %v1117 = vld [vmem:[#allocation3 + $0x2120] sm:$0xff]
    %v1118 = vld [vmem:[#allocation3 + $0x2128] sm:$0xff]
    %v1119 = vld [vmem:[#allocation3 + $0x2130] sm:$0xff]
    %v1120 = vld [vmem:[#allocation3 + $0x2138] sm:$0xff]
    %v1121 = vld [vmem:[#allocation3 + $0x2140] sm:$0xff]
    %v1122 = vld [vmem:[#allocation3 + $0x2148] sm:$0xff]
    %v1123 = vld [vmem:[#allocation3 + $0x2150] sm:$0xff]
    %v1124 = vld [vmem:[#allocation3 + $0x2158] sm:$0xff]
    %v1125 = vld [vmem:[#allocation3 + $0x2160] sm:$0xff]
    %v1126 = vld [vmem:[#allocation3 + $0x2168] sm:$0xff]
    %v1127 = vld [vmem:[#allocation3 + $0x2170] sm:$0xff]
    %v1128 = vld [vmem:[#allocation3 + $0x2178] sm:$0xff]
    %v1129 = vld [vmem:[#allocation3 + $0x2180] sm:$0xff]
    %v1130 = vld [vmem:[#allocation3 + $0x2188] sm:$0xff]
    %v1131 = vld [vmem:[#allocation3 + $0x2190] sm:$0xff]
    %v1132 = vld [vmem:[#allocation3 + $0x2198] sm:$0xff]
    %v1133 = vld [vmem:[#allocation3 + $0x21a0] sm:$0xff]
    %v1134 = vld [vmem:[#allocation3 + $0x21a8] sm:$0xff]
    %v1135 = vld [vmem:[#allocation3 + $0x21b0] sm:$0xff]
    %v1136 = vld [vmem:[#allocation3 + $0x21b8] sm:$0xff]
    %v1137 = vld [vmem:[#allocation3 + $0x21c0] sm:$0xff]
    %v1138 = vld [vmem:[#allocation3 + $0x21c8] sm:$0xff]
    %v1139 = vld [vmem:[#allocation3 + $0x21d0] sm:$0xff]
    %v1140 = vld [vmem:[#allocation3 + $0x21d8] sm:$0xff]
    %v1141 = vld [vmem:[#allocation3 + $0x21e0] sm:$0xff]
    %v1142 = vld [vmem:[#allocation3 + $0x21e8] sm:$0xff]
    %v1143 = vld [vmem:[#allocation3 + $0x21f0] sm:$0xff]
    %v1144 = vld [vmem:[#allocation3 + $0x21f8] sm:$0xff]
    %v1145 = vld [vmem:[#allocation3 + $0x2200] sm:$0xff]
    %v1146 = vld [vmem:[#allocation3 + $0x2208] sm:$0xff]
    %v1147 = vld [vmem:[#allocation3 + $0x2210] sm:$0xff]
    %v1148 = vld [vmem:[#allocation3 + $0x2218] sm:$0xff]
    %v1149 = vld [vmem:[#allocation3 + $0x2220] sm:$0xff]
    %v1150 = vld [vmem:[#allocation3 + $0x2228] sm:$0xff]
    %v1151 = vld [vmem:[#allocation3 + $0x2230] sm:$0xff]
    %v1152 = vld [vmem:[#allocation3 + $0x2238] sm:$0xff]
    %v1153 = vld [vmem:[#allocation3 + $0x2240] sm:$0xff]
    %v1154 = vld [vmem:[#allocation3 + $0x2248] sm:$0xff]
    %v1155 = vld [vmem:[#allocation3 + $0x2250] sm:$0xff]
    %v1156 = vld [vmem:[#allocation3 + $0x2258] sm:$0xff]
    %v1157 = vld [vmem:[#allocation3 + $0x2260] sm:$0xff]
    %v1158 = vld [vmem:[#allocation3 + $0x2268] sm:$0xff]
    %v1159 = vld [vmem:[#allocation3 + $0x2270] sm:$0xff]
    %v1160 = vld [vmem:[#allocation3 + $0x2278] sm:$0xff]
    %v1161 = vld [vmem:[#allocation3 + $0x2280] sm:$0xff]
    %v1162 = vld [vmem:[#allocation3 + $0x2288] sm:$0xff]
    %v1163 = vld [vmem:[#allocation3 + $0x2290] sm:$0xff]
    %v1164 = vld [vmem:[#allocation3 + $0x2298] sm:$0xff]
    %v1165 = vld [vmem:[#allocation3 + $0x22a0] sm:$0xff]
    %v1166 = vld [vmem:[#allocation3 + $0x22a8] sm:$0xff]
    %v1167 = vld [vmem:[#allocation3 + $0x22b0] sm:$0xff]
    %v1168 = vld [vmem:[#allocation3 + $0x22b8] sm:$0xff]
    %v1169 = vld [vmem:[#allocation3 + $0x22c0] sm:$0xff]
    %v1170 = vld [vmem:[#allocation3 + $0x22c8] sm:$0xff]
    %v1171 = vld [vmem:[#allocation3 + $0x22d0] sm:$0xff]
    %v1172 = vld [vmem:[#allocation3 + $0x22d8] sm:$0xff]
    %v1173 = vld [vmem:[#allocation3 + $0x22e0] sm:$0xff]
    %v1174 = vld [vmem:[#allocation3 + $0x22e8] sm:$0xff]
    %v1175 = vld [vmem:[#allocation3 + $0x22f0] sm:$0xff]
    %v1176 = vld [vmem:[#allocation3 + $0x22f8] sm:$0xff]
    %v1177 = vld [vmem:[#allocation3 + $0x2300] sm:$0xff]
    %v1178 = vld [vmem:[#allocation3 + $0x2308] sm:$0xff]
    %v1179 = vld [vmem:[#allocation3 + $0x2310] sm:$0xff]
    %v1180 = vld [vmem:[#allocation3 + $0x2318] sm:$0xff]
    %v1181 = vld [vmem:[#allocation3 + $0x2320] sm:$0xff]
    %v1182 = vld [vmem:[#allocation3 + $0x2328] sm:$0xff]
    %v1183 = vld [vmem:[#allocation3 + $0x2330] sm:$0xff]
    %v1184 = vld [vmem:[#allocation3 + $0x2338] sm:$0xff]
    %v1185 = vld [vmem:[#allocation3 + $0x2340] sm:$0xff]
    %v1186 = vld [vmem:[#allocation3 + $0x2348] sm:$0xff]
    %v1187 = vld [vmem:[#allocation3 + $0x2350] sm:$0xff]
    %v1188 = vld [vmem:[#allocation3 + $0x2358] sm:$0xff]
    %v1189 = vld [vmem:[#allocation3 + $0x2360] sm:$0xff]
    %v1190 = vld [vmem:[#allocation3 + $0x2368] sm:$0xff]
    %v1191 = vld [vmem:[#allocation3 + $0x2370] sm:$0xff]
    %v1192 = vld [vmem:[#allocation3 + $0x2378] sm:$0xff]
    %v1193 = vld [vmem:[#allocation3 + $0x2380] sm:$0xff]
    %v1194 = vld [vmem:[#allocation3 + $0x2388] sm:$0xff]
    %v1195 = vld [vmem:[#allocation3 + $0x2390] sm:$0xff]
    %v1196 = vld [vmem:[#allocation3 + $0x2398] sm:$0xff]
    %v1197 = vld [vmem:[#allocation3 + $0x23a0] sm:$0xff]
    %v1198 = vld [vmem:[#allocation3 + $0x23a8] sm:$0xff]
    %v1199 = vld [vmem:[#allocation3 + $0x23b0] sm:$0xff]
    %v1200 = vld [vmem:[#allocation3 + $0x23b8] sm:$0xff]
    %v1201 = vld [vmem:[#allocation3 + $0x23c0] sm:$0xff]
    %v1202 = vld [vmem:[#allocation3 + $0x23c8] sm:$0xff]
    %v1203 = vld [vmem:[#allocation3 + $0x23d0] sm:$0xff]
    %v1204 = vld [vmem:[#allocation3 + $0x23d8] sm:$0xff]
    %v1205 = vld [vmem:[#allocation3 + $0x23e0] sm:$0xff]
    %v1206 = vld [vmem:[#allocation3 + $0x23e8] sm:$0xff]
    %v1207 = vld [vmem:[#allocation3 + $0x23f0] sm:$0xff]
    %v1208 = vld [vmem:[#allocation3 + $0x23f8] sm:$0xff]
    %v1209 = vld [vmem:[%s2] sm:$0x3f]
    %v1211 = vlaneseq
    %v1212 = vshrl.u32 %v1211, 7
    %v1213 = vsub.s32 0, %v1212
    %v1214 = vrot.slane %v1209, %v1213
    %v1215 = vlaneseq
    %v1216 = vshrl.u32 %v1215, 7
    %v1217 = vsub.s32 1, %v1216
    %v1218 = vrot.slane %v1209, %v1217
    %v1219 = vlaneseq
    %v1220 = vshrl.u32 %v1219, 7
    %v1221 = vsub.s32 2, %v1220
    %v1222 = vrot.slane %v1209, %v1221
    %v1223 = vlaneseq
    %v1224 = vshrl.u32 %v1223, 7
    %v1225 = vsub.s32 3, %v1224
    %v1226 = vrot.slane %v1209, %v1225
    %v1227 = vlaneseq
    %v1228 = vshrl.u32 %v1227, 7
    %v1229 = vsub.s32 4, %v1228
    %v1230 = vrot.slane %v1209, %v1229
    %v1231 = vlaneseq
    %v1232 = vshrl.u32 %v1231, 7
    %v1233 = vsub.s32 5, %v1232
    %v1234 = vrot.slane %v1209, %v1233
    %v1244 = vcombine.high %v54, %v54
    %v1246 = vunpack.c.l.s4 1983009808
    %v1247 = vunpack.c.0.s8 %v1246
    %v1248 = vlaneseq
    %v1249 = vshrl.u32 %v1248, 7
    %v1250 = vsub.s32 %v1247, %v1249
    %v1251 = vrot.slane %v54, %v1250
    %v1253 = vunpack.c.l.s4 1983009808
    %v1254 = vunpack.c.0.s8 %v1253
    %v1255 = vlaneseq
    %v1256 = vshrl.u32 %v1255, 7
    %v1257 = vsub.s32 %v1254, %v1256
    %v1258 = vrot.slane %v1244, %v1257
    %v1259 = vcombine.high %v1251, %v1251
    %v1260 = vcombine.high %v1258, %v1258
    %v1261 = vcombine.high %v55, %v55
    %v1263 = vunpack.c.l.s4 1983009808
    %v1264 = vunpack.c.0.s8 %v1263
    %v1265 = vlaneseq
    %v1266 = vshrl.u32 %v1265, 7
    %v1267 = vsub.s32 %v1264, %v1266
    %v1268 = vrot.slane %v55, %v1267
    %v1270 = vunpack.c.l.s4 1983009808
    %v1271 = vunpack.c.0.s8 %v1270
    %v1272 = vlaneseq
    %v1273 = vshrl.u32 %v1272, 7
    %v1274 = vsub.s32 %v1271, %v1273
    %v1275 = vrot.slane %v1261, %v1274
    %v1276 = vcombine.high %v1268, %v1268
    %v1277 = vcombine.high %v1275, %v1275
    %v1278 = vcombine.high %v56, %v56
    %v1280 = vunpack.c.l.s4 1983009808
    %v1281 = vunpack.c.0.s8 %v1280
    %v1282 = vlaneseq
    %v1283 = vshrl.u32 %v1282, 7
    %v1284 = vsub.s32 %v1281, %v1283
    %v1285 = vrot.slane %v56, %v1284
    %v1287 = vunpack.c.l.s4 1983009808
    %v1288 = vunpack.c.0.s8 %v1287
    %v1289 = vlaneseq
    %v1290 = vshrl.u32 %v1289, 7
    %v1291 = vsub.s32 %v1288, %v1290
    %v1292 = vrot.slane %v1278, %v1291
    %v1293 = vcombine.high %v1285, %v1285
    %v1294 = vcombine.high %v1292, %v1292
    %1307 = vmatprep.subr.mxu0 %v148
    %1308 = vmatpush1.msra.mxu0 %v147
    %1309 = vmatprep.subr.mxu0 %v142
    %1310 = vmatpush1.msra.mxu0 %v141
    %1311 = vmatprep.subr.mxu0 %v136
    %1312 = vmatpush1.msra.mxu0 %v135
    %1313 = vmatprep.subr.mxu0 %v130
    %1314 = vmatpush1.msra.mxu0 %v129
    %1315 = vmatprep.subr.mxu0 %v124
    %1316 = vmatpush1.msra.mxu0 %v123
    %1317 = vmatprep.subr.mxu0 %v118
    %1318 = vmatpush1.msra.mxu0 %v117
    %1319 = vmatprep.subr.mxu0 %v112
    %1320 = vmatpush1.msra.mxu0 %v111
    %1321 = vmatprep.subr.mxu0 %v106
    %1322 = vmatpush1.msra.mxu0 %v105
    %1323 = vmatprep.subr.mxu0 %v100
    %1324 = vmatpush1.msra.mxu0 %v99
    %1325 = vmatprep.subr.mxu0 %v94
    %1326 = vmatpush1.msra.mxu0 %v93
    %1327 = vmatprep.subr.mxu0 %v88
    %1328 = vmatpush1.msra.mxu0 %v87
    %1329 = vmatprep.subr.mxu0 %v82
    %1330 = vmatpush1.msra.mxu0 %v81
    %1331 = vmatprep.subr.mxu0 %v76
    %1332 = vmatpush1.msra.mxu0 %v75
    %1333 = vmatprep.subr.mxu0 %v70
    %1334 = vmatpush1.msra.mxu0 %v69
    %1335 = vmatprep.subr.mxu0 %v64
    %1336 = vmatpush1.msra.mxu0 %v63
    %1337 = vmatprep.subr.mxu0 %v58
    %1338 = vmatpush1.msra.mxu0 %v57
    %1339 = vmatprep.subr.mxu0 %v244
    %1340 = vmatpush2.msra.mxu0 %v243
    %1341 = vmatprep.subr.mxu0 %v238
    %1342 = vmatpush2.msra.mxu0 %v237
    %1343 = vmatprep.subr.mxu0 %v232
    %1344 = vmatpush2.msra.mxu0 %v231
    %1345 = vmatprep.subr.mxu0 %v226
    %1346 = vmatpush2.msra.mxu0 %v225
    %1347 = vmatprep.subr.mxu0 %v220
    %1348 = vmatpush2.msra.mxu0 %v219
    %1349 = vmatprep.subr.mxu0 %v214
    %1350 = vmatpush2.msra.mxu0 %v213
    %1351 = vmatprep.subr.mxu0 %v208
    %1352 = vmatpush2.msra.mxu0 %v207
    %1353 = vmatprep.subr.mxu0 %v202
    %1354 = vmatpush2.msra.mxu0 %v201
    %1355 = vmatprep.subr.mxu0 %v196
    %1356 = vmatpush2.msra.mxu0 %v195
    %1357 = vmatprep.subr.mxu0 %v190
    %1358 = vmatpush2.msra.mxu0 %v189
    %1359 = vmatprep.subr.mxu0 %v184
    %1360 = vmatpush2.msra.mxu0 %v183
    %1361 = vmatprep.subr.mxu0 %v178
    %1362 = vmatpush2.msra.mxu0 %v177
    %1363 = vmatprep.subr.mxu0 %v172
    %1364 = vmatpush2.msra.mxu0 %v171
    %1365 = vmatprep.subr.mxu0 %v166
    %1366 = vmatpush2.msra.mxu0 %v165
    %1367 = vmatprep.subr.mxu0 %v160
    %1368 = vmatpush2.msra.mxu0 %v159
    %1369 = vmatprep.subr.mxu0 %v154
    %1370 = vmatpush2.msra.mxu0 %v153
    %1371 = vmatprep.mubr.f32.mxu0 %v1259
    %1372 = vmatmul.mubr.f32.gmra.mxu0 %v1251
    %v1373 = vpop.f32.mrf.mxu0
    %v1374 = vadd.f32 %v1214, %v1373
    %v1375 = vpop.f32.mrf.mxu0
    %v1376 = vadd.f32 %v1218, %v1375
    %1377 = vdwg.mxu0
    %1378 = vmatprep.subr.mxu0 %v340
    %1379 = vmatpush1.msra.mxu0 %v339
    %1380 = vmatprep.subr.mxu0 %v334
    %1381 = vmatpush1.msra.mxu0 %v333
    %1382 = vmatprep.subr.mxu0 %v328
    %1383 = vmatpush1.msra.mxu0 %v327
    %1384 = vmatprep.subr.mxu0 %v322
    %1385 = vmatpush1.msra.mxu0 %v321
    %1386 = vmatprep.subr.mxu0 %v316
    %1387 = vmatpush1.msra.mxu0 %v315
    %1388 = vmatprep.subr.mxu0 %v310
    %1389 = vmatpush1.msra.mxu0 %v309
    %1390 = vmatprep.subr.mxu0 %v304
    %1391 = vmatpush1.msra.mxu0 %v303
    %1392 = vmatprep.subr.mxu0 %v298
    %1393 = vmatpush1.msra.mxu0 %v297
    %1394 = vmatprep.subr.mxu0 %v292
    %1395 = vmatpush1.msra.mxu0 %v291
    %1396 = vmatprep.subr.mxu0 %v286
    %1397 = vmatpush1.msra.mxu0 %v285
    %1398 = vmatprep.subr.mxu0 %v280
    %1399 = vmatpush1.msra.mxu0 %v279
    %1400 = vmatprep.subr.mxu0 %v274
    %1401 = vmatpush1.msra.mxu0 %v273
    %1402 = vmatprep.subr.mxu0 %v268
    %1403 = vmatpush1.msra.mxu0 %v267
    %1404 = vmatprep.subr.mxu0 %v262
    %1405 = vmatpush1.msra.mxu0 %v261
    %1406 = vmatprep.subr.mxu0 %v256
    %1407 = vmatpush1.msra.mxu0 %v255
    %1408 = vmatprep.subr.mxu0 %v250
    %1409 = vmatpush1.msra.mxu0 %v249
    %1410 = vmatprep.subr.mxu0 %v436
    %1411 = vmatpush2.msra.mxu0 %v435
    %1412 = vmatprep.subr.mxu0 %v430
    %1413 = vmatpush2.msra.mxu0 %v429
    %1414 = vmatprep.subr.mxu0 %v424
    %1415 = vmatpush2.msra.mxu0 %v423
    %1416 = vmatprep.subr.mxu0 %v418
    %1417 = vmatpush2.msra.mxu0 %v417
    %1418 = vmatprep.subr.mxu0 %v412
    %1419 = vmatpush2.msra.mxu0 %v411
    %1420 = vmatprep.subr.mxu0 %v406
    %1421 = vmatpush2.msra.mxu0 %v405
    %1422 = vmatprep.subr.mxu0 %v400
    %1423 = vmatpush2.msra.mxu0 %v399
    %1424 = vmatprep.subr.mxu0 %v394
    %1425 = vmatpush2.msra.mxu0 %v393
    %1426 = vmatprep.subr.mxu0 %v388
    %1427 = vmatpush2.msra.mxu0 %v387
    %1428 = vmatprep.subr.mxu0 %v382
    %1429 = vmatpush2.msra.mxu0 %v381
    %1430 = vmatprep.subr.mxu0 %v376
    %1431 = vmatpush2.msra.mxu0 %v375
    %1432 = vmatprep.subr.mxu0 %v370
    %1433 = vmatpush2.msra.mxu0 %v369
    %1434 = vmatprep.subr.mxu0 %v364
    %1435 = vmatpush2.msra.mxu0 %v363
    %1436 = vmatprep.subr.mxu0 %v358
    %1437 = vmatpush2.msra.mxu0 %v357
    %1438 = vmatprep.subr.mxu0 %v352
    %1439 = vmatpush2.msra.mxu0 %v351
    %1440 = vmatprep.subr.mxu0 %v346
    %1441 = vmatpush2.msra.mxu0 %v345
    %1442 = vmatprep.mubr.f32.mxu0 %v1260
    %1443 = vmatmul.mubr.f32.gmra.mxu0 %v1258
    %v1444 = vpop.f32.mrf.mxu0
    %v1445 = vadd.f32 %v1374, %v1444
    %v1446 = vpop.f32.mrf.mxu0
    %v1447 = vadd.f32 %v1376, %v1446
    %1448 = vdwg.mxu0
    %1449 = vmatprep.subr.mxu0 %v532
    %1450 = vmatpush1.msra.mxu0 %v531
    %1451 = vmatprep.subr.mxu0 %v526
    %1452 = vmatpush1.msra.mxu0 %v525
    %1453 = vmatprep.subr.mxu0 %v520
    %1454 = vmatpush1.msra.mxu0 %v519
    %1455 = vmatprep.subr.mxu0 %v514
    %1456 = vmatpush1.msra.mxu0 %v513
    %1457 = vmatprep.subr.mxu0 %v508
    %1458 = vmatpush1.msra.mxu0 %v507
    %1459 = vmatprep.subr.mxu0 %v502
    %1460 = vmatpush1.msra.mxu0 %v501
    %1461 = vmatprep.subr.mxu0 %v496
    %1462 = vmatpush1.msra.mxu0 %v495
    %1463 = vmatprep.subr.mxu0 %v490
    %1464 = vmatpush1.msra.mxu0 %v489
    %1465 = vmatprep.subr.mxu0 %v484
    %1466 = vmatpush1.msra.mxu0 %v483
    %1467 = vmatprep.subr.mxu0 %v478
    %1468 = vmatpush1.msra.mxu0 %v477
    %1469 = vmatprep.subr.mxu0 %v472
    %1470 = vmatpush1.msra.mxu0 %v471
    %1471 = vmatprep.subr.mxu0 %v466
    %1472 = vmatpush1.msra.mxu0 %v465
    %1473 = vmatprep.subr.mxu0 %v460
    %1474 = vmatpush1.msra.mxu0 %v459
    %1475 = vmatprep.subr.mxu0 %v454
    %1476 = vmatpush1.msra.mxu0 %v453
    %1477 = vmatprep.subr.mxu0 %v448
    %1478 = vmatpush1.msra.mxu0 %v447
    %1479 = vmatprep.subr.mxu0 %v442
    %1480 = vmatpush1.msra.mxu0 %v441
    %1481 = vmatprep.subr.mxu0 %v628
    %1482 = vmatpush2.msra.mxu0 %v627
    %1483 = vmatprep.subr.mxu0 %v622
    %1484 = vmatpush2.msra.mxu0 %v621
    %1485 = vmatprep.subr.mxu0 %v616
    %1486 = vmatpush2.msra.mxu0 %v615
    %1487 = vmatprep.subr.mxu0 %v610
    %1488 = vmatpush2.msra.mxu0 %v609
    %1489 = vmatprep.subr.mxu0 %v604
    %1490 = vmatpush2.msra.mxu0 %v603
    %1491 = vmatprep.subr.mxu0 %v598
    %1492 = vmatpush2.msra.mxu0 %v597
    %1493 = vmatprep.subr.mxu0 %v592
    %1494 = vmatpush2.msra.mxu0 %v591
    %1495 = vmatprep.subr.mxu0 %v586
    %1496 = vmatpush2.msra.mxu0 %v585
    %1497 = vmatprep.subr.mxu0 %v580
    %1498 = vmatpush2.msra.mxu0 %v579
    %1499 = vmatprep.subr.mxu0 %v574
    %1500 = vmatpush2.msra.mxu0 %v573
    %1501 = vmatprep.subr.mxu0 %v568
    %1502 = vmatpush2.msra.mxu0 %v567
    %1503 = vmatprep.subr.mxu0 %v562
    %1504 = vmatpush2.msra.mxu0 %v561
    %1505 = vmatprep.subr.mxu0 %v556
    %1506 = vmatpush2.msra.mxu0 %v555
    %1507 = vmatprep.subr.mxu0 %v550
    %1508 = vmatpush2.msra.mxu0 %v549
    %1509 = vmatprep.subr.mxu0 %v544
    %1510 = vmatpush2.msra.mxu0 %v543
    %1511 = vmatprep.subr.mxu0 %v538
    %1512 = vmatpush2.msra.mxu0 %v537
    %1513 = vmatprep.mubr.f32.mxu0 %v1276
    %1514 = vmatmul.mubr.f32.gmra.mxu0 %v1268
    %v1515 = vpop.f32.mrf.mxu0
    %v1516 = vadd.f32 %v1445, %v1515
    %v1517 = vpop.f32.mrf.mxu0
    %v1518 = vadd.f32 %v1447, %v1517
    %1519 = vdwg.mxu0
    %1520 = vmatprep.subr.mxu0 %v724
    %1521 = vmatpush1.msra.mxu0 %v723
    %1522 = vmatprep.subr.mxu0 %v718
    %1523 = vmatpush1.msra.mxu0 %v717
    %1524 = vmatprep.subr.mxu0 %v712
    %1525 = vmatpush1.msra.mxu0 %v711
    %1526 = vmatprep.subr.mxu0 %v706
    %1527 = vmatpush1.msra.mxu0 %v705
    %1528 = vmatprep.subr.mxu0 %v700
    %1529 = vmatpush1.msra.mxu0 %v699
    %1530 = vmatprep.subr.mxu0 %v694
    %1531 = vmatpush1.msra.mxu0 %v693
    %1532 = vmatprep.subr.mxu0 %v688
    %1533 = vmatpush1.msra.mxu0 %v687
    %1534 = vmatprep.subr.mxu0 %v682
    %1535 = vmatpush1.msra.mxu0 %v681
    %1536 = vmatprep.subr.mxu0 %v676
    %1537 = vmatpush1.msra.mxu0 %v675
    %1538 = vmatprep.subr.mxu0 %v670
    %1539 = vmatpush1.msra.mxu0 %v669
    %1540 = vmatprep.subr.mxu0 %v664
    %1541 = vmatpush1.msra.mxu0 %v663
    %1542 = vmatprep.subr.mxu0 %v658
    %1543 = vmatpush1.msra.mxu0 %v657
    %1544 = vmatprep.subr.mxu0 %v652
    %1545 = vmatpush1.msra.mxu0 %v651
    %1546 = vmatprep.subr.mxu0 %v646
    %1547 = vmatpush1.msra.mxu0 %v645
    %1548 = vmatprep.subr.mxu0 %v640
    %1549 = vmatpush1.msra.mxu0 %v639
    %1550 = vmatprep.subr.mxu0 %v634
    %1551 = vmatpush1.msra.mxu0 %v633
    %1552 = vmatprep.subr.mxu0 %v820
    %1553 = vmatpush2.msra.mxu0 %v819
    %1554 = vmatprep.subr.mxu0 %v814
    %1555 = vmatpush2.msra.mxu0 %v813
    %1556 = vmatprep.subr.mxu0 %v808
    %1557 = vmatpush2.msra.mxu0 %v807
    %1558 = vmatprep.subr.mxu0 %v802
    %1559 = vmatpush2.msra.mxu0 %v801
    %1560 = vmatprep.subr.mxu0 %v796
    %1561 = vmatpush2.msra.mxu0 %v795
    %1562 = vmatprep.subr.mxu0 %v790
    %1563 = vmatpush2.msra.mxu0 %v789
    %1564 = vmatprep.subr.mxu0 %v784
    %1565 = vmatpush2.msra.mxu0 %v783
    %1566 = vmatprep.subr.mxu0 %v778
    %1567 = vmatpush2.msra.mxu0 %v777
    %1568 = vmatprep.subr.mxu0 %v772
    %1569 = vmatpush2.msra.mxu0 %v771
    %1570 = vmatprep.subr.mxu0 %v766
    %1571 = vmatpush2.msra.mxu0 %v765
    %1572 = vmatprep.subr.mxu0 %v760
    %1573 = vmatpush2.msra.mxu0 %v759
    %1574 = vmatprep.subr.mxu0 %v754
    %1575 = vmatpush2.msra.mxu0 %v753
    %1576 = vmatprep.subr.mxu0 %v748
    %1577 = vmatpush2.msra.mxu0 %v747
    %1578 = vmatprep.subr.mxu0 %v742
    %1579 = vmatpush2.msra.mxu0 %v741
    %1580 = vmatprep.subr.mxu0 %v736
    %1581 = vmatpush2.msra.mxu0 %v735
    %1582 = vmatprep.subr.mxu0 %v730
    %1583 = vmatpush2.msra.mxu0 %v729
    %1584 = vmatprep.mubr.f32.mxu0 %v1277
    %1585 = vmatmul.mubr.f32.gmra.mxu0 %v1275
    %v1586 = vpop.f32.mrf.mxu0
    %v1587 = vadd.f32 %v1516, %v1586
    %v1588 = vpop.f32.mrf.mxu0
    %v1589 = vadd.f32 %v1518, %v1588
    %1590 = vdwg.mxu0
    %1591 = vmatprep.subr.mxu0 %v916
    %1592 = vmatpush1.msra.mxu0 %v915
    %1593 = vmatprep.subr.mxu0 %v910
    %1594 = vmatpush1.msra.mxu0 %v909
    %1595 = vmatprep.subr.mxu0 %v904
    %1596 = vmatpush1.msra.mxu0 %v903
    %1597 = vmatprep.subr.mxu0 %v898
    %1598 = vmatpush1.msra.mxu0 %v897
    %1599 = vmatprep.subr.mxu0 %v892
    %1600 = vmatpush1.msra.mxu0 %v891
    %1601 = vmatprep.subr.mxu0 %v886
    %1602 = vmatpush1.msra.mxu0 %v885
    %1603 = vmatprep.subr.mxu0 %v880
    %1604 = vmatpush1.msra.mxu0 %v879
    %1605 = vmatprep.subr.mxu0 %v874
    %1606 = vmatpush1.msra.mxu0 %v873
    %1607 = vmatprep.subr.mxu0 %v868
    %1608 = vmatpush1.msra.mxu0 %v867
    %1609 = vmatprep.subr.mxu0 %v862
    %1610 = vmatpush1.msra.mxu0 %v861
    %1611 = vmatprep.subr.mxu0 %v856
    %1612 = vmatpush1.msra.mxu0 %v855
    %1613 = vmatprep.subr.mxu0 %v850
    %1614 = vmatpush1.msra.mxu0 %v849
    %1615 = vmatprep.subr.mxu0 %v844
    %1616 = vmatpush1.msra.mxu0 %v843
    %1617 = vmatprep.subr.mxu0 %v838
    %1618 = vmatpush1.msra.mxu0 %v837
    %1619 = vmatprep.subr.mxu0 %v832
    %1620 = vmatpush1.msra.mxu0 %v831
    %1621 = vmatprep.subr.mxu0 %v826
    %1622 = vmatpush1.msra.mxu0 %v825
    %1623 = vmatprep.subr.mxu0 %v1012
    %1624 = vmatpush2.msra.mxu0 %v1011
    %1625 = vmatprep.subr.mxu0 %v1006
    %1626 = vmatpush2.msra.mxu0 %v1005
    %1627 = vmatprep.subr.mxu0 %v1000
    %1628 = vmatpush2.msra.mxu0 %v999
    %1629 = vmatprep.subr.mxu0 %v994
    %1630 = vmatpush2.msra.mxu0 %v993
    %1631 = vmatprep.subr.mxu0 %v988
    %1632 = vmatpush2.msra.mxu0 %v987
    %1633 = vmatprep.subr.mxu0 %v982
    %1634 = vmatpush2.msra.mxu0 %v981
    %1635 = vmatprep.subr.mxu0 %v976
    %1636 = vmatpush2.msra.mxu0 %v975
    %1637 = vmatprep.subr.mxu0 %v970
    %1638 = vmatpush2.msra.mxu0 %v969
    %1639 = vmatprep.subr.mxu0 %v964
    %1640 = vmatpush2.msra.mxu0 %v963
    %1641 = vmatprep.subr.mxu0 %v958
    %1642 = vmatpush2.msra.mxu0 %v957
    %1643 = vmatprep.subr.mxu0 %v952
    %1644 = vmatpush2.msra.mxu0 %v951
    %1645 = vmatprep.subr.mxu0 %v946
    %1646 = vmatpush2.msra.mxu0 %v945
    %1647 = vmatprep.subr.mxu0 %v940
    %1648 = vmatpush2.msra.mxu0 %v939
    %1649 = vmatprep.subr.mxu0 %v934
    %1650 = vmatpush2.msra.mxu0 %v933
    %1651 = vmatprep.subr.mxu0 %v928
    %1652 = vmatpush2.msra.mxu0 %v927
    %1653 = vmatprep.subr.mxu0 %v922
    %1654 = vmatpush2.msra.mxu0 %v921
    %1655 = vmatprep.mubr.f32.mxu0 %v1293
    %1656 = vmatmul.mubr.f32.gmra.mxu0 %v1285
    %v1657 = vpop.f32.mrf.mxu0
    %v1658 = vadd.f32 %v1587, %v1657
    %v1659 = vpop.f32.mrf.mxu0
    %v1660 = vadd.f32 %v1589, %v1659
    %1661 = vdwg.mxu0
    %1662 = vmatprep.subr.mxu0 %v1108
    %1663 = vmatpush1.msra.mxu0 %v1107
    %1664 = vmatprep.subr.mxu0 %v1102
    %1665 = vmatpush1.msra.mxu0 %v1101
    %1666 = vmatprep.subr.mxu0 %v1096
    %1667 = vmatpush1.msra.mxu0 %v1095
    %1668 = vmatprep.subr.mxu0 %v1090
    %1669 = vmatpush1.msra.mxu0 %v1089
    %1670 = vmatprep.subr.mxu0 %v1084
    %1671 = vmatpush1.msra.mxu0 %v1083
    %1672 = vmatprep.subr.mxu0 %v1078
    %1673 = vmatpush1.msra.mxu0 %v1077
    %1674 = vmatprep.subr.mxu0 %v1072
    %1675 = vmatpush1.msra.mxu0 %v1071
    %1676 = vmatprep.subr.mxu0 %v1066
    %1677 = vmatpush1.msra.mxu0 %v1065
    %1678 = vmatprep.subr.mxu0 %v1060
    %1679 = vmatpush1.msra.mxu0 %v1059
    %1680 = vmatprep.subr.mxu0 %v1054
    %1681 = vmatpush1.msra.mxu0 %v1053
    %1682 = vmatprep.subr.mxu0 %v1048
    %1683 = vmatpush1.msra.mxu0 %v1047
    %1684 = vmatprep.subr.mxu0 %v1042
    %1685 = vmatpush1.msra.mxu0 %v1041
    %1686 = vmatprep.subr.mxu0 %v1036
    %1687 = vmatpush1.msra.mxu0 %v1035
    %1688 = vmatprep.subr.mxu0 %v1030
    %1689 = vmatpush1.msra.mxu0 %v1029
    %1690 = vmatprep.subr.mxu0 %v1024
    %1691 = vmatpush1.msra.mxu0 %v1023
    %1692 = vmatprep.subr.mxu0 %v1018
    %1693 = vmatpush1.msra.mxu0 %v1017
    %1694 = vmatprep.subr.mxu0 %v1204
    %1695 = vmatpush2.msra.mxu0 %v1203
    %1696 = vmatprep.subr.mxu0 %v1198
    %1697 = vmatpush2.msra.mxu0 %v1197
    %1698 = vmatprep.subr.mxu0 %v1192
    %1699 = vmatpush2.msra.mxu0 %v1191
    %1700 = vmatprep.subr.mxu0 %v1186
    %1701 = vmatpush2.msra.mxu0 %v1185
    %1702 = vmatprep.subr.mxu0 %v1180
    %1703 = vmatpush2.msra.mxu0 %v1179
    %1704 = vmatprep.subr.mxu0 %v1174
    %1705 = vmatpush2.msra.mxu0 %v1173
    %1706 = vmatprep.subr.mxu0 %v1168
    %1707 = vmatpush2.msra.mxu0 %v1167
    %1708 = vmatprep.subr.mxu0 %v1162
    %1709 = vmatpush2.msra.mxu0 %v1161
    %1710 = vmatprep.subr.mxu0 %v1156
    %1711 = vmatpush2.msra.mxu0 %v1155
    %1712 = vmatprep.subr.mxu0 %v1150
    %1713 = vmatpush2.msra.mxu0 %v1149
    %1714 = vmatprep.subr.mxu0 %v1144
    %1715 = vmatpush2.msra.mxu0 %v1143
    %1716 = vmatprep.subr.mxu0 %v1138
    %1717 = vmatpush2.msra.mxu0 %v1137
    %1718 = vmatprep.subr.mxu0 %v1132
    %1719 = vmatpush2.msra.mxu0 %v1131
    %1720 = vmatprep.subr.mxu0 %v1126
    %1721 = vmatpush2.msra.mxu0 %v1125
    %1722 = vmatprep.subr.mxu0 %v1120
    %1723 = vmatpush2.msra.mxu0 %v1119
    %1724 = vmatprep.subr.mxu0 %v1114
    %1725 = vmatpush2.msra.mxu0 %v1113
    %1726 = vmatprep.mubr.f32.mxu0 %v1294
    %1727 = vmatmul.mubr.f32.gmra.mxu0 %v1292
    %v1728 = vpop.f32.mrf.mxu0
    %v1729 = vadd.f32 %v1658, %v1728
    %v1730 = vpop.f32.mrf.mxu0
    %v1731 = vadd.f32 %v1660, %v1730
    %1732 = vdwg.mxu0
    %1733 = vmatprep.subr.mxu0 %v150
    %1734 = vmatpush1.msra.mxu0 %v149
    %1735 = vmatprep.subr.mxu0 %v144
    %1736 = vmatpush1.msra.mxu0 %v143
    %1737 = vmatprep.subr.mxu0 %v138
    %1738 = vmatpush1.msra.mxu0 %v137
    %1739 = vmatprep.subr.mxu0 %v132
    %1740 = vmatpush1.msra.mxu0 %v131
    %1741 = vmatprep.subr.mxu0 %v126
    %1742 = vmatpush1.msra.mxu0 %v125
    %1743 = vmatprep.subr.mxu0 %v120
    %1744 = vmatpush1.msra.mxu0 %v119
    %1745 = vmatprep.subr.mxu0 %v114
    %1746 = vmatpush1.msra.mxu0 %v113
    %1747 = vmatprep.subr.mxu0 %v108
    %1748 = vmatpush1.msra.mxu0 %v107
    %1749 = vmatprep.subr.mxu0 %v102
    %1750 = vmatpush1.msra.mxu0 %v101
    %1751 = vmatprep.subr.mxu0 %v96
    %1752 = vmatpush1.msra.mxu0 %v95
    %1753 = vmatprep.subr.mxu0 %v90
    %1754 = vmatpush1.msra.mxu0 %v89
    %1755 = vmatprep.subr.mxu0 %v84
    %1756 = vmatpush1.msra.mxu0 %v83
    %1757 = vmatprep.subr.mxu0 %v78
    %1758 = vmatpush1.msra.mxu0 %v77
    %1759 = vmatprep.subr.mxu0 %v72
    %1760 = vmatpush1.msra.mxu0 %v71
    %1761 = vmatprep.subr.mxu0 %v66
    %1762 = vmatpush1.msra.mxu0 %v65
    %1763 = vmatprep.subr.mxu0 %v60
    %1764 = vmatpush1.msra.mxu0 %v59
    %1765 = vmatprep.subr.mxu0 %v246
    %1766 = vmatpush2.msra.mxu0 %v245
    %1767 = vmatprep.subr.mxu0 %v240
    %1768 = vmatpush2.msra.mxu0 %v239
    %1769 = vmatprep.subr.mxu0 %v234
    %1770 = vmatpush2.msra.mxu0 %v233
    %1771 = vmatprep.subr.mxu0 %v228
    %1772 = vmatpush2.msra.mxu0 %v227
    %1773 = vmatprep.subr.mxu0 %v222
    %1774 = vmatpush2.msra.mxu0 %v221
    %1775 = vmatprep.subr.mxu0 %v216
    %1776 = vmatpush2.msra.mxu0 %v215
    %1777 = vmatprep.subr.mxu0 %v210
    %1778 = vmatpush2.msra.mxu0 %v209
    %1779 = vmatprep.subr.mxu0 %v204
    %1780 = vmatpush2.msra.mxu0 %v203
    %1781 = vmatprep.subr.mxu0 %v198
    %1782 = vmatpush2.msra.mxu0 %v197
    %1783 = vmatprep.subr.mxu0 %v192
    %1784 = vmatpush2.msra.mxu0 %v191
    %1785 = vmatprep.subr.mxu0 %v186
    %1786 = vmatpush2.msra.mxu0 %v185
    %1787 = vmatprep.subr.mxu0 %v180
    %1788 = vmatpush2.msra.mxu0 %v179
    %1789 = vmatprep.subr.mxu0 %v174
    %1790 = vmatpush2.msra.mxu0 %v173
    %1791 = vmatprep.subr.mxu0 %v168
    %1792 = vmatpush2.msra.mxu0 %v167
    %1793 = vmatprep.subr.mxu0 %v162
    %1794 = vmatpush2.msra.mxu0 %v161
    %1795 = vmatprep.subr.mxu0 %v156
    %1796 = vmatpush2.msra.mxu0 %v155
    %1797 = vmatprep.mubr.f32.mxu0 %v1259
    %1798 = vmatmul.mubr.f32.gmra.mxu0 %v1251
    %v1799 = vpop.f32.mrf.mxu0
    %v1800 = vadd.f32 %v1222, %v1799
    %v1801 = vpop.f32.mrf.mxu0
    %v1802 = vadd.f32 %v1226, %v1801
    %1803 = vdwg.mxu0
    %1804 = vmatprep.subr.mxu0 %v342
    %1805 = vmatpush1.msra.mxu0 %v341
    %1806 = vmatprep.subr.mxu0 %v336
    %1807 = vmatpush1.msra.mxu0 %v335
    %1808 = vmatprep.subr.mxu0 %v330
    %1809 = vmatpush1.msra.mxu0 %v329
    %1810 = vmatprep.subr.mxu0 %v324
    %1811 = vmatpush1.msra.mxu0 %v323
    %1812 = vmatprep.subr.mxu0 %v318
    %1813 = vmatpush1.msra.mxu0 %v317
    %1814 = vmatprep.subr.mxu0 %v312
    %1815 = vmatpush1.msra.mxu0 %v311
    %1816 = vmatprep.subr.mxu0 %v306
    %1817 = vmatpush1.msra.mxu0 %v305
    %1818 = vmatprep.subr.mxu0 %v300
    %1819 = vmatpush1.msra.mxu0 %v299
    %1820 = vmatprep.subr.mxu0 %v294
    %1821 = vmatpush1.msra.mxu0 %v293
    %1822 = vmatprep.subr.mxu0 %v288
    %1823 = vmatpush1.msra.mxu0 %v287
    %1824 = vmatprep.subr.mxu0 %v282
    %1825 = vmatpush1.msra.mxu0 %v281
    %1826 = vmatprep.subr.mxu0 %v276
    %1827 = vmatpush1.msra.mxu0 %v275
    %1828 = vmatprep.subr.mxu0 %v270
    %1829 = vmatpush1.msra.mxu0 %v269
    %1830 = vmatprep.subr.mxu0 %v264
    %1831 = vmatpush1.msra.mxu0 %v263
    %1832 = vmatprep.subr.mxu0 %v258
    %1833 = vmatpush1.msra.mxu0 %v257
    %1834 = vmatprep.subr.mxu0 %v252
    %1835 = vmatpush1.msra.mxu0 %v251
    %1836 = vmatprep.subr.mxu0 %v438
    %1837 = vmatpush2.msra.mxu0 %v437
    %1838 = vmatprep.subr.mxu0 %v432
    %1839 = vmatpush2.msra.mxu0 %v431
    %1840 = vmatprep.subr.mxu0 %v426
    %1841 = vmatpush2.msra.mxu0 %v425
    %1842 = vmatprep.subr.mxu0 %v420
    %1843 = vmatpush2.msra.mxu0 %v419
    %1844 = vmatprep.subr.mxu0 %v414
    %1845 = vmatpush2.msra.mxu0 %v413
    %1846 = vmatprep.subr.mxu0 %v408
    %1847 = vmatpush2.msra.mxu0 %v407
    %1848 = vmatprep.subr.mxu0 %v402
    %1849 = vmatpush2.msra.mxu0 %v401
    %1850 = vmatprep.subr.mxu0 %v396
    %1851 = vmatpush2.msra.mxu0 %v395
    %1852 = vmatprep.subr.mxu0 %v390
    %1853 = vmatpush2.msra.mxu0 %v389
    %1854 = vmatprep.subr.mxu0 %v384
    %1855 = vmatpush2.msra.mxu0 %v383
    %1856 = vmatprep.subr.mxu0 %v378
    %1857 = vmatpush2.msra.mxu0 %v377
    %1858 = vmatprep.subr.mxu0 %v372
    %1859 = vmatpush2.msra.mxu0 %v371
    %1860 = vmatprep.subr.mxu0 %v366
    %1861 = vmatpush2.msra.mxu0 %v365
    %1862 = vmatprep.subr.mxu0 %v360
    %1863 = vmatpush2.msra.mxu0 %v359
    %1864 = vmatprep.subr.mxu0 %v354
    %1865 = vmatpush2.msra.mxu0 %v353
    %1866 = vmatprep.subr.mxu0 %v348
    %1867 = vmatpush2.msra.mxu0 %v347
    %1868 = vmatprep.mubr.f32.mxu0 %v1260
    %1869 = vmatmul.mubr.f32.gmra.mxu0 %v1258
    %v1870 = vpop.f32.mrf.mxu0
    %v1871 = vadd.f32 %v1800, %v1870
    %v1872 = vpop.f32.mrf.mxu0
    %v1873 = vadd.f32 %v1802, %v1872
    %1874 = vdwg.mxu0
    %1875 = vmatprep.subr.mxu0 %v534
    %1876 = vmatpush1.msra.mxu0 %v533
    %1877 = vmatprep.subr.mxu0 %v528
    %1878 = vmatpush1.msra.mxu0 %v527
    %1879 = vmatprep.subr.mxu0 %v522
    %1880 = vmatpush1.msra.mxu0 %v521
    %1881 = vmatprep.subr.mxu0 %v516
    %1882 = vmatpush1.msra.mxu0 %v515
    %1883 = vmatprep.subr.mxu0 %v510
    %1884 = vmatpush1.msra.mxu0 %v509
    %1885 = vmatprep.subr.mxu0 %v504
    %1886 = vmatpush1.msra.mxu0 %v503
    %1887 = vmatprep.subr.mxu0 %v498
    %1888 = vmatpush1.msra.mxu0 %v497
    %1889 = vmatprep.subr.mxu0 %v492
    %1890 = vmatpush1.msra.mxu0 %v491
    %1891 = vmatprep.subr.mxu0 %v486
    %1892 = vmatpush1.msra.mxu0 %v485
    %1893 = vmatprep.subr.mxu0 %v480
    %1894 = vmatpush1.msra.mxu0 %v479
    %1895 = vmatprep.subr.mxu0 %v474
    %1896 = vmatpush1.msra.mxu0 %v473
    %1897 = vmatprep.subr.mxu0 %v468
    %1898 = vmatpush1.msra.mxu0 %v467
    %1899 = vmatprep.subr.mxu0 %v462
    %1900 = vmatpush1.msra.mxu0 %v461
    %1901 = vmatprep.subr.mxu0 %v456
    %1902 = vmatpush1.msra.mxu0 %v455
    %1903 = vmatprep.subr.mxu0 %v450
    %1904 = vmatpush1.msra.mxu0 %v449
    %1905 = vmatprep.subr.mxu0 %v444
    %1906 = vmatpush1.msra.mxu0 %v443
    %1907 = vmatprep.subr.mxu0 %v630
    %1908 = vmatpush2.msra.mxu0 %v629
    %1909 = vmatprep.subr.mxu0 %v624
    %1910 = vmatpush2.msra.mxu0 %v623
    %1911 = vmatprep.subr.mxu0 %v618
    %1912 = vmatpush2.msra.mxu0 %v617
    %1913 = vmatprep.subr.mxu0 %v612
    %1914 = vmatpush2.msra.mxu0 %v611
    %1915 = vmatprep.subr.mxu0 %v606
    %1916 = vmatpush2.msra.mxu0 %v605
    %1917 = vmatprep.subr.mxu0 %v600
    %1918 = vmatpush2.msra.mxu0 %v599
    %1919 = vmatprep.subr.mxu0 %v594
    %1920 = vmatpush2.msra.mxu0 %v593
    %1921 = vmatprep.subr.mxu0 %v588
    %1922 = vmatpush2.msra.mxu0 %v587
    %1923 = vmatprep.subr.mxu0 %v582
    %1924 = vmatpush2.msra.mxu0 %v581
    %1925 = vmatprep.subr.mxu0 %v576
    %1926 = vmatpush2.msra.mxu0 %v575
    %1927 = vmatprep.subr.mxu0 %v570
    %1928 = vmatpush2.msra.mxu0 %v569
    %1929 = vmatprep.subr.mxu0 %v564
    %1930 = vmatpush2.msra.mxu0 %v563
    %1931 = vmatprep.subr.mxu0 %v558
    %1932 = vmatpush2.msra.mxu0 %v557
    %1933 = vmatprep.subr.mxu0 %v552
    %1934 = vmatpush2.msra.mxu0 %v551
    %1935 = vmatprep.subr.mxu0 %v546
    %1936 = vmatpush2.msra.mxu0 %v545
    %1937 = vmatprep.subr.mxu0 %v540
    %1938 = vmatpush2.msra.mxu0 %v539
    %1939 = vmatprep.mubr.f32.mxu0 %v1276
    %1940 = vmatmul.mubr.f32.gmra.mxu0 %v1268
    %v1941 = vpop.f32.mrf.mxu0
    %v1942 = vadd.f32 %v1871, %v1941
    %v1943 = vpop.f32.mrf.mxu0
    %v1944 = vadd.f32 %v1873, %v1943
    %1945 = vdwg.mxu0
    %1946 = vmatprep.subr.mxu0 %v726
    %1947 = vmatpush1.msra.mxu0 %v725
    %1948 = vmatprep.subr.mxu0 %v720
    %1949 = vmatpush1.msra.mxu0 %v719
    %1950 = vmatprep.subr.mxu0 %v714
    %1951 = vmatpush1.msra.mxu0 %v713
    %1952 = vmatprep.subr.mxu0 %v708
    %1953 = vmatpush1.msra.mxu0 %v707
    %1954 = vmatprep.subr.mxu0 %v702
    %1955 = vmatpush1.msra.mxu0 %v701
    %1956 = vmatprep.subr.mxu0 %v696
    %1957 = vmatpush1.msra.mxu0 %v695
    %1958 = vmatprep.subr.mxu0 %v690
    %1959 = vmatpush1.msra.mxu0 %v689
    %1960 = vmatprep.subr.mxu0 %v684
    %1961 = vmatpush1.msra.mxu0 %v683
    %1962 = vmatprep.subr.mxu0 %v678
    %1963 = vmatpush1.msra.mxu0 %v677
    %1964 = vmatprep.subr.mxu0 %v672
    %1965 = vmatpush1.msra.mxu0 %v671
    %1966 = vmatprep.subr.mxu0 %v666
    %1967 = vmatpush1.msra.mxu0 %v665
    %1968 = vmatprep.subr.mxu0 %v660
    %1969 = vmatpush1.msra.mxu0 %v659
    %1970 = vmatprep.subr.mxu0 %v654
    %1971 = vmatpush1.msra.mxu0 %v653
    %1972 = vmatprep.subr.mxu0 %v648
    %1973 = vmatpush1.msra.mxu0 %v647
    %1974 = vmatprep.subr.mxu0 %v642
    %1975 = vmatpush1.msra.mxu0 %v641
    %1976 = vmatprep.subr.mxu0 %v636
    %1977 = vmatpush1.msra.mxu0 %v635
    %1978 = vmatprep.subr.mxu0 %v822
    %1979 = vmatpush2.msra.mxu0 %v821
    %1980 = vmatprep.subr.mxu0 %v816
    %1981 = vmatpush2.msra.mxu0 %v815
    %1982 = vmatprep.subr.mxu0 %v810
    %1983 = vmatpush2.msra.mxu0 %v809
    %1984 = vmatprep.subr.mxu0 %v804
    %1985 = vmatpush2.msra.mxu0 %v803
    %1986 = vmatprep.subr.mxu0 %v798
    %1987 = vmatpush2.msra.mxu0 %v797
    %1988 = vmatprep.subr.mxu0 %v792
    %1989 = vmatpush2.msra.mxu0 %v791
    %1990 = vmatprep.subr.mxu0 %v786
    %1991 = vmatpush2.msra.mxu0 %v785
    %1992 = vmatprep.subr.mxu0 %v780
    %1993 = vmatpush2.msra.mxu0 %v779
    %1994 = vmatprep.subr.mxu0 %v774
    %1995 = vmatpush2.msra.mxu0 %v773
    %1996 = vmatprep.subr.mxu0 %v768
    %1997 = vmatpush2.msra.mxu0 %v767
    %1998 = vmatprep.subr.mxu0 %v762
    %1999 = vmatpush2.msra.mxu0 %v761
    %2000 = vmatprep.subr.mxu0 %v756
    %2001 = vmatpush2.msra.mxu0 %v755
    %2002 = vmatprep.subr.mxu0 %v750
    %2003 = vmatpush2.msra.mxu0 %v749
    %2004 = vmatprep.subr.mxu0 %v744
    %2005 = vmatpush2.msra.mxu0 %v743
    %2006 = vmatprep.subr.mxu0 %v738
    %2007 = vmatpush2.msra.mxu0 %v737
    %2008 = vmatprep.subr.mxu0 %v732
    %2009 = vmatpush2.msra.mxu0 %v731
    %2010 = vmatprep.mubr.f32.mxu0 %v1277
    %2011 = vmatmul.mubr.f32.gmra.mxu0 %v1275
    %v2012 = vpop.f32.mrf.mxu0
    %v2013 = vadd.f32 %v1942, %v2012
    %v2014 = vpop.f32.mrf.mxu0
    %v2015 = vadd.f32 %v1944, %v2014
    %2016 = vdwg.mxu0
    %2017 = vmatprep.subr.mxu0 %v918
    %2018 = vmatpush1.msra.mxu0 %v917
    %2019 = vmatprep.subr.mxu0 %v912
    %2020 = vmatpush1.msra.mxu0 %v911
    %2021 = vmatprep.subr.mxu0 %v906
    %2022 = vmatpush1.msra.mxu0 %v905
    %2023 = vmatprep.subr.mxu0 %v900
    %2024 = vmatpush1.msra.mxu0 %v899
    %2025 = vmatprep.subr.mxu0 %v894
    %2026 = vmatpush1.msra.mxu0 %v893
    %2027 = vmatprep.subr.mxu0 %v888
    %2028 = vmatpush1.msra.mxu0 %v887
    %2029 = vmatprep.subr.mxu0 %v882
    %2030 = vmatpush1.msra.mxu0 %v881
    %2031 = vmatprep.subr.mxu0 %v876
    %2032 = vmatpush1.msra.mxu0 %v875
    %2033 = vmatprep.subr.mxu0 %v870
    %2034 = vmatpush1.msra.mxu0 %v869
    %2035 = vmatprep.subr.mxu0 %v864
    %2036 = vmatpush1.msra.mxu0 %v863
    %2037 = vmatprep.subr.mxu0 %v858
    %2038 = vmatpush1.msra.mxu0 %v857
    %2039 = vmatprep.subr.mxu0 %v852
    %2040 = vmatpush1.msra.mxu0 %v851
    %2041 = vmatprep.subr.mxu0 %v846
    %2042 = vmatpush1.msra.mxu0 %v845
    %2043 = vmatprep.subr.mxu0 %v840
    %2044 = vmatpush1.msra.mxu0 %v839
    %2045 = vmatprep.subr.mxu0 %v834
    %2046 = vmatpush1.msra.mxu0 %v833
    %2047 = vmatprep.subr.mxu0 %v828
    %2048 = vmatpush1.msra.mxu0 %v827
    %2049 = vmatprep.subr.mxu0 %v1014
    %2050 = vmatpush2.msra.mxu0 %v1013
    %2051 = vmatprep.subr.mxu0 %v1008
    %2052 = vmatpush2.msra.mxu0 %v1007
    %2053 = vmatprep.subr.mxu0 %v1002
    %2054 = vmatpush2.msra.mxu0 %v1001
    %2055 = vmatprep.subr.mxu0 %v996
    %2056 = vmatpush2.msra.mxu0 %v995
    %2057 = vmatprep.subr.mxu0 %v990
    %2058 = vmatpush2.msra.mxu0 %v989
    %2059 = vmatprep.subr.mxu0 %v984
    %2060 = vmatpush2.msra.mxu0 %v983
    %2061 = vmatprep.subr.mxu0 %v978
    %2062 = vmatpush2.msra.mxu0 %v977
    %2063 = vmatprep.subr.mxu0 %v972
    %2064 = vmatpush2.msra.mxu0 %v971
    %2065 = vmatprep.subr.mxu0 %v966
    %2066 = vmatpush2.msra.mxu0 %v965
    %2067 = vmatprep.subr.mxu0 %v960
    %2068 = vmatpush2.msra.mxu0 %v959
    %2069 = vmatprep.subr.mxu0 %v954
    %2070 = vmatpush2.msra.mxu0 %v953
    %2071 = vmatprep.subr.mxu0 %v948
    %2072 = vmatpush2.msra.mxu0 %v947
    %2073 = vmatprep.subr.mxu0 %v942
    %2074 = vmatpush2.msra.mxu0 %v941
    %2075 = vmatprep.subr.mxu0 %v936
    %2076 = vmatpush2.msra.mxu0 %v935
    %2077 = vmatprep.subr.mxu0 %v930
    %2078 = vmatpush2.msra.mxu0 %v929
    %2079 = vmatprep.subr.mxu0 %v924
    %2080 = vmatpush2.msra.mxu0 %v923
    %2081 = vmatprep.mubr.f32.mxu0 %v1293
    %2082 = vmatmul.mubr.f32.gmra.mxu0 %v1285
    %v2083 = vpop.f32.mrf.mxu0
    %v2084 = vadd.f32 %v2013, %v2083
    %v2085 = vpop.f32.mrf.mxu0
    %v2086 = vadd.f32 %v2015, %v2085
    %2087 = vdwg.mxu0
    %2088 = vmatprep.subr.mxu0 %v1110
    %2089 = vmatpush1.msra.mxu0 %v1109
    %2090 = vmatprep.subr.mxu0 %v1104
    %2091 = vmatpush1.msra.mxu0 %v1103
    %2092 = vmatprep.subr.mxu0 %v1098
    %2093 = vmatpush1.msra.mxu0 %v1097
    %2094 = vmatprep.subr.mxu0 %v1092
    %2095 = vmatpush1.msra.mxu0 %v1091
    %2096 = vmatprep.subr.mxu0 %v1086
    %2097 = vmatpush1.msra.mxu0 %v1085
    %2098 = vmatprep.subr.mxu0 %v1080
    %2099 = vmatpush1.msra.mxu0 %v1079
    %2100 = vmatprep.subr.mxu0 %v1074
    %2101 = vmatpush1.msra.mxu0 %v1073
    %2102 = vmatprep.subr.mxu0 %v1068
    %2103 = vmatpush1.msra.mxu0 %v1067
    %2104 = vmatprep.subr.mxu0 %v1062
    %2105 = vmatpush1.msra.mxu0 %v1061
    %2106 = vmatprep.subr.mxu0 %v1056
    %2107 = vmatpush1.msra.mxu0 %v1055
    %2108 = vmatprep.subr.mxu0 %v1050
    %2109 = vmatpush1.msra.mxu0 %v1049
    %2110 = vmatprep.subr.mxu0 %v1044
    %2111 = vmatpush1.msra.mxu0 %v1043
    %2112 = vmatprep.subr.mxu0 %v1038
    %2113 = vmatpush1.msra.mxu0 %v1037
    %2114 = vmatprep.subr.mxu0 %v1032
    %2115 = vmatpush1.msra.mxu0 %v1031
    %2116 = vmatprep.subr.mxu0 %v1026
    %2117 = vmatpush1.msra.mxu0 %v1025
    %2118 = vmatprep.subr.mxu0 %v1020
    %2119 = vmatpush1.msra.mxu0 %v1019
    %2120 = vmatprep.subr.mxu0 %v1206
    %2121 = vmatpush2.msra.mxu0 %v1205
    %2122 = vmatprep.subr.mxu0 %v1200
    %2123 = vmatpush2.msra.mxu0 %v1199
    %2124 = vmatprep.subr.mxu0 %v1194
    %2125 = vmatpush2.msra.mxu0 %v1193
    %2126 = vmatprep.subr.mxu0 %v1188
    %2127 = vmatpush2.msra.mxu0 %v1187
    %2128 = vmatprep.subr.mxu0 %v1182
    %2129 = vmatpush2.msra.mxu0 %v1181
    %2130 = vmatprep.subr.mxu0 %v1176
    %2131 = vmatpush2.msra.mxu0 %v1175
    %2132 = vmatprep.subr.mxu0 %v1170
    %2133 = vmatpush2.msra.mxu0 %v1169
    %2134 = vmatprep.subr.mxu0 %v1164
    %2135 = vmatpush2.msra.mxu0 %v1163
    %2136 = vmatprep.subr.mxu0 %v1158
    %2137 = vmatpush2.msra.mxu0 %v1157
    %2138 = vmatprep.subr.mxu0 %v1152
    %2139 = vmatpush2.msra.mxu0 %v1151
    %2140 = vmatprep.subr.mxu0 %v1146
    %2141 = vmatpush2.msra.mxu0 %v1145
    %2142 = vmatprep.subr.mxu0 %v1140
    %2143 = vmatpush2.msra.mxu0 %v1139
    %2144 = vmatprep.subr.mxu0 %v1134
    %2145 = vmatpush2.msra.mxu0 %v1133
    %2146 = vmatprep.subr.mxu0 %v1128
    %2147 = vmatpush2.msra.mxu0 %v1127
    %2148 = vmatprep.subr.mxu0 %v1122
    %2149 = vmatpush2.msra.mxu0 %v1121
    %2150 = vmatprep.subr.mxu0 %v1116
    %2151 = vmatpush2.msra.mxu0 %v1115
    %2152 = vmatprep.mubr.f32.mxu0 %v1294
    %2153 = vmatmul.mubr.f32.gmra.mxu0 %v1292
    %v2154 = vpop.f32.mrf.mxu0
    %v2155 = vadd.f32 %v2084, %v2154
    %v2156 = vpop.f32.mrf.mxu0
    %v2157 = vadd.f32 %v2086, %v2156
    %2158 = vdwg.mxu0
    %2159 = vmatprep.subr.mxu0 %v152
    %2160 = vmatpush1.msra.mxu0 %v151
    %2161 = vmatprep.subr.mxu0 %v146
    %2162 = vmatpush1.msra.mxu0 %v145
    %2163 = vmatprep.subr.mxu0 %v140
    %2164 = vmatpush1.msra.mxu0 %v139
    %2165 = vmatprep.subr.mxu0 %v134
    %2166 = vmatpush1.msra.mxu0 %v133
    %2167 = vmatprep.subr.mxu0 %v128
    %2168 = vmatpush1.msra.mxu0 %v127
    %2169 = vmatprep.subr.mxu0 %v122
    %2170 = vmatpush1.msra.mxu0 %v121
    %2171 = vmatprep.subr.mxu0 %v116
    %2172 = vmatpush1.msra.mxu0 %v115
    %2173 = vmatprep.subr.mxu0 %v110
    %2174 = vmatpush1.msra.mxu0 %v109
    %2175 = vmatprep.subr.mxu0 %v104
    %2176 = vmatpush1.msra.mxu0 %v103
    %2177 = vmatprep.subr.mxu0 %v98
    %2178 = vmatpush1.msra.mxu0 %v97
    %2179 = vmatprep.subr.mxu0 %v92
    %2180 = vmatpush1.msra.mxu0 %v91
    %2181 = vmatprep.subr.mxu0 %v86
    %2182 = vmatpush1.msra.mxu0 %v85
    %2183 = vmatprep.subr.mxu0 %v80
    %2184 = vmatpush1.msra.mxu0 %v79
    %2185 = vmatprep.subr.mxu0 %v74
    %2186 = vmatpush1.msra.mxu0 %v73
    %2187 = vmatprep.subr.mxu0 %v68
    %2188 = vmatpush1.msra.mxu0 %v67
    %2189 = vmatprep.subr.mxu0 %v62
    %2190 = vmatpush1.msra.mxu0 %v61
    %2191 = vmatprep.subr.mxu0 %v248
    %2192 = vmatpush2.msra.mxu0 %v247
    %2193 = vmatprep.subr.mxu0 %v242
    %2194 = vmatpush2.msra.mxu0 %v241
    %2195 = vmatprep.subr.mxu0 %v236
    %2196 = vmatpush2.msra.mxu0 %v235
    %2197 = vmatprep.subr.mxu0 %v230
    %2198 = vmatpush2.msra.mxu0 %v229
    %2199 = vmatprep.subr.mxu0 %v224
    %2200 = vmatpush2.msra.mxu0 %v223
    %2201 = vmatprep.subr.mxu0 %v218
    %2202 = vmatpush2.msra.mxu0 %v217
    %2203 = vmatprep.subr.mxu0 %v212
    %2204 = vmatpush2.msra.mxu0 %v211
    %2205 = vmatprep.subr.mxu0 %v206
    %2206 = vmatpush2.msra.mxu0 %v205
    %2207 = vmatprep.subr.mxu0 %v200
    %2208 = vmatpush2.msra.mxu0 %v199
    %2209 = vmatprep.subr.mxu0 %v194
    %2210 = vmatpush2.msra.mxu0 %v193
    %2211 = vmatprep.subr.mxu0 %v188
    %2212 = vmatpush2.msra.mxu0 %v187
    %2213 = vmatprep.subr.mxu0 %v182
    %2214 = vmatpush2.msra.mxu0 %v181
    %2215 = vmatprep.subr.mxu0 %v176
    %2216 = vmatpush2.msra.mxu0 %v175
    %2217 = vmatprep.subr.mxu0 %v170
    %2218 = vmatpush2.msra.mxu0 %v169
    %2219 = vmatprep.subr.mxu0 %v164
    %2220 = vmatpush2.msra.mxu0 %v163
    %2221 = vmatprep.subr.mxu0 %v158
    %2222 = vmatpush2.msra.mxu0 %v157
    %2223 = vmatprep.mubr.f32.mxu0 %v1259
    %2224 = vmatmul.mubr.f32.gmra.mxu0 %v1251
    %v2225 = vpop.f32.mrf.mxu0
    %v2226 = vadd.f32 %v1230, %v2225
    %v2227 = vpop.f32.mrf.mxu0
    %v2228 = vadd.f32 %v1234, %v2227
    %2229 = vdwg.mxu0
    %2230 = vmatprep.subr.mxu0 %v344
    %2231 = vmatpush1.msra.mxu0 %v343
    %2232 = vmatprep.subr.mxu0 %v338
    %2233 = vmatpush1.msra.mxu0 %v337
    %2234 = vmatprep.subr.mxu0 %v332
    %2235 = vmatpush1.msra.mxu0 %v331
    %2236 = vmatprep.subr.mxu0 %v326
    %2237 = vmatpush1.msra.mxu0 %v325
    %2238 = vmatprep.subr.mxu0 %v320
    %2239 = vmatpush1.msra.mxu0 %v319
    %2240 = vmatprep.subr.mxu0 %v314
    %2241 = vmatpush1.msra.mxu0 %v313
    %2242 = vmatprep.subr.mxu0 %v308
    %2243 = vmatpush1.msra.mxu0 %v307
    %2244 = vmatprep.subr.mxu0 %v302
    %2245 = vmatpush1.msra.mxu0 %v301
    %2246 = vmatprep.subr.mxu0 %v296
    %2247 = vmatpush1.msra.mxu0 %v295
    %2248 = vmatprep.subr.mxu0 %v290
    %2249 = vmatpush1.msra.mxu0 %v289
    %2250 = vmatprep.subr.mxu0 %v284
    %2251 = vmatpush1.msra.mxu0 %v283
    %2252 = vmatprep.subr.mxu0 %v278
    %2253 = vmatpush1.msra.mxu0 %v277
    %2254 = vmatprep.subr.mxu0 %v272
    %2255 = vmatpush1.msra.mxu0 %v271
    %2256 = vmatprep.subr.mxu0 %v266
    %2257 = vmatpush1.msra.mxu0 %v265
    %2258 = vmatprep.subr.mxu0 %v260
    %2259 = vmatpush1.msra.mxu0 %v259
    %2260 = vmatprep.subr.mxu0 %v254
    %2261 = vmatpush1.msra.mxu0 %v253
    %2262 = vmatprep.subr.mxu0 %v440
    %2263 = vmatpush2.msra.mxu0 %v439
    %2264 = vmatprep.subr.mxu0 %v434
    %2265 = vmatpush2.msra.mxu0 %v433
    %2266 = vmatprep.subr.mxu0 %v428
    %2267 = vmatpush2.msra.mxu0 %v427
    %2268 = vmatprep.subr.mxu0 %v422
    %2269 = vmatpush2.msra.mxu0 %v421
    %2270 = vmatprep.subr.mxu0 %v416
    %2271 = vmatpush2.msra.mxu0 %v415
    %2272 = vmatprep.subr.mxu0 %v410
    %2273 = vmatpush2.msra.mxu0 %v409
    %2274 = vmatprep.subr.mxu0 %v404
    %2275 = vmatpush2.msra.mxu0 %v403
    %2276 = vmatprep.subr.mxu0 %v398
    %2277 = vmatpush2.msra.mxu0 %v397
    %2278 = vmatprep.subr.mxu0 %v392
    %2279 = vmatpush2.msra.mxu0 %v391
    %2280 = vmatprep.subr.mxu0 %v386
    %2281 = vmatpush2.msra.mxu0 %v385
    %2282 = vmatprep.subr.mxu0 %v380
    %2283 = vmatpush2.msra.mxu0 %v379
    %2284 = vmatprep.subr.mxu0 %v374
    %2285 = vmatpush2.msra.mxu0 %v373
    %2286 = vmatprep.subr.mxu0 %v368
    %2287 = vmatpush2.msra.mxu0 %v367
    %2288 = vmatprep.subr.mxu0 %v362
    %2289 = vmatpush2.msra.mxu0 %v361
    %2290 = vmatprep.subr.mxu0 %v356
    %2291 = vmatpush2.msra.mxu0 %v355
    %2292 = vmatprep.subr.mxu0 %v350
    %2293 = vmatpush2.msra.mxu0 %v349
    %2294 = vmatprep.mubr.f32.mxu0 %v1260
    %2295 = vmatmul.mubr.f32.gmra.mxu0 %v1258
    %v2296 = vpop.f32.mrf.mxu0
    %v2297 = vadd.f32 %v2226, %v2296
    %v2298 = vpop.f32.mrf.mxu0
    %v2299 = vadd.f32 %v2228, %v2298
    %2300 = vdwg.mxu0
    %2301 = vmatprep.subr.mxu0 %v536
    %2302 = vmatpush1.msra.mxu0 %v535
    %2303 = vmatprep.subr.mxu0 %v530
    %2304 = vmatpush1.msra.mxu0 %v529
    %2305 = vmatprep.subr.mxu0 %v524
    %2306 = vmatpush1.msra.mxu0 %v523
    %2307 = vmatprep.subr.mxu0 %v518
    %2308 = vmatpush1.msra.mxu0 %v517
    %2309 = vmatprep.subr.mxu0 %v512
    %2310 = vmatpush1.msra.mxu0 %v511
    %2311 = vmatprep.subr.mxu0 %v506
    %2312 = vmatpush1.msra.mxu0 %v505
    %2313 = vmatprep.subr.mxu0 %v500
    %2314 = vmatpush1.msra.mxu0 %v499
    %2315 = vmatprep.subr.mxu0 %v494
    %2316 = vmatpush1.msra.mxu0 %v493
    %2317 = vmatprep.subr.mxu0 %v488
    %2318 = vmatpush1.msra.mxu0 %v487
    %2319 = vmatprep.subr.mxu0 %v482
    %2320 = vmatpush1.msra.mxu0 %v481
    %2321 = vmatprep.subr.mxu0 %v476
    %2322 = vmatpush1.msra.mxu0 %v475
    %2323 = vmatprep.subr.mxu0 %v470
    %2324 = vmatpush1.msra.mxu0 %v469
    %2325 = vmatprep.subr.mxu0 %v464
    %2326 = vmatpush1.msra.mxu0 %v463
    %2327 = vmatprep.subr.mxu0 %v458
    %2328 = vmatpush1.msra.mxu0 %v457
    %2329 = vmatprep.subr.mxu0 %v452
    %2330 = vmatpush1.msra.mxu0 %v451
    %2331 = vmatprep.subr.mxu0 %v446
    %2332 = vmatpush1.msra.mxu0 %v445
    %2333 = vmatprep.subr.mxu0 %v632
    %2334 = vmatpush2.msra.mxu0 %v631
    %2335 = vmatprep.subr.mxu0 %v626
    %2336 = vmatpush2.msra.mxu0 %v625
    %2337 = vmatprep.subr.mxu0 %v620
    %2338 = vmatpush2.msra.mxu0 %v619
    %2339 = vmatprep.subr.mxu0 %v614
    %2340 = vmatpush2.msra.mxu0 %v613
    %2341 = vmatprep.subr.mxu0 %v608
    %2342 = vmatpush2.msra.mxu0 %v607
    %2343 = vmatprep.subr.mxu0 %v602
    %2344 = vmatpush2.msra.mxu0 %v601
    %2345 = vmatprep.subr.mxu0 %v596
    %2346 = vmatpush2.msra.mxu0 %v595
    %2347 = vmatprep.subr.mxu0 %v590
    %2348 = vmatpush2.msra.mxu0 %v589
    %2349 = vmatprep.subr.mxu0 %v584
    %2350 = vmatpush2.msra.mxu0 %v583
    %2351 = vmatprep.subr.mxu0 %v578
    %2352 = vmatpush2.msra.mxu0 %v577
    %2353 = vmatprep.subr.mxu0 %v572
    %2354 = vmatpush2.msra.mxu0 %v571
    %2355 = vmatprep.subr.mxu0 %v566
    %2356 = vmatpush2.msra.mxu0 %v565
    %2357 = vmatprep.subr.mxu0 %v560
    %2358 = vmatpush2.msra.mxu0 %v559
    %2359 = vmatprep.subr.mxu0 %v554
    %2360 = vmatpush2.msra.mxu0 %v553
    %2361 = vmatprep.subr.mxu0 %v548
    %2362 = vmatpush2.msra.mxu0 %v547
    %2363 = vmatprep.subr.mxu0 %v542
    %2364 = vmatpush2.msra.mxu0 %v541
    %2365 = vmatprep.mubr.f32.mxu0 %v1276
    %2366 = vmatmul.mubr.f32.gmra.mxu0 %v1268
    %v2367 = vpop.f32.mrf.mxu0
    %v2368 = vadd.f32 %v2297, %v2367
    %v2369 = vpop.f32.mrf.mxu0
    %v2370 = vadd.f32 %v2299, %v2369
    %2371 = vdwg.mxu0
    %2372 = vmatprep.subr.mxu0 %v728
    %2373 = vmatpush1.msra.mxu0 %v727
    %2374 = vmatprep.subr.mxu0 %v722
    %2375 = vmatpush1.msra.mxu0 %v721
    %2376 = vmatprep.subr.mxu0 %v716
    %2377 = vmatpush1.msra.mxu0 %v715
    %2378 = vmatprep.subr.mxu0 %v710
    %2379 = vmatpush1.msra.mxu0 %v709
    %2380 = vmatprep.subr.mxu0 %v704
    %2381 = vmatpush1.msra.mxu0 %v703
    %2382 = vmatprep.subr.mxu0 %v698
    %2383 = vmatpush1.msra.mxu0 %v697
    %2384 = vmatprep.subr.mxu0 %v692
    %2385 = vmatpush1.msra.mxu0 %v691
    %2386 = vmatprep.subr.mxu0 %v686
    %2387 = vmatpush1.msra.mxu0 %v685
    %2388 = vmatprep.subr.mxu0 %v680
    %2389 = vmatpush1.msra.mxu0 %v679
    %2390 = vmatprep.subr.mxu0 %v674
    %2391 = vmatpush1.msra.mxu0 %v673
    %2392 = vmatprep.subr.mxu0 %v668
    %2393 = vmatpush1.msra.mxu0 %v667
    %2394 = vmatprep.subr.mxu0 %v662
    %2395 = vmatpush1.msra.mxu0 %v661
    %2396 = vmatprep.subr.mxu0 %v656
    %2397 = vmatpush1.msra.mxu0 %v655
    %2398 = vmatprep.subr.mxu0 %v650
    %2399 = vmatpush1.msra.mxu0 %v649
    %2400 = vmatprep.subr.mxu0 %v644
    %2401 = vmatpush1.msra.mxu0 %v643
    %2402 = vmatprep.subr.mxu0 %v638
    %2403 = vmatpush1.msra.mxu0 %v637
    %2404 = vmatprep.subr.mxu0 %v824
    %2405 = vmatpush2.msra.mxu0 %v823
    %2406 = vmatprep.subr.mxu0 %v818
    %2407 = vmatpush2.msra.mxu0 %v817
    %2408 = vmatprep.subr.mxu0 %v812
    %2409 = vmatpush2.msra.mxu0 %v811
    %2410 = vmatprep.subr.mxu0 %v806
    %2411 = vmatpush2.msra.mxu0 %v805
    %2412 = vmatprep.subr.mxu0 %v800
    %2413 = vmatpush2.msra.mxu0 %v799
    %2414 = vmatprep.subr.mxu0 %v794
    %2415 = vmatpush2.msra.mxu0 %v793
    %2416 = vmatprep.subr.mxu0 %v788
    %2417 = vmatpush2.msra.mxu0 %v787
    %2418 = vmatprep.subr.mxu0 %v782
    %2419 = vmatpush2.msra.mxu0 %v781
    %2420 = vmatprep.subr.mxu0 %v776
    %2421 = vmatpush2.msra.mxu0 %v775
    %2422 = vmatprep.subr.mxu0 %v770
    %2423 = vmatpush2.msra.mxu0 %v769
    %2424 = vmatprep.subr.mxu0 %v764
    %2425 = vmatpush2.msra.mxu0 %v763
    %2426 = vmatprep.subr.mxu0 %v758
    %2427 = vmatpush2.msra.mxu0 %v757
    %2428 = vmatprep.subr.mxu0 %v752
    %2429 = vmatpush2.msra.mxu0 %v751
    %2430 = vmatprep.subr.mxu0 %v746
    %2431 = vmatpush2.msra.mxu0 %v745
    %2432 = vmatprep.subr.mxu0 %v740
    %2433 = vmatpush2.msra.mxu0 %v739
    %2434 = vmatprep.subr.mxu0 %v734
    %2435 = vmatpush2.msra.mxu0 %v733
    %2436 = vmatprep.mubr.f32.mxu0 %v1277
    %2437 = vmatmul.mubr.f32.gmra.mxu0 %v1275
    %v2438 = vpop.f32.mrf.mxu0
    %v2439 = vadd.f32 %v2368, %v2438
    %v2440 = vpop.f32.mrf.mxu0
    %v2441 = vadd.f32 %v2370, %v2440
    %2442 = vdwg.mxu0
    %2443 = vmatprep.subr.mxu0 %v920
    %2444 = vmatpush1.msra.mxu0 %v919
    %2445 = vmatprep.subr.mxu0 %v914
    %2446 = vmatpush1.msra.mxu0 %v913
    %2447 = vmatprep.subr.mxu0 %v908
    %2448 = vmatpush1.msra.mxu0 %v907
    %2449 = vmatprep.subr.mxu0 %v902
    %2450 = vmatpush1.msra.mxu0 %v901
    %2451 = vmatprep.subr.mxu0 %v896
    %2452 = vmatpush1.msra.mxu0 %v895
    %2453 = vmatprep.subr.mxu0 %v890
    %2454 = vmatpush1.msra.mxu0 %v889
    %2455 = vmatprep.subr.mxu0 %v884
    %2456 = vmatpush1.msra.mxu0 %v883
    %2457 = vmatprep.subr.mxu0 %v878
    %2458 = vmatpush1.msra.mxu0 %v877
    %2459 = vmatprep.subr.mxu0 %v872
    %2460 = vmatpush1.msra.mxu0 %v871
    %2461 = vmatprep.subr.mxu0 %v866
    %2462 = vmatpush1.msra.mxu0 %v865
    %2463 = vmatprep.subr.mxu0 %v860
    %2464 = vmatpush1.msra.mxu0 %v859
    %2465 = vmatprep.subr.mxu0 %v854
    %2466 = vmatpush1.msra.mxu0 %v853
    %2467 = vmatprep.subr.mxu0 %v848
    %2468 = vmatpush1.msra.mxu0 %v847
    %2469 = vmatprep.subr.mxu0 %v842
    %2470 = vmatpush1.msra.mxu0 %v841
    %2471 = vmatprep.subr.mxu0 %v836
    %2472 = vmatpush1.msra.mxu0 %v835
    %2473 = vmatprep.subr.mxu0 %v830
    %2474 = vmatpush1.msra.mxu0 %v829
    %2475 = vmatprep.subr.mxu0 %v1016
    %2476 = vmatpush2.msra.mxu0 %v1015
    %2477 = vmatprep.subr.mxu0 %v1010
    %2478 = vmatpush2.msra.mxu0 %v1009
    %2479 = vmatprep.subr.mxu0 %v1004
    %2480 = vmatpush2.msra.mxu0 %v1003
    %2481 = vmatprep.subr.mxu0 %v998
    %2482 = vmatpush2.msra.mxu0 %v997
    %2483 = vmatprep.subr.mxu0 %v992
    %2484 = vmatpush2.msra.mxu0 %v991
    %2485 = vmatprep.subr.mxu0 %v986
    %2486 = vmatpush2.msra.mxu0 %v985
    %2487 = vmatprep.subr.mxu0 %v980
    %2488 = vmatpush2.msra.mxu0 %v979
    %2489 = vmatprep.subr.mxu0 %v974
    %2490 = vmatpush2.msra.mxu0 %v973
    %2491 = vmatprep.subr.mxu0 %v968
    %2492 = vmatpush2.msra.mxu0 %v967
    %2493 = vmatprep.subr.mxu0 %v962
    %2494 = vmatpush2.msra.mxu0 %v961
    %2495 = vmatprep.subr.mxu0 %v956
    %2496 = vmatpush2.msra.mxu0 %v955
    %2497 = vmatprep.subr.mxu0 %v950
    %2498 = vmatpush2.msra.mxu0 %v949
    %2499 = vmatprep.subr.mxu0 %v944
    %2500 = vmatpush2.msra.mxu0 %v943
    %2501 = vmatprep.subr.mxu0 %v938
    %2502 = vmatpush2.msra.mxu0 %v937
    %2503 = vmatprep.subr.mxu0 %v932
    %2504 = vmatpush2.msra.mxu0 %v931
    %2505 = vmatprep.subr.mxu0 %v926
    %2506 = vmatpush2.msra.mxu0 %v925
    %2507 = vmatprep.mubr.f32.mxu0 %v1293
    %2508 = vmatmul.mubr.f32.gmra.mxu0 %v1285
    %v2509 = vpop.f32.mrf.mxu0
    %v2510 = vadd.f32 %v2439, %v2509
    %v2511 = vpop.f32.mrf.mxu0
    %v2512 = vadd.f32 %v2441, %v2511
    %2513 = vdwg.mxu0
    %2514 = vmatprep.subr.mxu0 %v1112
    %2515 = vmatpush1.msra.mxu0 %v1111
    %2516 = vmatprep.subr.mxu0 %v1106
    %2517 = vmatpush1.msra.mxu0 %v1105
    %2518 = vmatprep.subr.mxu0 %v1100
    %2519 = vmatpush1.msra.mxu0 %v1099
    %2520 = vmatprep.subr.mxu0 %v1094
    %2521 = vmatpush1.msra.mxu0 %v1093
    %2522 = vmatprep.subr.mxu0 %v1088
    %2523 = vmatpush1.msra.mxu0 %v1087
    %2524 = vmatprep.subr.mxu0 %v1082
    %2525 = vmatpush1.msra.mxu0 %v1081
    %2526 = vmatprep.subr.mxu0 %v1076
    %2527 = vmatpush1.msra.mxu0 %v1075
    %2528 = vmatprep.subr.mxu0 %v1070
    %2529 = vmatpush1.msra.mxu0 %v1069
    %2530 = vmatprep.subr.mxu0 %v1064
    %2531 = vmatpush1.msra.mxu0 %v1063
    %2532 = vmatprep.subr.mxu0 %v1058
    %2533 = vmatpush1.msra.mxu0 %v1057
    %2534 = vmatprep.subr.mxu0 %v1052
    %2535 = vmatpush1.msra.mxu0 %v1051
    %2536 = vmatprep.subr.mxu0 %v1046
    %2537 = vmatpush1.msra.mxu0 %v1045
    %2538 = vmatprep.subr.mxu0 %v1040
    %2539 = vmatpush1.msra.mxu0 %v1039
    %2540 = vmatprep.subr.mxu0 %v1034
    %2541 = vmatpush1.msra.mxu0 %v1033
    %2542 = vmatprep.subr.mxu0 %v1028
    %2543 = vmatpush1.msra.mxu0 %v1027
    %2544 = vmatprep.subr.mxu0 %v1022
    %2545 = vmatpush1.msra.mxu0 %v1021
    %2546 = vmatprep.subr.mxu0 %v1208
    %2547 = vmatpush2.msra.mxu0 %v1207
    %2548 = vmatprep.subr.mxu0 %v1202
    %2549 = vmatpush2.msra.mxu0 %v1201
    %2550 = vmatprep.subr.mxu0 %v1196
    %2551 = vmatpush2.msra.mxu0 %v1195
    %2552 = vmatprep.subr.mxu0 %v1190
    %2553 = vmatpush2.msra.mxu0 %v1189
    %2554 = vmatprep.subr.mxu0 %v1184
    %2555 = vmatpush2.msra.mxu0 %v1183
    %2556 = vmatprep.subr.mxu0 %v1178
    %2557 = vmatpush2.msra.mxu0 %v1177
    %2558 = vmatprep.subr.mxu0 %v1172
    %2559 = vmatpush2.msra.mxu0 %v1171
    %2560 = vmatprep.subr.mxu0 %v1166
    %2561 = vmatpush2.msra.mxu0 %v1165
    %2562 = vmatprep.subr.mxu0 %v1160
    %2563 = vmatpush2.msra.mxu0 %v1159
    %2564 = vmatprep.subr.mxu0 %v1154
    %2565 = vmatpush2.msra.mxu0 %v1153
    %2566 = vmatprep.subr.mxu0 %v1148
    %2567 = vmatpush2.msra.mxu0 %v1147
    %2568 = vmatprep.subr.mxu0 %v1142
    %2569 = vmatpush2.msra.mxu0 %v1141
    %2570 = vmatprep.subr.mxu0 %v1136
    %2571 = vmatpush2.msra.mxu0 %v1135
    %2572 = vmatprep.subr.mxu0 %v1130
    %2573 = vmatpush2.msra.mxu0 %v1129
    %2574 = vmatprep.subr.mxu0 %v1124
    %2575 = vmatpush2.msra.mxu0 %v1123
    %2576 = vmatprep.subr.mxu0 %v1118
    %2577 = vmatpush2.msra.mxu0 %v1117
    %2578 = vmatprep.mubr.f32.mxu0 %v1294
    %2579 = vmatmul.mubr.f32.gmra.mxu0 %v1292
    %v2580 = vpop.f32.mrf.mxu0
    %v2581 = vadd.f32 %v2510, %v2580
    %v2582 = vpop.f32.mrf.mxu0
    %v2583 = vadd.f32 %v2512, %v2582
    %2584 = vdwg.mxu0
    %v2585 = vmax.f32 %v1729, 0.0
    %v2586 = vmax.f32 %v1731, 0.0
    %v2587 = vmax.f32 %v2155, 0.0
    %v2588 = vmax.f32 %v2157, 0.0
    %v2589 = vmax.f32 %v2581, 0.0
    %v2590 = vmax.f32 %v2583, 0.0
    %v2591 = vld [vmem:[%s3] sm:$0xff]
    %v2592 = vld [vmem:[%s3 + $0x8] sm:$0xff]
    %v2593 = vld [vmem:[%s3 + $0x10] sm:$0xff]
    %v2594 = vld [vmem:[%s3 + $0x18] sm:$0xff]
    %v2595 = vld [vmem:[%s3 + $0x20] sm:$0xff]
    %v2596 = vld [vmem:[%s3 + $0x28] sm:$0xff]
    %v2597 = vld [vmem:[%s3 + $0x30] sm:$0xff]
    %v2598 = vld [vmem:[%s3 + $0x38] sm:$0xff]
    %v2599 = vld [vmem:[%s3 + $0x40] sm:$0xff]
    %v2600 = vld [vmem:[%s3 + $0x48] sm:$0xff]
    %v2601 = vld [vmem:[%s3 + $0x50] sm:$0xff]
    %v2602 = vld [vmem:[%s3 + $0x58] sm:$0xff]
    %v2603 = vld [vmem:[%s3 + $0x60] sm:$0xff]
    %v2604 = vld [vmem:[%s3 + $0x68] sm:$0xff]
    %v2605 = vld [vmem:[%s3 + $0x70] sm:$0xff]
    %v2606 = vld [vmem:[%s3 + $0x78] sm:$0xff]
    %v2607 = vld [vmem:[%s3 + $0x80] sm:$0xff]
    %v2608 = vld [vmem:[%s3 + $0x88] sm:$0xff]
    %v2609 = vld [vmem:[%s3 + $0x90] sm:$0xff]
    %v2610 = vld [vmem:[%s3 + $0x98] sm:$0xff]
    %v2611 = vld [vmem:[%s3 + $0xa0] sm:$0xff]
    %v2612 = vld [vmem:[%s3 + $0xa8] sm:$0xff]
    %v2613 = vld [vmem:[%s3 + $0xb0] sm:$0xff]
    %v2614 = vld [vmem:[%s3 + $0xb8] sm:$0xff]
    %v2615 = vld [vmem:[%s3 + $0xc0] sm:$0xff]
    %v2616 = vld [vmem:[%s3 + $0xc8] sm:$0xff]
    %v2617 = vld [vmem:[%s3 + $0xd0] sm:$0xff]
    %v2618 = vld [vmem:[%s3 + $0xd8] sm:$0xff]
    %v2619 = vld [vmem:[%s3 + $0xe0] sm:$0xff]
    %v2620 = vld [vmem:[%s3 + $0xe8] sm:$0xff]
    %v2621 = vld [vmem:[%s3 + $0xf0] sm:$0xff]
    %v2622 = vld [vmem:[%s3 + $0xf8] sm:$0xff]
    %v2623 = vld [vmem:[%s3 + $0x100] sm:$0xff]
    %v2624 = vld [vmem:[%s3 + $0x108] sm:$0xff]
    %v2625 = vld [vmem:[%s3 + $0x110] sm:$0xff]
    %v2626 = vld [vmem:[%s3 + $0x118] sm:$0xff]
    %v2627 = vld [vmem:[%s3 + $0x120] sm:$0xff]
    %v2628 = vld [vmem:[%s3 + $0x128] sm:$0xff]
    %v2629 = vld [vmem:[%s3 + $0x130] sm:$0xff]
    %v2630 = vld [vmem:[%s3 + $0x138] sm:$0xff]
    %v2631 = vld [vmem:[%s3 + $0x140] sm:$0xff]
    %v2632 = vld [vmem:[%s3 + $0x148] sm:$0xff]
    %v2633 = vld [vmem:[%s3 + $0x150] sm:$0xff]
    %v2634 = vld [vmem:[%s3 + $0x158] sm:$0xff]
    %v2635 = vld [vmem:[%s3 + $0x160] sm:$0xff]
    %v2636 = vld [vmem:[%s3 + $0x168] sm:$0xff]
    %v2637 = vld [vmem:[%s3 + $0x170] sm:$0xff]
    %v2638 = vld [vmem:[%s3 + $0x178] sm:$0xff]
    %v2639 = vld [vmem:[%s3 + $0x180] sm:$0xff]
    %v2640 = vld [vmem:[%s3 + $0x188] sm:$0xff]
    %v2641 = vld [vmem:[%s3 + $0x190] sm:$0xff]
    %v2642 = vld [vmem:[%s3 + $0x198] sm:$0xff]
    %v2643 = vld [vmem:[%s3 + $0x1a0] sm:$0xff]
    %v2644 = vld [vmem:[%s3 + $0x1a8] sm:$0xff]
    %v2645 = vld [vmem:[%s3 + $0x1b0] sm:$0xff]
    %v2646 = vld [vmem:[%s3 + $0x1b8] sm:$0xff]
    %v2647 = vld [vmem:[%s3 + $0x1c0] sm:$0xff]
    %v2648 = vld [vmem:[%s3 + $0x1c8] sm:$0xff]
    %v2649 = vld [vmem:[%s3 + $0x1d0] sm:$0xff]
    %v2650 = vld [vmem:[%s3 + $0x1d8] sm:$0xff]
    %v2651 = vld [vmem:[%s3 + $0x1e0] sm:$0xff]
    %v2652 = vld [vmem:[%s3 + $0x1e8] sm:$0xff]
    %v2653 = vld [vmem:[%s3 + $0x1f0] sm:$0xff]
    %v2654 = vld [vmem:[%s3 + $0x1f8] sm:$0xff]
    %v2655 = vld [vmem:[%s3 + $0x200] sm:$0xff]
    %v2656 = vld [vmem:[%s3 + $0x208] sm:$0xff]
    %v2657 = vld [vmem:[%s3 + $0x210] sm:$0xff]
    %v2658 = vld [vmem:[%s3 + $0x218] sm:$0xff]
    %v2659 = vld [vmem:[%s3 + $0x220] sm:$0xff]
    %v2660 = vld [vmem:[%s3 + $0x228] sm:$0xff]
    %v2661 = vld [vmem:[%s3 + $0x230] sm:$0xff]
    %v2662 = vld [vmem:[%s3 + $0x238] sm:$0xff]
    %v2663 = vld [vmem:[%s3 + $0x240] sm:$0xff]
    %v2664 = vld [vmem:[%s3 + $0x248] sm:$0xff]
    %v2665 = vld [vmem:[%s3 + $0x250] sm:$0xff]
    %v2666 = vld [vmem:[%s3 + $0x258] sm:$0xff]
    %v2667 = vld [vmem:[%s3 + $0x260] sm:$0xff]
    %v2668 = vld [vmem:[%s3 + $0x268] sm:$0xff]
    %v2669 = vld [vmem:[%s3 + $0x270] sm:$0xff]
    %v2670 = vld [vmem:[%s3 + $0x278] sm:$0xff]
    %v2671 = vld [vmem:[%s3 + $0x280] sm:$0xff]
    %v2672 = vld [vmem:[%s3 + $0x288] sm:$0xff]
    %v2673 = vld [vmem:[%s3 + $0x290] sm:$0xff]
    %v2674 = vld [vmem:[%s3 + $0x298] sm:$0xff]
    %v2675 = vld [vmem:[%s3 + $0x2a0] sm:$0xff]
    %v2676 = vld [vmem:[%s3 + $0x2a8] sm:$0xff]
    %v2677 = vld [vmem:[%s3 + $0x2b0] sm:$0xff]
    %v2678 = vld [vmem:[%s3 + $0x2b8] sm:$0xff]
    %v2679 = vld [vmem:[%s3 + $0x2c0] sm:$0xff]
    %v2680 = vld [vmem:[%s3 + $0x2c8] sm:$0xff]
    %v2681 = vld [vmem:[%s3 + $0x2d0] sm:$0xff]
    %v2682 = vld [vmem:[%s3 + $0x2d8] sm:$0xff]
    %v2683 = vld [vmem:[%s3 + $0x2e0] sm:$0xff]
    %v2684 = vld [vmem:[%s3 + $0x2e8] sm:$0xff]
    %v2685 = vld [vmem:[%s3 + $0x2f0] sm:$0xff]
    %v2686 = vld [vmem:[%s3 + $0x2f8] sm:$0xff]
    %v2687 = vld [vmem:[#allocation5] sm:$0x1]
    %v2689 = vlaneseq
    %v2690 = vshrl.u32 %v2689, 7
    %v2691 = vsub.s32 0, %v2690
    %v2692 = vrot.slane %v2687, %v2691
    %2694 = vmatprep.subr.mxu0 0.0
    %2695 = vmatpush1.msra.mxu0 %v2606
    %2696 = vmatprep.subr.mxu0 0.0
    %2697 = vmatpush1.msra.mxu0 %v2605
    %2698 = vmatprep.subr.mxu0 0.0
    %2699 = vmatpush1.msra.mxu0 %v2604
    %2700 = vmatprep.subr.mxu0 0.0
    %2701 = vmatpush1.msra.mxu0 %v2603
    %2702 = vmatprep.subr.mxu0 0.0
    %2703 = vmatpush1.msra.mxu0 %v2602
    %2704 = vmatprep.subr.mxu0 0.0
    %2705 = vmatpush1.msra.mxu0 %v2601
    %2706 = vmatprep.subr.mxu0 0.0
    %2707 = vmatpush1.msra.mxu0 %v2600
    %2708 = vmatprep.subr.mxu0 0.0
    %2709 = vmatpush1.msra.mxu0 %v2599
    %2710 = vmatprep.subr.mxu0 0.0
    %2711 = vmatpush1.msra.mxu0 %v2598
    %2712 = vmatprep.subr.mxu0 0.0
    %2713 = vmatpush1.msra.mxu0 %v2597
    %2714 = vmatprep.subr.mxu0 0.0
    %2715 = vmatpush1.msra.mxu0 %v2596
    %2716 = vmatprep.subr.mxu0 0.0
    %2717 = vmatpush1.msra.mxu0 %v2595
    %2718 = vmatprep.subr.mxu0 0.0
    %2719 = vmatpush1.msra.mxu0 %v2594
    %2720 = vmatprep.subr.mxu0 0.0
    %2721 = vmatpush1.msra.mxu0 %v2593
    %2722 = vmatprep.subr.mxu0 0.0
    %2723 = vmatpush1.msra.mxu0 %v2592
    %2724 = vmatprep.subr.mxu0 0.0
    %2725 = vmatpush1.msra.mxu0 %v2591
    %2726 = vmatprep.subr.mxu0 0.0
    %2727 = vmatpush2.msra.mxu0 %v2622
    %2728 = vmatprep.subr.mxu0 0.0
    %2729 = vmatpush2.msra.mxu0 %v2621
    %2730 = vmatprep.subr.mxu0 0.0
    %2731 = vmatpush2.msra.mxu0 %v2620
    %2732 = vmatprep.subr.mxu0 0.0
    %2733 = vmatpush2.msra.mxu0 %v2619
    %2734 = vmatprep.subr.mxu0 0.0
    %2735 = vmatpush2.msra.mxu0 %v2618
    %2736 = vmatprep.subr.mxu0 0.0
    %2737 = vmatpush2.msra.mxu0 %v2617
    %2738 = vmatprep.subr.mxu0 0.0
    %2739 = vmatpush2.msra.mxu0 %v2616
    %2740 = vmatprep.subr.mxu0 0.0
    %2741 = vmatpush2.msra.mxu0 %v2615
    %2742 = vmatprep.subr.mxu0 0.0
    %2743 = vmatpush2.msra.mxu0 %v2614
    %2744 = vmatprep.subr.mxu0 0.0
    %2745 = vmatpush2.msra.mxu0 %v2613
    %2746 = vmatprep.subr.mxu0 0.0
    %2747 = vmatpush2.msra.mxu0 %v2612
    %2748 = vmatprep.subr.mxu0 0.0
    %2749 = vmatpush2.msra.mxu0 %v2611
    %2750 = vmatprep.subr.mxu0 0.0
    %2751 = vmatpush2.msra.mxu0 %v2610
    %2752 = vmatprep.subr.mxu0 0.0
    %2753 = vmatpush2.msra.mxu0 %v2609
    %2754 = vmatprep.subr.mxu0 0.0
    %2755 = vmatpush2.msra.mxu0 %v2608
    %2756 = vmatprep.subr.mxu0 0.0
    %2757 = vmatpush2.msra.mxu0 %v2607
    %2758 = vmatprep.mubr.f32.mxu0 %v2586
    %2759 = vmatmul.mubr.f32.gmra.mxu0 %v2585
    %v2760 = vpop.f32.mrf.mxu0
    %v2761 = vadd.f32 %v2692, %v2760
    %v2762 = vpop.f32.mrf.mxu0
    %2763 = vdwg.mxu0
    %2764 = vmatprep.subr.mxu0 0.0
    %2765 = vmatpush1.msra.mxu0 %v2638
    %2766 = vmatprep.subr.mxu0 0.0
    %2767 = vmatpush1.msra.mxu0 %v2637
    %2768 = vmatprep.subr.mxu0 0.0
    %2769 = vmatpush1.msra.mxu0 %v2636
    %2770 = vmatprep.subr.mxu0 0.0
    %2771 = vmatpush1.msra.mxu0 %v2635
    %2772 = vmatprep.subr.mxu0 0.0
    %2773 = vmatpush1.msra.mxu0 %v2634
    %2774 = vmatprep.subr.mxu0 0.0
    %2775 = vmatpush1.msra.mxu0 %v2633
    %2776 = vmatprep.subr.mxu0 0.0
    %2777 = vmatpush1.msra.mxu0 %v2632
    %2778 = vmatprep.subr.mxu0 0.0
    %2779 = vmatpush1.msra.mxu0 %v2631
    %2780 = vmatprep.subr.mxu0 0.0
    %2781 = vmatpush1.msra.mxu0 %v2630
    %2782 = vmatprep.subr.mxu0 0.0
    %2783 = vmatpush1.msra.mxu0 %v2629
    %2784 = vmatprep.subr.mxu0 0.0
    %2785 = vmatpush1.msra.mxu0 %v2628
    %2786 = vmatprep.subr.mxu0 0.0
    %2787 = vmatpush1.msra.mxu0 %v2627
    %2788 = vmatprep.subr.mxu0 0.0
    %2789 = vmatpush1.msra.mxu0 %v2626
    %2790 = vmatprep.subr.mxu0 0.0
    %2791 = vmatpush1.msra.mxu0 %v2625
    %2792 = vmatprep.subr.mxu0 0.0
    %2793 = vmatpush1.msra.mxu0 %v2624
    %2794 = vmatprep.subr.mxu0 0.0
    %2795 = vmatpush1.msra.mxu0 %v2623
    %2796 = vmatprep.subr.mxu0 0.0
    %2797 = vmatpush2.msra.mxu0 %v2654
    %2798 = vmatprep.subr.mxu0 0.0
    %2799 = vmatpush2.msra.mxu0 %v2653
    %2800 = vmatprep.subr.mxu0 0.0
    %2801 = vmatpush2.msra.mxu0 %v2652
    %2802 = vmatprep.subr.mxu0 0.0
    %2803 = vmatpush2.msra.mxu0 %v2651
    %2804 = vmatprep.subr.mxu0 0.0
    %2805 = vmatpush2.msra.mxu0 %v2650
    %2806 = vmatprep.subr.mxu0 0.0
    %2807 = vmatpush2.msra.mxu0 %v2649
    %2808 = vmatprep.subr.mxu0 0.0
    %2809 = vmatpush2.msra.mxu0 %v2648
    %2810 = vmatprep.subr.mxu0 0.0
    %2811 = vmatpush2.msra.mxu0 %v2647
    %2812 = vmatprep.subr.mxu0 0.0
    %2813 = vmatpush2.msra.mxu0 %v2646
    %2814 = vmatprep.subr.mxu0 0.0
    %2815 = vmatpush2.msra.mxu0 %v2645
    %2816 = vmatprep.subr.mxu0 0.0
    %2817 = vmatpush2.msra.mxu0 %v2644
    %2818 = vmatprep.subr.mxu0 0.0
    %2819 = vmatpush2.msra.mxu0 %v2643
    %2820 = vmatprep.subr.mxu0 0.0
    %2821 = vmatpush2.msra.mxu0 %v2642
    %2822 = vmatprep.subr.mxu0 0.0
    %2823 = vmatpush2.msra.mxu0 %v2641
    %2824 = vmatprep.subr.mxu0 0.0
    %2825 = vmatpush2.msra.mxu0 %v2640
    %2826 = vmatprep.subr.mxu0 0.0
    %2827 = vmatpush2.msra.mxu0 %v2639
    %2828 = vmatprep.mubr.f32.mxu0 %v2588
    %2829 = vmatmul.mubr.f32.gmra.mxu0 %v2587
    %v2830 = vpop.f32.mrf.mxu0
    %v2831 = vadd.f32 %v2761, %v2830
    %v2832 = vpop.f32.mrf.mxu0
    %2833 = vdwg.mxu0
    %2834 = vmatprep.subr.mxu0 0.0
    %2835 = vmatpush1.msra.mxu0 %v2670
    %2836 = vmatprep.subr.mxu0 0.0
    %2837 = vmatpush1.msra.mxu0 %v2669
    %2838 = vmatprep.subr.mxu0 0.0
    %2839 = vmatpush1.msra.mxu0 %v2668
    %2840 = vmatprep.subr.mxu0 0.0
    %2841 = vmatpush1.msra.mxu0 %v2667
    %2842 = vmatprep.subr.mxu0 0.0
    %2843 = vmatpush1.msra.mxu0 %v2666
    %2844 = vmatprep.subr.mxu0 0.0
    %2845 = vmatpush1.msra.mxu0 %v2665
    %2846 = vmatprep.subr.mxu0 0.0
    %2847 = vmatpush1.msra.mxu0 %v2664
    %2848 = vmatprep.subr.mxu0 0.0
    %2849 = vmatpush1.msra.mxu0 %v2663
    %2850 = vmatprep.subr.mxu0 0.0
    %2851 = vmatpush1.msra.mxu0 %v2662
    %2852 = vmatprep.subr.mxu0 0.0
    %2853 = vmatpush1.msra.mxu0 %v2661
    %2854 = vmatprep.subr.mxu0 0.0
    %2855 = vmatpush1.msra.mxu0 %v2660
    %2856 = vmatprep.subr.mxu0 0.0
    %2857 = vmatpush1.msra.mxu0 %v2659
    %2858 = vmatprep.subr.mxu0 0.0
    %2859 = vmatpush1.msra.mxu0 %v2658
    %2860 = vmatprep.subr.mxu0 0.0
    %2861 = vmatpush1.msra.mxu0 %v2657
    %2862 = vmatprep.subr.mxu0 0.0
    %2863 = vmatpush1.msra.mxu0 %v2656
    %2864 = vmatprep.subr.mxu0 0.0
    %2865 = vmatpush1.msra.mxu0 %v2655
    %2866 = vmatprep.subr.mxu0 0.0
    %2867 = vmatpush2.msra.mxu0 %v2686
    %2868 = vmatprep.subr.mxu0 0.0
    %2869 = vmatpush2.msra.mxu0 %v2685
    %2870 = vmatprep.subr.mxu0 0.0
    %2871 = vmatpush2.msra.mxu0 %v2684
    %2872 = vmatprep.subr.mxu0 0.0
    %2873 = vmatpush2.msra.mxu0 %v2683
    %2874 = vmatprep.subr.mxu0 0.0
    %2875 = vmatpush2.msra.mxu0 %v2682
    %2876 = vmatprep.subr.mxu0 0.0
    %2877 = vmatpush2.msra.mxu0 %v2681
    %2878 = vmatprep.subr.mxu0 0.0
    %2879 = vmatpush2.msra.mxu0 %v2680
    %2880 = vmatprep.subr.mxu0 0.0
    %2881 = vmatpush2.msra.mxu0 %v2679
    %2882 = vmatprep.subr.mxu0 0.0
    %2883 = vmatpush2.msra.mxu0 %v2678
    %2884 = vmatprep.subr.mxu0 0.0
    %2885 = vmatpush2.msra.mxu0 %v2677
    %2886 = vmatprep.subr.mxu0 0.0
    %2887 = vmatpush2.msra.mxu0 %v2676
    %2888 = vmatprep.subr.mxu0 0.0
    %2889 = vmatpush2.msra.mxu0 %v2675
    %2890 = vmatprep.subr.mxu0 0.0
    %2891 = vmatpush2.msra.mxu0 %v2674
    %2892 = vmatprep.subr.mxu0 0.0
    %2893 = vmatpush2.msra.mxu0 %v2673
    %2894 = vmatprep.subr.mxu0 0.0
    %2895 = vmatpush2.msra.mxu0 %v2672
    %2896 = vmatprep.subr.mxu0 0.0
    %2897 = vmatpush2.msra.mxu0 %v2671
    %2898 = vmatprep.mubr.f32.mxu0 %v2590
    %2899 = vmatmul.mubr.f32.gmra.mxu0 %v2589
    %v2900 = vpop.f32.mrf.mxu0
    %v2901 = vadd.f32 %v2831, %v2900
    %v2902 = vpop.f32.mrf.mxu0
    %2903 = vdwg.mxu0
    %v2904 = vmax.f32 %v2901, 0.0
    %v2905 = vld [vmem:[%s5] sm:$0xff]
    %v2906 = vld [vmem:[%s5 + $0x8] sm:$0xff]
    %v2907 = vld [vmem:[%s5 + $0x10] sm:$0xff]
    %v2908 = vld [vmem:[%s5 + $0x18] sm:$0xff]
    %v2909 = vld [vmem:[%s5 + $0x20] sm:$0xff]
    %v2910 = vld [vmem:[%s5 + $0x28] sm:$0xff]
    %v2911 = vld [vmem:[%s5 + $0x30] sm:$0xff]
    %v2912 = vld [vmem:[%s5 + $0x38] sm:$0xff]
    %v2913 = vld [vmem:[#allocation2] sm:$0x1]
    %v2915 = vlaneseq
    %v2916 = vshrl.u32 %v2915, 7
    %v2917 = vsub.s32 0, %v2916
    %v2918 = vrot.slane %v2913, %v2917
    %vm2920 = vcmask 523264
    %v2922 = vsel %vm2920, %v2904, 0
    %2924 = vmatprep.subr.mxu0 0.0
    %2925 = vmatpush1.msra.mxu0 0.0
    %2926 = vmatprep.subr.mxu0 0.0
    %2927 = vmatpush1.msra.mxu0 0.0
    %2928 = vmatprep.subr.mxu0 0.0
    %2929 = vmatpush1.msra.mxu0 0.0
    %2930 = vmatprep.subr.mxu0 0.0
    %2931 = vmatpush1.msra.mxu0 0.0
    %2932 = vmatprep.subr.mxu0 0.0
    %2933 = vmatpush1.msra.mxu0 0.0
    %2934 = vmatprep.subr.mxu0 0.0
    %2935 = vmatpush1.msra.mxu0 0.0
    %2936 = vmatprep.subr.mxu0 0.0
    %2937 = vmatpush1.msra.mxu0 0.0
    %2938 = vmatprep.subr.mxu0 0.0
    %2939 = vmatpush1.msra.mxu0 0.0
    %2940 = vmatprep.subr.mxu0 0.0
    %2941 = vmatpush1.msra.mxu0 %v2912
    %2942 = vmatprep.subr.mxu0 0.0
    %2943 = vmatpush1.msra.mxu0 %v2911
    %2944 = vmatprep.subr.mxu0 0.0
    %2945 = vmatpush1.msra.mxu0 %v2910
    %2946 = vmatprep.subr.mxu0 0.0
    %2947 = vmatpush1.msra.mxu0 %v2909
    %2948 = vmatprep.subr.mxu0 0.0
    %2949 = vmatpush1.msra.mxu0 %v2908
    %2950 = vmatprep.subr.mxu0 0.0
    %2951 = vmatpush1.msra.mxu0 %v2907
    %2952 = vmatprep.subr.mxu0 0.0
    %2953 = vmatpush1.msra.mxu0 %v2906
    %2954 = vmatprep.subr.mxu0 0.0
    %2955 = vmatpush1.msra.mxu0 %v2905
    %2956 = vmatprep.subr.mxu0 0.0
    %2957 = vmatpush2.msra.mxu0 0.0
    %2958 = vmatprep.subr.mxu0 0.0
    %2959 = vmatpush2.msra.mxu0 0.0
    %2960 = vmatprep.subr.mxu0 0.0
    %2961 = vmatpush2.msra.mxu0 0.0
    %2962 = vmatprep.subr.mxu0 0.0
    %2963 = vmatpush2.msra.mxu0 0.0
    %2964 = vmatprep.subr.mxu0 0.0
    %2965 = vmatpush2.msra.mxu0 0.0
    %2966 = vmatprep.subr.mxu0 0.0
    %2967 = vmatpush2.msra.mxu0 0.0
    %2968 = vmatprep.subr.mxu0 0.0
    %2969 = vmatpush2.msra.mxu0 0.0
    %2970 = vmatprep.subr.mxu0 0.0
    %2971 = vmatpush2.msra.mxu0 0.0
    %2972 = vmatprep.subr.mxu0 0.0
    %2973 = vmatpush2.msra.mxu0 0.0
    %2974 = vmatprep.subr.mxu0 0.0
    %2975 = vmatpush2.msra.mxu0 0.0
    %2976 = vmatprep.subr.mxu0 0.0
    %2977 = vmatpush2.msra.mxu0 0.0
    %2978 = vmatprep.subr.mxu0 0.0
    %2979 = vmatpush2.msra.mxu0 0.0
    %2980 = vmatprep.subr.mxu0 0.0
    %2981 = vmatpush2.msra.mxu0 0.0
    %2982 = vmatprep.subr.mxu0 0.0
    %2983 = vmatpush2.msra.mxu0 0.0
    %2984 = vmatprep.subr.mxu0 0.0
    %2985 = vmatpush2.msra.mxu0 0.0
    %2986 = vmatprep.subr.mxu0 0.0
    %2987 = vmatpush2.msra.mxu0 0.0
    %2988 = vmatprep.mubr.f32.mxu0 0.0
    %2989 = vmatmul.mubr.f32.gmra.mxu0 %v2922
    %v2990 = vpop.f32.mrf.mxu0
    %v2991 = vadd.f32 %v2918, %v2990
    %v2992 = vpop.f32.mrf.mxu0
    %2993 = vdwg.mxu0
    %vm2994 = vcmask 1024
    %2995 = vst.msk [vmem:[%s7] sm:$0x3] %vm2994, %v2991
    // Predicated region
    $region38: #{attention_forward_pallas.3} parent=1 // pred_check
      _
    $region39: #{attention_forward_pallas.3} parent=1 // pred_check_branch
      %2997 = sbr.rel (0) target = $region41
    $region40: #{attention_forward_pallas.3} parent=1 // pred_region
      _
    $region41: #{attention_forward_pallas.3} parent=1 // pred_fallthru
      _
    // Predicated region
    $region42: #{attention_forward_pallas.3} parent=1 // pred_check
      _
    $region43: #{attention_forward_pallas.3} parent=1 // pred_check_branch
      %2999 = sbr.rel (0) target = $region45
    $region44: #{attention_forward_pallas.3} parent=1 // pred_region
      _
    $region45: #{attention_forward_pallas.3} parent=1 // pred_fallthru
      _
    %3000 = vsyncpa [#allocation4], 1
    %3001 = vsyncpa [#allocation6], 1

</llo_original>
